<compile_context>
chip_gen: v5e
topology: v5e:2x2
jax: 0.10.0
libtpu: 0.0.40
codegen_flags: <defaults>
</compile_context>

<pallas_src>
import functools

import jax
import jax.numpy as jnp
from jax.experimental import pallas as pl
from jax.experimental.pallas import tpu as pltpu


# --------------------------- int8 weight quantization -----------------------------

def quantize_cols(w):
    """Symmetric per-output-column int8 quantization. Returns (int8 q, (1, N) f32 scale)."""
    s = jnp.max(jnp.abs(w), axis=0, keepdims=True) / 127.0
    s = jnp.maximum(s, 1e-30)                                   # guard all-zero (padded) columns
    q = jnp.clip(jnp.round(w / s), -127.0, 127.0).astype(jnp.int8)
    return q, s.astype(jnp.float32)


def _dequant_bf16(q):
    # int8 -> f32 -> bf16 (exact for |q| <= 127); conservative two-hop cast for portable lowering.
    return q.astype(jnp.float32).astype(jnp.bfloat16)


# --------------------------------- fused kernel ------------------------------------

def fused_video_classifier_kernel(p_ref, wcb_ref, bc_ref, w1q_ref, s1_ref, b1_ref,
                                  w2q_ref, s2_ref, b2_ref, o_ref, h_sc,
                                  *, B, F, HpWp, Cout, D, HID, DC):
    """p_ref:   (B*F*HpWp, 4*Kp) bf16  im2col patches, one 2x2 pool window per 128-lane row
       wcb_ref: (4*Kp, 4*Cout)   bf16  block-diagonal conv weight
       bc_ref:  (1, 4*Cout)      f32   conv bias tiled x4
       w1q_ref: (D, HID) int8 / s1_ref, b1_ref: (1, HID) f32
       w2q_ref: (HID, TN) int8 / s2_ref, b2_ref: (1, TN) f32   (one class tile per grid step)
       o_ref:   (B, TN)   f32   logits tile
       h_sc:    (B, HID)  f32   persistent fc1 activations (per core)."""

    @pl.when(pl.program_id(1) == 0)
    def _():
        # 3x3 conv as a single lane-dense im2col matmul (+ bias + ReLU), f32 accumulate.
        acc = jnp.dot(p_ref[...], wcb_ref[...], preferred_element_type=jnp.float32)
        acc = jnp.maximum(acc + bc_ref[...], 0.0)               # (B*F*HpWp, 4*Cout)
        # 2x2 max-pool: lanes are [h0w0 | h0w1 | h1w0 | h1w1] x Cout -> two aligned-half maxima.
        m = jnp.maximum(acc[:, :2 * Cout], acc[:, 2 * Cout:])   # max over h-offset
        pooled = jnp.maximum(m[:, :Cout], m[:, Cout:])          # (B*F*HpWp, Cout)
        # Mean over frames BEFORE the sublane->lane flatten (mean and flatten commute).
        xm = jnp.mean(pooled.reshape(B, F, HpWp, Cout), axis=1)  # (B, HpWp, Cout)
        xm = xm.reshape(B, D).astype(jnp.bfloat16)               # (B, D), (hp, wp, c) order
        # fc1: int8 weight dequantized in D-chunks (bounds VMEM temporaries), scale after the dot.
        h = jnp.zeros((B, HID), jnp.float32)
        for c in range(D // DC):                                  # static, unrolled
            wb = _dequant_bf16(w1q_ref[c * DC:(c + 1) * DC, :])
            h = h + jnp.dot(xm[:, c * DC:(c + 1) * DC], wb,
                            preferred_element_type=jnp.float32)
        h = jnp.maximum(h * s1_ref[...] + b1_ref[...], 0.0)      # ReLU
        # TODO(synk): nn.Dropout(p=0.5) is treated as inference-mode identity.
        h_sc[...] = h

    # fc2 class tile (every grid step): dequant int8 tile, bf16 matmul, f32 acc, scale + bias.
    hb = h_sc[...].astype(jnp.bfloat16)
    o_ref[...] = (jnp.dot(hb, _dequant_bf16(w2q_ref[...]),
                          preferred_element_type=jnp.float32)
                  * s2_ref[...] + b2_ref[...])


# ----------------------------------- wrapper ----------------------------------------

def video_classifier_forward(x, params, *, class_tile=512, d_chunk=512):
    """x: (B, F, C, H, W) float32 — same axis convention as the PyTorch module."""
    B, F, C, H, W = x.shape
    w_conv = params["w_conv"]                      # (3, 3, C, Cout)  HWIO
    Cout = w_conv.shape[-1]
    Hp, Wp = H // 2, W // 2
    HpWp = Hp * Wp
    D = HpWp * Cout
    HID = params["w1"].shape[1]
    NC = params["w2"].shape[1]
    NCp = pl.cdiv(NC, 128) * 128                   # 2000 -> 2048 lane-dense classes
    N = B * F
    K = 9 * C
    Kp = pl.cdiv(K, 32) * 32                       # 27 -> 32 (zero-padded)

    TN = min(class_tile, NCp)
    assert NCp % (2 * TN) == 0, (NCp, TN)
    TJ = NCp // TN // 2                            # fc2 class tiles per core
    DC = min(d_chunk, D)
    assert D % DC == 0, (D, DC)

    # ---- XLA glue: NCHW->NHWC, pad=1, im2col grouped per 2x2 pool window, bf16 ------------
    xi = jnp.transpose(x.reshape(N, C, H, W), (0, 2, 3, 1))                # (N, H, W, C)
    xp = jnp.pad(xi, ((0, 0), (1, 1), (1, 1), (0, 0)))                     # (N, H+2, W+2, C)
    patches = jnp.concatenate(
        [xp[:, dh:dh + H, dw:dw + W, :] for dh in range(3) for dw in range(3)],
        axis=-1)                                                            # (N, H, W, 9C)
    patches = jnp.pad(patches, ((0, 0), (0, 0), (0, 0), (0, Kp - K)))       # (N, H, W, Kp)
    patches = patches.reshape(N, Hp, 2, Wp, 2, Kp).transpose(0, 1, 3, 2, 4, 5)
    patches = patches.reshape(N * HpWp, 4 * Kp).astype(jnp.bfloat16)        # (N*HpWp, 4*Kp)

    wc = jnp.pad(w_conv.reshape(K, Cout), ((0, Kp - K), (0, 0)))            # (Kp, Cout)
    wcb = jnp.kron(jnp.eye(4, dtype=wc.dtype), wc).astype(jnp.bfloat16)     # (4Kp, 4Cout) block-diag
    bc4 = jnp.tile(params["b_conv"], 4).reshape(1, 4 * Cout).astype(jnp.float32)

    # ---- fc weights: per-output-column int8 + f32 scales -----------------------------------
    w1q, s1 = quantize_cols(params["w1"])                                   # (D, HID), (1, HID)
    b1 = params["b1"].reshape(1, HID).astype(jnp.float32)
    w2q, s2 = quantize_cols(jnp.pad(params["w2"], ((0, 0), (0, NCp - NC)))) # (HID, NCp), (1, NCp)
    b2 = jnp.pad(params["b2"], (0, NCp - NC)).reshape(1, NCp).astype(jnp.float32)

    kernel = functools.partial(fused_video_classifier_kernel,
                               B=B, F=F, HpWp=HpWp, Cout=Cout, D=D, HID=HID, DC=DC)
    out = pl.pallas_call(
        kernel,
        out_shape=jax.ShapeDtypeStruct((B, NCp), jnp.float32),
        grid_spec=pltpu.PrefetchScalarGridSpec(
            num_scalar_prefetch=0,
            grid=(2, TJ),                          # (v7x cores, fc2 class tiles per core)
            in_specs=[
                pl.BlockSpec((N * HpWp, 4 * Kp), lambda c, j: (0, 0)),     # patches   (resident)
                pl.BlockSpec((4 * Kp, 4 * Cout), lambda c, j: (0, 0)),     # conv W    (resident)
                pl.BlockSpec((1, 4 * Cout), lambda c, j: (0, 0)),          # conv bias (resident)
                pl.BlockSpec((D, HID), lambda c, j: (0, 0)),               # w1 int8   (resident)
                pl.BlockSpec((1, HID), lambda c, j: (0, 0)),               # s1
                pl.BlockSpec((1, HID), lambda c, j: (0, 0)),               # b1
                pl.BlockSpec((HID, TN), lambda c, j: (0, c * TJ + j)),     # w2 int8 tile (streamed)
                pl.BlockSpec((1, TN), lambda c, j: (0, c * TJ + j)),       # s2 tile
                pl.BlockSpec((1, TN), lambda c, j: (0, c * TJ + j)),       # b2 tile
            ],
            out_specs=pl.BlockSpec((B, TN), lambda c, j: (0, c * TJ + j)),
            scratch_shapes=[pltpu.VMEM((B, HID), jnp.float32)],            # fc1 activations
        ),
        compiler_params=pltpu.CompilerParams(
            dimension_semantics=("parallel", "arbitrary"),
            vmem_limit_bytes=32 * 1024 * 1024,
        ),
    )(patches, wcb, bc4, w1q, s1, b1, w2q, s2, b2)
    return out[:, :NC]


# ------------------------------- pure-JAX references ---------------------------------

def reference_forward(x, params):
    """Full-f32 reference (HIGHEST-precision conv, f32 fc layers)."""
    B, F, C, H, W = x.shape
    xi = jnp.transpose(x.reshape(B * F, C, H, W), (0, 2, 3, 1))
    co = jax.lax.conv_general_dilated(
        xi, params["w_conv"], window_strides=(1, 1), padding="SAME",
        dimension_numbers=("NHWC", "HWIO", "NHWC"),
        precision=jax.lax.Precision.HIGHEST)
    co = jnp.maximum(co + params["b_conv"][None, None, None, :], 0.0)
    N, Ho, Wo, Cout = co.shape
    pooled = co.reshape(N, Ho // 2, 2, Wo // 2, 2, Cout).max(axis=(2, 4))
    xm = pooled.reshape(B, F, -1).mean(axis=1)
    h = jnp.maximum(xm @ params["w1"] + params["b1"], 0.0)
    return h @ params["w2"] + params["b2"]


def reference_forward_quant(x, params):
    """Reference matching the kernel's numerics: bf16 conv operands (f32 acc), int8
    per-column-quantized fc weights dequantized to bf16, bf16 activations, f32 acc."""
    B, F, C, H, W = x.shape
    xi = jnp.transpose(x.reshape(B * F, C, H, W), (0, 2, 3, 1)).astype(jnp.bfloat16)
    co = jax.lax.conv_general_dilated(
        xi, params["w_conv"].astype(jnp.bfloat16), window_strides=(1, 1), padding="SAME",
        dimension_numbers=("NHWC", "HWIO", "NHWC"),
        preferred_element_type=jnp.float32)
    co = jnp.maximum(co + params["b_conv"][None, None, None, :], 0.0)
    N, Ho, Wo, Cout = co.shape
    pooled = co.reshape(N, Ho // 2, 2, Wo // 2, 2, Cout).max(axis=(2, 4))
    xm = pooled.reshape(B, F, -1).mean(axis=1)

    w1q, s1 = quantize_cols(params["w1"])
    w2q, s2 = quantize_cols(params["w2"])
    h = jnp.dot(xm.astype(jnp.bfloat16), w1q.astype(jnp.bfloat16),
                preferred_element_type=jnp.float32) * s1 + params["b1"]
    h = jnp.maximum(h, 0.0)
    return jnp.dot(h.astype(jnp.bfloat16), w2q.astype(jnp.bfloat16),
                   preferred_element_type=jnp.float32) * s2 + params["b2"]


# --------------------------------------- main -----------------------------------------

if __name__ == "__main__":
    # Small shapes consistent with the module's forward:
    # batch=2, frames=4, C=3, H=W=16 -> fc input dim = 32 * 8 * 8 = 2048.
    B, F, C, H, W = 2, 4, 3, 16, 16
    Cout, HID, NC = 32, 512, 2000
    D = Cout * (H // 2) * (W // 2)

    key = jax.random.PRNGKey(0)
    ks = jax.random.split(key, 7)
    params = {
        "w_conv": jax.random.normal(ks[0], (3, 3, C, Cout), jnp.float32) * 0.05,  # HWIO
        "b_conv": jax.random.normal(ks[1], (Cout,), jnp.float32) * 0.01,
        "w1": jax.random.normal(ks[2], (D, HID), jnp.float32) * 0.02,
        "b1": jax.random.normal(ks[3], (HID,), jnp.float32) * 0.01,
        "w2": jax.random.normal(ks[4], (HID, NC), jnp.float32) * 0.02,
        "b2": jax.random.normal(ks[5], (NC,), jnp.float32) * 0.01,
    }
    x = jax.random.normal(ks[6], (B, F, C, H, W), jnp.float32)

    fwd = jax.jit(video_classifier_forward)
    out = jax.block_until_ready(fwd(x, params))

    ref_q = jax.block_until_ready(reference_forward_quant(x, params))
    ref_f = jax.block_until_ready(reference_forward(x, params))

    assert out.shape == (B, NC), out.shape
    # Tight check vs a reference with the same int8 weights / bf16 activations / f32 accumulate.
    assert jnp.allclose(out, ref_q, rtol=2e-3, atol=2e-3), \
        float(jnp.max(jnp.abs(out - ref_q)))
    # Looser check vs the full-f32 reference (int8 weight storage + bf16 activations cost a few 1e-3).
    assert jnp.allclose(out, ref_f, rtol=1e-2, atol=1e-2), \
        float(jnp.max(jnp.abs(out - ref_f)))
    print("KERNEL_OK")
</pallas_src>

<mosaic_0001>
module attributes {stable_mosaic.version = 11 : i64} {
  func.func @fused_video_classifier_kernel(%arg0: i32, %arg1: i32, %arg2: memref<512x128xbf16, #tpu.memory_space<vmem>>, %arg3: memref<128x128xbf16, #tpu.memory_space<vmem>>, %arg4: memref<1x128xf32, #tpu.memory_space<vmem>>, %arg5: memref<2048x512xi8, #tpu.memory_space<vmem>>, %arg6: memref<1x512xf32, #tpu.memory_space<vmem>>, %arg7: memref<1x512xf32, #tpu.memory_space<vmem>>, %arg8: memref<512x512xi8, #tpu.memory_space<vmem>>, %arg9: memref<1x512xf32, #tpu.memory_space<vmem>>, %arg10: memref<1x512xf32, #tpu.memory_space<vmem>>, %arg11: memref<2x512xf32, #tpu.memory_space<vmem>>, %arg12: memref<2x512xf32, #tpu.memory_space<vmem>>) attributes {dimension_semantics = [#tpu.dimension_semantics<parallel>, #tpu.dimension_semantics<arbitrary>], iteration_bounds = array<i64: 2, 2>, scalar_prefetch = 0 : i64, scratch_operands = 1 : i64, tpu.core_type = #tpu.core_type<tc>, window_params = [{pipeline_mode = #tpu.pipeline_mode<synchronous>, transform_indices = @transform_0, window_bounds = array<i64: 512, 128>}, {pipeline_mode = #tpu.pipeline_mode<synchronous>, transform_indices = @transform_1, window_bounds = array<i64: 128, 128>}, {pipeline_mode = #tpu.pipeline_mode<synchronous>, transform_indices = @transform_2, window_bounds = array<i64: 1, 128>}, {pipeline_mode = #tpu.pipeline_mode<synchronous>, transform_indices = @transform_3, window_bounds = array<i64: 2048, 512>}, {pipeline_mode = #tpu.pipeline_mode<synchronous>, transform_indices = @transform_4, window_bounds = array<i64: 1, 512>}, {pipeline_mode = #tpu.pipeline_mode<synchronous>, transform_indices = @transform_5, window_bounds = array<i64: 1, 512>}, {transform_indices = @transform_6, window_bounds = array<i64: 512, 512>}, {transform_indices = @transform_7, window_bounds = array<i64: 1, 512>}, {transform_indices = @transform_8, window_bounds = array<i64: 1, 512>}, {transform_indices = @transform_9, window_bounds = array<i64: 2, 512>}]} {
    %c0_i32 = arith.constant 0 : i32
    %0 = arith.cmpi eq, %arg1, %c0_i32 : i32
    %1 = arith.extui %0 : i1 to i32
    %c0_i32_0 = arith.constant 0 : i32
    %2 = arith.cmpi ne, %1, %c0_i32_0 : i32
    scf.if %2 {
      %c0_10 = arith.constant 0 : index
      %c0_11 = arith.constant 0 : index
      %16 = vector.load %arg2[%c0_10, %c0_11] : memref<512x128xbf16, #tpu.memory_space<vmem>>, vector<512x128xbf16>
      %c0_12 = arith.constant 0 : index
      %c0_13 = arith.constant 0 : index
      %17 = vector.load %arg3[%c0_12, %c0_13] : memref<128x128xbf16, #tpu.memory_space<vmem>>, vector<128x128xbf16>
      %cst_14 = arith.constant dense<0.000000e+00> : vector<512x128xf32>
      %18 = tpu.matmul %16, %17, %cst_14 {dimension_numbers = #tpu.dot_dimension_numbers<[1], [0], [0], [1], [0, 0, 1, 1], [], []>} : vector<512x128xbf16>, vector<128x128xbf16>, vector<512x128xf32> -> vector<512x128xf32>
      %c0_15 = arith.constant 0 : index
      %c0_16 = arith.constant 0 : index
      %19 = vector.load %arg4[%c0_15, %c0_16] : memref<1x128xf32, #tpu.memory_space<vmem>>, vector<1x128xf32>
      %20 = vector.broadcast %19 : vector<1x128xf32> to vector<512x128xf32>
      %21 = arith.addf %18, %20 : vector<512x128xf32>
      %cst_17 = arith.constant 0.000000e+00 : f32
      %22 = vector.broadcast %cst_17 : f32 to vector<512x128xf32>
      %23 = arith.maximumf %21, %22 : vector<512x128xf32>
      %24 = vector.extract_strided_slice %23 {offsets = [0, 0], sizes = [512, 64], strides = [1, 1]} : vector<512x128xf32> to vector<512x64xf32>
      %25 = vector.extract_strided_slice %23 {offsets = [0, 64], sizes = [512, 64], strides = [1, 1]} : vector<512x128xf32> to vector<512x64xf32>
      %26 = arith.maximumf %24, %25 : vector<512x64xf32>
      %27 = vector.extract_strided_slice %26 {offsets = [0, 0], sizes = [512, 32], strides = [1, 1]} : vector<512x64xf32> to vector<512x32xf32>
      %28 = vector.extract_strided_slice %26 {offsets = [0, 32], sizes = [512, 32], strides = [1, 1]} : vector<512x64xf32> to vector<512x32xf32>
      %29 = arith.maximumf %27, %28 : vector<512x32xf32>
      %30 = vector.shape_cast %29 : vector<512x32xf32> to vector<2x4x64x32xf32>
      %cst_18 = arith.constant dense<0.000000e+00> : vector<2x64x32xf32>
      %31 = vector.multi_reduction <add>, %30, %cst_18 [1] : vector<2x4x64x32xf32> to vector<2x64x32xf32>
      %cst_19 = arith.constant 4.000000e+00 : f32
      %32 = vector.broadcast %cst_19 : f32 to vector<2x64x32xf32>
      %33 = arith.divf %31, %32 : vector<2x64x32xf32>
      %34 = vector.shape_cast %33 : vector<2x64x32xf32> to vector<2x2048xf32>
      %35 = arith.truncf %34 : vector<2x2048xf32> to vector<2x2048xbf16>
      %cst_20 = arith.constant 0.000000e+00 : f32
      %36 = vector.broadcast %cst_20 : f32 to vector<2x512xf32>
      %c0_21 = arith.constant 0 : index
      %c0_22 = arith.constant 0 : index
      %37 = vector.load %arg5[%c0_21, %c0_22] : memref<2048x512xi8, #tpu.memory_space<vmem>>, vector<512x512xi8>
      %38 = arith.sitofp %37 : vector<512x512xi8> to vector<512x512xf32>
      %39 = arith.truncf %38 : vector<512x512xf32> to vector<512x512xbf16>
      %40 = vector.extract_strided_slice %35 {offsets = [0, 0], sizes = [2, 512], strides = [1, 1]} : vector<2x2048xbf16> to vector<2x512xbf16>
      %cst_23 = arith.constant dense<0.000000e+00> : vector<2x512xf32>
      %41 = tpu.matmul %40, %39, %cst_23 {dimension_numbers = #tpu.dot_dimension_numbers<[1], [0], [0], [1], [0, 0, 1, 1], [], []>} : vector<2x512xbf16>, vector<512x512xbf16>, vector<2x512xf32> -> vector<2x512xf32>
      %42 = arith.addf %36, %41 : vector<2x512xf32>
      %c512 = arith.constant 512 : index
      %c0_24 = arith.constant 0 : index
      %43 = vector.load %arg5[%c512, %c0_24] : memref<2048x512xi8, #tpu.memory_space<vmem>>, vector<512x512xi8>
      %44 = arith.sitofp %43 : vector<512x512xi8> to vector<512x512xf32>
      %45 = arith.truncf %44 : vector<512x512xf32> to vector<512x512xbf16>
      %46 = vector.extract_strided_slice %35 {offsets = [0, 512], sizes = [2, 512], strides = [1, 1]} : vector<2x2048xbf16> to vector<2x512xbf16>
      %cst_25 = arith.constant dense<0.000000e+00> : vector<2x512xf32>
      %47 = tpu.matmul %46, %45, %cst_25 {dimension_numbers = #tpu.dot_dimension_numbers<[1], [0], [0], [1], [0, 0, 1, 1], [], []>} : vector<2x512xbf16>, vector<512x512xbf16>, vector<2x512xf32> -> vector<2x512xf32>
      %48 = arith.addf %42, %47 : vector<2x512xf32>
      %c1024 = arith.constant 1024 : index
      %c0_26 = arith.constant 0 : index
      %49 = vector.load %arg5[%c1024, %c0_26] : memref<2048x512xi8, #tpu.memory_space<vmem>>, vector<512x512xi8>
      %50 = arith.sitofp %49 : vector<512x512xi8> to vector<512x512xf32>
      %51 = arith.truncf %50 : vector<512x512xf32> to vector<512x512xbf16>
      %52 = vector.extract_strided_slice %35 {offsets = [0, 1024], sizes = [2, 512], strides = [1, 1]} : vector<2x2048xbf16> to vector<2x512xbf16>
      %cst_27 = arith.constant dense<0.000000e+00> : vector<2x512xf32>
      %53 = tpu.matmul %52, %51, %cst_27 {dimension_numbers = #tpu.dot_dimension_numbers<[1], [0], [0], [1], [0, 0, 1, 1], [], []>} : vector<2x512xbf16>, vector<512x512xbf16>, vector<2x512xf32> -> vector<2x512xf32>
      %54 = arith.addf %48, %53 : vector<2x512xf32>
      %c1536 = arith.constant 1536 : index
      %c0_28 = arith.constant 0 : index
      %55 = vector.load %arg5[%c1536, %c0_28] : memref<2048x512xi8, #tpu.memory_space<vmem>>, vector<512x512xi8>
      %56 = arith.sitofp %55 : vector<512x512xi8> to vector<512x512xf32>
      %57 = arith.truncf %56 : vector<512x512xf32> to vector<512x512xbf16>
      %58 = vector.extract_strided_slice %35 {offsets = [0, 1536], sizes = [2, 512], strides = [1, 1]} : vector<2x2048xbf16> to vector<2x512xbf16>
      %cst_29 = arith.constant dense<0.000000e+00> : vector<2x512xf32>
      %59 = tpu.matmul %58, %57, %cst_29 {dimension_numbers = #tpu.dot_dimension_numbers<[1], [0], [0], [1], [0, 0, 1, 1], [], []>} : vector<2x512xbf16>, vector<512x512xbf16>, vector<2x512xf32> -> vector<2x512xf32>
      %60 = arith.addf %54, %59 : vector<2x512xf32>
      %c0_30 = arith.constant 0 : index
      %c0_31 = arith.constant 0 : index
      %61 = vector.load %arg6[%c0_30, %c0_31] : memref<1x512xf32, #tpu.memory_space<vmem>>, vector<1x512xf32>
      %62 = vector.broadcast %61 : vector<1x512xf32> to vector<2x512xf32>
      %63 = arith.mulf %60, %62 : vector<2x512xf32>
      %c0_32 = arith.constant 0 : index
      %c0_33 = arith.constant 0 : index
      %64 = vector.load %arg7[%c0_32, %c0_33] : memref<1x512xf32, #tpu.memory_space<vmem>>, vector<1x512xf32>
      %65 = vector.broadcast %64 : vector<1x512xf32> to vector<2x512xf32>
      %66 = arith.addf %63, %65 : vector<2x512xf32>
      %cst_34 = arith.constant 0.000000e+00 : f32
      %67 = vector.broadcast %cst_34 : f32 to vector<2x512xf32>
      %68 = arith.maximumf %66, %67 : vector<2x512xf32>
      %c0_35 = arith.constant 0 : index
      %c0_36 = arith.constant 0 : index
      %69 = vector.load %arg12[%c0_35, %c0_36] : memref<2x512xf32, #tpu.memory_space<vmem>>, vector<2x512xf32>
      tpu.vector_store %arg12[%c0_35, %c0_36], %68 {strides = array<i32>} : memref<2x512xf32, #tpu.memory_space<vmem>>, vector<2x512xf32>,
    } else {
    }
    %c0 = arith.constant 0 : index
    %c0_1 = arith.constant 0 : index
    %3 = vector.load %arg12[%c0, %c0_1] : memref<2x512xf32, #tpu.memory_space<vmem>>, vector<2x512xf32>
    %4 = arith.truncf %3 : vector<2x512xf32> to vector<2x512xbf16>
    %c0_2 = arith.constant 0 : index
    %c0_3 = arith.constant 0 : index
    %5 = vector.load %arg8[%c0_2, %c0_3] : memref<512x512xi8, #tpu.memory_space<vmem>>, vector<512x512xi8>
    %6 = arith.sitofp %5 : vector<512x512xi8> to vector<512x512xf32>
    %7 = arith.truncf %6 : vector<512x512xf32> to vector<512x512xbf16>
    %cst = arith.constant dense<0.000000e+00> : vector<2x512xf32>
    %8 = tpu.matmul %4, %7, %cst {dimension_numbers = #tpu.dot_dimension_numbers<[1], [0], [0], [1], [0, 0, 1, 1], [], []>} : vector<2x512xbf16>, vector<512x512xbf16>, vector<2x512xf32> -> vector<2x512xf32>
    %c0_4 = arith.constant 0 : index
    %c0_5 = arith.constant 0 : index
    %9 = vector.load %arg9[%c0_4, %c0_5] : memref<1x512xf32, #tpu.memory_space<vmem>>, vector<1x512xf32>
    %10 = vector.broadcast %9 : vector<1x512xf32> to vector<2x512xf32>
    %11 = arith.mulf %8, %10 : vector<2x512xf32>
    %c0_6 = arith.constant 0 : index
    %c0_7 = arith.constant 0 : index
    %12 = vector.load %arg10[%c0_6, %c0_7] : memref<1x512xf32, #tpu.memory_space<vmem>>, vector<1x512xf32>
    %13 = vector.broadcast %12 : vector<1x512xf32> to vector<2x512xf32>
    %14 = arith.addf %11, %13 : vector<2x512xf32>
    %c0_8 = arith.constant 0 : index
    %c0_9 = arith.constant 0 : index
    %15 = vector.load %arg11[%c0_8, %c0_9] : memref<2x512xf32, #tpu.memory_space<vmem>>, vector<2x512xf32>
    tpu.vector_store %arg11[%c0_8, %c0_9], %14 {strides = array<i32>} : memref<2x512xf32, #tpu.memory_space<vmem>>, vector<2x512xf32>,
    return
  }
  func.func @transform_0(%arg0: i32, %arg1: i32) -> (i32, i32) {
    %c0_i32 = arith.constant 0 : i32
    %c0_i32_0 = arith.constant 0 : i32
    %c0_i32_1 = arith.constant 0 : i32
    return %c0_i32, %c0_i32_0 : i32, i32
  }
  func.func @transform_1(%arg0: i32, %arg1: i32) -> (i32, i32) {
    %c0_i32 = arith.constant 0 : i32
    %c0_i32_0 = arith.constant 0 : i32
    %c0_i32_1 = arith.constant 0 : i32
    return %c0_i32, %c0_i32_0 : i32, i32
  }
  func.func @transform_2(%arg0: i32, %arg1: i32) -> (i32, i32) {
    %c0_i32 = arith.constant 0 : i32
    %c0_i32_0 = arith.constant 0 : i32
    %c0_i32_1 = arith.constant 0 : i32
    return %c0_i32, %c0_i32_0 : i32, i32
  }
  func.func @transform_3(%arg0: i32, %arg1: i32) -> (i32, i32) {
    %c0_i32 = arith.constant 0 : i32
    %c0_i32_0 = arith.constant 0 : i32
    %c0_i32_1 = arith.constant 0 : i32
    return %c0_i32, %c0_i32_0 : i32, i32
  }
  func.func @transform_4(%arg0: i32, %arg1: i32) -> (i32, i32) {
    %c0_i32 = arith.constant 0 : i32
    %c0_i32_0 = arith.constant 0 : i32
    %c0_i32_1 = arith.constant 0 : i32
    return %c0_i32, %c0_i32_0 : i32, i32
  }
  func.func @transform_5(%arg0: i32, %arg1: i32) -> (i32, i32) {
    %c0_i32 = arith.constant 0 : i32
    %c0_i32_0 = arith.constant 0 : i32
    %c0_i32_1 = arith.constant 0 : i32
    return %c0_i32, %c0_i32_0 : i32, i32
  }
  func.func @transform_6(%arg0: i32, %arg1: i32) -> (i32, i32) {
    %c2_i32 = arith.constant 2 : i32
    %0 = arith.muli %arg0, %c2_i32 : i32
    %1 = arith.addi %0, %arg1 : i32
    %c0_i32 = arith.constant 0 : i32
    %c0_i32_0 = arith.constant 0 : i32
    return %c0_i32, %1 : i32, i32
  }
  func.func @transform_7(%arg0: i32, %arg1: i32) -> (i32, i32) {
    %c2_i32 = arith.constant 2 : i32
    %0 = arith.muli %arg0, %c2_i32 : i32
    %1 = arith.addi %0, %arg1 : i32
    %c0_i32 = arith.constant 0 : i32
    %c0_i32_0 = arith.constant 0 : i32
    return %c0_i32, %1 : i32, i32
  }
  func.func @transform_8(%arg0: i32, %arg1: i32) -> (i32, i32) {
    %c2_i32 = arith.constant 2 : i32
    %0 = arith.muli %arg0, %c2_i32 : i32
    %1 = arith.addi %0, %arg1 : i32
    %c0_i32 = arith.constant 0 : i32
    %c0_i32_0 = arith.constant 0 : i32
    return %c0_i32, %1 : i32, i32
  }
  func.func @transform_9(%arg0: i32, %arg1: i32) -> (i32, i32) {
    %c2_i32 = arith.constant 2 : i32
    %0 = arith.muli %arg0, %c2_i32 : i32
    %1 = arith.addi %0, %arg1 : i32
    %c0_i32 = arith.constant 0 : i32
    %c0_i32_0 = arith.constant 0 : i32
    return %c0_i32, %1 : i32, i32
  }
}

</mosaic_0001>

<llo_original>
// kernel: tile.8
$region0: #{tile.8}
  #allocation0 [shape = 's32[1]{0}', space=sflag, size = 0x4, scoped, tag = 'scoped memory for tile.8']
  %s0 = inlined_call_operand.vmem [shape: f32[32], index: 0, kind: input, shape index: {}]
  %s1 = inlined_call_operand.vmem [shape: f32[4,32], index: 1, kind: output, shape index: {}]
  // Predicated region
  $region2: #{tile.8} parent=0 // pred_check
    _
  $region3: #{tile.8} parent=0 // pred_check_branch
    %3 = sbr.rel (0) target = $region5
  $region4: #{tile.8} parent=0 // pred_region
    _
  $region5: #{tile.8} parent=0 // pred_fallthru
    _
  %v4 = vld [vmem:[%s0] ss:$0 sm:$0xff]
  %5 = vst [vmem:[%s1] sm:$0xf] %v4

// kernel: tile.9
$region0: #{tile.9}
  %s0 = inlined_call_operand.vmem [shape: f32[4,32], index: 0, kind: input, shape index: {}]
  %s1 = inlined_call_operand.vmem [shape: f32[1,128], index: 1, kind: output, shape index: {}]
  $region1: #{tile.9} parent=0
    #allocation0 [shape = 'u8[4096]{0}', space=vmem, size = 0x1000, scoped, tag = 'scoped mem for output reshape']
    #allocation1 [shape = 'u8[4096]{0}', space=vmem, size = 0x1000, scoped, tag = 'scoped mem for input reshape']
    %s3 = ssub.s32 16, 1
    %v4 = vld [vmem:[%s0] sm:%s3]
    %5 = vst [vmem:[#allocation1] sm:%s3] %v4
    %v6 = vld [vmem:[#allocation1] sm:$0x1]
    %vm7 = vcmask 261120
    %8 = vst.msk [vmem:[#allocation0] sm:$0x1] %vm7, %v6
    %s9 = scalar_lea.vmem [#allocation1], 3
    %v10 = vld [vmem:[%s9] sm:$0x1]
    %11 = vrot.lane.b32.xlu0 %v10, 96
    %v12 = vpop.permute.xlu0 %11
    %vm13 = vcmask 1048320
    %14 = vst.msk [vmem:[#allocation0] sm:$0x1] %vm13, %v12
    %s15 = scalar_lea.vmem [#allocation1], 2
    %v16 = vld [vmem:[%s15] sm:$0x1]
    %17 = vrot.lane.b32.xlu0 %v16, 64
    %v18 = vpop.permute.xlu0 %17
    %vm19 = vcmask 785920
    %20 = vst.msk [vmem:[#allocation0] sm:$0x1] %vm19, %v18
    %s21 = scalar_lea.vmem [#allocation1], 1
    %v22 = vld [vmem:[%s21] sm:$0x1]
    %23 = vrot.lane.b32.xlu0 %v22, 32
    %v24 = vpop.permute.xlu0 %23
    %vm25 = vcmask 523520
    %26 = vst.msk [vmem:[#allocation0] sm:$0x1] %vm25, %v24
    %s28 = ssub.s32 2, 1
    %v29 = vld [vmem:[#allocation0] sm:%s28]
    %s31 = ssub.s32 2, 1
    %32 = vst [vmem:[%s1] sm:%s31] %v29

// kernel: video_classifier_forward.1
$region0: #{video_classifier_forward.1}
  #allocation0 [shape = 'u32[]', space=smem, size = 0x4, offset = 0x4, fixed_abs, tag = 'smem constant byte address 0x4 - core index']
  #allocation1 [shape = 'u32[72,128]{1,0:T(1,128)}', space=vmem, size = 0x9000, scoped, tag = 'internal scratch']
  #allocation2 [shape = 'f32[2,512]{1,0:T(2,128)}', space=vmem, size = 0x1000, scoped, tag = 'scratch operand']
  %s0 = inlined_call_operand.vmem [shape: bf16[512,128], index: 0, kind: input, shape index: {}]
  %s1 = inlined_call_operand.vmem [shape: bf16[128,128], index: 1, kind: input, shape index: {}]
  %s2 = inlined_call_operand.vmem [shape: f32[1,128], index: 2, kind: input, shape index: {}]
  %s3 = inlined_call_operand.vmem [shape: s8[2048,512], index: 3, kind: input, shape index: {}]
  %s4 = inlined_call_operand.vmem [shape: f32[1,512], index: 4, kind: input, shape index: {}]
  %s5 = inlined_call_operand.vmem [shape: f32[1,512], index: 5, kind: input, shape index: {}]
  %s6 = inlined_call_operand.vmem [shape: s8[512,2048], index: 6, kind: input, shape index: {}]
  %s7 = inlined_call_operand.vmem [shape: f32[1,2048], index: 7, kind: input, shape index: {}]
  %s8 = inlined_call_operand.vmem [shape: f32[1,2048], index: 8, kind: input, shape index: {}]
  %s9 = inlined_call_operand.hbm [shape: f32[2,2048], index: 9, kind: output, shape index: {}]
  %s10 = sld [smem:[#allocation0]]
  $region96: #{video_classifier_forward.1} parent=0
    _
  %s12 = ssub.s32 1, %s10
  %s13 = scalar_select 0, %s12, %s10
  $region1: #{video_classifier_forward.1} parent=0
    #allocation3 [shape = 'u8[524288]{0}', space=vmem, size = 0x80000, scoped, tag = 'input window, operand 6']
    #allocation4 [shape = 'u8[8192]{0}', space=vmem, size = 0x2000, scoped, tag = 'output window, operand 0']
    #allocation5 [shape = 's32[2]{0}', space=sflag, size = 0x8, scoped, tag = 'scoped memory for video_classifier_forward.1']
    %14 = vsyncpa [#allocation5], 0
    %s15 = scalar_lea.sflag [#allocation5], 1
    %16 = vsyncpa %s15, 0
    loop: start=0, step=1, limit=6
    $region2: #{video_classifier_forward.1} parent=1 // loop_pre_header
      _
    $region3: #{video_classifier_forward.1} parent=1 // loop_header
      %s18 = sphi 0, %s22
      %p19 = scmp.ge.s32.totalorder %s18, 6
      %s25 = sphi 0, %s37
      %s26 = sphi 0, %s33
      %s27 = sphi 0, %s25
      %s28 = sphi 0, %s26
      %s29 = sphi 0, %s27
      %s30 = sphi 0, %s28
      %s38 = sphi 0, %s38
      %s40 = sphi 0, %s38
      %s41 = sphi 0, %s40
      %s55 = sphi 0, %s41
      %s59 = sphi 0, %s59
      %s61 = sphi 0, %s59
      %s62 = sphi 0, %s61
      %s76 = sphi 0, %s62
      %s80 = sphi 0, %s80
      %s82 = sphi 0, %s80
      %s83 = sphi 0, %s82
      %s97 = sphi 0, %s83
      %s101 = sphi 0, %s101
      %s103 = sphi 0, %s101
      %s104 = sphi 0, %s103
      %s118 = sphi 0, %s104
      %s122 = sphi 0, %s122
      %s124 = sphi 0, %s122
      %s125 = sphi 0, %s124
      %s139 = sphi 0, %s125
      %s143 = sphi 0, %s143
      %s145 = sphi 0, %s143
      %s146 = sphi 0, %s145
      %s160 = sphi 0, %s146
      %s170 = sphi 0, %s172
      %s173 = sphi 0, %s170
      %s174 = sphi 0, %s173
      %s190 = sphi 0, %s174
      %s200 = sphi 0, %s202
      %s203 = sphi 0, %s200
      %s204 = sphi 0, %s203
      %s220 = sphi 0, %s204
      %s230 = sphi 0, %s232
      %s233 = sphi 0, %s230
      %s234 = sphi 0, %s233
      %s250 = sphi 0, %s234
      %s260 = sphi 0, %s262
      %s263 = sphi 0, %s260
      %s264 = sphi 0, %s263
      %s280 = sphi 0, %s264
    $region4: #{video_classifier_forward.1} parent=1 // loop_header_branch
      %21 = sbr.rel (%p19) target = $region8
    $region5: #{video_classifier_forward.1} parent=1 // loop_body
      %s23 = ssub.s32 %s18, 1
      %s24 = ssub.s32 %s18, 2
      %s31 = sadd.s32 1, %s26
      %p32 = scmp.ge.s32.totalorder %s31, 2
      %s33 = scalar_select %p32, 0, %s31
      %s34 = sadd.s32 1, %s25
      %s35 = scalar_select %p32, %s34, %s25
      %p36 = scmp.ge.s32.totalorder %s35, 2
      %s37 = scalar_select %p36, 0, %s35
      %s39 = sadd.s32 %s38, 1
      %p42 = scmp.eq.s32.totalorder %s18, 3
      %p43 = scmp.ne.s32.totalorder %s38, %s40
      %p44 = scmp.eq.s32.totalorder %s18, 0
      %p45 = por %p43, %p44
      %p46 = scmp.ne.s32.totalorder %s38, %s40
      %p47 = scmp.eq.s32.totalorder %s23, 3
      %p48 = por %p46, %p47
      %p49 = scmp.ne.s32.totalorder %s40, %s41
      %p50 = scmp.eq.s32.totalorder %s23, 0
      %p51 = por %p49, %p50
      %p52 = scmp.ne.s32.totalorder %s40, %s41
      %p53 = scmp.eq.s32.totalorder %s24, 3
      %p54 = por %p52, %p53
      %p56 = scmp.ne.s32.totalorder %s41, %s55
      %p57 = scmp.eq.s32.totalorder %s24, 0
      %p58 = por %p56, %p57
      %s60 = sadd.s32 %s59, 1
      %p63 = scmp.eq.s32.totalorder %s18, 3
      %p64 = scmp.ne.s32.totalorder %s59, %s61
      %p65 = scmp.eq.s32.totalorder %s18, 0
      %p66 = por %p64, %p65
      %p67 = scmp.ne.s32.totalorder %s59, %s61
      %p68 = scmp.eq.s32.totalorder %s23, 3
      %p69 = por %p67, %p68
      %p70 = scmp.ne.s32.totalorder %s61, %s62
      %p71 = scmp.eq.s32.totalorder %s23, 0
      %p72 = por %p70, %p71
      %p73 = scmp.ne.s32.totalorder %s61, %s62
      %p74 = scmp.eq.s32.totalorder %s24, 3
      %p75 = por %p73, %p74
      %p77 = scmp.ne.s32.totalorder %s62, %s76
      %p78 = scmp.eq.s32.totalorder %s24, 0
      %p79 = por %p77, %p78
      %s81 = sadd.s32 %s80, 1
      %p84 = scmp.eq.s32.totalorder %s18, 3
      %p85 = scmp.ne.s32.totalorder %s80, %s82
      %p86 = scmp.eq.s32.totalorder %s18, 0
      %p87 = por %p85, %p86
      %p88 = scmp.ne.s32.totalorder %s80, %s82
      %p89 = scmp.eq.s32.totalorder %s23, 3
      %p90 = por %p88, %p89
      %p91 = scmp.ne.s32.totalorder %s82, %s83
      %p92 = scmp.eq.s32.totalorder %s23, 0
      %p93 = por %p91, %p92
      %p94 = scmp.ne.s32.totalorder %s82, %s83
      %p95 = scmp.eq.s32.totalorder %s24, 3
      %p96 = por %p94, %p95
      %p98 = scmp.ne.s32.totalorder %s83, %s97
      %p99 = scmp.eq.s32.totalorder %s24, 0
      %p100 = por %p98, %p99
      %s102 = sadd.s32 %s101, 1
      %p105 = scmp.eq.s32.totalorder %s18, 3
      %p106 = scmp.ne.s32.totalorder %s101, %s103
      %p107 = scmp.eq.s32.totalorder %s18, 0
      %p108 = por %p106, %p107
      %p109 = scmp.ne.s32.totalorder %s101, %s103
      %p110 = scmp.eq.s32.totalorder %s23, 3
      %p111 = por %p109, %p110
      %p112 = scmp.ne.s32.totalorder %s103, %s104
      %p113 = scmp.eq.s32.totalorder %s23, 0
      %p114 = por %p112, %p113
      %p115 = scmp.ne.s32.totalorder %s103, %s104
      %p116 = scmp.eq.s32.totalorder %s24, 3
      %p117 = por %p115, %p116
      %p119 = scmp.ne.s32.totalorder %s104, %s118
      %p120 = scmp.eq.s32.totalorder %s24, 0
      %p121 = por %p119, %p120
      %s123 = sadd.s32 %s122, 1
      %p126 = scmp.eq.s32.totalorder %s18, 3
      %p127 = scmp.ne.s32.totalorder %s122, %s124
      %p128 = scmp.eq.s32.totalorder %s18, 0
      %p129 = por %p127, %p128
      %p130 = scmp.ne.s32.totalorder %s122, %s124
      %p131 = scmp.eq.s32.totalorder %s23, 3
      %p132 = por %p130, %p131
      %p133 = scmp.ne.s32.totalorder %s124, %s125
      %p134 = scmp.eq.s32.totalorder %s23, 0
      %p135 = por %p133, %p134
      %p136 = scmp.ne.s32.totalorder %s124, %s125
      %p137 = scmp.eq.s32.totalorder %s24, 3
      %p138 = por %p136, %p137
      %p140 = scmp.ne.s32.totalorder %s125, %s139
      %p141 = scmp.eq.s32.totalorder %s24, 0
      %p142 = por %p140, %p141
      %s144 = sadd.s32 %s143, 1
      %p147 = scmp.eq.s32.totalorder %s18, 3
      %p148 = scmp.ne.s32.totalorder %s143, %s145
      %p149 = scmp.eq.s32.totalorder %s18, 0
      %p150 = por %p148, %p149
      %p151 = scmp.ne.s32.totalorder %s143, %s145
      %p152 = scmp.eq.s32.totalorder %s23, 3
      %p153 = por %p151, %p152
      %p154 = scmp.ne.s32.totalorder %s145, %s146
      %p155 = scmp.eq.s32.totalorder %s23, 0
      %p156 = por %p154, %p155
      %p157 = scmp.ne.s32.totalorder %s145, %s146
      %p158 = scmp.eq.s32.totalorder %s24, 3
      %p159 = por %p157, %p158
      %p161 = scmp.ne.s32.totalorder %s146, %s160
      %p162 = scmp.eq.s32.totalorder %s24, 0
      %p163 = por %p161, %p162
      %s164 = smul.u32 %s25, 2
      %s165 = sadd.s32 %s164, %s26
      %s166 = smul.u32 %s37, 2
      %s167 = sadd.s32 %s166, %s33
      %s168 = ssub.s32 %s165, %s167
      %p169 = scmp.eq.s32.totalorder %s168, 0
      %s171 = sadd.s32 %s170, 1
      %s172 = scalar_select %p169, %s170, %s171
      %p175 = pneg %p169
      %p176 = scmp.eq.s32.totalorder %s18, 3
      %p177 = por %p175, %p176
      %p178 = scmp.ne.s32.totalorder %s170, %s173
      %p179 = scmp.eq.s32.totalorder %s18, 0
      %p180 = por %p178, %p179
      %p181 = scmp.ne.s32.totalorder %s170, %s173
      %p182 = scmp.eq.s32.totalorder %s23, 3
      %p183 = por %p181, %p182
      %p184 = scmp.ne.s32.totalorder %s173, %s174
      %p185 = scmp.eq.s32.totalorder %s23, 0
      %p186 = por %p184, %p185
      %p187 = scmp.ne.s32.totalorder %s173, %s174
      %p188 = scmp.eq.s32.totalorder %s24, 3
      %p189 = por %p187, %p188
      %p191 = scmp.ne.s32.totalorder %s174, %s190
      %p192 = scmp.eq.s32.totalorder %s24, 0
      %p193 = por %p191, %p192
      %s194 = smul.u32 %s25, 2
      %s195 = sadd.s32 %s194, %s26
      %s196 = smul.u32 %s37, 2
      %s197 = sadd.s32 %s196, %s33
      %s198 = ssub.s32 %s195, %s197
      %p199 = scmp.eq.s32.totalorder %s198, 0
      %s201 = sadd.s32 %s200, 1
      %s202 = scalar_select %p199, %s200, %s201
      %p205 = pneg %p199
      %p206 = scmp.eq.s32.totalorder %s18, 3
      %p207 = por %p205, %p206
      %p208 = scmp.ne.s32.totalorder %s200, %s203
      %p209 = scmp.eq.s32.totalorder %s18, 0
      %p210 = por %p208, %p209
      %p211 = scmp.ne.s32.totalorder %s200, %s203
      %p212 = scmp.eq.s32.totalorder %s23, 3
      %p213 = por %p211, %p212
      %p214 = scmp.ne.s32.totalorder %s203, %s204
      %p215 = scmp.eq.s32.totalorder %s23, 0
      %p216 = por %p214, %p215
      %p217 = scmp.ne.s32.totalorder %s203, %s204
      %p218 = scmp.eq.s32.totalorder %s24, 3
      %p219 = por %p217, %p218
      %p221 = scmp.ne.s32.totalorder %s204, %s220
      %p222 = scmp.eq.s32.totalorder %s24, 0
      %p223 = por %p221, %p222
      %s224 = smul.u32 %s25, 2
      %s225 = sadd.s32 %s224, %s26
      %s226 = smul.u32 %s37, 2
      %s227 = sadd.s32 %s226, %s33
      %s228 = ssub.s32 %s225, %s227
      %p229 = scmp.eq.s32.totalorder %s228, 0
      %s231 = sadd.s32 %s230, 1
      %s232 = scalar_select %p229, %s230, %s231
      %p235 = pneg %p229
      %p236 = scmp.eq.s32.totalorder %s18, 3
      %p237 = por %p235, %p236
      %p238 = scmp.ne.s32.totalorder %s230, %s233
      %p239 = scmp.eq.s32.totalorder %s18, 0
      %p240 = por %p238, %p239
      %p241 = scmp.ne.s32.totalorder %s230, %s233
      %p242 = scmp.eq.s32.totalorder %s23, 3
      %p243 = por %p241, %p242
      %p244 = scmp.ne.s32.totalorder %s233, %s234
      %p245 = scmp.eq.s32.totalorder %s23, 0
      %p246 = por %p244, %p245
      %p247 = scmp.ne.s32.totalorder %s233, %s234
      %p248 = scmp.eq.s32.totalorder %s24, 3
      %p249 = por %p247, %p248
      %p251 = scmp.ne.s32.totalorder %s234, %s250
      %p252 = scmp.eq.s32.totalorder %s24, 0
      %p253 = por %p251, %p252
      %s254 = smul.u32 %s25, 2
      %s255 = sadd.s32 %s254, %s26
      %s256 = smul.u32 %s37, 2
      %s257 = sadd.s32 %s256, %s33
      %s258 = ssub.s32 %s255, %s257
      %p259 = scmp.eq.s32.totalorder %s258, 0
      %s261 = sadd.s32 %s260, 1
      %s262 = scalar_select %p259, %s260, %s261
      %p265 = pneg %p259
      %p266 = scmp.eq.s32.totalorder %s18, 3
      %p267 = por %p265, %p266
      %p268 = scmp.ne.s32.totalorder %s260, %s263
      %p269 = scmp.eq.s32.totalorder %s18, 0
      %p270 = por %p268, %p269
      %p271 = scmp.ne.s32.totalorder %s260, %s263
      %p272 = scmp.eq.s32.totalorder %s23, 3
      %p273 = por %p271, %p272
      %p274 = scmp.ne.s32.totalorder %s263, %s264
      %p275 = scmp.eq.s32.totalorder %s23, 0
      %p276 = por %p274, %p275
      %p277 = scmp.ne.s32.totalorder %s263, %s264
      %p278 = scmp.eq.s32.totalorder %s24, 3
      %p279 = por %p277, %p278
      %p281 = scmp.ne.s32.totalorder %s264, %s280
      %p282 = scmp.eq.s32.totalorder %s24, 0
      %p283 = por %p281, %p282
      %p284 = scmp.le.s32.totalorder 1, %s18
      %p285 = scmp.lt.s32.totalorder %s18, 5
      %p286 = pnand %p284, %p285
      %p287 = pneg %p286
      // Predicated region
      $region9: #{video_classifier_forward.1} parent=5 // pred_check
        _
      $region10: #{video_classifier_forward.1} parent=5 // pred_check_branch
        %289 = sbr.rel (%p286) target = $region12
      $region11: #{video_classifier_forward.1} parent=5 // pred_region
        %s290 = ssub.s32 %s18, 1
        // Predicated region
        $region13: #{video_classifier_forward.1} parent=11 // pred_check
          %p291 = pneg %p51
        $region14: #{video_classifier_forward.1} parent=11 // pred_check_branch
          %293 = sbr.rel (%p291) target = $region16
        $region15: #{video_classifier_forward.1} parent=11 // pred_region
          _
        $region16: #{video_classifier_forward.1} parent=11 // pred_fallthru
          _
        // Predicated region
        $region17: #{video_classifier_forward.1} parent=11 // pred_check
          %p294 = pneg %p72
        $region18: #{video_classifier_forward.1} parent=11 // pred_check_branch
          %296 = sbr.rel (%p294) target = $region20
        $region19: #{video_classifier_forward.1} parent=11 // pred_region
          _
        $region20: #{video_classifier_forward.1} parent=11 // pred_fallthru
          _
        // Predicated region
        $region21: #{video_classifier_forward.1} parent=11 // pred_check
          %p297 = pneg %p93
        $region22: #{video_classifier_forward.1} parent=11 // pred_check_branch
          %299 = sbr.rel (%p297) target = $region24
        $region23: #{video_classifier_forward.1} parent=11 // pred_region
          _
        $region24: #{video_classifier_forward.1} parent=11 // pred_fallthru
          _
        // Predicated region
        $region25: #{video_classifier_forward.1} parent=11 // pred_check
          %p300 = pneg %p114
        $region26: #{video_classifier_forward.1} parent=11 // pred_check_branch
          %302 = sbr.rel (%p300) target = $region28
        $region27: #{video_classifier_forward.1} parent=11 // pred_region
          _
        $region28: #{video_classifier_forward.1} parent=11 // pred_fallthru
          _
        // Predicated region
        $region29: #{video_classifier_forward.1} parent=11 // pred_check
          %p303 = pneg %p135
        $region30: #{video_classifier_forward.1} parent=11 // pred_check_branch
          %305 = sbr.rel (%p303) target = $region32
        $region31: #{video_classifier_forward.1} parent=11 // pred_region
          _
        $region32: #{video_classifier_forward.1} parent=11 // pred_fallthru
          _
        // Predicated region
        $region33: #{video_classifier_forward.1} parent=11 // pred_check
          %p306 = pneg %p156
        $region34: #{video_classifier_forward.1} parent=11 // pred_check_branch
          %308 = sbr.rel (%p306) target = $region36
        $region35: #{video_classifier_forward.1} parent=11 // pred_region
          _
        $region36: #{video_classifier_forward.1} parent=11 // pred_fallthru
          _
      $region12: #{video_classifier_forward.1} parent=5 // pred_fallthru
        _
      %p309 = scmp.lt.s32.totalorder %s18, 4
      // Predicated region
      $region37: #{video_classifier_forward.1} parent=5 // pred_check
        %p310 = pneg %p309
      $region38: #{video_classifier_forward.1} parent=5 // pred_check_branch
        %312 = sbr.rel (%p310) target = $region40
      $region39: #{video_classifier_forward.1} parent=5 // pred_region
        // Predicated region
        $region41: #{video_classifier_forward.1} parent=39 // pred_check
          %p313 = pneg %p180
        $region42: #{video_classifier_forward.1} parent=39 // pred_check_branch
          %315 = sbr.rel (%p313) target = $region44
        $region43: #{video_classifier_forward.1} parent=39 // pred_region
          %s316 = sand.u32 %s170, 1
          %s317 = sand.u32 %s170, 1
          %s318 = smul.addr %s317, 512
          %s319 = scalar_lea.vmem [#allocation3], %s318
          %s320 = smul.u32 %s25, 2
          %s321 = sadd.s32 %s320, %s26
          %s322 = smul.u32 4, %s321
          %s323 = smul.addr %s322, 8
          %s324 = scalar_lea.vmem %s6, %s323
          // Predicated region
          $region45: #{video_classifier_forward.1} parent=43 // pred_check
            _
          $region46: #{video_classifier_forward.1} parent=43 // pred_check_branch
            %326 = sbr.rel (0) target = $region48
          $region47: #{video_classifier_forward.1} parent=43 // pred_region
            // Predicated region
            $region49: #{video_classifier_forward.1} parent=47 // pred_check
              _
            $region50: #{video_classifier_forward.1} parent=47 // pred_check_branch
              %328 = sbr.rel (0) target = $region52
            $region51: #{video_classifier_forward.1} parent=47 // pred_region
              loop: start=0, step=1, limit=1
              $region53: #{video_classifier_forward.1} parent=51 // loop_pre_header
                _
              $region54: #{video_classifier_forward.1} parent=51 // loop_header
                %s330 = sphi 0, %s334
                %p331 = scmp.ge.s32.totalorder %s330, 1
                %s335 = sphi %s324, %s324
                %s336 = sphi %s319, %s319
              $region55: #{video_classifier_forward.1} parent=51 // loop_header_branch
                %333 = sbr.rel (%p331) target = $region59
              $region56: #{video_classifier_forward.1} parent=51 // loop_body
                %v337 = vld [vmem:[%s335] sm:$0xff]
                %338 = vst [vmem:[%s336] sm:$0xff] %v337
                %v339 = vld [vmem:[%s335 + $0x8] sm:$0xff]
                %340 = vst [vmem:[%s336 + $0x8] sm:$0xff] %v339
                %v341 = vld [vmem:[%s335 + $0x10] sm:$0xff]
                %342 = vst [vmem:[%s336 + $0x10] sm:$0xff] %v341
                %v343 = vld [vmem:[%s335 + $0x18] sm:$0xff]
                %344 = vst [vmem:[%s336 + $0x18] sm:$0xff] %v343
                %v345 = vld [vmem:[%s335 + $0x80] sm:$0xff]
                %346 = vst [vmem:[%s336 + $0x20] sm:$0xff] %v345
                %v347 = vld [vmem:[%s335 + $0x88] sm:$0xff]
                %348 = vst [vmem:[%s336 + $0x28] sm:$0xff] %v347
                %v349 = vld [vmem:[%s335 + $0x90] sm:$0xff]
                %350 = vst [vmem:[%s336 + $0x30] sm:$0xff] %v349
                %v351 = vld [vmem:[%s335 + $0x98] sm:$0xff]
                %352 = vst [vmem:[%s336 + $0x38] sm:$0xff] %v351
                %v353 = vld [vmem:[%s335 + $0x100] sm:$0xff]
                %354 = vst [vmem:[%s336 + $0x40] sm:$0xff] %v353
                %v355 = vld [vmem:[%s335 + $0x108] sm:$0xff]
                %356 = vst [vmem:[%s336 + $0x48] sm:$0xff] %v355
                %v357 = vld [vmem:[%s335 + $0x110] sm:$0xff]
                %358 = vst [vmem:[%s336 + $0x50] sm:$0xff] %v357
                %v359 = vld [vmem:[%s335 + $0x118] sm:$0xff]
                %360 = vst [vmem:[%s336 + $0x58] sm:$0xff] %v359
                %v361 = vld [vmem:[%s335 + $0x180] sm:$0xff]
                %362 = vst [vmem:[%s336 + $0x60] sm:$0xff] %v361
                %v363 = vld [vmem:[%s335 + $0x188] sm:$0xff]
                %364 = vst [vmem:[%s336 + $0x68] sm:$0xff] %v363
                %v365 = vld [vmem:[%s335 + $0x190] sm:$0xff]
                %366 = vst [vmem:[%s336 + $0x70] sm:$0xff] %v365
                %v367 = vld [vmem:[%s335 + $0x198] sm:$0xff]
                %368 = vst [vmem:[%s336 + $0x78] sm:$0xff] %v367
                %v369 = vld [vmem:[%s335 + $0x200] sm:$0xff]
                %370 = vst [vmem:[%s336 + $0x80] sm:$0xff] %v369
                %v371 = vld [vmem:[%s335 + $0x208] sm:$0xff]
                %372 = vst [vmem:[%s336 + $0x88] sm:$0xff] %v371
                %v373 = vld [vmem:[%s335 + $0x210] sm:$0xff]
                %374 = vst [vmem:[%s336 + $0x90] sm:$0xff] %v373
                %v375 = vld [vmem:[%s335 + $0x218] sm:$0xff]
                %376 = vst [vmem:[%s336 + $0x98] sm:$0xff] %v375
                %v377 = vld [vmem:[%s335 + $0x280] sm:$0xff]
                %378 = vst [vmem:[%s336 + $0xa0] sm:$0xff] %v377
                %v379 = vld [vmem:[%s335 + $0x288] sm:$0xff]
                %380 = vst [vmem:[%s336 + $0xa8] sm:$0xff] %v379
                %v381 = vld [vmem:[%s335 + $0x290] sm:$0xff]
                %382 = vst [vmem:[%s336 + $0xb0] sm:$0xff] %v381
                %v383 = vld [vmem:[%s335 + $0x298] sm:$0xff]
                %384 = vst [vmem:[%s336 + $0xb8] sm:$0xff] %v383
                %v385 = vld [vmem:[%s335 + $0x300] sm:$0xff]
                %386 = vst [vmem:[%s336 + $0xc0] sm:$0xff] %v385
                %v387 = vld [vmem:[%s335 + $0x308] sm:$0xff]
                %388 = vst [vmem:[%s336 + $0xc8] sm:$0xff] %v387
                %v389 = vld [vmem:[%s335 + $0x310] sm:$0xff]
                %390 = vst [vmem:[%s336 + $0xd0] sm:$0xff] %v389
                %v391 = vld [vmem:[%s335 + $0x318] sm:$0xff]
                %392 = vst [vmem:[%s336 + $0xd8] sm:$0xff] %v391
                %v393 = vld [vmem:[%s335 + $0x380] sm:$0xff]
                %394 = vst [vmem:[%s336 + $0xe0] sm:$0xff] %v393
                %v395 = vld [vmem:[%s335 + $0x388] sm:$0xff]
                %396 = vst [vmem:[%s336 + $0xe8] sm:$0xff] %v395
                %v397 = vld [vmem:[%s335 + $0x390] sm:$0xff]
                %398 = vst [vmem:[%s336 + $0xf0] sm:$0xff] %v397
                %v399 = vld [vmem:[%s335 + $0x398] sm:$0xff]
                %400 = vst [vmem:[%s336 + $0xf8] sm:$0xff] %v399
                %v401 = vld [vmem:[%s335 + $0x400] sm:$0xff]
                %402 = vst [vmem:[%s336 + $0x100] sm:$0xff] %v401
                %v403 = vld [vmem:[%s335 + $0x408] sm:$0xff]
                %404 = vst [vmem:[%s336 + $0x108] sm:$0xff] %v403
                %v405 = vld [vmem:[%s335 + $0x410] sm:$0xff]
                %406 = vst [vmem:[%s336 + $0x110] sm:$0xff] %v405
                %v407 = vld [vmem:[%s335 + $0x418] sm:$0xff]
                %408 = vst [vmem:[%s336 + $0x118] sm:$0xff] %v407
                %v409 = vld [vmem:[%s335 + $0x480] sm:$0xff]
                %410 = vst [vmem:[%s336 + $0x120] sm:$0xff] %v409
                %v411 = vld [vmem:[%s335 + $0x488] sm:$0xff]
                %412 = vst [vmem:[%s336 + $0x128] sm:$0xff] %v411
                %v413 = vld [vmem:[%s335 + $0x490] sm:$0xff]
                %414 = vst [vmem:[%s336 + $0x130] sm:$0xff] %v413
                %v415 = vld [vmem:[%s335 + $0x498] sm:$0xff]
                %416 = vst [vmem:[%s336 + $0x138] sm:$0xff] %v415
                %v417 = vld [vmem:[%s335 + $0x500] sm:$0xff]
                %418 = vst [vmem:[%s336 + $0x140] sm:$0xff] %v417
                %v419 = vld [vmem:[%s335 + $0x508] sm:$0xff]
                %420 = vst [vmem:[%s336 + $0x148] sm:$0xff] %v419
                %v421 = vld [vmem:[%s335 + $0x510] sm:$0xff]
                %422 = vst [vmem:[%s336 + $0x150] sm:$0xff] %v421
                %v423 = vld [vmem:[%s335 + $0x518] sm:$0xff]
                %424 = vst [vmem:[%s336 + $0x158] sm:$0xff] %v423
                %v425 = vld [vmem:[%s335 + $0x580] sm:$0xff]
                %426 = vst [vmem:[%s336 + $0x160] sm:$0xff] %v425
                %v427 = vld [vmem:[%s335 + $0x588] sm:$0xff]
                %428 = vst [vmem:[%s336 + $0x168] sm:$0xff] %v427
                %v429 = vld [vmem:[%s335 + $0x590] sm:$0xff]
                %430 = vst [vmem:[%s336 + $0x170] sm:$0xff] %v429
                %v431 = vld [vmem:[%s335 + $0x598] sm:$0xff]
                %432 = vst [vmem:[%s336 + $0x178] sm:$0xff] %v431
                %v433 = vld [vmem:[%s335 + $0x600] sm:$0xff]
                %434 = vst [vmem:[%s336 + $0x180] sm:$0xff] %v433
                %v435 = vld [vmem:[%s335 + $0x608] sm:$0xff]
                %436 = vst [vmem:[%s336 + $0x188] sm:$0xff] %v435
                %v437 = vld [vmem:[%s335 + $0x610] sm:$0xff]
                %438 = vst [vmem:[%s336 + $0x190] sm:$0xff] %v437
                %v439 = vld [vmem:[%s335 + $0x618] sm:$0xff]
                %440 = vst [vmem:[%s336 + $0x198] sm:$0xff] %v439
                %v441 = vld [vmem:[%s335 + $0x680] sm:$0xff]
                %442 = vst [vmem:[%s336 + $0x1a0] sm:$0xff] %v441
                %v443 = vld [vmem:[%s335 + $0x688] sm:$0xff]
                %444 = vst [vmem:[%s336 + $0x1a8] sm:$0xff] %v443
                %v445 = vld [vmem:[%s335 + $0x690] sm:$0xff]
                %446 = vst [vmem:[%s336 + $0x1b0] sm:$0xff] %v445
                %v447 = vld [vmem:[%s335 + $0x698] sm:$0xff]
                %448 = vst [vmem:[%s336 + $0x1b8] sm:$0xff] %v447
                %v449 = vld [vmem:[%s335 + $0x700] sm:$0xff]
                %450 = vst [vmem:[%s336 + $0x1c0] sm:$0xff] %v449
                %v451 = vld [vmem:[%s335 + $0x708] sm:$0xff]
                %452 = vst [vmem:[%s336 + $0x1c8] sm:$0xff] %v451
                %v453 = vld [vmem:[%s335 + $0x710] sm:$0xff]
                %454 = vst [vmem:[%s336 + $0x1d0] sm:$0xff] %v453
                %v455 = vld [vmem:[%s335 + $0x718] sm:$0xff]
                %456 = vst [vmem:[%s336 + $0x1d8] sm:$0xff] %v455
                %v457 = vld [vmem:[%s335 + $0x780] sm:$0xff]
                %458 = vst [vmem:[%s336 + $0x1e0] sm:$0xff] %v457
                %v459 = vld [vmem:[%s335 + $0x788] sm:$0xff]
                %460 = vst [vmem:[%s336 + $0x1e8] sm:$0xff] %v459
                %v461 = vld [vmem:[%s335 + $0x790] sm:$0xff]
                %462 = vst [vmem:[%s336 + $0x1f0] sm:$0xff] %v461
                %v463 = vld [vmem:[%s335 + $0x798] sm:$0xff]
                %464 = vst [vmem:[%s336 + $0x1f8] sm:$0xff] %v463
              $region57: #{video_classifier_forward.1} parent=51 // loop_footer
                %s334 = sadd.s32 1, %s330
              $region58: #{video_classifier_forward.1} parent=51 // loop_footer_branch
                %329 = sbr.rel target = $region54
              $region59: #{video_classifier_forward.1} parent=51 // loop_exit
                _
            $region52: #{video_classifier_forward.1} parent=47 // pred_fallthru
              _
            // Predicated region
            $region60: #{video_classifier_forward.1} parent=47 // pred_check
              _
            $region61: #{video_classifier_forward.1} parent=47 // pred_check_branch
              %466 = sbr.rel target = $region63
            $region62: #{video_classifier_forward.1} parent=47 // pred_region
              _
            $region63: #{video_classifier_forward.1} parent=47 // pred_fallthru
              _
          $region48: #{video_classifier_forward.1} parent=43 // pred_fallthru
            _
          %467 = vnop
        $region44: #{video_classifier_forward.1} parent=39 // pred_fallthru
          _
        // Predicated region
        $region64: #{video_classifier_forward.1} parent=39 // pred_check
          %p468 = pneg %p210
        $region65: #{video_classifier_forward.1} parent=39 // pred_check_branch
          %470 = sbr.rel (%p468) target = $region67
        $region66: #{video_classifier_forward.1} parent=39 // pred_region
          %s471 = smul.u32 %s25, 2
          %s472 = sadd.s32 %s471, %s26
          %s473 = smul.u32 4, %s472
          %p474 = scmp.lt.s32.totalorder %s473, 15
          %s475 = scalar_select %p474, %s473, 15
          %s476 = scalar_lea.vmem %s7, %s475
          %s477 = smul.u32 %s25, 2
          %s478 = sadd.s32 %s477, %s26
          %s479 = smul.u32 4, %s478
        $region67: #{video_classifier_forward.1} parent=39 // pred_fallthru
          _
        // Predicated region
        $region68: #{video_classifier_forward.1} parent=39 // pred_check
          %p480 = pneg %p240
        $region69: #{video_classifier_forward.1} parent=39 // pred_check_branch
          %482 = sbr.rel (%p480) target = $region71
        $region70: #{video_classifier_forward.1} parent=39 // pred_region
          %s483 = smul.u32 %s25, 2
          %s484 = sadd.s32 %s483, %s26
          %s485 = smul.u32 4, %s484
          %p486 = scmp.lt.s32.totalorder %s485, 15
          %s487 = scalar_select %p486, %s485, 15
          %s488 = scalar_lea.vmem %s8, %s487
          %s489 = smul.u32 %s25, 2
          %s490 = sadd.s32 %s489, %s26
          %s491 = smul.u32 4, %s490
        $region71: #{video_classifier_forward.1} parent=39 // pred_fallthru
          _
      $region40: #{video_classifier_forward.1} parent=5 // pred_fallthru
        _
      %p492 = scmp.le.s32.totalorder 1, %s18
      %p493 = scmp.lt.s32.totalorder %s18, 5
      %p494 = pnand %p492, %p493
      %p495 = pneg %p494
      // Predicated region
      $region72: #{video_classifier_forward.1} parent=5 // pred_check
        _
      $region73: #{video_classifier_forward.1} parent=5 // pred_check_branch
        %497 = sbr.rel (%p494) target = $region75
      $region74: #{video_classifier_forward.1} parent=5 // pred_region
        %s498 = ssub.s32 %s18, 1
        %s499 = sand.u32 %s173, 1
        %s500 = sand.u32 %s173, 1
        %s501 = smul.addr %s500, 512
        %s502 = scalar_lea.vmem [#allocation3], %s501
        // Predicated region
        $region76: #{video_classifier_forward.1} parent=74 // pred_check
          %p503 = pneg %p186
        $region77: #{video_classifier_forward.1} parent=74 // pred_check_branch
          %505 = sbr.rel (%p503) target = $region79
        $region78: #{video_classifier_forward.1} parent=74 // pred_region
          _
        $region79: #{video_classifier_forward.1} parent=74 // pred_fallthru
          _
        %p506 = pneg %p51
        %p507 = pneg %p48
        %p508 = pneg %p72
        %p509 = pneg %p69
        %p510 = pneg %p93
        %p511 = pneg %p90
        %p512 = pneg %p114
        %p513 = pneg %p111
        %p514 = pneg %p135
        %p515 = pneg %p132
        %p516 = pneg %p156
        %p517 = pneg %p153
        %s518 = sand.u32 %s173, 1
        %s519 = sand.u32 %s173, 1
        %s520 = smul.addr %s519, 512
        %s521 = scalar_lea.vmem [#allocation3], %s520
        %p522 = pneg %p186
        %p523 = pneg %p183
        %s524 = smul.u32 %s27, 2
        %s525 = sadd.s32 %s524, %s28
        %s526 = smul.u32 4, %s525
        %p527 = scmp.lt.s32.totalorder %s526, 15
        %s528 = scalar_select %p527, %s526, 15
        %s529 = scalar_lea.vmem %s7, %s528
        %p530 = pneg %p216
        %p531 = pneg %p213
        %s532 = smul.u32 %s27, 2
        %s533 = sadd.s32 %s532, %s28
        %s534 = smul.u32 4, %s533
        %p535 = scmp.lt.s32.totalorder %s534, 15
        %s536 = scalar_select %p535, %s534, 15
        %s537 = scalar_lea.vmem %s8, %s536
        %p538 = pneg %p246
        %p539 = pneg %p243
        %p540 = pneg %p276
        %p541 = pneg %p273
        %s542 = sand.u32 %s263, 1
        %s543 = scalar_lea.sflag [#allocation5], %s542
        %s544 = sand.u32 %s263, 1
        %s545 = smul.addr %s544, 8
        %s546 = scalar_lea.vmem [#allocation4], %s545
        %s547 = smul.u32 %s27, 2
        %s548 = sadd.s32 %s547, %s28
        %s549 = smul.u32 4, %s548
        %s550 = smul.u32 %s27, 2
        %s551 = sadd.s32 %s550, %s28
        %s552 = smul.u32 4, %s551
        %p553 = scmp.lt.s32.totalorder %s552, 15
        %s554 = scalar_select %p553, %s552, 15
        %s555 = scalar_lea.vmem %s7, %s554
        %s556 = smul.u32 %s27, 2
        %s557 = sadd.s32 %s556, %s28
        %s558 = smul.u32 4, %s557
        %s559 = smul.u32 %s27, 2
        %s560 = sadd.s32 %s559, %s28
        %s561 = smul.u32 4, %s560
        %p562 = scmp.lt.s32.totalorder %s561, 15
        %s563 = scalar_select %p562, %s561, 15
        %s564 = scalar_lea.vmem %s8, %s563
        %s565 = smul.u32 %s27, 2
        %s566 = sadd.s32 %s565, %s28
        %s567 = smul.u32 4, %s566
        %s568 = smul.u32 %s27, 2
        %s569 = sadd.s32 %s568, %s28
        %s570 = smul.u32 4, %s569
        %p571 = scmp.eq.s32.totalorder %s28, 0
        // Predicated region
        $region80: #{video_classifier_forward.1} parent=74 // pred_check
          %p572 = pneg %p571
        $region81: #{video_classifier_forward.1} parent=74 // pred_check_branch
          %574 = sbr.rel (%p572) target = $region83
        $region82: #{video_classifier_forward.1} parent=74 // pred_region
          %v575 = vld [vmem:[%s0] sm:$0xf]
          %v576 = vld [vmem:[%s0 + $0x4] sm:$0xf]
          %v577 = vld [vmem:[%s0 + $0x8] sm:$0xf]
          %v578 = vld [vmem:[%s0 + $0xc] sm:$0xf]
          %v579 = vld [vmem:[%s0 + $0x10] sm:$0xf]
          %v580 = vld [vmem:[%s0 + $0x14] sm:$0xf]
          %v581 = vld [vmem:[%s0 + $0x18] sm:$0xf]
          %v582 = vld [vmem:[%s0 + $0x1c] sm:$0xf]
          %v583 = vld [vmem:[%s0 + $0x20] sm:$0xf]
          %v584 = vld [vmem:[%s0 + $0x24] sm:$0xf]
          %v585 = vld [vmem:[%s0 + $0x28] sm:$0xf]
          %v586 = vld [vmem:[%s0 + $0x2c] sm:$0xf]
          %v587 = vld [vmem:[%s0 + $0x30] sm:$0xf]
          %v588 = vld [vmem:[%s0 + $0x34] sm:$0xf]
          %v589 = vld [vmem:[%s0 + $0x38] sm:$0xf]
          %v590 = vld [vmem:[%s0 + $0x3c] sm:$0xf]
          %v591 = vld [vmem:[%s0 + $0x40] sm:$0xf]
          %v592 = vld [vmem:[%s0 + $0x44] sm:$0xf]
          %v593 = vld [vmem:[%s0 + $0x48] sm:$0xf]
          %v594 = vld [vmem:[%s0 + $0x4c] sm:$0xf]
          %v595 = vld [vmem:[%s0 + $0x50] sm:$0xf]
          %v596 = vld [vmem:[%s0 + $0x54] sm:$0xf]
          %v597 = vld [vmem:[%s0 + $0x58] sm:$0xf]
          %v598 = vld [vmem:[%s0 + $0x5c] sm:$0xf]
          %v599 = vld [vmem:[%s0 + $0x60] sm:$0xf]
          %v600 = vld [vmem:[%s0 + $0x64] sm:$0xf]
          %v601 = vld [vmem:[%s0 + $0x68] sm:$0xf]
          %v602 = vld [vmem:[%s0 + $0x6c] sm:$0xf]
          %v603 = vld [vmem:[%s0 + $0x70] sm:$0xf]
          %v604 = vld [vmem:[%s0 + $0x74] sm:$0xf]
          %v605 = vld [vmem:[%s0 + $0x78] sm:$0xf]
          %v606 = vld [vmem:[%s0 + $0x7c] sm:$0xf]
          %v607 = vld [vmem:[%s0 + $0x80] sm:$0xf]
          %v608 = vld [vmem:[%s0 + $0x84] sm:$0xf]
          %v609 = vld [vmem:[%s0 + $0x88] sm:$0xf]
          %v610 = vld [vmem:[%s0 + $0x8c] sm:$0xf]
          %v611 = vld [vmem:[%s0 + $0x90] sm:$0xf]
          %v612 = vld [vmem:[%s0 + $0x94] sm:$0xf]
          %v613 = vld [vmem:[%s0 + $0x98] sm:$0xf]
          %v614 = vld [vmem:[%s0 + $0x9c] sm:$0xf]
          %v615 = vld [vmem:[%s0 + $0xa0] sm:$0xf]
          %v616 = vld [vmem:[%s0 + $0xa4] sm:$0xf]
          %v617 = vld [vmem:[%s0 + $0xa8] sm:$0xf]
          %v618 = vld [vmem:[%s0 + $0xac] sm:$0xf]
          %v619 = vld [vmem:[%s0 + $0xb0] sm:$0xf]
          %v620 = vld [vmem:[%s0 + $0xb4] sm:$0xf]
          %v621 = vld [vmem:[%s0 + $0xb8] sm:$0xf]
          %v622 = vld [vmem:[%s0 + $0xbc] sm:$0xf]
          %v623 = vld [vmem:[%s0 + $0xc0] sm:$0xf]
          %v624 = vld [vmem:[%s0 + $0xc4] sm:$0xf]
          %v625 = vld [vmem:[%s0 + $0xc8] sm:$0xf]
          %v626 = vld [vmem:[%s0 + $0xcc] sm:$0xf]
          %v627 = vld [vmem:[%s0 + $0xd0] sm:$0xf]
          %v628 = vld [vmem:[%s0 + $0xd4] sm:$0xf]
          %v629 = vld [vmem:[%s0 + $0xd8] sm:$0xf]
          %v630 = vld [vmem:[%s0 + $0xdc] sm:$0xf]
          %v631 = vld [vmem:[%s0 + $0xe0] sm:$0xf]
          %v632 = vld [vmem:[%s0 + $0xe4] sm:$0xf]
          %v633 = vld [vmem:[%s0 + $0xe8] sm:$0xf]
          %v634 = vld [vmem:[%s0 + $0xec] sm:$0xf]
          %v635 = vld [vmem:[%s0 + $0xf0] sm:$0xf]
          %v636 = vld [vmem:[%s0 + $0xf4] sm:$0xf]
          %v637 = vld [vmem:[%s0 + $0xf8] sm:$0xf]
          %v638 = vld [vmem:[%s0 + $0xfc] sm:$0xf]
          %v639 = vld [vmem:[%s1] sm:$0xf]
          %v640 = vld [vmem:[%s1 + $0x4] sm:$0xf]
          %v641 = vld [vmem:[%s1 + $0x8] sm:$0xf]
          %v642 = vld [vmem:[%s1 + $0xc] sm:$0xf]
          %v643 = vld [vmem:[%s1 + $0x10] sm:$0xf]
          %v644 = vld [vmem:[%s1 + $0x14] sm:$0xf]
          %v645 = vld [vmem:[%s1 + $0x18] sm:$0xf]
          %v646 = vld [vmem:[%s1 + $0x1c] sm:$0xf]
          %v647 = vld [vmem:[%s1 + $0x20] sm:$0xf]
          %v648 = vld [vmem:[%s1 + $0x24] sm:$0xf]
          %v649 = vld [vmem:[%s1 + $0x28] sm:$0xf]
          %v650 = vld [vmem:[%s1 + $0x2c] sm:$0xf]
          %v651 = vld [vmem:[%s1 + $0x30] sm:$0xf]
          %v652 = vld [vmem:[%s1 + $0x34] sm:$0xf]
          %v653 = vld [vmem:[%s1 + $0x38] sm:$0xf]
          %v654 = vld [vmem:[%s1 + $0x3c] sm:$0xf]
          %v655 = vld [vmem:[%s2] sm:$0x1]
          %v657 = vperm.slane %v655, 0
          %v723 = vunpack.c.l.b16 %v575
          %v724 = vunpack.c.l.b16 %v576
          %v725 = vunpack.c.l.b16 %v577
          %v726 = vunpack.c.l.b16 %v578
          %v727 = vunpack.c.l.b16 %v579
          %v728 = vunpack.c.l.b16 %v580
          %v729 = vunpack.c.l.b16 %v581
          %v730 = vunpack.c.l.b16 %v582
          %v731 = vunpack.c.l.b16 %v583
          %v732 = vunpack.c.l.b16 %v584
          %v733 = vunpack.c.l.b16 %v585
          %v734 = vunpack.c.l.b16 %v586
          %v735 = vunpack.c.l.b16 %v587
          %v736 = vunpack.c.l.b16 %v588
          %v737 = vunpack.c.l.b16 %v589
          %v738 = vunpack.c.l.b16 %v590
          %v739 = vunpack.c.l.b16 %v591
          %v740 = vunpack.c.l.b16 %v592
          %v741 = vunpack.c.l.b16 %v593
          %v742 = vunpack.c.l.b16 %v594
          %v743 = vunpack.c.l.b16 %v595
          %v744 = vunpack.c.l.b16 %v596
          %v745 = vunpack.c.l.b16 %v597
          %v746 = vunpack.c.l.b16 %v598
          %v747 = vunpack.c.l.b16 %v599
          %v748 = vunpack.c.l.b16 %v600
          %v749 = vunpack.c.l.b16 %v601
          %v750 = vunpack.c.l.b16 %v602
          %v751 = vunpack.c.l.b16 %v603
          %v752 = vunpack.c.l.b16 %v604
          %v753 = vunpack.c.l.b16 %v605
          %v754 = vunpack.c.l.b16 %v606
          %v755 = vunpack.c.l.b16 %v607
          %v756 = vunpack.c.l.b16 %v608
          %v757 = vunpack.c.l.b16 %v609
          %v758 = vunpack.c.l.b16 %v610
          %v759 = vunpack.c.l.b16 %v611
          %v760 = vunpack.c.l.b16 %v612
          %v761 = vunpack.c.l.b16 %v613
          %v762 = vunpack.c.l.b16 %v614
          %v763 = vunpack.c.l.b16 %v615
          %v764 = vunpack.c.l.b16 %v616
          %v765 = vunpack.c.l.b16 %v617
          %v766 = vunpack.c.l.b16 %v618
          %v767 = vunpack.c.l.b16 %v619
          %v768 = vunpack.c.l.b16 %v620
          %v769 = vunpack.c.l.b16 %v621
          %v770 = vunpack.c.l.b16 %v622
          %v771 = vunpack.c.l.b16 %v623
          %v772 = vunpack.c.l.b16 %v624
          %v773 = vunpack.c.l.b16 %v625
          %v774 = vunpack.c.l.b16 %v626
          %v775 = vunpack.c.l.b16 %v627
          %v776 = vunpack.c.l.b16 %v628
          %v777 = vunpack.c.l.b16 %v629
          %v778 = vunpack.c.l.b16 %v630
          %v779 = vunpack.c.l.b16 %v631
          %v780 = vunpack.c.l.b16 %v632
          %v781 = vunpack.c.l.b16 %v633
          %v782 = vunpack.c.l.b16 %v634
          %v783 = vunpack.c.l.b16 %v635
          %v784 = vunpack.c.l.b16 %v636
          %v785 = vunpack.c.l.b16 %v637
          %v786 = vunpack.c.l.b16 %v638
          %v787 = vpack.c.b16 %v724, %v723
          %v788 = vpack.c.b16 %v726, %v725
          %v789 = vpack.c.b16 %v728, %v727
          %v790 = vpack.c.b16 %v730, %v729
          %v791 = vpack.c.b16 %v732, %v731
          %v792 = vpack.c.b16 %v734, %v733
          %v793 = vpack.c.b16 %v736, %v735
          %v794 = vpack.c.b16 %v738, %v737
          %v795 = vpack.c.b16 %v740, %v739
          %v796 = vpack.c.b16 %v742, %v741
          %v797 = vpack.c.b16 %v744, %v743
          %v798 = vpack.c.b16 %v746, %v745
          %v799 = vpack.c.b16 %v748, %v747
          %v800 = vpack.c.b16 %v750, %v749
          %v801 = vpack.c.b16 %v752, %v751
          %v802 = vpack.c.b16 %v754, %v753
          %v803 = vpack.c.b16 %v756, %v755
          %v804 = vpack.c.b16 %v758, %v757
          %v805 = vpack.c.b16 %v760, %v759
          %v806 = vpack.c.b16 %v762, %v761
          %v807 = vpack.c.b16 %v764, %v763
          %v808 = vpack.c.b16 %v766, %v765
          %v809 = vpack.c.b16 %v768, %v767
          %v810 = vpack.c.b16 %v770, %v769
          %v811 = vpack.c.b16 %v772, %v771
          %v812 = vpack.c.b16 %v774, %v773
          %v813 = vpack.c.b16 %v776, %v775
          %v814 = vpack.c.b16 %v778, %v777
          %v815 = vpack.c.b16 %v780, %v779
          %v816 = vpack.c.b16 %v782, %v781
          %v817 = vpack.c.b16 %v784, %v783
          %v818 = vpack.c.b16 %v786, %v785
          %v867 = vunpack.c.l.b16 %v639
          %v868 = vunpack.c.l.b16 %v640
          %v869 = vunpack.c.l.b16 %v641
          %v870 = vunpack.c.l.b16 %v642
          %v871 = vunpack.c.l.b16 %v643
          %v872 = vunpack.c.l.b16 %v644
          %v873 = vunpack.c.l.b16 %v645
          %v874 = vunpack.c.l.b16 %v646
          %v875 = vunpack.c.l.b16 %v647
          %v876 = vunpack.c.l.b16 %v648
          %v877 = vunpack.c.l.b16 %v649
          %v878 = vunpack.c.l.b16 %v650
          %v879 = vunpack.c.l.b16 %v651
          %v880 = vunpack.c.l.b16 %v652
          %v881 = vunpack.c.l.b16 %v653
          %v882 = vunpack.c.l.b16 %v654
          %v883 = vpack.c.b16 %v868, %v867
          %v884 = vpack.c.b16 %v870, %v869
          %v885 = vpack.c.b16 %v872, %v871
          %v886 = vpack.c.b16 %v874, %v873
          %v887 = vpack.c.b16 %v876, %v875
          %v888 = vpack.c.b16 %v878, %v877
          %v889 = vpack.c.b16 %v880, %v879
          %v890 = vpack.c.b16 %v882, %v881
          %899 = vmatpush.bf16.msra.mxu0 %v890
          %900 = vmatpush.bf16.msra.mxu0 %v889
          %901 = vmatpush.bf16.msra.mxu0 %v888
          %902 = vmatpush.bf16.msra.mxu0 %v887
          %903 = vmatpush.bf16.msra.mxu0 %v886
          %904 = vmatpush.bf16.msra.mxu0 %v885
          %905 = vmatpush.bf16.msra.mxu0 %v884
          %906 = vmatpush.bf16.msra.mxu0 %v883
          %907 = vmatmul.bf16.gmra.mxu0 %v787
          %v908 = vpop.f32.mrf.mxu0
          %v909 = vadd.f32 %v657, %v908
          %v910 = vpop.f32.mrf.mxu0
          %v911 = vadd.f32 %v657, %v910
          %912 = vmatmul.bf16.gmra.mxu0 %v788
          %v913 = vpop.f32.mrf.mxu0
          %v914 = vadd.f32 %v657, %v913
          %v915 = vpop.f32.mrf.mxu0
          %v916 = vadd.f32 %v657, %v915
          %917 = vmatmul.bf16.gmra.mxu0 %v789
          %v918 = vpop.f32.mrf.mxu0
          %v919 = vadd.f32 %v657, %v918
          %v920 = vpop.f32.mrf.mxu0
          %v921 = vadd.f32 %v657, %v920
          %922 = vmatmul.bf16.gmra.mxu0 %v790
          %v923 = vpop.f32.mrf.mxu0
          %v924 = vadd.f32 %v657, %v923
          %v925 = vpop.f32.mrf.mxu0
          %v926 = vadd.f32 %v657, %v925
          %927 = vmatmul.bf16.gmra.mxu0 %v791
          %v928 = vpop.f32.mrf.mxu0
          %v929 = vadd.f32 %v657, %v928
          %v930 = vpop.f32.mrf.mxu0
          %v931 = vadd.f32 %v657, %v930
          %932 = vmatmul.bf16.gmra.mxu0 %v792
          %v933 = vpop.f32.mrf.mxu0
          %v934 = vadd.f32 %v657, %v933
          %v935 = vpop.f32.mrf.mxu0
          %v936 = vadd.f32 %v657, %v935
          %937 = vmatmul.bf16.gmra.mxu0 %v793
          %v938 = vpop.f32.mrf.mxu0
          %v939 = vadd.f32 %v657, %v938
          %v940 = vpop.f32.mrf.mxu0
          %v941 = vadd.f32 %v657, %v940
          %942 = vmatmul.bf16.gmra.mxu0 %v794
          %v943 = vpop.f32.mrf.mxu0
          %v944 = vadd.f32 %v657, %v943
          %v945 = vpop.f32.mrf.mxu0
          %v946 = vadd.f32 %v657, %v945
          %947 = vmatmul.bf16.gmra.mxu0 %v795
          %v948 = vpop.f32.mrf.mxu0
          %v949 = vadd.f32 %v657, %v948
          %v950 = vpop.f32.mrf.mxu0
          %v951 = vadd.f32 %v657, %v950
          %952 = vmatmul.bf16.gmra.mxu0 %v796
          %v953 = vpop.f32.mrf.mxu0
          %v954 = vadd.f32 %v657, %v953
          %v955 = vpop.f32.mrf.mxu0
          %v956 = vadd.f32 %v657, %v955
          %957 = vmatmul.bf16.gmra.mxu0 %v797
          %v958 = vpop.f32.mrf.mxu0
          %v959 = vadd.f32 %v657, %v958
          %v960 = vpop.f32.mrf.mxu0
          %v961 = vadd.f32 %v657, %v960
          %962 = vmatmul.bf16.gmra.mxu0 %v798
          %v963 = vpop.f32.mrf.mxu0
          %v964 = vadd.f32 %v657, %v963
          %v965 = vpop.f32.mrf.mxu0
          %v966 = vadd.f32 %v657, %v965
          %967 = vmatmul.bf16.gmra.mxu0 %v799
          %v968 = vpop.f32.mrf.mxu0
          %v969 = vadd.f32 %v657, %v968
          %v970 = vpop.f32.mrf.mxu0
          %v971 = vadd.f32 %v657, %v970
          %972 = vmatmul.bf16.gmra.mxu0 %v800
          %v973 = vpop.f32.mrf.mxu0
          %v974 = vadd.f32 %v657, %v973
          %v975 = vpop.f32.mrf.mxu0
          %v976 = vadd.f32 %v657, %v975
          %977 = vmatmul.bf16.gmra.mxu0 %v801
          %v978 = vpop.f32.mrf.mxu0
          %v979 = vadd.f32 %v657, %v978
          %v980 = vpop.f32.mrf.mxu0
          %v981 = vadd.f32 %v657, %v980
          %982 = vmatmul.bf16.gmra.mxu0 %v802
          %v983 = vpop.f32.mrf.mxu0
          %v984 = vadd.f32 %v657, %v983
          %v985 = vpop.f32.mrf.mxu0
          %v986 = vadd.f32 %v657, %v985
          %987 = vmatmul.bf16.gmra.mxu0 %v803
          %v988 = vpop.f32.mrf.mxu0
          %v989 = vadd.f32 %v657, %v988
          %v990 = vpop.f32.mrf.mxu0
          %v991 = vadd.f32 %v657, %v990
          %992 = vmatmul.bf16.gmra.mxu0 %v804
          %v993 = vpop.f32.mrf.mxu0
          %v994 = vadd.f32 %v657, %v993
          %v995 = vpop.f32.mrf.mxu0
          %v996 = vadd.f32 %v657, %v995
          %997 = vmatmul.bf16.gmra.mxu0 %v805
          %v998 = vpop.f32.mrf.mxu0
          %v999 = vadd.f32 %v657, %v998
          %v1000 = vpop.f32.mrf.mxu0
          %v1001 = vadd.f32 %v657, %v1000
          %1002 = vmatmul.bf16.gmra.mxu0 %v806
          %v1003 = vpop.f32.mrf.mxu0
          %v1004 = vadd.f32 %v657, %v1003
          %v1005 = vpop.f32.mrf.mxu0
          %v1006 = vadd.f32 %v657, %v1005
          %1007 = vmatmul.bf16.gmra.mxu0 %v807
          %v1008 = vpop.f32.mrf.mxu0
          %v1009 = vadd.f32 %v657, %v1008
          %v1010 = vpop.f32.mrf.mxu0
          %v1011 = vadd.f32 %v657, %v1010
          %1012 = vmatmul.bf16.gmra.mxu0 %v808
          %v1013 = vpop.f32.mrf.mxu0
          %v1014 = vadd.f32 %v657, %v1013
          %v1015 = vpop.f32.mrf.mxu0
          %v1016 = vadd.f32 %v657, %v1015
          %1017 = vmatmul.bf16.gmra.mxu0 %v809
          %v1018 = vpop.f32.mrf.mxu0
          %v1019 = vadd.f32 %v657, %v1018
          %v1020 = vpop.f32.mrf.mxu0
          %v1021 = vadd.f32 %v657, %v1020
          %1022 = vmatmul.bf16.gmra.mxu0 %v810
          %v1023 = vpop.f32.mrf.mxu0
          %v1024 = vadd.f32 %v657, %v1023
          %v1025 = vpop.f32.mrf.mxu0
          %v1026 = vadd.f32 %v657, %v1025
          %1027 = vmatmul.bf16.gmra.mxu0 %v811
          %v1028 = vpop.f32.mrf.mxu0
          %v1029 = vadd.f32 %v657, %v1028
          %v1030 = vpop.f32.mrf.mxu0
          %v1031 = vadd.f32 %v657, %v1030
          %1032 = vmatmul.bf16.gmra.mxu0 %v812
          %v1033 = vpop.f32.mrf.mxu0
          %v1034 = vadd.f32 %v657, %v1033
          %v1035 = vpop.f32.mrf.mxu0
          %v1036 = vadd.f32 %v657, %v1035
          %1037 = vmatmul.bf16.gmra.mxu0 %v813
          %v1038 = vpop.f32.mrf.mxu0
          %v1039 = vadd.f32 %v657, %v1038
          %v1040 = vpop.f32.mrf.mxu0
          %v1041 = vadd.f32 %v657, %v1040
          %1042 = vmatmul.bf16.gmra.mxu0 %v814
          %v1043 = vpop.f32.mrf.mxu0
          %v1044 = vadd.f32 %v657, %v1043
          %v1045 = vpop.f32.mrf.mxu0
          %v1046 = vadd.f32 %v657, %v1045
          %1047 = vmatmul.bf16.gmra.mxu0 %v815
          %v1048 = vpop.f32.mrf.mxu0
          %v1049 = vadd.f32 %v657, %v1048
          %v1050 = vpop.f32.mrf.mxu0
          %v1051 = vadd.f32 %v657, %v1050
          %1052 = vmatmul.bf16.gmra.mxu0 %v816
          %v1053 = vpop.f32.mrf.mxu0
          %v1054 = vadd.f32 %v657, %v1053
          %v1055 = vpop.f32.mrf.mxu0
          %v1056 = vadd.f32 %v657, %v1055
          %1057 = vmatmul.bf16.gmra.mxu0 %v817
          %v1058 = vpop.f32.mrf.mxu0
          %v1059 = vadd.f32 %v657, %v1058
          %v1060 = vpop.f32.mrf.mxu0
          %v1061 = vadd.f32 %v657, %v1060
          %1062 = vmatmul.bf16.gmra.mxu0 %v818
          %v1063 = vpop.f32.mrf.mxu0
          %v1064 = vadd.f32 %v657, %v1063
          %v1065 = vpop.f32.mrf.mxu0
          %v1066 = vadd.f32 %v657, %v1065
          %1067 = vdwg.mxu0
          %v1068 = vmax.f32 %v909, 0.0
          %v1069 = vmax.f32 %v911, 0.0
          %v1070 = vmax.f32 %v914, 0.0
          %v1071 = vmax.f32 %v916, 0.0
          %v1072 = vmax.f32 %v919, 0.0
          %v1073 = vmax.f32 %v921, 0.0
          %v1074 = vmax.f32 %v924, 0.0
          %v1075 = vmax.f32 %v926, 0.0
          %v1076 = vmax.f32 %v929, 0.0
          %v1077 = vmax.f32 %v931, 0.0
          %v1078 = vmax.f32 %v934, 0.0
          %v1079 = vmax.f32 %v936, 0.0
          %v1080 = vmax.f32 %v939, 0.0
          %v1081 = vmax.f32 %v941, 0.0
          %v1082 = vmax.f32 %v944, 0.0
          %v1083 = vmax.f32 %v946, 0.0
          %v1084 = vmax.f32 %v949, 0.0
          %v1085 = vmax.f32 %v951, 0.0
          %v1086 = vmax.f32 %v954, 0.0
          %v1087 = vmax.f32 %v956, 0.0
          %v1088 = vmax.f32 %v959, 0.0
          %v1089 = vmax.f32 %v961, 0.0
          %v1090 = vmax.f32 %v964, 0.0
          %v1091 = vmax.f32 %v966, 0.0
          %v1092 = vmax.f32 %v969, 0.0
          %v1093 = vmax.f32 %v971, 0.0
          %v1094 = vmax.f32 %v974, 0.0
          %v1095 = vmax.f32 %v976, 0.0
          %v1096 = vmax.f32 %v979, 0.0
          %v1097 = vmax.f32 %v981, 0.0
          %v1098 = vmax.f32 %v984, 0.0
          %v1099 = vmax.f32 %v986, 0.0
          %v1100 = vmax.f32 %v989, 0.0
          %v1101 = vmax.f32 %v991, 0.0
          %v1102 = vmax.f32 %v994, 0.0
          %v1103 = vmax.f32 %v996, 0.0
          %v1104 = vmax.f32 %v999, 0.0
          %v1105 = vmax.f32 %v1001, 0.0
          %v1106 = vmax.f32 %v1004, 0.0
          %v1107 = vmax.f32 %v1006, 0.0
          %v1108 = vmax.f32 %v1009, 0.0
          %v1109 = vmax.f32 %v1011, 0.0
          %v1110 = vmax.f32 %v1014, 0.0
          %v1111 = vmax.f32 %v1016, 0.0
          %v1112 = vmax.f32 %v1019, 0.0
          %v1113 = vmax.f32 %v1021, 0.0
          %v1114 = vmax.f32 %v1024, 0.0
          %v1115 = vmax.f32 %v1026, 0.0
          %v1116 = vmax.f32 %v1029, 0.0
          %v1117 = vmax.f32 %v1031, 0.0
          %v1118 = vmax.f32 %v1034, 0.0
          %v1119 = vmax.f32 %v1036, 0.0
          %v1120 = vmax.f32 %v1039, 0.0
          %v1121 = vmax.f32 %v1041, 0.0
          %v1122 = vmax.f32 %v1044, 0.0
          %v1123 = vmax.f32 %v1046, 0.0
          %v1124 = vmax.f32 %v1049, 0.0
          %v1125 = vmax.f32 %v1051, 0.0
          %v1126 = vmax.f32 %v1054, 0.0
          %v1127 = vmax.f32 %v1056, 0.0
          %v1128 = vmax.f32 %v1059, 0.0
          %v1129 = vmax.f32 %v1061, 0.0
          %v1130 = vmax.f32 %v1064, 0.0
          %v1131 = vmax.f32 %v1066, 0.0
          %1196 = vrot.lane.b32.xlu0 %v1068, 64
          %v1197 = vpop.permute.xlu0 %1196
          %1198 = vrot.lane.b32.xlu0 %v1069, 64
          %v1199 = vpop.permute.xlu0 %1198
          %1200 = vrot.lane.b32.xlu0 %v1070, 64
          %v1201 = vpop.permute.xlu0 %1200
          %1202 = vrot.lane.b32.xlu0 %v1071, 64
          %v1203 = vpop.permute.xlu0 %1202
          %1204 = vrot.lane.b32.xlu0 %v1072, 64
          %v1205 = vpop.permute.xlu0 %1204
          %1206 = vrot.lane.b32.xlu0 %v1073, 64
          %v1207 = vpop.permute.xlu0 %1206
          %1208 = vrot.lane.b32.xlu0 %v1074, 64
          %v1209 = vpop.permute.xlu0 %1208
          %1210 = vrot.lane.b32.xlu0 %v1075, 64
          %v1211 = vpop.permute.xlu0 %1210
          %1212 = vrot.lane.b32.xlu0 %v1076, 64
          %v1213 = vpop.permute.xlu0 %1212
          %1214 = vrot.lane.b32.xlu0 %v1077, 64
          %v1215 = vpop.permute.xlu0 %1214
          %1216 = vrot.lane.b32.xlu0 %v1078, 64
          %v1217 = vpop.permute.xlu0 %1216
          %1218 = vrot.lane.b32.xlu0 %v1079, 64
          %v1219 = vpop.permute.xlu0 %1218
          %1220 = vrot.lane.b32.xlu0 %v1080, 64
          %v1221 = vpop.permute.xlu0 %1220
          %1222 = vrot.lane.b32.xlu0 %v1081, 64
          %v1223 = vpop.permute.xlu0 %1222
          %1224 = vrot.lane.b32.xlu0 %v1082, 64
          %v1225 = vpop.permute.xlu0 %1224
          %1226 = vrot.lane.b32.xlu0 %v1083, 64
          %v1227 = vpop.permute.xlu0 %1226
          %1228 = vrot.lane.b32.xlu0 %v1084, 64
          %v1229 = vpop.permute.xlu0 %1228
          %1230 = vrot.lane.b32.xlu0 %v1085, 64
          %v1231 = vpop.permute.xlu0 %1230
          %1232 = vrot.lane.b32.xlu0 %v1086, 64
          %v1233 = vpop.permute.xlu0 %1232
          %1234 = vrot.lane.b32.xlu0 %v1087, 64
          %v1235 = vpop.permute.xlu0 %1234
          %1236 = vrot.lane.b32.xlu0 %v1088, 64
          %v1237 = vpop.permute.xlu0 %1236
          %1238 = vrot.lane.b32.xlu0 %v1089, 64
          %v1239 = vpop.permute.xlu0 %1238
          %1240 = vrot.lane.b32.xlu0 %v1090, 64
          %v1241 = vpop.permute.xlu0 %1240
          %1242 = vrot.lane.b32.xlu0 %v1091, 64
          %v1243 = vpop.permute.xlu0 %1242
          %1244 = vrot.lane.b32.xlu0 %v1092, 64
          %v1245 = vpop.permute.xlu0 %1244
          %1246 = vrot.lane.b32.xlu0 %v1093, 64
          %v1247 = vpop.permute.xlu0 %1246
          %1248 = vrot.lane.b32.xlu0 %v1094, 64
          %v1249 = vpop.permute.xlu0 %1248
          %1250 = vrot.lane.b32.xlu0 %v1095, 64
          %v1251 = vpop.permute.xlu0 %1250
          %1252 = vrot.lane.b32.xlu0 %v1096, 64
          %v1253 = vpop.permute.xlu0 %1252
          %1254 = vrot.lane.b32.xlu0 %v1097, 64
          %v1255 = vpop.permute.xlu0 %1254
          %1256 = vrot.lane.b32.xlu0 %v1098, 64
          %v1257 = vpop.permute.xlu0 %1256
          %1258 = vrot.lane.b32.xlu0 %v1099, 64
          %v1259 = vpop.permute.xlu0 %1258
          %1260 = vrot.lane.b32.xlu0 %v1100, 64
          %v1261 = vpop.permute.xlu0 %1260
          %1262 = vrot.lane.b32.xlu0 %v1101, 64
          %v1263 = vpop.permute.xlu0 %1262
          %1264 = vrot.lane.b32.xlu0 %v1102, 64
          %v1265 = vpop.permute.xlu0 %1264
          %1266 = vrot.lane.b32.xlu0 %v1103, 64
          %v1267 = vpop.permute.xlu0 %1266
          %1268 = vrot.lane.b32.xlu0 %v1104, 64
          %v1269 = vpop.permute.xlu0 %1268
          %1270 = vrot.lane.b32.xlu0 %v1105, 64
          %v1271 = vpop.permute.xlu0 %1270
          %1272 = vrot.lane.b32.xlu0 %v1106, 64
          %v1273 = vpop.permute.xlu0 %1272
          %1274 = vrot.lane.b32.xlu0 %v1107, 64
          %v1275 = vpop.permute.xlu0 %1274
          %1276 = vrot.lane.b32.xlu0 %v1108, 64
          %v1277 = vpop.permute.xlu0 %1276
          %1278 = vrot.lane.b32.xlu0 %v1109, 64
          %v1279 = vpop.permute.xlu0 %1278
          %1280 = vrot.lane.b32.xlu0 %v1110, 64
          %v1281 = vpop.permute.xlu0 %1280
          %1282 = vrot.lane.b32.xlu0 %v1111, 64
          %v1283 = vpop.permute.xlu0 %1282
          %1284 = vrot.lane.b32.xlu0 %v1112, 64
          %v1285 = vpop.permute.xlu0 %1284
          %1286 = vrot.lane.b32.xlu0 %v1113, 64
          %v1287 = vpop.permute.xlu0 %1286
          %1288 = vrot.lane.b32.xlu0 %v1114, 64
          %v1289 = vpop.permute.xlu0 %1288
          %1290 = vrot.lane.b32.xlu0 %v1115, 64
          %v1291 = vpop.permute.xlu0 %1290
          %1292 = vrot.lane.b32.xlu0 %v1116, 64
          %v1293 = vpop.permute.xlu0 %1292
          %1294 = vrot.lane.b32.xlu0 %v1117, 64
          %v1295 = vpop.permute.xlu0 %1294
          %1296 = vrot.lane.b32.xlu0 %v1118, 64
          %v1297 = vpop.permute.xlu0 %1296
          %1298 = vrot.lane.b32.xlu0 %v1119, 64
          %v1299 = vpop.permute.xlu0 %1298
          %1300 = vrot.lane.b32.xlu0 %v1120, 64
          %v1301 = vpop.permute.xlu0 %1300
          %1302 = vrot.lane.b32.xlu0 %v1121, 64
          %v1303 = vpop.permute.xlu0 %1302
          %1304 = vrot.lane.b32.xlu0 %v1122, 64
          %v1305 = vpop.permute.xlu0 %1304
          %1306 = vrot.lane.b32.xlu0 %v1123, 64
          %v1307 = vpop.permute.xlu0 %1306
          %1308 = vrot.lane.b32.xlu0 %v1124, 64
          %v1309 = vpop.permute.xlu0 %1308
          %1310 = vrot.lane.b32.xlu0 %v1125, 64
          %v1311 = vpop.permute.xlu0 %1310
          %1312 = vrot.lane.b32.xlu0 %v1126, 64
          %v1313 = vpop.permute.xlu0 %1312
          %1314 = vrot.lane.b32.xlu0 %v1127, 64
          %v1315 = vpop.permute.xlu0 %1314
          %1316 = vrot.lane.b32.xlu0 %v1128, 64
          %v1317 = vpop.permute.xlu0 %1316
          %1318 = vrot.lane.b32.xlu0 %v1129, 64
          %v1319 = vpop.permute.xlu0 %1318
          %1320 = vrot.lane.b32.xlu0 %v1130, 64
          %v1321 = vpop.permute.xlu0 %1320
          %1322 = vrot.lane.b32.xlu0 %v1131, 64
          %v1323 = vpop.permute.xlu0 %1322
          %v1388 = vmax.f32 %v1068, %v1197
          %v1389 = vmax.f32 %v1069, %v1199
          %v1390 = vmax.f32 %v1070, %v1201
          %v1391 = vmax.f32 %v1071, %v1203
          %v1392 = vmax.f32 %v1072, %v1205
          %v1393 = vmax.f32 %v1073, %v1207
          %v1394 = vmax.f32 %v1074, %v1209
          %v1395 = vmax.f32 %v1075, %v1211
          %v1396 = vmax.f32 %v1076, %v1213
          %v1397 = vmax.f32 %v1077, %v1215
          %v1398 = vmax.f32 %v1078, %v1217
          %v1399 = vmax.f32 %v1079, %v1219
          %v1400 = vmax.f32 %v1080, %v1221
          %v1401 = vmax.f32 %v1081, %v1223
          %v1402 = vmax.f32 %v1082, %v1225
          %v1403 = vmax.f32 %v1083, %v1227
          %v1404 = vmax.f32 %v1084, %v1229
          %v1405 = vmax.f32 %v1085, %v1231
          %v1406 = vmax.f32 %v1086, %v1233
          %v1407 = vmax.f32 %v1087, %v1235
          %v1408 = vmax.f32 %v1088, %v1237
          %v1409 = vmax.f32 %v1089, %v1239
          %v1410 = vmax.f32 %v1090, %v1241
          %v1411 = vmax.f32 %v1091, %v1243
          %v1412 = vmax.f32 %v1092, %v1245
          %v1413 = vmax.f32 %v1093, %v1247
          %v1414 = vmax.f32 %v1094, %v1249
          %v1415 = vmax.f32 %v1095, %v1251
          %v1416 = vmax.f32 %v1096, %v1253
          %v1417 = vmax.f32 %v1097, %v1255
          %v1418 = vmax.f32 %v1098, %v1257
          %v1419 = vmax.f32 %v1099, %v1259
          %v1420 = vmax.f32 %v1100, %v1261
          %v1421 = vmax.f32 %v1101, %v1263
          %v1422 = vmax.f32 %v1102, %v1265
          %v1423 = vmax.f32 %v1103, %v1267
          %v1424 = vmax.f32 %v1104, %v1269
          %v1425 = vmax.f32 %v1105, %v1271
          %v1426 = vmax.f32 %v1106, %v1273
          %v1427 = vmax.f32 %v1107, %v1275
          %v1428 = vmax.f32 %v1108, %v1277
          %v1429 = vmax.f32 %v1109, %v1279
          %v1430 = vmax.f32 %v1110, %v1281
          %v1431 = vmax.f32 %v1111, %v1283
          %v1432 = vmax.f32 %v1112, %v1285
          %v1433 = vmax.f32 %v1113, %v1287
          %v1434 = vmax.f32 %v1114, %v1289
          %v1435 = vmax.f32 %v1115, %v1291
          %v1436 = vmax.f32 %v1116, %v1293
          %v1437 = vmax.f32 %v1117, %v1295
          %v1438 = vmax.f32 %v1118, %v1297
          %v1439 = vmax.f32 %v1119, %v1299
          %v1440 = vmax.f32 %v1120, %v1301
          %v1441 = vmax.f32 %v1121, %v1303
          %v1442 = vmax.f32 %v1122, %v1305
          %v1443 = vmax.f32 %v1123, %v1307
          %v1444 = vmax.f32 %v1124, %v1309
          %v1445 = vmax.f32 %v1125, %v1311
          %v1446 = vmax.f32 %v1126, %v1313
          %v1447 = vmax.f32 %v1127, %v1315
          %v1448 = vmax.f32 %v1128, %v1317
          %v1449 = vmax.f32 %v1129, %v1319
          %v1450 = vmax.f32 %v1130, %v1321
          %v1451 = vmax.f32 %v1131, %v1323
          %1516 = vrot.lane.b32.xlu0 %v1388, 96
          %v1517 = vpop.permute.xlu0 %1516
          %1518 = vrot.lane.b32.xlu0 %v1389, 96
          %v1519 = vpop.permute.xlu0 %1518
          %1520 = vrot.lane.b32.xlu0 %v1390, 96
          %v1521 = vpop.permute.xlu0 %1520
          %1522 = vrot.lane.b32.xlu0 %v1391, 96
          %v1523 = vpop.permute.xlu0 %1522
          %1524 = vrot.lane.b32.xlu0 %v1392, 96
          %v1525 = vpop.permute.xlu0 %1524
          %1526 = vrot.lane.b32.xlu0 %v1393, 96
          %v1527 = vpop.permute.xlu0 %1526
          %1528 = vrot.lane.b32.xlu0 %v1394, 96
          %v1529 = vpop.permute.xlu0 %1528
          %1530 = vrot.lane.b32.xlu0 %v1395, 96
          %v1531 = vpop.permute.xlu0 %1530
          %1532 = vrot.lane.b32.xlu0 %v1396, 96
          %v1533 = vpop.permute.xlu0 %1532
          %1534 = vrot.lane.b32.xlu0 %v1397, 96
          %v1535 = vpop.permute.xlu0 %1534
          %1536 = vrot.lane.b32.xlu0 %v1398, 96
          %v1537 = vpop.permute.xlu0 %1536
          %1538 = vrot.lane.b32.xlu0 %v1399, 96
          %v1539 = vpop.permute.xlu0 %1538
          %1540 = vrot.lane.b32.xlu0 %v1400, 96
          %v1541 = vpop.permute.xlu0 %1540
          %1542 = vrot.lane.b32.xlu0 %v1401, 96
          %v1543 = vpop.permute.xlu0 %1542
          %1544 = vrot.lane.b32.xlu0 %v1402, 96
          %v1545 = vpop.permute.xlu0 %1544
          %1546 = vrot.lane.b32.xlu0 %v1403, 96
          %v1547 = vpop.permute.xlu0 %1546
          %1548 = vrot.lane.b32.xlu0 %v1404, 96
          %v1549 = vpop.permute.xlu0 %1548
          %1550 = vrot.lane.b32.xlu0 %v1405, 96
          %v1551 = vpop.permute.xlu0 %1550
          %1552 = vrot.lane.b32.xlu0 %v1406, 96
          %v1553 = vpop.permute.xlu0 %1552
          %1554 = vrot.lane.b32.xlu0 %v1407, 96
          %v1555 = vpop.permute.xlu0 %1554
          %1556 = vrot.lane.b32.xlu0 %v1408, 96
          %v1557 = vpop.permute.xlu0 %1556
          %1558 = vrot.lane.b32.xlu0 %v1409, 96
          %v1559 = vpop.permute.xlu0 %1558
          %1560 = vrot.lane.b32.xlu0 %v1410, 96
          %v1561 = vpop.permute.xlu0 %1560
          %1562 = vrot.lane.b32.xlu0 %v1411, 96
          %v1563 = vpop.permute.xlu0 %1562
          %1564 = vrot.lane.b32.xlu0 %v1412, 96
          %v1565 = vpop.permute.xlu0 %1564
          %1566 = vrot.lane.b32.xlu0 %v1413, 96
          %v1567 = vpop.permute.xlu0 %1566
          %1568 = vrot.lane.b32.xlu0 %v1414, 96
          %v1569 = vpop.permute.xlu0 %1568
          %1570 = vrot.lane.b32.xlu0 %v1415, 96
          %v1571 = vpop.permute.xlu0 %1570
          %1572 = vrot.lane.b32.xlu0 %v1416, 96
          %v1573 = vpop.permute.xlu0 %1572
          %1574 = vrot.lane.b32.xlu0 %v1417, 96
          %v1575 = vpop.permute.xlu0 %1574
          %1576 = vrot.lane.b32.xlu0 %v1418, 96
          %v1577 = vpop.permute.xlu0 %1576
          %1578 = vrot.lane.b32.xlu0 %v1419, 96
          %v1579 = vpop.permute.xlu0 %1578
          %1580 = vrot.lane.b32.xlu0 %v1420, 96
          %v1581 = vpop.permute.xlu0 %1580
          %1582 = vrot.lane.b32.xlu0 %v1421, 96
          %v1583 = vpop.permute.xlu0 %1582
          %1584 = vrot.lane.b32.xlu0 %v1422, 96
          %v1585 = vpop.permute.xlu0 %1584
          %1586 = vrot.lane.b32.xlu0 %v1423, 96
          %v1587 = vpop.permute.xlu0 %1586
          %1588 = vrot.lane.b32.xlu0 %v1424, 96
          %v1589 = vpop.permute.xlu0 %1588
          %1590 = vrot.lane.b32.xlu0 %v1425, 96
          %v1591 = vpop.permute.xlu0 %1590
          %1592 = vrot.lane.b32.xlu0 %v1426, 96
          %v1593 = vpop.permute.xlu0 %1592
          %1594 = vrot.lane.b32.xlu0 %v1427, 96
          %v1595 = vpop.permute.xlu0 %1594
          %1596 = vrot.lane.b32.xlu0 %v1428, 96
          %v1597 = vpop.permute.xlu0 %1596
          %1598 = vrot.lane.b32.xlu0 %v1429, 96
          %v1599 = vpop.permute.xlu0 %1598
          %1600 = vrot.lane.b32.xlu0 %v1430, 96
          %v1601 = vpop.permute.xlu0 %1600
          %1602 = vrot.lane.b32.xlu0 %v1431, 96
          %v1603 = vpop.permute.xlu0 %1602
          %1604 = vrot.lane.b32.xlu0 %v1432, 96
          %v1605 = vpop.permute.xlu0 %1604
          %1606 = vrot.lane.b32.xlu0 %v1433, 96
          %v1607 = vpop.permute.xlu0 %1606
          %1608 = vrot.lane.b32.xlu0 %v1434, 96
          %v1609 = vpop.permute.xlu0 %1608
          %1610 = vrot.lane.b32.xlu0 %v1435, 96
          %v1611 = vpop.permute.xlu0 %1610
          %1612 = vrot.lane.b32.xlu0 %v1436, 96
          %v1613 = vpop.permute.xlu0 %1612
          %1614 = vrot.lane.b32.xlu0 %v1437, 96
          %v1615 = vpop.permute.xlu0 %1614
          %1616 = vrot.lane.b32.xlu0 %v1438, 96
          %v1617 = vpop.permute.xlu0 %1616
          %1618 = vrot.lane.b32.xlu0 %v1439, 96
          %v1619 = vpop.permute.xlu0 %1618
          %1620 = vrot.lane.b32.xlu0 %v1440, 96
          %v1621 = vpop.permute.xlu0 %1620
          %1622 = vrot.lane.b32.xlu0 %v1441, 96
          %v1623 = vpop.permute.xlu0 %1622
          %1624 = vrot.lane.b32.xlu0 %v1442, 96
          %v1625 = vpop.permute.xlu0 %1624
          %1626 = vrot.lane.b32.xlu0 %v1443, 96
          %v1627 = vpop.permute.xlu0 %1626
          %1628 = vrot.lane.b32.xlu0 %v1444, 96
          %v1629 = vpop.permute.xlu0 %1628
          %1630 = vrot.lane.b32.xlu0 %v1445, 96
          %v1631 = vpop.permute.xlu0 %1630
          %1632 = vrot.lane.b32.xlu0 %v1446, 96
          %v1633 = vpop.permute.xlu0 %1632
          %1634 = vrot.lane.b32.xlu0 %v1447, 96
          %v1635 = vpop.permute.xlu0 %1634
          %1636 = vrot.lane.b32.xlu0 %v1448, 96
          %v1637 = vpop.permute.xlu0 %1636
          %1638 = vrot.lane.b32.xlu0 %v1449, 96
          %v1639 = vpop.permute.xlu0 %1638
          %1640 = vrot.lane.b32.xlu0 %v1450, 96
          %v1641 = vpop.permute.xlu0 %1640
          %1642 = vrot.lane.b32.xlu0 %v1451, 96
          %v1643 = vpop.permute.xlu0 %1642
          %v1708 = vmax.f32 %v1388, %v1517
          %v1709 = vmax.f32 %v1389, %v1519
          %v1710 = vmax.f32 %v1390, %v1521
          %v1711 = vmax.f32 %v1391, %v1523
          %v1712 = vmax.f32 %v1392, %v1525
          %v1713 = vmax.f32 %v1393, %v1527
          %v1714 = vmax.f32 %v1394, %v1529
          %v1715 = vmax.f32 %v1395, %v1531
          %v1716 = vmax.f32 %v1396, %v1533
          %v1717 = vmax.f32 %v1397, %v1535
          %v1718 = vmax.f32 %v1398, %v1537
          %v1719 = vmax.f32 %v1399, %v1539
          %v1720 = vmax.f32 %v1400, %v1541
          %v1721 = vmax.f32 %v1401, %v1543
          %v1722 = vmax.f32 %v1402, %v1545
          %v1723 = vmax.f32 %v1403, %v1547
          %v1724 = vmax.f32 %v1404, %v1549
          %v1725 = vmax.f32 %v1405, %v1551
          %v1726 = vmax.f32 %v1406, %v1553
          %v1727 = vmax.f32 %v1407, %v1555
          %v1728 = vmax.f32 %v1408, %v1557
          %v1729 = vmax.f32 %v1409, %v1559
          %v1730 = vmax.f32 %v1410, %v1561
          %v1731 = vmax.f32 %v1411, %v1563
          %v1732 = vmax.f32 %v1412, %v1565
          %v1733 = vmax.f32 %v1413, %v1567
          %v1734 = vmax.f32 %v1414, %v1569
          %v1735 = vmax.f32 %v1415, %v1571
          %v1736 = vmax.f32 %v1416, %v1573
          %v1737 = vmax.f32 %v1417, %v1575
          %v1738 = vmax.f32 %v1418, %v1577
          %v1739 = vmax.f32 %v1419, %v1579
          %v1740 = vmax.f32 %v1420, %v1581
          %v1741 = vmax.f32 %v1421, %v1583
          %v1742 = vmax.f32 %v1422, %v1585
          %v1743 = vmax.f32 %v1423, %v1587
          %v1744 = vmax.f32 %v1424, %v1589
          %v1745 = vmax.f32 %v1425, %v1591
          %v1746 = vmax.f32 %v1426, %v1593
          %v1747 = vmax.f32 %v1427, %v1595
          %v1748 = vmax.f32 %v1428, %v1597
          %v1749 = vmax.f32 %v1429, %v1599
          %v1750 = vmax.f32 %v1430, %v1601
          %v1751 = vmax.f32 %v1431, %v1603
          %v1752 = vmax.f32 %v1432, %v1605
          %v1753 = vmax.f32 %v1433, %v1607
          %v1754 = vmax.f32 %v1434, %v1609
          %v1755 = vmax.f32 %v1435, %v1611
          %v1756 = vmax.f32 %v1436, %v1613
          %v1757 = vmax.f32 %v1437, %v1615
          %v1758 = vmax.f32 %v1438, %v1617
          %v1759 = vmax.f32 %v1439, %v1619
          %v1760 = vmax.f32 %v1440, %v1621
          %v1761 = vmax.f32 %v1441, %v1623
          %v1762 = vmax.f32 %v1442, %v1625
          %v1763 = vmax.f32 %v1443, %v1627
          %v1764 = vmax.f32 %v1444, %v1629
          %v1765 = vmax.f32 %v1445, %v1631
          %v1766 = vmax.f32 %v1446, %v1633
          %v1767 = vmax.f32 %v1447, %v1635
          %v1768 = vmax.f32 %v1448, %v1637
          %v1769 = vmax.f32 %v1449, %v1639
          %v1770 = vmax.f32 %v1450, %v1641
          %v1771 = vmax.f32 %v1451, %v1643
          %vm1772 = vcmask 261120
          %v1773 = vsel %vm1772, %v1708, 0.0
          %v1774 = vsel %vm1772, %v1716, 0.0
          %v1775 = vadd.f32 %v1773, %v1774
          %v1776 = vsel %vm1772, %v1724, 0.0
          %v1777 = vadd.f32 %v1775, %v1776
          %v1778 = vsel %vm1772, %v1732, 0.0
          %v1779 = vadd.f32 %v1777, %v1778
          %v1780 = vsel %vm1772, %v1709, 0.0
          %v1781 = vsel %vm1772, %v1717, 0.0
          %v1782 = vadd.f32 %v1780, %v1781
          %v1783 = vsel %vm1772, %v1725, 0.0
          %v1784 = vadd.f32 %v1782, %v1783
          %v1785 = vsel %vm1772, %v1733, 0.0
          %v1786 = vadd.f32 %v1784, %v1785
          %v1787 = vsel %vm1772, %v1710, 0.0
          %v1788 = vsel %vm1772, %v1718, 0.0
          %v1789 = vadd.f32 %v1787, %v1788
          %v1790 = vsel %vm1772, %v1726, 0.0
          %v1791 = vadd.f32 %v1789, %v1790
          %v1792 = vsel %vm1772, %v1734, 0.0
          %v1793 = vadd.f32 %v1791, %v1792
          %v1794 = vsel %vm1772, %v1711, 0.0
          %v1795 = vsel %vm1772, %v1719, 0.0
          %v1796 = vadd.f32 %v1794, %v1795
          %v1797 = vsel %vm1772, %v1727, 0.0
          %v1798 = vadd.f32 %v1796, %v1797
          %v1799 = vsel %vm1772, %v1735, 0.0
          %v1800 = vadd.f32 %v1798, %v1799
          %v1801 = vsel %vm1772, %v1712, 0.0
          %v1802 = vsel %vm1772, %v1720, 0.0
          %v1803 = vadd.f32 %v1801, %v1802
          %v1804 = vsel %vm1772, %v1728, 0.0
          %v1805 = vadd.f32 %v1803, %v1804
          %v1806 = vsel %vm1772, %v1736, 0.0
          %v1807 = vadd.f32 %v1805, %v1806
          %v1808 = vsel %vm1772, %v1713, 0.0
          %v1809 = vsel %vm1772, %v1721, 0.0
          %v1810 = vadd.f32 %v1808, %v1809
          %v1811 = vsel %vm1772, %v1729, 0.0
          %v1812 = vadd.f32 %v1810, %v1811
          %v1813 = vsel %vm1772, %v1737, 0.0
          %v1814 = vadd.f32 %v1812, %v1813
          %v1815 = vsel %vm1772, %v1714, 0.0
          %v1816 = vsel %vm1772, %v1722, 0.0
          %v1817 = vadd.f32 %v1815, %v1816
          %v1818 = vsel %vm1772, %v1730, 0.0
          %v1819 = vadd.f32 %v1817, %v1818
          %v1820 = vsel %vm1772, %v1738, 0.0
          %v1821 = vadd.f32 %v1819, %v1820
          %v1822 = vsel %vm1772, %v1715, 0.0
          %v1823 = vsel %vm1772, %v1723, 0.0
          %v1824 = vadd.f32 %v1822, %v1823
          %v1825 = vsel %vm1772, %v1731, 0.0
          %v1826 = vadd.f32 %v1824, %v1825
          %v1827 = vsel %vm1772, %v1739, 0.0
          %v1828 = vadd.f32 %v1826, %v1827
          %v1829 = vsel %vm1772, %v1740, 0.0
          %v1830 = vsel %vm1772, %v1748, 0.0
          %v1831 = vadd.f32 %v1829, %v1830
          %v1832 = vsel %vm1772, %v1756, 0.0
          %v1833 = vadd.f32 %v1831, %v1832
          %v1834 = vsel %vm1772, %v1764, 0.0
          %v1835 = vadd.f32 %v1833, %v1834
          %v1836 = vsel %vm1772, %v1741, 0.0
          %v1837 = vsel %vm1772, %v1749, 0.0
          %v1838 = vadd.f32 %v1836, %v1837
          %v1839 = vsel %vm1772, %v1757, 0.0
          %v1840 = vadd.f32 %v1838, %v1839
          %v1841 = vsel %vm1772, %v1765, 0.0
          %v1842 = vadd.f32 %v1840, %v1841
          %v1843 = vsel %vm1772, %v1742, 0.0
          %v1844 = vsel %vm1772, %v1750, 0.0
          %v1845 = vadd.f32 %v1843, %v1844
          %v1846 = vsel %vm1772, %v1758, 0.0
          %v1847 = vadd.f32 %v1845, %v1846
          %v1848 = vsel %vm1772, %v1766, 0.0
          %v1849 = vadd.f32 %v1847, %v1848
          %v1850 = vsel %vm1772, %v1743, 0.0
          %v1851 = vsel %vm1772, %v1751, 0.0
          %v1852 = vadd.f32 %v1850, %v1851
          %v1853 = vsel %vm1772, %v1759, 0.0
          %v1854 = vadd.f32 %v1852, %v1853
          %v1855 = vsel %vm1772, %v1767, 0.0
          %v1856 = vadd.f32 %v1854, %v1855
          %v1857 = vsel %vm1772, %v1744, 0.0
          %v1858 = vsel %vm1772, %v1752, 0.0
          %v1859 = vadd.f32 %v1857, %v1858
          %v1860 = vsel %vm1772, %v1760, 0.0
          %v1861 = vadd.f32 %v1859, %v1860
          %v1862 = vsel %vm1772, %v1768, 0.0
          %v1863 = vadd.f32 %v1861, %v1862
          %v1864 = vsel %vm1772, %v1745, 0.0
          %v1865 = vsel %vm1772, %v1753, 0.0
          %v1866 = vadd.f32 %v1864, %v1865
          %v1867 = vsel %vm1772, %v1761, 0.0
          %v1868 = vadd.f32 %v1866, %v1867
          %v1869 = vsel %vm1772, %v1769, 0.0
          %v1870 = vadd.f32 %v1868, %v1869
          %v1871 = vsel %vm1772, %v1746, 0.0
          %v1872 = vsel %vm1772, %v1754, 0.0
          %v1873 = vadd.f32 %v1871, %v1872
          %v1874 = vsel %vm1772, %v1762, 0.0
          %v1875 = vadd.f32 %v1873, %v1874
          %v1876 = vsel %vm1772, %v1770, 0.0
          %v1877 = vadd.f32 %v1875, %v1876
          %v1878 = vsel %vm1772, %v1747, 0.0
          %v1879 = vsel %vm1772, %v1755, 0.0
          %v1880 = vadd.f32 %v1878, %v1879
          %v1881 = vsel %vm1772, %v1763, 0.0
          %v1882 = vadd.f32 %v1880, %v1881
          %v1883 = vsel %vm1772, %v1771, 0.0
          %v1884 = vadd.f32 %v1882, %v1883
          %v1885 = vrcp.pop 4.0
          %v1886 = vmul.f32 4.0, %v1885
          %v1887 = vsub.f32 1.0, %v1886
          %v1888 = vmul.f32 %v1885, %v1887
          %v1889 = vadd.f32 %v1885, %v1888
          %vm1890 = vweird.f32 %v1885
          %v1891 = vsel %vm1890, %v1885, %v1889
          %v1892 = vmul.f32 %v1779, %v1891
          %v1893 = vmul.f32 %v1786, %v1891
          %v1894 = vmul.f32 %v1793, %v1891
          %v1895 = vmul.f32 %v1800, %v1891
          %v1896 = vmul.f32 %v1807, %v1891
          %v1897 = vmul.f32 %v1814, %v1891
          %v1898 = vmul.f32 %v1821, %v1891
          %v1899 = vmul.f32 %v1828, %v1891
          %v1900 = vmul.f32 %v1835, %v1891
          %v1901 = vmul.f32 %v1842, %v1891
          %v1902 = vmul.f32 %v1849, %v1891
          %v1903 = vmul.f32 %v1856, %v1891
          %v1904 = vmul.f32 %v1863, %v1891
          %v1905 = vmul.f32 %v1870, %v1891
          %v1906 = vmul.f32 %v1877, %v1891
          %v1907 = vmul.f32 %v1884, %v1891
          %v1908 = vrot.slane %v1892, 4
          %vm1909 = vcmask 1047556
          %v1910 = vsel %vm1909, 0.0, %v1908
          %v1912 = vunpack.c.l.s4 1983009808
          %v1913 = vunpack.c.0.s8 %v1912
          %v1914 = vperm.slane %v1892, %v1913
          %v1916 = vunpack.c.l.s4 1983009808
          %v1917 = vunpack.c.0.s8 %v1916
          %v1918 = vperm.slane %v1910, %v1917
          %v1919 = vrot.slane %v1900, 4
          %v1920 = vsel %vm1909, 0.0, %v1919
          %v1922 = vunpack.c.l.s4 1983009808
          %v1923 = vunpack.c.0.s8 %v1922
          %v1924 = vperm.slane %v1900, %v1923
          %v1926 = vunpack.c.l.s4 1983009808
          %v1927 = vunpack.c.0.s8 %v1926
          %v1928 = vperm.slane %v1920, %v1927
          %v1929 = vrot.slane %v1924, 4
          %v1930 = vsel %vm1909, %v1929, %v1914
          %v1931 = vrot.slane %v1914, 4
          %v1932 = vsel %vm1909, %v1924, %v1931
          %v1934 = vunpack.c.l.s4 1934713408
          %v1935 = vunpack.c.0.s8 %v1934
          %v1936 = vperm.slane %v1930, %v1935
          %v1938 = vunpack.c.l.s4 1934713408
          %v1939 = vunpack.c.0.s8 %v1938
          %v1940 = vperm.slane %v1932, %v1939
          %v1941 = vrot.slane %v1928, 4
          %v1942 = vsel %vm1909, %v1941, %v1918
          %v1943 = vrot.slane %v1918, 4
          %v1944 = vsel %vm1909, %v1928, %v1943
          %v1946 = vunpack.c.l.s4 1934713408
          %v1947 = vunpack.c.0.s8 %v1946
          %v1948 = vperm.slane %v1942, %v1947
          %v1950 = vunpack.c.l.s4 1934713408
          %v1951 = vunpack.c.0.s8 %v1950
          %v1952 = vperm.slane %v1944, %v1951
          %v1953 = vrot.slane %v1936, 4
          %v1954 = vsel %vm1909, 0.0, %v1953
          %v1955 = vrot.slane %v1940, 4
          %v1956 = vsel %vm1909, 0.0, %v1955
          %v1957 = vrot.slane %v1948, 4
          %v1958 = vsel %vm1909, 0.0, %v1957
          %v1959 = vrot.slane %v1952, 4
          %v1960 = vsel %vm1909, 0.0, %v1959
          %v1961 = vrot.slane %v1893, 4
          %v1962 = vsel %vm1909, 0.0, %v1961
          %v1964 = vunpack.c.l.s4 1983009808
          %v1965 = vunpack.c.0.s8 %v1964
          %v1966 = vperm.slane %v1893, %v1965
          %v1968 = vunpack.c.l.s4 1983009808
          %v1969 = vunpack.c.0.s8 %v1968
          %v1970 = vperm.slane %v1962, %v1969
          %v1971 = vrot.slane %v1901, 4
          %v1972 = vsel %vm1909, 0.0, %v1971
          %v1974 = vunpack.c.l.s4 1983009808
          %v1975 = vunpack.c.0.s8 %v1974
          %v1976 = vperm.slane %v1901, %v1975
          %v1978 = vunpack.c.l.s4 1983009808
          %v1979 = vunpack.c.0.s8 %v1978
          %v1980 = vperm.slane %v1972, %v1979
          %v1981 = vrot.slane %v1976, 4
          %v1982 = vsel %vm1909, %v1981, %v1966
          %v1983 = vrot.slane %v1966, 4
          %v1984 = vsel %vm1909, %v1976, %v1983
          %v1986 = vunpack.c.l.s4 1934713408
          %v1987 = vunpack.c.0.s8 %v1986
          %v1988 = vperm.slane %v1982, %v1987
          %v1990 = vunpack.c.l.s4 1934713408
          %v1991 = vunpack.c.0.s8 %v1990
          %v1992 = vperm.slane %v1984, %v1991
          %v1993 = vrot.slane %v1980, 4
          %v1994 = vsel %vm1909, %v1993, %v1970
          %v1995 = vrot.slane %v1970, 4
          %v1996 = vsel %vm1909, %v1980, %v1995
          %v1998 = vunpack.c.l.s4 1934713408
          %v1999 = vunpack.c.0.s8 %v1998
          %v2000 = vperm.slane %v1994, %v1999
          %v2002 = vunpack.c.l.s4 1934713408
          %v2003 = vunpack.c.0.s8 %v2002
          %v2004 = vperm.slane %v1996, %v2003
          %v2005 = vrot.slane %v1988, 4
          %v2006 = vsel %vm1909, 0.0, %v2005
          %v2007 = vrot.slane %v1992, 4
          %v2008 = vsel %vm1909, 0.0, %v2007
          %v2009 = vrot.slane %v2000, 4
          %v2010 = vsel %vm1909, 0.0, %v2009
          %v2011 = vrot.slane %v2004, 4
          %v2012 = vsel %vm1909, 0.0, %v2011
          %v2013 = vrot.slane %v1894, 4
          %v2014 = vsel %vm1909, 0.0, %v2013
          %v2016 = vunpack.c.l.s4 1983009808
          %v2017 = vunpack.c.0.s8 %v2016
          %v2018 = vperm.slane %v1894, %v2017
          %v2020 = vunpack.c.l.s4 1983009808
          %v2021 = vunpack.c.0.s8 %v2020
          %v2022 = vperm.slane %v2014, %v2021
          %v2023 = vrot.slane %v1902, 4
          %v2024 = vsel %vm1909, 0.0, %v2023
          %v2026 = vunpack.c.l.s4 1983009808
          %v2027 = vunpack.c.0.s8 %v2026
          %v2028 = vperm.slane %v1902, %v2027
          %v2030 = vunpack.c.l.s4 1983009808
          %v2031 = vunpack.c.0.s8 %v2030
          %v2032 = vperm.slane %v2024, %v2031
          %v2033 = vrot.slane %v2028, 4
          %v2034 = vsel %vm1909, %v2033, %v2018
          %v2035 = vrot.slane %v2018, 4
          %v2036 = vsel %vm1909, %v2028, %v2035
          %v2038 = vunpack.c.l.s4 1934713408
          %v2039 = vunpack.c.0.s8 %v2038
          %v2040 = vperm.slane %v2034, %v2039
          %v2042 = vunpack.c.l.s4 1934713408
          %v2043 = vunpack.c.0.s8 %v2042
          %v2044 = vperm.slane %v2036, %v2043
          %v2045 = vrot.slane %v2032, 4
          %v2046 = vsel %vm1909, %v2045, %v2022
          %v2047 = vrot.slane %v2022, 4
          %v2048 = vsel %vm1909, %v2032, %v2047
          %v2050 = vunpack.c.l.s4 1934713408
          %v2051 = vunpack.c.0.s8 %v2050
          %v2052 = vperm.slane %v2046, %v2051
          %v2054 = vunpack.c.l.s4 1934713408
          %v2055 = vunpack.c.0.s8 %v2054
          %v2056 = vperm.slane %v2048, %v2055
          %v2057 = vrot.slane %v2040, 4
          %v2058 = vsel %vm1909, 0.0, %v2057
          %v2059 = vrot.slane %v2044, 4
          %v2060 = vsel %vm1909, 0.0, %v2059
          %v2061 = vrot.slane %v2052, 4
          %v2062 = vsel %vm1909, 0.0, %v2061
          %v2063 = vrot.slane %v2056, 4
          %v2064 = vsel %vm1909, 0.0, %v2063
          %v2065 = vrot.slane %v1895, 4
          %v2066 = vsel %vm1909, 0.0, %v2065
          %v2068 = vunpack.c.l.s4 1983009808
          %v2069 = vunpack.c.0.s8 %v2068
          %v2070 = vperm.slane %v1895, %v2069
          %v2072 = vunpack.c.l.s4 1983009808
          %v2073 = vunpack.c.0.s8 %v2072
          %v2074 = vperm.slane %v2066, %v2073
          %v2075 = vrot.slane %v1903, 4
          %v2076 = vsel %vm1909, 0.0, %v2075
          %v2078 = vunpack.c.l.s4 1983009808
          %v2079 = vunpack.c.0.s8 %v2078
          %v2080 = vperm.slane %v1903, %v2079
          %v2082 = vunpack.c.l.s4 1983009808
          %v2083 = vunpack.c.0.s8 %v2082
          %v2084 = vperm.slane %v2076, %v2083
          %v2085 = vrot.slane %v2080, 4
          %v2086 = vsel %vm1909, %v2085, %v2070
          %v2087 = vrot.slane %v2070, 4
          %v2088 = vsel %vm1909, %v2080, %v2087
          %v2090 = vunpack.c.l.s4 1934713408
          %v2091 = vunpack.c.0.s8 %v2090
          %v2092 = vperm.slane %v2086, %v2091
          %v2094 = vunpack.c.l.s4 1934713408
          %v2095 = vunpack.c.0.s8 %v2094
          %v2096 = vperm.slane %v2088, %v2095
          %v2097 = vrot.slane %v2084, 4
          %v2098 = vsel %vm1909, %v2097, %v2074
          %v2099 = vrot.slane %v2074, 4
          %v2100 = vsel %vm1909, %v2084, %v2099
          %v2102 = vunpack.c.l.s4 1934713408
          %v2103 = vunpack.c.0.s8 %v2102
          %v2104 = vperm.slane %v2098, %v2103
          %v2106 = vunpack.c.l.s4 1934713408
          %v2107 = vunpack.c.0.s8 %v2106
          %v2108 = vperm.slane %v2100, %v2107
          %v2109 = vrot.slane %v2092, 4
          %v2110 = vsel %vm1909, 0.0, %v2109
          %v2111 = vrot.slane %v2096, 4
          %v2112 = vsel %vm1909, 0.0, %v2111
          %v2113 = vrot.slane %v2104, 4
          %v2114 = vsel %vm1909, 0.0, %v2113
          %v2115 = vrot.slane %v2108, 4
          %v2116 = vsel %vm1909, 0.0, %v2115
          %v2117 = vrot.slane %v1896, 4
          %v2118 = vsel %vm1909, 0.0, %v2117
          %v2120 = vunpack.c.l.s4 1983009808
          %v2121 = vunpack.c.0.s8 %v2120
          %v2122 = vperm.slane %v1896, %v2121
          %v2124 = vunpack.c.l.s4 1983009808
          %v2125 = vunpack.c.0.s8 %v2124
          %v2126 = vperm.slane %v2118, %v2125
          %v2127 = vrot.slane %v1904, 4
          %v2128 = vsel %vm1909, 0.0, %v2127
          %v2130 = vunpack.c.l.s4 1983009808
          %v2131 = vunpack.c.0.s8 %v2130
          %v2132 = vperm.slane %v1904, %v2131
          %v2134 = vunpack.c.l.s4 1983009808
          %v2135 = vunpack.c.0.s8 %v2134
          %v2136 = vperm.slane %v2128, %v2135
          %v2137 = vrot.slane %v2132, 4
          %v2138 = vsel %vm1909, %v2137, %v2122
          %v2139 = vrot.slane %v2122, 4
          %v2140 = vsel %vm1909, %v2132, %v2139
          %v2142 = vunpack.c.l.s4 1934713408
          %v2143 = vunpack.c.0.s8 %v2142
          %v2144 = vperm.slane %v2138, %v2143
          %v2146 = vunpack.c.l.s4 1934713408
          %v2147 = vunpack.c.0.s8 %v2146
          %v2148 = vperm.slane %v2140, %v2147
          %v2149 = vrot.slane %v2136, 4
          %v2150 = vsel %vm1909, %v2149, %v2126
          %v2151 = vrot.slane %v2126, 4
          %v2152 = vsel %vm1909, %v2136, %v2151
          %v2154 = vunpack.c.l.s4 1934713408
          %v2155 = vunpack.c.0.s8 %v2154
          %v2156 = vperm.slane %v2150, %v2155
          %v2158 = vunpack.c.l.s4 1934713408
          %v2159 = vunpack.c.0.s8 %v2158
          %v2160 = vperm.slane %v2152, %v2159
          %v2161 = vrot.slane %v2144, 4
          %v2162 = vsel %vm1909, 0.0, %v2161
          %v2163 = vrot.slane %v2148, 4
          %v2164 = vsel %vm1909, 0.0, %v2163
          %v2165 = vrot.slane %v2156, 4
          %v2166 = vsel %vm1909, 0.0, %v2165
          %v2167 = vrot.slane %v2160, 4
          %v2168 = vsel %vm1909, 0.0, %v2167
          %v2169 = vrot.slane %v1897, 4
          %v2170 = vsel %vm1909, 0.0, %v2169
          %v2172 = vunpack.c.l.s4 1983009808
          %v2173 = vunpack.c.0.s8 %v2172
          %v2174 = vperm.slane %v1897, %v2173
          %v2176 = vunpack.c.l.s4 1983009808
          %v2177 = vunpack.c.0.s8 %v2176
          %v2178 = vperm.slane %v2170, %v2177
          %v2179 = vrot.slane %v1905, 4
          %v2180 = vsel %vm1909, 0.0, %v2179
          %v2182 = vunpack.c.l.s4 1983009808
          %v2183 = vunpack.c.0.s8 %v2182
          %v2184 = vperm.slane %v1905, %v2183
          %v2186 = vunpack.c.l.s4 1983009808
          %v2187 = vunpack.c.0.s8 %v2186
          %v2188 = vperm.slane %v2180, %v2187
          %v2189 = vrot.slane %v2184, 4
          %v2190 = vsel %vm1909, %v2189, %v2174
          %v2191 = vrot.slane %v2174, 4
          %v2192 = vsel %vm1909, %v2184, %v2191
          %v2194 = vunpack.c.l.s4 1934713408
          %v2195 = vunpack.c.0.s8 %v2194
          %v2196 = vperm.slane %v2190, %v2195
          %v2198 = vunpack.c.l.s4 1934713408
          %v2199 = vunpack.c.0.s8 %v2198
          %v2200 = vperm.slane %v2192, %v2199
          %v2201 = vrot.slane %v2188, 4
          %v2202 = vsel %vm1909, %v2201, %v2178
          %v2203 = vrot.slane %v2178, 4
          %v2204 = vsel %vm1909, %v2188, %v2203
          %v2206 = vunpack.c.l.s4 1934713408
          %v2207 = vunpack.c.0.s8 %v2206
          %v2208 = vperm.slane %v2202, %v2207
          %v2210 = vunpack.c.l.s4 1934713408
          %v2211 = vunpack.c.0.s8 %v2210
          %v2212 = vperm.slane %v2204, %v2211
          %v2213 = vrot.slane %v2196, 4
          %v2214 = vsel %vm1909, 0.0, %v2213
          %v2215 = vrot.slane %v2200, 4
          %v2216 = vsel %vm1909, 0.0, %v2215
          %v2217 = vrot.slane %v2208, 4
          %v2218 = vsel %vm1909, 0.0, %v2217
          %v2219 = vrot.slane %v2212, 4
          %v2220 = vsel %vm1909, 0.0, %v2219
          %v2221 = vrot.slane %v1898, 4
          %v2222 = vsel %vm1909, 0.0, %v2221
          %v2224 = vunpack.c.l.s4 1983009808
          %v2225 = vunpack.c.0.s8 %v2224
          %v2226 = vperm.slane %v1898, %v2225
          %v2228 = vunpack.c.l.s4 1983009808
          %v2229 = vunpack.c.0.s8 %v2228
          %v2230 = vperm.slane %v2222, %v2229
          %v2231 = vrot.slane %v1906, 4
          %v2232 = vsel %vm1909, 0.0, %v2231
          %v2234 = vunpack.c.l.s4 1983009808
          %v2235 = vunpack.c.0.s8 %v2234
          %v2236 = vperm.slane %v1906, %v2235
          %v2238 = vunpack.c.l.s4 1983009808
          %v2239 = vunpack.c.0.s8 %v2238
          %v2240 = vperm.slane %v2232, %v2239
          %v2241 = vrot.slane %v2236, 4
          %v2242 = vsel %vm1909, %v2241, %v2226
          %v2243 = vrot.slane %v2226, 4
          %v2244 = vsel %vm1909, %v2236, %v2243
          %v2246 = vunpack.c.l.s4 1934713408
          %v2247 = vunpack.c.0.s8 %v2246
          %v2248 = vperm.slane %v2242, %v2247
          %v2250 = vunpack.c.l.s4 1934713408
          %v2251 = vunpack.c.0.s8 %v2250
          %v2252 = vperm.slane %v2244, %v2251
          %v2253 = vrot.slane %v2240, 4
          %v2254 = vsel %vm1909, %v2253, %v2230
          %v2255 = vrot.slane %v2230, 4
          %v2256 = vsel %vm1909, %v2240, %v2255
          %v2258 = vunpack.c.l.s4 1934713408
          %v2259 = vunpack.c.0.s8 %v2258
          %v2260 = vperm.slane %v2254, %v2259
          %v2262 = vunpack.c.l.s4 1934713408
          %v2263 = vunpack.c.0.s8 %v2262
          %v2264 = vperm.slane %v2256, %v2263
          %v2265 = vrot.slane %v2248, 4
          %v2266 = vsel %vm1909, 0.0, %v2265
          %v2267 = vrot.slane %v2252, 4
          %v2268 = vsel %vm1909, 0.0, %v2267
          %v2269 = vrot.slane %v2260, 4
          %v2270 = vsel %vm1909, 0.0, %v2269
          %v2271 = vrot.slane %v2264, 4
          %v2272 = vsel %vm1909, 0.0, %v2271
          %v2273 = vrot.slane %v1899, 4
          %v2274 = vsel %vm1909, 0.0, %v2273
          %v2276 = vunpack.c.l.s4 1983009808
          %v2277 = vunpack.c.0.s8 %v2276
          %v2278 = vperm.slane %v1899, %v2277
          %v2280 = vunpack.c.l.s4 1983009808
          %v2281 = vunpack.c.0.s8 %v2280
          %v2282 = vperm.slane %v2274, %v2281
          %v2283 = vrot.slane %v1907, 4
          %v2284 = vsel %vm1909, 0.0, %v2283
          %v2286 = vunpack.c.l.s4 1983009808
          %v2287 = vunpack.c.0.s8 %v2286
          %v2288 = vperm.slane %v1907, %v2287
          %v2290 = vunpack.c.l.s4 1983009808
          %v2291 = vunpack.c.0.s8 %v2290
          %v2292 = vperm.slane %v2284, %v2291
          %v2293 = vrot.slane %v2288, 4
          %v2294 = vsel %vm1909, %v2293, %v2278
          %v2295 = vrot.slane %v2278, 4
          %v2296 = vsel %vm1909, %v2288, %v2295
          %v2298 = vunpack.c.l.s4 1934713408
          %v2299 = vunpack.c.0.s8 %v2298
          %v2300 = vperm.slane %v2294, %v2299
          %v2302 = vunpack.c.l.s4 1934713408
          %v2303 = vunpack.c.0.s8 %v2302
          %v2304 = vperm.slane %v2296, %v2303
          %v2305 = vrot.slane %v2292, 4
          %v2306 = vsel %vm1909, %v2305, %v2282
          %v2307 = vrot.slane %v2282, 4
          %v2308 = vsel %vm1909, %v2292, %v2307
          %v2310 = vunpack.c.l.s4 1934713408
          %v2311 = vunpack.c.0.s8 %v2310
          %v2312 = vperm.slane %v2306, %v2311
          %v2314 = vunpack.c.l.s4 1934713408
          %v2315 = vunpack.c.0.s8 %v2314
          %v2316 = vperm.slane %v2308, %v2315
          %v2317 = vrot.slane %v2300, 4
          %v2318 = vsel %vm1909, 0.0, %v2317
          %v2319 = vrot.slane %v2304, 4
          %v2320 = vsel %vm1909, 0.0, %v2319
          %v2321 = vrot.slane %v2312, 4
          %v2322 = vsel %vm1909, 0.0, %v2321
          %v2323 = vrot.slane %v2316, 4
          %v2324 = vsel %vm1909, 0.0, %v2323
          %2326 = vrot.lane.b32.xlu0 %v1954, 32
          %v2327 = vpop.permute.xlu0 %2326
          %2330 = vrot.lane.b32.xlu0 %v1940, 64
          %v2331 = vpop.permute.xlu0 %2330
          %2334 = vrot.lane.b32.xlu0 %v1956, 96
          %v2335 = vpop.permute.xlu0 %2334
          %2338 = vrot.lane.b32.xlu0 %v1958, 32
          %v2339 = vpop.permute.xlu0 %2338
          %2342 = vrot.lane.b32.xlu0 %v1952, 64
          %v2343 = vpop.permute.xlu0 %2342
          %2346 = vrot.lane.b32.xlu0 %v1960, 96
          %v2347 = vpop.permute.xlu0 %2346
          %2350 = vrot.lane.b32.xlu0 %v2006, 32
          %v2351 = vpop.permute.xlu0 %2350
          %2354 = vrot.lane.b32.xlu0 %v1992, 64
          %v2355 = vpop.permute.xlu0 %2354
          %2358 = vrot.lane.b32.xlu0 %v2008, 96
          %v2359 = vpop.permute.xlu0 %2358
          %2362 = vrot.lane.b32.xlu0 %v2010, 32
          %v2363 = vpop.permute.xlu0 %2362
          %2366 = vrot.lane.b32.xlu0 %v2004, 64
          %v2367 = vpop.permute.xlu0 %2366
          %2370 = vrot.lane.b32.xlu0 %v2012, 96
          %v2371 = vpop.permute.xlu0 %2370
          %2374 = vrot.lane.b32.xlu0 %v2058, 32
          %v2375 = vpop.permute.xlu0 %2374
          %2378 = vrot.lane.b32.xlu0 %v2044, 64
          %v2379 = vpop.permute.xlu0 %2378
          %2382 = vrot.lane.b32.xlu0 %v2060, 96
          %v2383 = vpop.permute.xlu0 %2382
          %2386 = vrot.lane.b32.xlu0 %v2062, 32
          %v2387 = vpop.permute.xlu0 %2386
          %2390 = vrot.lane.b32.xlu0 %v2056, 64
          %v2391 = vpop.permute.xlu0 %2390
          %2394 = vrot.lane.b32.xlu0 %v2064, 96
          %v2395 = vpop.permute.xlu0 %2394
          %2398 = vrot.lane.b32.xlu0 %v2110, 32
          %v2399 = vpop.permute.xlu0 %2398
          %2402 = vrot.lane.b32.xlu0 %v2096, 64
          %v2403 = vpop.permute.xlu0 %2402
          %2406 = vrot.lane.b32.xlu0 %v2112, 96
          %v2407 = vpop.permute.xlu0 %2406
          %2410 = vrot.lane.b32.xlu0 %v2114, 32
          %v2411 = vpop.permute.xlu0 %2410
          %2414 = vrot.lane.b32.xlu0 %v2108, 64
          %v2415 = vpop.permute.xlu0 %2414
          %2418 = vrot.lane.b32.xlu0 %v2116, 96
          %v2419 = vpop.permute.xlu0 %2418
          %2422 = vrot.lane.b32.xlu0 %v2162, 32
          %v2423 = vpop.permute.xlu0 %2422
          %2426 = vrot.lane.b32.xlu0 %v2148, 64
          %v2427 = vpop.permute.xlu0 %2426
          %2430 = vrot.lane.b32.xlu0 %v2164, 96
          %v2431 = vpop.permute.xlu0 %2430
          %2434 = vrot.lane.b32.xlu0 %v2166, 32
          %v2435 = vpop.permute.xlu0 %2434
          %2438 = vrot.lane.b32.xlu0 %v2160, 64
          %v2439 = vpop.permute.xlu0 %2438
          %2442 = vrot.lane.b32.xlu0 %v2168, 96
          %v2443 = vpop.permute.xlu0 %2442
          %2446 = vrot.lane.b32.xlu0 %v2214, 32
          %v2447 = vpop.permute.xlu0 %2446
          %2450 = vrot.lane.b32.xlu0 %v2200, 64
          %v2451 = vpop.permute.xlu0 %2450
          %2454 = vrot.lane.b32.xlu0 %v2216, 96
          %v2455 = vpop.permute.xlu0 %2454
          %2458 = vrot.lane.b32.xlu0 %v2218, 32
          %v2459 = vpop.permute.xlu0 %2458
          %2462 = vrot.lane.b32.xlu0 %v2212, 64
          %v2463 = vpop.permute.xlu0 %2462
          %2466 = vrot.lane.b32.xlu0 %v2220, 96
          %v2467 = vpop.permute.xlu0 %2466
          %2470 = vrot.lane.b32.xlu0 %v2266, 32
          %v2471 = vpop.permute.xlu0 %2470
          %2474 = vrot.lane.b32.xlu0 %v2252, 64
          %v2475 = vpop.permute.xlu0 %2474
          %2478 = vrot.lane.b32.xlu0 %v2268, 96
          %v2479 = vpop.permute.xlu0 %2478
          %2482 = vrot.lane.b32.xlu0 %v2270, 32
          %v2483 = vpop.permute.xlu0 %2482
          %2486 = vrot.lane.b32.xlu0 %v2264, 64
          %v2487 = vpop.permute.xlu0 %2486
          %2490 = vrot.lane.b32.xlu0 %v2272, 96
          %v2491 = vpop.permute.xlu0 %2490
          %2494 = vrot.lane.b32.xlu0 %v2318, 32
          %v2495 = vpop.permute.xlu0 %2494
          %2498 = vrot.lane.b32.xlu0 %v2304, 64
          %v2499 = vpop.permute.xlu0 %2498
          %2502 = vrot.lane.b32.xlu0 %v2320, 96
          %v2503 = vpop.permute.xlu0 %2502
          %2506 = vrot.lane.b32.xlu0 %v2322, 32
          %v2507 = vpop.permute.xlu0 %2506
          %2510 = vrot.lane.b32.xlu0 %v2316, 64
          %v2511 = vpop.permute.xlu0 %2510
          %2514 = vrot.lane.b32.xlu0 %v2324, 96
          %v2515 = vpop.permute.xlu0 %2514
          %v2517 = vsel %vm1772, %v1936, %v2327
          %vm2518 = vcmask 523264
          %v2519 = vsel %vm2518, %v2517, %v2331
          %vm2520 = vcmask 785408
          %v2521 = vsel %vm2520, %v2519, %v2335
          %v2522 = vsel %vm1772, %v1948, %v2339
          %v2523 = vsel %vm2518, %v2522, %v2343
          %v2524 = vsel %vm2520, %v2523, %v2347
          %v2525 = vsel %vm1772, %v1988, %v2351
          %v2526 = vsel %vm2518, %v2525, %v2355
          %v2527 = vsel %vm2520, %v2526, %v2359
          %v2528 = vsel %vm1772, %v2000, %v2363
          %v2529 = vsel %vm2518, %v2528, %v2367
          %v2530 = vsel %vm2520, %v2529, %v2371
          %v2531 = vsel %vm1772, %v2040, %v2375
          %v2532 = vsel %vm2518, %v2531, %v2379
          %v2533 = vsel %vm2520, %v2532, %v2383
          %v2534 = vsel %vm1772, %v2052, %v2387
          %v2535 = vsel %vm2518, %v2534, %v2391
          %v2536 = vsel %vm2520, %v2535, %v2395
          %v2537 = vsel %vm1772, %v2092, %v2399
          %v2538 = vsel %vm2518, %v2537, %v2403
          %v2539 = vsel %vm2520, %v2538, %v2407
          %v2540 = vsel %vm1772, %v2104, %v2411
          %v2541 = vsel %vm2518, %v2540, %v2415
          %v2542 = vsel %vm2520, %v2541, %v2419
          %v2543 = vsel %vm1772, %v2144, %v2423
          %v2544 = vsel %vm2518, %v2543, %v2427
          %v2545 = vsel %vm2520, %v2544, %v2431
          %v2546 = vsel %vm1772, %v2156, %v2435
          %v2547 = vsel %vm2518, %v2546, %v2439
          %v2548 = vsel %vm2520, %v2547, %v2443
          %v2549 = vsel %vm1772, %v2196, %v2447
          %v2550 = vsel %vm2518, %v2549, %v2451
          %v2551 = vsel %vm2520, %v2550, %v2455
          %v2552 = vsel %vm1772, %v2208, %v2459
          %v2553 = vsel %vm2518, %v2552, %v2463
          %v2554 = vsel %vm2520, %v2553, %v2467
          %v2555 = vsel %vm1772, %v2248, %v2471
          %v2556 = vsel %vm2518, %v2555, %v2475
          %v2557 = vsel %vm2520, %v2556, %v2479
          %v2558 = vsel %vm1772, %v2260, %v2483
          %v2559 = vsel %vm2518, %v2558, %v2487
          %v2560 = vsel %vm2520, %v2559, %v2491
          %v2561 = vsel %vm1772, %v2300, %v2495
          %v2562 = vsel %vm2518, %v2561, %v2499
          %v2563 = vsel %vm2520, %v2562, %v2503
          %v2564 = vsel %vm1772, %v2312, %v2507
          %v2565 = vsel %vm2518, %v2564, %v2511
          %v2566 = vsel %vm2520, %v2565, %v2515
          %v2567 = vpack.c.bf16 %v2524, %v2521
          %v2568 = vpack.c.bf16 %v2530, %v2527
          %v2569 = vpack.c.bf16 %v2536, %v2533
          %v2570 = vpack.c.bf16 %v2542, %v2539
          %v2571 = vpack.c.bf16 %v2548, %v2545
          %v2572 = vpack.c.bf16 %v2554, %v2551
          %v2573 = vpack.c.bf16 %v2560, %v2557
          %v2574 = vpack.c.bf16 %v2566, %v2563
          %v2575 = vld [vmem:[%s3] sm:$0xff]
          %v2576 = vld [vmem:[%s3 + $0x8] sm:$0xff]
          %v2577 = vld [vmem:[%s3 + $0x10] sm:$0xff]
          %v2578 = vld [vmem:[%s3 + $0x18] sm:$0xff]
          %v2579 = vld [vmem:[%s3 + $0x20] sm:$0xff]
          %v2580 = vld [vmem:[%s3 + $0x28] sm:$0xff]
          %v2581 = vld [vmem:[%s3 + $0x30] sm:$0xff]
          %v2582 = vld [vmem:[%s3 + $0x38] sm:$0xff]
          %v2583 = vld [vmem:[%s3 + $0x40] sm:$0xff]
          %v2584 = vld [vmem:[%s3 + $0x48] sm:$0xff]
          %v2585 = vld [vmem:[%s3 + $0x50] sm:$0xff]
          %v2586 = vld [vmem:[%s3 + $0x58] sm:$0xff]
          %v2587 = vld [vmem:[%s3 + $0x60] sm:$0xff]
          %v2588 = vld [vmem:[%s3 + $0x68] sm:$0xff]
          %v2589 = vld [vmem:[%s3 + $0x70] sm:$0xff]
          %v2590 = vld [vmem:[%s3 + $0x78] sm:$0xff]
          %v2591 = vld [vmem:[%s3 + $0x80] sm:$0xff]
          %v2592 = vld [vmem:[%s3 + $0x88] sm:$0xff]
          %v2593 = vld [vmem:[%s3 + $0x90] sm:$0xff]
          %v2594 = vld [vmem:[%s3 + $0x98] sm:$0xff]
          %v2595 = vld [vmem:[%s3 + $0xa0] sm:$0xff]
          %v2596 = vld [vmem:[%s3 + $0xa8] sm:$0xff]
          %v2597 = vld [vmem:[%s3 + $0xb0] sm:$0xff]
          %v2598 = vld [vmem:[%s3 + $0xb8] sm:$0xff]
          %v2599 = vld [vmem:[%s3 + $0xc0] sm:$0xff]
          %v2600 = vld [vmem:[%s3 + $0xc8] sm:$0xff]
          %v2601 = vld [vmem:[%s3 + $0xd0] sm:$0xff]
          %v2602 = vld [vmem:[%s3 + $0xd8] sm:$0xff]
          %v2603 = vld [vmem:[%s3 + $0xe0] sm:$0xff]
          %v2604 = vld [vmem:[%s3 + $0xe8] sm:$0xff]
          %v2605 = vld [vmem:[%s3 + $0xf0] sm:$0xff]
          %v2606 = vld [vmem:[%s3 + $0xf8] sm:$0xff]
          %v2607 = vld [vmem:[%s3 + $0x100] sm:$0xff]
          %v2608 = vld [vmem:[%s3 + $0x108] sm:$0xff]
          %v2609 = vld [vmem:[%s3 + $0x110] sm:$0xff]
          %v2610 = vld [vmem:[%s3 + $0x118] sm:$0xff]
          %v2611 = vld [vmem:[%s3 + $0x120] sm:$0xff]
          %v2612 = vld [vmem:[%s3 + $0x128] sm:$0xff]
          %v2613 = vld [vmem:[%s3 + $0x130] sm:$0xff]
          %v2614 = vld [vmem:[%s3 + $0x138] sm:$0xff]
          %v2615 = vld [vmem:[%s3 + $0x140] sm:$0xff]
          %v2616 = vld [vmem:[%s3 + $0x148] sm:$0xff]
          %v2617 = vld [vmem:[%s3 + $0x150] sm:$0xff]
          %v2618 = vld [vmem:[%s3 + $0x158] sm:$0xff]
          %v2619 = vld [vmem:[%s3 + $0x160] sm:$0xff]
          %v2620 = vld [vmem:[%s3 + $0x168] sm:$0xff]
          %v2621 = vld [vmem:[%s3 + $0x170] sm:$0xff]
          %v2622 = vld [vmem:[%s3 + $0x178] sm:$0xff]
          %v2623 = vld [vmem:[%s3 + $0x180] sm:$0xff]
          %v2624 = vld [vmem:[%s3 + $0x188] sm:$0xff]
          %v2625 = vld [vmem:[%s3 + $0x190] sm:$0xff]
          %v2626 = vld [vmem:[%s3 + $0x198] sm:$0xff]
          %v2627 = vld [vmem:[%s3 + $0x1a0] sm:$0xff]
          %v2628 = vld [vmem:[%s3 + $0x1a8] sm:$0xff]
          %v2629 = vld [vmem:[%s3 + $0x1b0] sm:$0xff]
          %v2630 = vld [vmem:[%s3 + $0x1b8] sm:$0xff]
          %v2631 = vld [vmem:[%s3 + $0x1c0] sm:$0xff]
          %v2632 = vld [vmem:[%s3 + $0x1c8] sm:$0xff]
          %v2633 = vld [vmem:[%s3 + $0x1d0] sm:$0xff]
          %v2634 = vld [vmem:[%s3 + $0x1d8] sm:$0xff]
          %v2635 = vld [vmem:[%s3 + $0x1e0] sm:$0xff]
          %v2636 = vld [vmem:[%s3 + $0x1e8] sm:$0xff]
          %v2637 = vld [vmem:[%s3 + $0x1f0] sm:$0xff]
          %v2638 = vld [vmem:[%s3 + $0x1f8] sm:$0xff]
          %v2639 = vunpack.c.0.s8 %v2575
          %v2640 = vunpack.c.0.s8 %v2576
          %v2641 = vunpack.c.0.s8 %v2577
          %v2642 = vunpack.c.0.s8 %v2578
          %v2643 = vunpack.c.1.s8 %v2575
          %v2644 = vunpack.c.1.s8 %v2576
          %v2645 = vunpack.c.1.s8 %v2577
          %v2646 = vunpack.c.1.s8 %v2578
          %v2647 = vunpack.c.2.s8 %v2575
          %v2648 = vunpack.c.2.s8 %v2576
          %v2649 = vunpack.c.2.s8 %v2577
          %v2650 = vunpack.c.2.s8 %v2578
          %v2651 = vunpack.c.3.s8 %v2575
          %v2652 = vunpack.c.3.s8 %v2576
          %v2653 = vunpack.c.3.s8 %v2577
          %v2654 = vunpack.c.3.s8 %v2578
          %v2655 = vunpack.c.0.s8 %v2579
          %v2656 = vunpack.c.0.s8 %v2580
          %v2657 = vunpack.c.0.s8 %v2581
          %v2658 = vunpack.c.0.s8 %v2582
          %v2659 = vunpack.c.1.s8 %v2579
          %v2660 = vunpack.c.1.s8 %v2580
          %v2661 = vunpack.c.1.s8 %v2581
          %v2662 = vunpack.c.1.s8 %v2582
          %v2663 = vunpack.c.2.s8 %v2579
          %v2664 = vunpack.c.2.s8 %v2580
          %v2665 = vunpack.c.2.s8 %v2581
          %v2666 = vunpack.c.2.s8 %v2582
          %v2667 = vunpack.c.3.s8 %v2579
          %v2668 = vunpack.c.3.s8 %v2580
          %v2669 = vunpack.c.3.s8 %v2581
          %v2670 = vunpack.c.3.s8 %v2582
          %v2671 = vunpack.c.0.s8 %v2583
          %v2672 = vunpack.c.0.s8 %v2584
          %v2673 = vunpack.c.0.s8 %v2585
          %v2674 = vunpack.c.0.s8 %v2586
          %v2675 = vunpack.c.1.s8 %v2583
          %v2676 = vunpack.c.1.s8 %v2584
          %v2677 = vunpack.c.1.s8 %v2585
          %v2678 = vunpack.c.1.s8 %v2586
          %v2679 = vunpack.c.2.s8 %v2583
          %v2680 = vunpack.c.2.s8 %v2584
          %v2681 = vunpack.c.2.s8 %v2585
          %v2682 = vunpack.c.2.s8 %v2586
          %v2683 = vunpack.c.3.s8 %v2583
          %v2684 = vunpack.c.3.s8 %v2584
          %v2685 = vunpack.c.3.s8 %v2585
          %v2686 = vunpack.c.3.s8 %v2586
          %v2687 = vunpack.c.0.s8 %v2587
          %v2688 = vunpack.c.0.s8 %v2588
          %v2689 = vunpack.c.0.s8 %v2589
          %v2690 = vunpack.c.0.s8 %v2590
          %v2691 = vunpack.c.1.s8 %v2587
          %v2692 = vunpack.c.1.s8 %v2588
          %v2693 = vunpack.c.1.s8 %v2589
          %v2694 = vunpack.c.1.s8 %v2590
          %v2695 = vunpack.c.2.s8 %v2587
          %v2696 = vunpack.c.2.s8 %v2588
          %v2697 = vunpack.c.2.s8 %v2589
          %v2698 = vunpack.c.2.s8 %v2590
          %v2699 = vunpack.c.3.s8 %v2587
          %v2700 = vunpack.c.3.s8 %v2588
          %v2701 = vunpack.c.3.s8 %v2589
          %v2702 = vunpack.c.3.s8 %v2590
          %v2703 = vunpack.c.0.s8 %v2591
          %v2704 = vunpack.c.0.s8 %v2592
          %v2705 = vunpack.c.0.s8 %v2593
          %v2706 = vunpack.c.0.s8 %v2594
          %v2707 = vunpack.c.1.s8 %v2591
          %v2708 = vunpack.c.1.s8 %v2592
          %v2709 = vunpack.c.1.s8 %v2593
          %v2710 = vunpack.c.1.s8 %v2594
          %v2711 = vunpack.c.2.s8 %v2591
          %v2712 = vunpack.c.2.s8 %v2592
          %v2713 = vunpack.c.2.s8 %v2593
          %v2714 = vunpack.c.2.s8 %v2594
          %v2715 = vunpack.c.3.s8 %v2591
          %v2716 = vunpack.c.3.s8 %v2592
          %v2717 = vunpack.c.3.s8 %v2593
          %v2718 = vunpack.c.3.s8 %v2594
          %v2719 = vunpack.c.0.s8 %v2595
          %v2720 = vunpack.c.0.s8 %v2596
          %v2721 = vunpack.c.0.s8 %v2597
          %v2722 = vunpack.c.0.s8 %v2598
          %v2723 = vunpack.c.1.s8 %v2595
          %v2724 = vunpack.c.1.s8 %v2596
          %v2725 = vunpack.c.1.s8 %v2597
          %v2726 = vunpack.c.1.s8 %v2598
          %v2727 = vunpack.c.2.s8 %v2595
          %v2728 = vunpack.c.2.s8 %v2596
          %v2729 = vunpack.c.2.s8 %v2597
          %v2730 = vunpack.c.2.s8 %v2598
          %v2731 = vunpack.c.3.s8 %v2595
          %v2732 = vunpack.c.3.s8 %v2596
          %v2733 = vunpack.c.3.s8 %v2597
          %v2734 = vunpack.c.3.s8 %v2598
          %v2735 = vunpack.c.0.s8 %v2599
          %v2736 = vunpack.c.0.s8 %v2600
          %v2737 = vunpack.c.0.s8 %v2601
          %v2738 = vunpack.c.0.s8 %v2602
          %v2739 = vunpack.c.1.s8 %v2599
          %v2740 = vunpack.c.1.s8 %v2600
          %v2741 = vunpack.c.1.s8 %v2601
          %v2742 = vunpack.c.1.s8 %v2602
          %v2743 = vunpack.c.2.s8 %v2599
          %v2744 = vunpack.c.2.s8 %v2600
          %v2745 = vunpack.c.2.s8 %v2601
          %v2746 = vunpack.c.2.s8 %v2602
          %v2747 = vunpack.c.3.s8 %v2599
          %v2748 = vunpack.c.3.s8 %v2600
          %v2749 = vunpack.c.3.s8 %v2601
          %v2750 = vunpack.c.3.s8 %v2602
          %v2751 = vunpack.c.0.s8 %v2603
          %v2752 = vunpack.c.0.s8 %v2604
          %v2753 = vunpack.c.0.s8 %v2605
          %v2754 = vunpack.c.0.s8 %v2606
          %v2755 = vunpack.c.1.s8 %v2603
          %v2756 = vunpack.c.1.s8 %v2604
          %v2757 = vunpack.c.1.s8 %v2605
          %v2758 = vunpack.c.1.s8 %v2606
          %v2759 = vunpack.c.2.s8 %v2603
          %v2760 = vunpack.c.2.s8 %v2604
          %v2761 = vunpack.c.2.s8 %v2605
          %v2762 = vunpack.c.2.s8 %v2606
          %v2763 = vunpack.c.3.s8 %v2603
          %v2764 = vunpack.c.3.s8 %v2604
          %v2765 = vunpack.c.3.s8 %v2605
          %v2766 = vunpack.c.3.s8 %v2606
          %v2767 = vunpack.c.0.s8 %v2607
          %v2768 = vunpack.c.0.s8 %v2608
          %v2769 = vunpack.c.0.s8 %v2609
          %v2770 = vunpack.c.0.s8 %v2610
          %v2771 = vunpack.c.1.s8 %v2607
          %v2772 = vunpack.c.1.s8 %v2608
          %v2773 = vunpack.c.1.s8 %v2609
          %v2774 = vunpack.c.1.s8 %v2610
          %v2775 = vunpack.c.2.s8 %v2607
          %v2776 = vunpack.c.2.s8 %v2608
          %v2777 = vunpack.c.2.s8 %v2609
          %v2778 = vunpack.c.2.s8 %v2610
          %v2779 = vunpack.c.3.s8 %v2607
          %v2780 = vunpack.c.3.s8 %v2608
          %v2781 = vunpack.c.3.s8 %v2609
          %v2782 = vunpack.c.3.s8 %v2610
          %v2783 = vunpack.c.0.s8 %v2611
          %v2784 = vunpack.c.0.s8 %v2612
          %v2785 = vunpack.c.0.s8 %v2613
          %v2786 = vunpack.c.0.s8 %v2614
          %v2787 = vunpack.c.1.s8 %v2611
          %v2788 = vunpack.c.1.s8 %v2612
          %v2789 = vunpack.c.1.s8 %v2613
          %v2790 = vunpack.c.1.s8 %v2614
          %v2791 = vunpack.c.2.s8 %v2611
          %v2792 = vunpack.c.2.s8 %v2612
          %v2793 = vunpack.c.2.s8 %v2613
          %v2794 = vunpack.c.2.s8 %v2614
          %v2795 = vunpack.c.3.s8 %v2611
          %v2796 = vunpack.c.3.s8 %v2612
          %v2797 = vunpack.c.3.s8 %v2613
          %v2798 = vunpack.c.3.s8 %v2614
          %v2799 = vunpack.c.0.s8 %v2615
          %v2800 = vunpack.c.0.s8 %v2616
          %v2801 = vunpack.c.0.s8 %v2617
          %v2802 = vunpack.c.0.s8 %v2618
          %v2803 = vunpack.c.1.s8 %v2615
          %v2804 = vunpack.c.1.s8 %v2616
          %v2805 = vunpack.c.1.s8 %v2617
          %v2806 = vunpack.c.1.s8 %v2618
          %v2807 = vunpack.c.2.s8 %v2615
          %v2808 = vunpack.c.2.s8 %v2616
          %v2809 = vunpack.c.2.s8 %v2617
          %v2810 = vunpack.c.2.s8 %v2618
          %v2811 = vunpack.c.3.s8 %v2615
          %v2812 = vunpack.c.3.s8 %v2616
          %v2813 = vunpack.c.3.s8 %v2617
          %v2814 = vunpack.c.3.s8 %v2618
          %v2815 = vunpack.c.0.s8 %v2619
          %v2816 = vunpack.c.0.s8 %v2620
          %v2817 = vunpack.c.0.s8 %v2621
          %v2818 = vunpack.c.0.s8 %v2622
          %v2819 = vunpack.c.1.s8 %v2619
          %v2820 = vunpack.c.1.s8 %v2620
          %v2821 = vunpack.c.1.s8 %v2621
          %v2822 = vunpack.c.1.s8 %v2622
          %v2823 = vunpack.c.2.s8 %v2619
          %v2824 = vunpack.c.2.s8 %v2620
          %v2825 = vunpack.c.2.s8 %v2621
          %v2826 = vunpack.c.2.s8 %v2622
          %v2827 = vunpack.c.3.s8 %v2619
          %v2828 = vunpack.c.3.s8 %v2620
          %v2829 = vunpack.c.3.s8 %v2621
          %v2830 = vunpack.c.3.s8 %v2622
          %v2831 = vunpack.c.0.s8 %v2623
          %v2832 = vunpack.c.0.s8 %v2624
          %v2833 = vunpack.c.0.s8 %v2625
          %v2834 = vunpack.c.0.s8 %v2626
          %v2835 = vunpack.c.1.s8 %v2623
          %v2836 = vunpack.c.1.s8 %v2624
          %v2837 = vunpack.c.1.s8 %v2625
          %v2838 = vunpack.c.1.s8 %v2626
          %v2839 = vunpack.c.2.s8 %v2623
          %v2840 = vunpack.c.2.s8 %v2624
          %v2841 = vunpack.c.2.s8 %v2625
          %v2842 = vunpack.c.2.s8 %v2626
          %v2843 = vunpack.c.3.s8 %v2623
          %v2844 = vunpack.c.3.s8 %v2624
          %v2845 = vunpack.c.3.s8 %v2625
          %v2846 = vunpack.c.3.s8 %v2626
          %v2847 = vunpack.c.0.s8 %v2627
          %v2848 = vunpack.c.0.s8 %v2628
          %v2849 = vunpack.c.0.s8 %v2629
          %v2850 = vunpack.c.0.s8 %v2630
          %v2851 = vunpack.c.1.s8 %v2627
          %v2852 = vunpack.c.1.s8 %v2628
          %v2853 = vunpack.c.1.s8 %v2629
          %v2854 = vunpack.c.1.s8 %v2630
          %v2855 = vunpack.c.2.s8 %v2627
          %v2856 = vunpack.c.2.s8 %v2628
          %v2857 = vunpack.c.2.s8 %v2629
          %v2858 = vunpack.c.2.s8 %v2630
          %v2859 = vunpack.c.3.s8 %v2627
          %v2860 = vunpack.c.3.s8 %v2628
          %v2861 = vunpack.c.3.s8 %v2629
          %v2862 = vunpack.c.3.s8 %v2630
          %v2863 = vunpack.c.0.s8 %v2631
          %v2864 = vunpack.c.0.s8 %v2632
          %v2865 = vunpack.c.0.s8 %v2633
          %v2866 = vunpack.c.0.s8 %v2634
          %v2867 = vunpack.c.1.s8 %v2631
          %v2868 = vunpack.c.1.s8 %v2632
          %v2869 = vunpack.c.1.s8 %v2633
          %v2870 = vunpack.c.1.s8 %v2634
          %v2871 = vunpack.c.2.s8 %v2631
          %v2872 = vunpack.c.2.s8 %v2632
          %v2873 = vunpack.c.2.s8 %v2633
          %v2874 = vunpack.c.2.s8 %v2634
          %v2875 = vunpack.c.3.s8 %v2631
          %v2876 = vunpack.c.3.s8 %v2632
          %v2877 = vunpack.c.3.s8 %v2633
          %v2878 = vunpack.c.3.s8 %v2634
          %v2879 = vunpack.c.0.s8 %v2635
          %v2880 = vunpack.c.0.s8 %v2636
          %v2881 = vunpack.c.0.s8 %v2637
          %v2882 = vunpack.c.0.s8 %v2638
          %v2883 = vunpack.c.1.s8 %v2635
          %v2884 = vunpack.c.1.s8 %v2636
          %v2885 = vunpack.c.1.s8 %v2637
          %v2886 = vunpack.c.1.s8 %v2638
          %v2887 = vunpack.c.2.s8 %v2635
          %v2888 = vunpack.c.2.s8 %v2636
          %v2889 = vunpack.c.2.s8 %v2637
          %v2890 = vunpack.c.2.s8 %v2638
          %v2891 = vunpack.c.3.s8 %v2635
          %v2892 = vunpack.c.3.s8 %v2636
          %v2893 = vunpack.c.3.s8 %v2637
          %v2894 = vunpack.c.3.s8 %v2638
          %v2895 = vcvt.s32.f32 %v2639
          %v2896 = vcvt.s32.f32 %v2640
          %v2897 = vcvt.s32.f32 %v2641
          %v2898 = vcvt.s32.f32 %v2642
          %v2899 = vcvt.s32.f32 %v2643
          %v2900 = vcvt.s32.f32 %v2644
          %v2901 = vcvt.s32.f32 %v2645
          %v2902 = vcvt.s32.f32 %v2646
          %v2903 = vcvt.s32.f32 %v2647
          %v2904 = vcvt.s32.f32 %v2648
          %v2905 = vcvt.s32.f32 %v2649
          %v2906 = vcvt.s32.f32 %v2650
          %v2907 = vcvt.s32.f32 %v2651
          %v2908 = vcvt.s32.f32 %v2652
          %v2909 = vcvt.s32.f32 %v2653
          %v2910 = vcvt.s32.f32 %v2654
          %v2911 = vcvt.s32.f32 %v2655
          %v2912 = vcvt.s32.f32 %v2656
          %v2913 = vcvt.s32.f32 %v2657
          %v2914 = vcvt.s32.f32 %v2658
          %v2915 = vcvt.s32.f32 %v2659
          %v2916 = vcvt.s32.f32 %v2660
          %v2917 = vcvt.s32.f32 %v2661
          %v2918 = vcvt.s32.f32 %v2662
          %v2919 = vcvt.s32.f32 %v2663
          %v2920 = vcvt.s32.f32 %v2664
          %v2921 = vcvt.s32.f32 %v2665
          %v2922 = vcvt.s32.f32 %v2666
          %v2923 = vcvt.s32.f32 %v2667
          %v2924 = vcvt.s32.f32 %v2668
          %v2925 = vcvt.s32.f32 %v2669
          %v2926 = vcvt.s32.f32 %v2670
          %v2927 = vcvt.s32.f32 %v2671
          %v2928 = vcvt.s32.f32 %v2672
          %v2929 = vcvt.s32.f32 %v2673
          %v2930 = vcvt.s32.f32 %v2674
          %v2931 = vcvt.s32.f32 %v2675
          %v2932 = vcvt.s32.f32 %v2676
          %v2933 = vcvt.s32.f32 %v2677
          %v2934 = vcvt.s32.f32 %v2678
          %v2935 = vcvt.s32.f32 %v2679
          %v2936 = vcvt.s32.f32 %v2680
          %v2937 = vcvt.s32.f32 %v2681
          %v2938 = vcvt.s32.f32 %v2682
          %v2939 = vcvt.s32.f32 %v2683
          %v2940 = vcvt.s32.f32 %v2684
          %v2941 = vcvt.s32.f32 %v2685
          %v2942 = vcvt.s32.f32 %v2686
          %v2943 = vcvt.s32.f32 %v2687
          %v2944 = vcvt.s32.f32 %v2688
          %v2945 = vcvt.s32.f32 %v2689
          %v2946 = vcvt.s32.f32 %v2690
          %v2947 = vcvt.s32.f32 %v2691
          %v2948 = vcvt.s32.f32 %v2692
          %v2949 = vcvt.s32.f32 %v2693
          %v2950 = vcvt.s32.f32 %v2694
          %v2951 = vcvt.s32.f32 %v2695
          %v2952 = vcvt.s32.f32 %v2696
          %v2953 = vcvt.s32.f32 %v2697
          %v2954 = vcvt.s32.f32 %v2698
          %v2955 = vcvt.s32.f32 %v2699
          %v2956 = vcvt.s32.f32 %v2700
          %v2957 = vcvt.s32.f32 %v2701
          %v2958 = vcvt.s32.f32 %v2702
          %v2959 = vcvt.s32.f32 %v2703
          %v2960 = vcvt.s32.f32 %v2704
          %v2961 = vcvt.s32.f32 %v2705
          %v2962 = vcvt.s32.f32 %v2706
          %v2963 = vcvt.s32.f32 %v2707
          %v2964 = vcvt.s32.f32 %v2708
          %v2965 = vcvt.s32.f32 %v2709
          %v2966 = vcvt.s32.f32 %v2710
          %v2967 = vcvt.s32.f32 %v2711
          %v2968 = vcvt.s32.f32 %v2712
          %v2969 = vcvt.s32.f32 %v2713
          %v2970 = vcvt.s32.f32 %v2714
          %v2971 = vcvt.s32.f32 %v2715
          %v2972 = vcvt.s32.f32 %v2716
          %v2973 = vcvt.s32.f32 %v2717
          %v2974 = vcvt.s32.f32 %v2718
          %v2975 = vcvt.s32.f32 %v2719
          %v2976 = vcvt.s32.f32 %v2720
          %v2977 = vcvt.s32.f32 %v2721
          %v2978 = vcvt.s32.f32 %v2722
          %v2979 = vcvt.s32.f32 %v2723
          %v2980 = vcvt.s32.f32 %v2724
          %v2981 = vcvt.s32.f32 %v2725
          %v2982 = vcvt.s32.f32 %v2726
          %v2983 = vcvt.s32.f32 %v2727
          %v2984 = vcvt.s32.f32 %v2728
          %v2985 = vcvt.s32.f32 %v2729
          %v2986 = vcvt.s32.f32 %v2730
          %v2987 = vcvt.s32.f32 %v2731
          %v2988 = vcvt.s32.f32 %v2732
          %v2989 = vcvt.s32.f32 %v2733
          %v2990 = vcvt.s32.f32 %v2734
          %v2991 = vcvt.s32.f32 %v2735
          %v2992 = vcvt.s32.f32 %v2736
          %v2993 = vcvt.s32.f32 %v2737
          %v2994 = vcvt.s32.f32 %v2738
          %v2995 = vcvt.s32.f32 %v2739
          %v2996 = vcvt.s32.f32 %v2740
          %v2997 = vcvt.s32.f32 %v2741
          %v2998 = vcvt.s32.f32 %v2742
          %v2999 = vcvt.s32.f32 %v2743
          %v3000 = vcvt.s32.f32 %v2744
          %v3001 = vcvt.s32.f32 %v2745
          %v3002 = vcvt.s32.f32 %v2746
          %v3003 = vcvt.s32.f32 %v2747
          %v3004 = vcvt.s32.f32 %v2748
          %v3005 = vcvt.s32.f32 %v2749
          %v3006 = vcvt.s32.f32 %v2750
          %v3007 = vcvt.s32.f32 %v2751
          %v3008 = vcvt.s32.f32 %v2752
          %v3009 = vcvt.s32.f32 %v2753
          %v3010 = vcvt.s32.f32 %v2754
          %v3011 = vcvt.s32.f32 %v2755
          %v3012 = vcvt.s32.f32 %v2756
          %v3013 = vcvt.s32.f32 %v2757
          %v3014 = vcvt.s32.f32 %v2758
          %v3015 = vcvt.s32.f32 %v2759
          %v3016 = vcvt.s32.f32 %v2760
          %v3017 = vcvt.s32.f32 %v2761
          %v3018 = vcvt.s32.f32 %v2762
          %v3019 = vcvt.s32.f32 %v2763
          %v3020 = vcvt.s32.f32 %v2764
          %v3021 = vcvt.s32.f32 %v2765
          %v3022 = vcvt.s32.f32 %v2766
          %v3023 = vcvt.s32.f32 %v2767
          %v3024 = vcvt.s32.f32 %v2768
          %v3025 = vcvt.s32.f32 %v2769
          %v3026 = vcvt.s32.f32 %v2770
          %v3027 = vcvt.s32.f32 %v2771
          %v3028 = vcvt.s32.f32 %v2772
          %v3029 = vcvt.s32.f32 %v2773
          %v3030 = vcvt.s32.f32 %v2774
          %v3031 = vcvt.s32.f32 %v2775
          %v3032 = vcvt.s32.f32 %v2776
          %v3033 = vcvt.s32.f32 %v2777
          %v3034 = vcvt.s32.f32 %v2778
          %v3035 = vcvt.s32.f32 %v2779
          %v3036 = vcvt.s32.f32 %v2780
          %v3037 = vcvt.s32.f32 %v2781
          %v3038 = vcvt.s32.f32 %v2782
          %v3039 = vcvt.s32.f32 %v2783
          %v3040 = vcvt.s32.f32 %v2784
          %v3041 = vcvt.s32.f32 %v2785
          %v3042 = vcvt.s32.f32 %v2786
          %v3043 = vcvt.s32.f32 %v2787
          %v3044 = vcvt.s32.f32 %v2788
          %v3045 = vcvt.s32.f32 %v2789
          %v3046 = vcvt.s32.f32 %v2790
          %v3047 = vcvt.s32.f32 %v2791
          %v3048 = vcvt.s32.f32 %v2792
          %v3049 = vcvt.s32.f32 %v2793
          %v3050 = vcvt.s32.f32 %v2794
          %v3051 = vcvt.s32.f32 %v2795
          %v3052 = vcvt.s32.f32 %v2796
          %v3053 = vcvt.s32.f32 %v2797
          %v3054 = vcvt.s32.f32 %v2798
          %v3055 = vcvt.s32.f32 %v2799
          %v3056 = vcvt.s32.f32 %v2800
          %v3057 = vcvt.s32.f32 %v2801
          %v3058 = vcvt.s32.f32 %v2802
          %v3059 = vcvt.s32.f32 %v2803
          %v3060 = vcvt.s32.f32 %v2804
          %v3061 = vcvt.s32.f32 %v2805
          %v3062 = vcvt.s32.f32 %v2806
          %v3063 = vcvt.s32.f32 %v2807
          %v3064 = vcvt.s32.f32 %v2808
          %v3065 = vcvt.s32.f32 %v2809
          %v3066 = vcvt.s32.f32 %v2810
          %v3067 = vcvt.s32.f32 %v2811
          %v3068 = vcvt.s32.f32 %v2812
          %v3069 = vcvt.s32.f32 %v2813
          %v3070 = vcvt.s32.f32 %v2814
          %v3071 = vcvt.s32.f32 %v2815
          %v3072 = vcvt.s32.f32 %v2816
          %v3073 = vcvt.s32.f32 %v2817
          %v3074 = vcvt.s32.f32 %v2818
          %v3075 = vcvt.s32.f32 %v2819
          %v3076 = vcvt.s32.f32 %v2820
          %v3077 = vcvt.s32.f32 %v2821
          %v3078 = vcvt.s32.f32 %v2822
          %v3079 = vcvt.s32.f32 %v2823
          %v3080 = vcvt.s32.f32 %v2824
          %v3081 = vcvt.s32.f32 %v2825
          %v3082 = vcvt.s32.f32 %v2826
          %v3083 = vcvt.s32.f32 %v2827
          %v3084 = vcvt.s32.f32 %v2828
          %v3085 = vcvt.s32.f32 %v2829
          %v3086 = vcvt.s32.f32 %v2830
          %v3087 = vcvt.s32.f32 %v2831
          %v3088 = vcvt.s32.f32 %v2832
          %v3089 = vcvt.s32.f32 %v2833
          %v3090 = vcvt.s32.f32 %v2834
          %v3091 = vcvt.s32.f32 %v2835
          %v3092 = vcvt.s32.f32 %v2836
          %v3093 = vcvt.s32.f32 %v2837
          %v3094 = vcvt.s32.f32 %v2838
          %v3095 = vcvt.s32.f32 %v2839
          %v3096 = vcvt.s32.f32 %v2840
          %v3097 = vcvt.s32.f32 %v2841
          %v3098 = vcvt.s32.f32 %v2842
          %v3099 = vcvt.s32.f32 %v2843
          %v3100 = vcvt.s32.f32 %v2844
          %v3101 = vcvt.s32.f32 %v2845
          %v3102 = vcvt.s32.f32 %v2846
          %v3103 = vcvt.s32.f32 %v2847
          %v3104 = vcvt.s32.f32 %v2848
          %v3105 = vcvt.s32.f32 %v2849
          %v3106 = vcvt.s32.f32 %v2850
          %v3107 = vcvt.s32.f32 %v2851
          %v3108 = vcvt.s32.f32 %v2852
          %v3109 = vcvt.s32.f32 %v2853
          %v3110 = vcvt.s32.f32 %v2854
          %v3111 = vcvt.s32.f32 %v2855
          %v3112 = vcvt.s32.f32 %v2856
          %v3113 = vcvt.s32.f32 %v2857
          %v3114 = vcvt.s32.f32 %v2858
          %v3115 = vcvt.s32.f32 %v2859
          %v3116 = vcvt.s32.f32 %v2860
          %v3117 = vcvt.s32.f32 %v2861
          %v3118 = vcvt.s32.f32 %v2862
          %v3119 = vcvt.s32.f32 %v2863
          %v3120 = vcvt.s32.f32 %v2864
          %v3121 = vcvt.s32.f32 %v2865
          %v3122 = vcvt.s32.f32 %v2866
          %v3123 = vcvt.s32.f32 %v2867
          %v3124 = vcvt.s32.f32 %v2868
          %v3125 = vcvt.s32.f32 %v2869
          %v3126 = vcvt.s32.f32 %v2870
          %v3127 = vcvt.s32.f32 %v2871
          %v3128 = vcvt.s32.f32 %v2872
          %v3129 = vcvt.s32.f32 %v2873
          %v3130 = vcvt.s32.f32 %v2874
          %v3131 = vcvt.s32.f32 %v2875
          %v3132 = vcvt.s32.f32 %v2876
          %v3133 = vcvt.s32.f32 %v2877
          %v3134 = vcvt.s32.f32 %v2878
          %v3135 = vcvt.s32.f32 %v2879
          %v3136 = vcvt.s32.f32 %v2880
          %v3137 = vcvt.s32.f32 %v2881
          %v3138 = vcvt.s32.f32 %v2882
          %v3139 = vcvt.s32.f32 %v2883
          %v3140 = vcvt.s32.f32 %v2884
          %v3141 = vcvt.s32.f32 %v2885
          %v3142 = vcvt.s32.f32 %v2886
          %v3143 = vcvt.s32.f32 %v2887
          %v3144 = vcvt.s32.f32 %v2888
          %v3145 = vcvt.s32.f32 %v2889
          %v3146 = vcvt.s32.f32 %v2890
          %v3147 = vcvt.s32.f32 %v2891
          %v3148 = vcvt.s32.f32 %v2892
          %v3149 = vcvt.s32.f32 %v2893
          %v3150 = vcvt.s32.f32 %v2894
          %v3151 = vpack.c.bf16 %v2899, %v2895
          %v3152 = vpack.c.bf16 %v2900, %v2896
          %v3153 = vpack.c.bf16 %v2901, %v2897
          %v3154 = vpack.c.bf16 %v2902, %v2898
          %v3155 = vpack.c.bf16 %v2907, %v2903
          %v3156 = vpack.c.bf16 %v2908, %v2904
          %v3157 = vpack.c.bf16 %v2909, %v2905
          %v3158 = vpack.c.bf16 %v2910, %v2906
          %v3159 = vpack.c.bf16 %v2915, %v2911
          %v3160 = vpack.c.bf16 %v2916, %v2912
          %v3161 = vpack.c.bf16 %v2917, %v2913
          %v3162 = vpack.c.bf16 %v2918, %v2914
          %v3163 = vpack.c.bf16 %v2923, %v2919
          %v3164 = vpack.c.bf16 %v2924, %v2920
          %v3165 = vpack.c.bf16 %v2925, %v2921
          %v3166 = vpack.c.bf16 %v2926, %v2922
          %v3167 = vpack.c.bf16 %v2931, %v2927
          %v3168 = vpack.c.bf16 %v2932, %v2928
          %v3169 = vpack.c.bf16 %v2933, %v2929
          %v3170 = vpack.c.bf16 %v2934, %v2930
          %v3171 = vpack.c.bf16 %v2939, %v2935
          %v3172 = vpack.c.bf16 %v2940, %v2936
          %v3173 = vpack.c.bf16 %v2941, %v2937
          %v3174 = vpack.c.bf16 %v2942, %v2938
          %v3175 = vpack.c.bf16 %v2947, %v2943
          %v3176 = vpack.c.bf16 %v2948, %v2944
          %v3177 = vpack.c.bf16 %v2949, %v2945
          %v3178 = vpack.c.bf16 %v2950, %v2946
          %v3179 = vpack.c.bf16 %v2955, %v2951
          %v3180 = vpack.c.bf16 %v2956, %v2952
          %v3181 = vpack.c.bf16 %v2957, %v2953
          %v3182 = vpack.c.bf16 %v2958, %v2954
          %v3183 = vpack.c.bf16 %v2963, %v2959
          %v3184 = vpack.c.bf16 %v2964, %v2960
          %v3185 = vpack.c.bf16 %v2965, %v2961
          %v3186 = vpack.c.bf16 %v2966, %v2962
          %v3187 = vpack.c.bf16 %v2971, %v2967
          %v3188 = vpack.c.bf16 %v2972, %v2968
          %v3189 = vpack.c.bf16 %v2973, %v2969
          %v3190 = vpack.c.bf16 %v2974, %v2970
          %v3191 = vpack.c.bf16 %v2979, %v2975
          %v3192 = vpack.c.bf16 %v2980, %v2976
          %v3193 = vpack.c.bf16 %v2981, %v2977
          %v3194 = vpack.c.bf16 %v2982, %v2978
          %v3195 = vpack.c.bf16 %v2987, %v2983
          %v3196 = vpack.c.bf16 %v2988, %v2984
          %v3197 = vpack.c.bf16 %v2989, %v2985
          %v3198 = vpack.c.bf16 %v2990, %v2986
          %v3199 = vpack.c.bf16 %v2995, %v2991
          %v3200 = vpack.c.bf16 %v2996, %v2992
          %v3201 = vpack.c.bf16 %v2997, %v2993
          %v3202 = vpack.c.bf16 %v2998, %v2994
          %v3203 = vpack.c.bf16 %v3003, %v2999
          %v3204 = vpack.c.bf16 %v3004, %v3000
          %v3205 = vpack.c.bf16 %v3005, %v3001
          %v3206 = vpack.c.bf16 %v3006, %v3002
          %v3207 = vpack.c.bf16 %v3011, %v3007
          %v3208 = vpack.c.bf16 %v3012, %v3008
          %v3209 = vpack.c.bf16 %v3013, %v3009
          %v3210 = vpack.c.bf16 %v3014, %v3010
          %v3211 = vpack.c.bf16 %v3019, %v3015
          %v3212 = vpack.c.bf16 %v3020, %v3016
          %v3213 = vpack.c.bf16 %v3021, %v3017
          %v3214 = vpack.c.bf16 %v3022, %v3018
          %v3215 = vpack.c.bf16 %v3027, %v3023
          %v3216 = vpack.c.bf16 %v3028, %v3024
          %v3217 = vpack.c.bf16 %v3029, %v3025
          %v3218 = vpack.c.bf16 %v3030, %v3026
          %v3219 = vpack.c.bf16 %v3035, %v3031
          %v3220 = vpack.c.bf16 %v3036, %v3032
          %v3221 = vpack.c.bf16 %v3037, %v3033
          %v3222 = vpack.c.bf16 %v3038, %v3034
          %v3223 = vpack.c.bf16 %v3043, %v3039
          %v3224 = vpack.c.bf16 %v3044, %v3040
          %v3225 = vpack.c.bf16 %v3045, %v3041
          %v3226 = vpack.c.bf16 %v3046, %v3042
          %v3227 = vpack.c.bf16 %v3051, %v3047
          %v3228 = vpack.c.bf16 %v3052, %v3048
          %v3229 = vpack.c.bf16 %v3053, %v3049
          %v3230 = vpack.c.bf16 %v3054, %v3050
          %v3231 = vpack.c.bf16 %v3059, %v3055
          %v3232 = vpack.c.bf16 %v3060, %v3056
          %v3233 = vpack.c.bf16 %v3061, %v3057
          %v3234 = vpack.c.bf16 %v3062, %v3058
          %v3235 = vpack.c.bf16 %v3067, %v3063
          %v3236 = vpack.c.bf16 %v3068, %v3064
          %v3237 = vpack.c.bf16 %v3069, %v3065
          %v3238 = vpack.c.bf16 %v3070, %v3066
          %v3239 = vpack.c.bf16 %v3075, %v3071
          %v3240 = vpack.c.bf16 %v3076, %v3072
          %v3241 = vpack.c.bf16 %v3077, %v3073
          %v3242 = vpack.c.bf16 %v3078, %v3074
          %v3243 = vpack.c.bf16 %v3083, %v3079
          %v3244 = vpack.c.bf16 %v3084, %v3080
          %v3245 = vpack.c.bf16 %v3085, %v3081
          %v3246 = vpack.c.bf16 %v3086, %v3082
          %v3247 = vpack.c.bf16 %v3091, %v3087
          %v3248 = vpack.c.bf16 %v3092, %v3088
          %v3249 = vpack.c.bf16 %v3093, %v3089
          %v3250 = vpack.c.bf16 %v3094, %v3090
          %v3251 = vpack.c.bf16 %v3099, %v3095
          %v3252 = vpack.c.bf16 %v3100, %v3096
          %v3253 = vpack.c.bf16 %v3101, %v3097
          %v3254 = vpack.c.bf16 %v3102, %v3098
          %v3255 = vpack.c.bf16 %v3107, %v3103
          %v3256 = vpack.c.bf16 %v3108, %v3104
          %v3257 = vpack.c.bf16 %v3109, %v3105
          %v3258 = vpack.c.bf16 %v3110, %v3106
          %v3259 = vpack.c.bf16 %v3115, %v3111
          %v3260 = vpack.c.bf16 %v3116, %v3112
          %v3261 = vpack.c.bf16 %v3117, %v3113
          %v3262 = vpack.c.bf16 %v3118, %v3114
          %v3263 = vpack.c.bf16 %v3123, %v3119
          %v3264 = vpack.c.bf16 %v3124, %v3120
          %v3265 = vpack.c.bf16 %v3125, %v3121
          %v3266 = vpack.c.bf16 %v3126, %v3122
          %v3267 = vpack.c.bf16 %v3131, %v3127
          %v3268 = vpack.c.bf16 %v3132, %v3128
          %v3269 = vpack.c.bf16 %v3133, %v3129
          %v3270 = vpack.c.bf16 %v3134, %v3130
          %v3271 = vpack.c.bf16 %v3139, %v3135
          %v3272 = vpack.c.bf16 %v3140, %v3136
          %v3273 = vpack.c.bf16 %v3141, %v3137
          %v3274 = vpack.c.bf16 %v3142, %v3138
          %v3275 = vpack.c.bf16 %v3147, %v3143
          %v3276 = vpack.c.bf16 %v3148, %v3144
          %v3277 = vpack.c.bf16 %v3149, %v3145
          %v3278 = vpack.c.bf16 %v3150, %v3146
          %v3279 = vld [vmem:[%s3 + $0x200] sm:$0xff]
          %v3280 = vld [vmem:[%s3 + $0x208] sm:$0xff]
          %v3281 = vld [vmem:[%s3 + $0x210] sm:$0xff]
          %v3282 = vld [vmem:[%s3 + $0x218] sm:$0xff]
          %v3283 = vld [vmem:[%s3 + $0x220] sm:$0xff]
          %v3284 = vld [vmem:[%s3 + $0x228] sm:$0xff]
          %v3285 = vld [vmem:[%s3 + $0x230] sm:$0xff]
          %v3286 = vld [vmem:[%s3 + $0x238] sm:$0xff]
          %v3287 = vld [vmem:[%s3 + $0x240] sm:$0xff]
          %v3288 = vld [vmem:[%s3 + $0x248] sm:$0xff]
          %v3289 = vld [vmem:[%s3 + $0x250] sm:$0xff]
          %v3290 = vld [vmem:[%s3 + $0x258] sm:$0xff]
          %v3291 = vld [vmem:[%s3 + $0x260] sm:$0xff]
          %v3292 = vld [vmem:[%s3 + $0x268] sm:$0xff]
          %v3293 = vld [vmem:[%s3 + $0x270] sm:$0xff]
          %v3294 = vld [vmem:[%s3 + $0x278] sm:$0xff]
          %v3295 = vld [vmem:[%s3 + $0x280] sm:$0xff]
          %v3296 = vld [vmem:[%s3 + $0x288] sm:$0xff]
          %v3297 = vld [vmem:[%s3 + $0x290] sm:$0xff]
          %v3298 = vld [vmem:[%s3 + $0x298] sm:$0xff]
          %v3299 = vld [vmem:[%s3 + $0x2a0] sm:$0xff]
          %v3300 = vld [vmem:[%s3 + $0x2a8] sm:$0xff]
          %v3301 = vld [vmem:[%s3 + $0x2b0] sm:$0xff]
          %v3302 = vld [vmem:[%s3 + $0x2b8] sm:$0xff]
          %v3303 = vld [vmem:[%s3 + $0x2c0] sm:$0xff]
          %v3304 = vld [vmem:[%s3 + $0x2c8] sm:$0xff]
          %v3305 = vld [vmem:[%s3 + $0x2d0] sm:$0xff]
          %v3306 = vld [vmem:[%s3 + $0x2d8] sm:$0xff]
          %v3307 = vld [vmem:[%s3 + $0x2e0] sm:$0xff]
          %v3308 = vld [vmem:[%s3 + $0x2e8] sm:$0xff]
          %v3309 = vld [vmem:[%s3 + $0x2f0] sm:$0xff]
          %v3310 = vld [vmem:[%s3 + $0x2f8] sm:$0xff]
          %v3311 = vld [vmem:[%s3 + $0x300] sm:$0xff]
          %v3312 = vld [vmem:[%s3 + $0x308] sm:$0xff]
          %v3313 = vld [vmem:[%s3 + $0x310] sm:$0xff]
          %v3314 = vld [vmem:[%s3 + $0x318] sm:$0xff]
          %v3315 = vld [vmem:[%s3 + $0x320] sm:$0xff]
          %v3316 = vld [vmem:[%s3 + $0x328] sm:$0xff]
          %v3317 = vld [vmem:[%s3 + $0x330] sm:$0xff]
          %v3318 = vld [vmem:[%s3 + $0x338] sm:$0xff]
          %v3319 = vld [vmem:[%s3 + $0x340] sm:$0xff]
          %v3320 = vld [vmem:[%s3 + $0x348] sm:$0xff]
          %v3321 = vld [vmem:[%s3 + $0x350] sm:$0xff]
          %v3322 = vld [vmem:[%s3 + $0x358] sm:$0xff]
          %v3323 = vld [vmem:[%s3 + $0x360] sm:$0xff]
          %v3324 = vld [vmem:[%s3 + $0x368] sm:$0xff]
          %v3325 = vld [vmem:[%s3 + $0x370] sm:$0xff]
          %v3326 = vld [vmem:[%s3 + $0x378] sm:$0xff]
          %v3327 = vld [vmem:[%s3 + $0x380] sm:$0xff]
          %v3328 = vld [vmem:[%s3 + $0x388] sm:$0xff]
          %v3329 = vld [vmem:[%s3 + $0x390] sm:$0xff]
          %v3330 = vld [vmem:[%s3 + $0x398] sm:$0xff]
          %v3331 = vld [vmem:[%s3 + $0x3a0] sm:$0xff]
          %v3332 = vld [vmem:[%s3 + $0x3a8] sm:$0xff]
          %v3333 = vld [vmem:[%s3 + $0x3b0] sm:$0xff]
          %v3334 = vld [vmem:[%s3 + $0x3b8] sm:$0xff]
          %v3335 = vld [vmem:[%s3 + $0x3c0] sm:$0xff]
          %v3336 = vld [vmem:[%s3 + $0x3c8] sm:$0xff]
          %v3337 = vld [vmem:[%s3 + $0x3d0] sm:$0xff]
          %v3338 = vld [vmem:[%s3 + $0x3d8] sm:$0xff]
          %v3339 = vld [vmem:[%s3 + $0x3e0] sm:$0xff]
          %v3340 = vld [vmem:[%s3 + $0x3e8] sm:$0xff]
          %v3341 = vld [vmem:[%s3 + $0x3f0] sm:$0xff]
          %v3342 = vld [vmem:[%s3 + $0x3f8] sm:$0xff]
          %v3343 = vunpack.c.0.s8 %v3279
          %v3344 = vunpack.c.0.s8 %v3280
          %v3345 = vunpack.c.0.s8 %v3281
          %v3346 = vunpack.c.0.s8 %v3282
          %v3347 = vunpack.c.1.s8 %v3279
          %v3348 = vunpack.c.1.s8 %v3280
          %v3349 = vunpack.c.1.s8 %v3281
          %v3350 = vunpack.c.1.s8 %v3282
          %v3351 = vunpack.c.2.s8 %v3279
          %v3352 = vunpack.c.2.s8 %v3280
          %v3353 = vunpack.c.2.s8 %v3281
          %v3354 = vunpack.c.2.s8 %v3282
          %v3355 = vunpack.c.3.s8 %v3279
          %v3356 = vunpack.c.3.s8 %v3280
          %v3357 = vunpack.c.3.s8 %v3281
          %v3358 = vunpack.c.3.s8 %v3282
          %v3359 = vunpack.c.0.s8 %v3283
          %v3360 = vunpack.c.0.s8 %v3284
          %v3361 = vunpack.c.0.s8 %v3285
          %v3362 = vunpack.c.0.s8 %v3286
          %v3363 = vunpack.c.1.s8 %v3283
          %v3364 = vunpack.c.1.s8 %v3284
          %v3365 = vunpack.c.1.s8 %v3285
          %v3366 = vunpack.c.1.s8 %v3286
          %v3367 = vunpack.c.2.s8 %v3283
          %v3368 = vunpack.c.2.s8 %v3284
          %v3369 = vunpack.c.2.s8 %v3285
          %v3370 = vunpack.c.2.s8 %v3286
          %v3371 = vunpack.c.3.s8 %v3283
          %v3372 = vunpack.c.3.s8 %v3284
          %v3373 = vunpack.c.3.s8 %v3285
          %v3374 = vunpack.c.3.s8 %v3286
          %v3375 = vunpack.c.0.s8 %v3287
          %v3376 = vunpack.c.0.s8 %v3288
          %v3377 = vunpack.c.0.s8 %v3289
          %v3378 = vunpack.c.0.s8 %v3290
          %v3379 = vunpack.c.1.s8 %v3287
          %v3380 = vunpack.c.1.s8 %v3288
          %v3381 = vunpack.c.1.s8 %v3289
          %v3382 = vunpack.c.1.s8 %v3290
          %v3383 = vunpack.c.2.s8 %v3287
          %v3384 = vunpack.c.2.s8 %v3288
          %v3385 = vunpack.c.2.s8 %v3289
          %v3386 = vunpack.c.2.s8 %v3290
          %v3387 = vunpack.c.3.s8 %v3287
          %v3388 = vunpack.c.3.s8 %v3288
          %v3389 = vunpack.c.3.s8 %v3289
          %v3390 = vunpack.c.3.s8 %v3290
          %v3391 = vunpack.c.0.s8 %v3291
          %v3392 = vunpack.c.0.s8 %v3292
          %v3393 = vunpack.c.0.s8 %v3293
          %v3394 = vunpack.c.0.s8 %v3294
          %v3395 = vunpack.c.1.s8 %v3291
          %v3396 = vunpack.c.1.s8 %v3292
          %v3397 = vunpack.c.1.s8 %v3293
          %v3398 = vunpack.c.1.s8 %v3294
          %v3399 = vunpack.c.2.s8 %v3291
          %v3400 = vunpack.c.2.s8 %v3292
          %v3401 = vunpack.c.2.s8 %v3293
          %v3402 = vunpack.c.2.s8 %v3294
          %v3403 = vunpack.c.3.s8 %v3291
          %v3404 = vunpack.c.3.s8 %v3292
          %v3405 = vunpack.c.3.s8 %v3293
          %v3406 = vunpack.c.3.s8 %v3294
          %v3407 = vunpack.c.0.s8 %v3295
          %v3408 = vunpack.c.0.s8 %v3296
          %v3409 = vunpack.c.0.s8 %v3297
          %v3410 = vunpack.c.0.s8 %v3298
          %v3411 = vunpack.c.1.s8 %v3295
          %v3412 = vunpack.c.1.s8 %v3296
          %v3413 = vunpack.c.1.s8 %v3297
          %v3414 = vunpack.c.1.s8 %v3298
          %v3415 = vunpack.c.2.s8 %v3295
          %v3416 = vunpack.c.2.s8 %v3296
          %v3417 = vunpack.c.2.s8 %v3297
          %v3418 = vunpack.c.2.s8 %v3298
          %v3419 = vunpack.c.3.s8 %v3295
          %v3420 = vunpack.c.3.s8 %v3296
          %v3421 = vunpack.c.3.s8 %v3297
          %v3422 = vunpack.c.3.s8 %v3298
          %v3423 = vunpack.c.0.s8 %v3299
          %v3424 = vunpack.c.0.s8 %v3300
          %v3425 = vunpack.c.0.s8 %v3301
          %v3426 = vunpack.c.0.s8 %v3302
          %v3427 = vunpack.c.1.s8 %v3299
          %v3428 = vunpack.c.1.s8 %v3300
          %v3429 = vunpack.c.1.s8 %v3301
          %v3430 = vunpack.c.1.s8 %v3302
          %v3431 = vunpack.c.2.s8 %v3299
          %v3432 = vunpack.c.2.s8 %v3300
          %v3433 = vunpack.c.2.s8 %v3301
          %v3434 = vunpack.c.2.s8 %v3302
          %v3435 = vunpack.c.3.s8 %v3299
          %v3436 = vunpack.c.3.s8 %v3300
          %v3437 = vunpack.c.3.s8 %v3301
          %v3438 = vunpack.c.3.s8 %v3302
          %v3439 = vunpack.c.0.s8 %v3303
          %v3440 = vunpack.c.0.s8 %v3304
          %v3441 = vunpack.c.0.s8 %v3305
          %v3442 = vunpack.c.0.s8 %v3306
          %v3443 = vunpack.c.1.s8 %v3303
          %v3444 = vunpack.c.1.s8 %v3304
          %v3445 = vunpack.c.1.s8 %v3305
          %v3446 = vunpack.c.1.s8 %v3306
          %v3447 = vunpack.c.2.s8 %v3303
          %v3448 = vunpack.c.2.s8 %v3304
          %v3449 = vunpack.c.2.s8 %v3305
          %v3450 = vunpack.c.2.s8 %v3306
          %v3451 = vunpack.c.3.s8 %v3303
          %v3452 = vunpack.c.3.s8 %v3304
          %v3453 = vunpack.c.3.s8 %v3305
          %v3454 = vunpack.c.3.s8 %v3306
          %v3455 = vunpack.c.0.s8 %v3307
          %v3456 = vunpack.c.0.s8 %v3308
          %v3457 = vunpack.c.0.s8 %v3309
          %v3458 = vunpack.c.0.s8 %v3310
          %v3459 = vunpack.c.1.s8 %v3307
          %v3460 = vunpack.c.1.s8 %v3308
          %v3461 = vunpack.c.1.s8 %v3309
          %v3462 = vunpack.c.1.s8 %v3310
          %v3463 = vunpack.c.2.s8 %v3307
          %v3464 = vunpack.c.2.s8 %v3308
          %v3465 = vunpack.c.2.s8 %v3309
          %v3466 = vunpack.c.2.s8 %v3310
          %v3467 = vunpack.c.3.s8 %v3307
          %v3468 = vunpack.c.3.s8 %v3308
          %v3469 = vunpack.c.3.s8 %v3309
          %v3470 = vunpack.c.3.s8 %v3310
          %v3471 = vunpack.c.0.s8 %v3311
          %v3472 = vunpack.c.0.s8 %v3312
          %v3473 = vunpack.c.0.s8 %v3313
          %v3474 = vunpack.c.0.s8 %v3314
          %v3475 = vunpack.c.1.s8 %v3311
          %v3476 = vunpack.c.1.s8 %v3312
          %v3477 = vunpack.c.1.s8 %v3313
          %v3478 = vunpack.c.1.s8 %v3314
          %v3479 = vunpack.c.2.s8 %v3311
          %v3480 = vunpack.c.2.s8 %v3312
          %v3481 = vunpack.c.2.s8 %v3313
          %v3482 = vunpack.c.2.s8 %v3314
          %v3483 = vunpack.c.3.s8 %v3311
          %v3484 = vunpack.c.3.s8 %v3312
          %v3485 = vunpack.c.3.s8 %v3313
          %v3486 = vunpack.c.3.s8 %v3314
          %v3487 = vunpack.c.0.s8 %v3315
          %v3488 = vunpack.c.0.s8 %v3316
          %v3489 = vunpack.c.0.s8 %v3317
          %v3490 = vunpack.c.0.s8 %v3318
          %v3491 = vunpack.c.1.s8 %v3315
          %v3492 = vunpack.c.1.s8 %v3316
          %v3493 = vunpack.c.1.s8 %v3317
          %v3494 = vunpack.c.1.s8 %v3318
          %v3495 = vunpack.c.2.s8 %v3315
          %v3496 = vunpack.c.2.s8 %v3316
          %v3497 = vunpack.c.2.s8 %v3317
          %v3498 = vunpack.c.2.s8 %v3318
          %v3499 = vunpack.c.3.s8 %v3315
          %v3500 = vunpack.c.3.s8 %v3316
          %v3501 = vunpack.c.3.s8 %v3317
          %v3502 = vunpack.c.3.s8 %v3318
          %v3503 = vunpack.c.0.s8 %v3319
          %v3504 = vunpack.c.0.s8 %v3320
          %v3505 = vunpack.c.0.s8 %v3321
          %v3506 = vunpack.c.0.s8 %v3322
          %v3507 = vunpack.c.1.s8 %v3319
          %v3508 = vunpack.c.1.s8 %v3320
          %v3509 = vunpack.c.1.s8 %v3321
          %v3510 = vunpack.c.1.s8 %v3322
          %v3511 = vunpack.c.2.s8 %v3319
          %v3512 = vunpack.c.2.s8 %v3320
          %v3513 = vunpack.c.2.s8 %v3321
          %v3514 = vunpack.c.2.s8 %v3322
          %v3515 = vunpack.c.3.s8 %v3319
          %v3516 = vunpack.c.3.s8 %v3320
          %v3517 = vunpack.c.3.s8 %v3321
          %v3518 = vunpack.c.3.s8 %v3322
          %v3519 = vunpack.c.0.s8 %v3323
          %v3520 = vunpack.c.0.s8 %v3324
          %v3521 = vunpack.c.0.s8 %v3325
          %v3522 = vunpack.c.0.s8 %v3326
          %v3523 = vunpack.c.1.s8 %v3323
          %v3524 = vunpack.c.1.s8 %v3324
          %v3525 = vunpack.c.1.s8 %v3325
          %v3526 = vunpack.c.1.s8 %v3326
          %v3527 = vunpack.c.2.s8 %v3323
          %v3528 = vunpack.c.2.s8 %v3324
          %v3529 = vunpack.c.2.s8 %v3325
          %v3530 = vunpack.c.2.s8 %v3326
          %v3531 = vunpack.c.3.s8 %v3323
          %v3532 = vunpack.c.3.s8 %v3324
          %v3533 = vunpack.c.3.s8 %v3325
          %v3534 = vunpack.c.3.s8 %v3326
          %v3535 = vunpack.c.0.s8 %v3327
          %v3536 = vunpack.c.0.s8 %v3328
          %v3537 = vunpack.c.0.s8 %v3329
          %v3538 = vunpack.c.0.s8 %v3330
          %v3539 = vunpack.c.1.s8 %v3327
          %v3540 = vunpack.c.1.s8 %v3328
          %v3541 = vunpack.c.1.s8 %v3329
          %v3542 = vunpack.c.1.s8 %v3330
          %v3543 = vunpack.c.2.s8 %v3327
          %v3544 = vunpack.c.2.s8 %v3328
          %v3545 = vunpack.c.2.s8 %v3329
          %v3546 = vunpack.c.2.s8 %v3330
          %v3547 = vunpack.c.3.s8 %v3327
          %v3548 = vunpack.c.3.s8 %v3328
          %v3549 = vunpack.c.3.s8 %v3329
          %v3550 = vunpack.c.3.s8 %v3330
          %v3551 = vunpack.c.0.s8 %v3331
          %v3552 = vunpack.c.0.s8 %v3332
          %v3553 = vunpack.c.0.s8 %v3333
          %v3554 = vunpack.c.0.s8 %v3334
          %v3555 = vunpack.c.1.s8 %v3331
          %v3556 = vunpack.c.1.s8 %v3332
          %v3557 = vunpack.c.1.s8 %v3333
          %v3558 = vunpack.c.1.s8 %v3334
          %v3559 = vunpack.c.2.s8 %v3331
          %v3560 = vunpack.c.2.s8 %v3332
          %v3561 = vunpack.c.2.s8 %v3333
          %v3562 = vunpack.c.2.s8 %v3334
          %v3563 = vunpack.c.3.s8 %v3331
          %v3564 = vunpack.c.3.s8 %v3332
          %v3565 = vunpack.c.3.s8 %v3333
          %v3566 = vunpack.c.3.s8 %v3334
          %v3567 = vunpack.c.0.s8 %v3335
          %v3568 = vunpack.c.0.s8 %v3336
          %v3569 = vunpack.c.0.s8 %v3337
          %v3570 = vunpack.c.0.s8 %v3338
          %v3571 = vunpack.c.1.s8 %v3335
          %v3572 = vunpack.c.1.s8 %v3336
          %v3573 = vunpack.c.1.s8 %v3337
          %v3574 = vunpack.c.1.s8 %v3338
          %v3575 = vunpack.c.2.s8 %v3335
          %v3576 = vunpack.c.2.s8 %v3336
          %v3577 = vunpack.c.2.s8 %v3337
          %v3578 = vunpack.c.2.s8 %v3338
          %v3579 = vunpack.c.3.s8 %v3335
          %v3580 = vunpack.c.3.s8 %v3336
          %v3581 = vunpack.c.3.s8 %v3337
          %v3582 = vunpack.c.3.s8 %v3338
          %v3583 = vunpack.c.0.s8 %v3339
          %v3584 = vunpack.c.0.s8 %v3340
          %v3585 = vunpack.c.0.s8 %v3341
          %v3586 = vunpack.c.0.s8 %v3342
          %v3587 = vunpack.c.1.s8 %v3339
          %v3588 = vunpack.c.1.s8 %v3340
          %v3589 = vunpack.c.1.s8 %v3341
          %v3590 = vunpack.c.1.s8 %v3342
          %v3591 = vunpack.c.2.s8 %v3339
          %v3592 = vunpack.c.2.s8 %v3340
          %v3593 = vunpack.c.2.s8 %v3341
          %v3594 = vunpack.c.2.s8 %v3342
          %v3595 = vunpack.c.3.s8 %v3339
          %v3596 = vunpack.c.3.s8 %v3340
          %v3597 = vunpack.c.3.s8 %v3341
          %v3598 = vunpack.c.3.s8 %v3342
          %v3599 = vcvt.s32.f32 %v3343
          %v3600 = vcvt.s32.f32 %v3344
          %v3601 = vcvt.s32.f32 %v3345
          %v3602 = vcvt.s32.f32 %v3346
          %v3603 = vcvt.s32.f32 %v3347
          %v3604 = vcvt.s32.f32 %v3348
          %v3605 = vcvt.s32.f32 %v3349
          %v3606 = vcvt.s32.f32 %v3350
          %v3607 = vcvt.s32.f32 %v3351
          %v3608 = vcvt.s32.f32 %v3352
          %v3609 = vcvt.s32.f32 %v3353
          %v3610 = vcvt.s32.f32 %v3354
          %v3611 = vcvt.s32.f32 %v3355
          %v3612 = vcvt.s32.f32 %v3356
          %v3613 = vcvt.s32.f32 %v3357
          %v3614 = vcvt.s32.f32 %v3358
          %v3615 = vcvt.s32.f32 %v3359
          %v3616 = vcvt.s32.f32 %v3360
          %v3617 = vcvt.s32.f32 %v3361
          %v3618 = vcvt.s32.f32 %v3362
          %v3619 = vcvt.s32.f32 %v3363
          %v3620 = vcvt.s32.f32 %v3364
          %v3621 = vcvt.s32.f32 %v3365
          %v3622 = vcvt.s32.f32 %v3366
          %v3623 = vcvt.s32.f32 %v3367
          %v3624 = vcvt.s32.f32 %v3368
          %v3625 = vcvt.s32.f32 %v3369
          %v3626 = vcvt.s32.f32 %v3370
          %v3627 = vcvt.s32.f32 %v3371
          %v3628 = vcvt.s32.f32 %v3372
          %v3629 = vcvt.s32.f32 %v3373
          %v3630 = vcvt.s32.f32 %v3374
          %v3631 = vcvt.s32.f32 %v3375
          %v3632 = vcvt.s32.f32 %v3376
          %v3633 = vcvt.s32.f32 %v3377
          %v3634 = vcvt.s32.f32 %v3378
          %v3635 = vcvt.s32.f32 %v3379
          %v3636 = vcvt.s32.f32 %v3380
          %v3637 = vcvt.s32.f32 %v3381
          %v3638 = vcvt.s32.f32 %v3382
          %v3639 = vcvt.s32.f32 %v3383
          %v3640 = vcvt.s32.f32 %v3384
          %v3641 = vcvt.s32.f32 %v3385
          %v3642 = vcvt.s32.f32 %v3386
          %v3643 = vcvt.s32.f32 %v3387
          %v3644 = vcvt.s32.f32 %v3388
          %v3645 = vcvt.s32.f32 %v3389
          %v3646 = vcvt.s32.f32 %v3390
          %v3647 = vcvt.s32.f32 %v3391
          %v3648 = vcvt.s32.f32 %v3392
          %v3649 = vcvt.s32.f32 %v3393
          %v3650 = vcvt.s32.f32 %v3394
          %v3651 = vcvt.s32.f32 %v3395
          %v3652 = vcvt.s32.f32 %v3396
          %v3653 = vcvt.s32.f32 %v3397
          %v3654 = vcvt.s32.f32 %v3398
          %v3655 = vcvt.s32.f32 %v3399
          %v3656 = vcvt.s32.f32 %v3400
          %v3657 = vcvt.s32.f32 %v3401
          %v3658 = vcvt.s32.f32 %v3402
          %v3659 = vcvt.s32.f32 %v3403
          %v3660 = vcvt.s32.f32 %v3404
          %v3661 = vcvt.s32.f32 %v3405
          %v3662 = vcvt.s32.f32 %v3406
          %v3663 = vcvt.s32.f32 %v3407
          %v3664 = vcvt.s32.f32 %v3408
          %v3665 = vcvt.s32.f32 %v3409
          %v3666 = vcvt.s32.f32 %v3410
          %v3667 = vcvt.s32.f32 %v3411
          %v3668 = vcvt.s32.f32 %v3412
          %v3669 = vcvt.s32.f32 %v3413
          %v3670 = vcvt.s32.f32 %v3414
          %v3671 = vcvt.s32.f32 %v3415
          %v3672 = vcvt.s32.f32 %v3416
          %v3673 = vcvt.s32.f32 %v3417
          %v3674 = vcvt.s32.f32 %v3418
          %v3675 = vcvt.s32.f32 %v3419
          %v3676 = vcvt.s32.f32 %v3420
          %v3677 = vcvt.s32.f32 %v3421
          %v3678 = vcvt.s32.f32 %v3422
          %v3679 = vcvt.s32.f32 %v3423
          %v3680 = vcvt.s32.f32 %v3424
          %v3681 = vcvt.s32.f32 %v3425
          %v3682 = vcvt.s32.f32 %v3426
          %v3683 = vcvt.s32.f32 %v3427
          %v3684 = vcvt.s32.f32 %v3428
          %v3685 = vcvt.s32.f32 %v3429
          %v3686 = vcvt.s32.f32 %v3430
          %v3687 = vcvt.s32.f32 %v3431
          %v3688 = vcvt.s32.f32 %v3432
          %v3689 = vcvt.s32.f32 %v3433
          %v3690 = vcvt.s32.f32 %v3434
          %v3691 = vcvt.s32.f32 %v3435
          %v3692 = vcvt.s32.f32 %v3436
          %v3693 = vcvt.s32.f32 %v3437
          %v3694 = vcvt.s32.f32 %v3438
          %v3695 = vcvt.s32.f32 %v3439
          %v3696 = vcvt.s32.f32 %v3440
          %v3697 = vcvt.s32.f32 %v3441
          %v3698 = vcvt.s32.f32 %v3442
          %v3699 = vcvt.s32.f32 %v3443
          %v3700 = vcvt.s32.f32 %v3444
          %v3701 = vcvt.s32.f32 %v3445
          %v3702 = vcvt.s32.f32 %v3446
          %v3703 = vcvt.s32.f32 %v3447
          %v3704 = vcvt.s32.f32 %v3448
          %v3705 = vcvt.s32.f32 %v3449
          %v3706 = vcvt.s32.f32 %v3450
          %v3707 = vcvt.s32.f32 %v3451
          %v3708 = vcvt.s32.f32 %v3452
          %v3709 = vcvt.s32.f32 %v3453
          %v3710 = vcvt.s32.f32 %v3454
          %v3711 = vcvt.s32.f32 %v3455
          %v3712 = vcvt.s32.f32 %v3456
          %v3713 = vcvt.s32.f32 %v3457
          %v3714 = vcvt.s32.f32 %v3458
          %v3715 = vcvt.s32.f32 %v3459
          %v3716 = vcvt.s32.f32 %v3460
          %v3717 = vcvt.s32.f32 %v3461
          %v3718 = vcvt.s32.f32 %v3462
          %v3719 = vcvt.s32.f32 %v3463
          %v3720 = vcvt.s32.f32 %v3464
          %v3721 = vcvt.s32.f32 %v3465
          %v3722 = vcvt.s32.f32 %v3466
          %v3723 = vcvt.s32.f32 %v3467
          %v3724 = vcvt.s32.f32 %v3468
          %v3725 = vcvt.s32.f32 %v3469
          %v3726 = vcvt.s32.f32 %v3470
          %v3727 = vcvt.s32.f32 %v3471
          %v3728 = vcvt.s32.f32 %v3472
          %v3729 = vcvt.s32.f32 %v3473
          %v3730 = vcvt.s32.f32 %v3474
          %v3731 = vcvt.s32.f32 %v3475
          %v3732 = vcvt.s32.f32 %v3476
          %v3733 = vcvt.s32.f32 %v3477
          %v3734 = vcvt.s32.f32 %v3478
          %v3735 = vcvt.s32.f32 %v3479
          %v3736 = vcvt.s32.f32 %v3480
          %v3737 = vcvt.s32.f32 %v3481
          %v3738 = vcvt.s32.f32 %v3482
          %v3739 = vcvt.s32.f32 %v3483
          %v3740 = vcvt.s32.f32 %v3484
          %v3741 = vcvt.s32.f32 %v3485
          %v3742 = vcvt.s32.f32 %v3486
          %v3743 = vcvt.s32.f32 %v3487
          %v3744 = vcvt.s32.f32 %v3488
          %v3745 = vcvt.s32.f32 %v3489
          %v3746 = vcvt.s32.f32 %v3490
          %v3747 = vcvt.s32.f32 %v3491
          %v3748 = vcvt.s32.f32 %v3492
          %v3749 = vcvt.s32.f32 %v3493
          %v3750 = vcvt.s32.f32 %v3494
          %v3751 = vcvt.s32.f32 %v3495
          %v3752 = vcvt.s32.f32 %v3496
          %v3753 = vcvt.s32.f32 %v3497
          %v3754 = vcvt.s32.f32 %v3498
          %v3755 = vcvt.s32.f32 %v3499
          %v3756 = vcvt.s32.f32 %v3500
          %v3757 = vcvt.s32.f32 %v3501
          %v3758 = vcvt.s32.f32 %v3502
          %v3759 = vcvt.s32.f32 %v3503
          %v3760 = vcvt.s32.f32 %v3504
          %v3761 = vcvt.s32.f32 %v3505
          %v3762 = vcvt.s32.f32 %v3506
          %v3763 = vcvt.s32.f32 %v3507
          %v3764 = vcvt.s32.f32 %v3508
          %v3765 = vcvt.s32.f32 %v3509
          %v3766 = vcvt.s32.f32 %v3510
          %v3767 = vcvt.s32.f32 %v3511
          %v3768 = vcvt.s32.f32 %v3512
          %v3769 = vcvt.s32.f32 %v3513
          %v3770 = vcvt.s32.f32 %v3514
          %v3771 = vcvt.s32.f32 %v3515
          %v3772 = vcvt.s32.f32 %v3516
          %v3773 = vcvt.s32.f32 %v3517
          %v3774 = vcvt.s32.f32 %v3518
          %v3775 = vcvt.s32.f32 %v3519
          %v3776 = vcvt.s32.f32 %v3520
          %v3777 = vcvt.s32.f32 %v3521
          %v3778 = vcvt.s32.f32 %v3522
          %v3779 = vcvt.s32.f32 %v3523
          %v3780 = vcvt.s32.f32 %v3524
          %v3781 = vcvt.s32.f32 %v3525
          %v3782 = vcvt.s32.f32 %v3526
          %v3783 = vcvt.s32.f32 %v3527
          %v3784 = vcvt.s32.f32 %v3528
          %v3785 = vcvt.s32.f32 %v3529
          %v3786 = vcvt.s32.f32 %v3530
          %v3787 = vcvt.s32.f32 %v3531
          %v3788 = vcvt.s32.f32 %v3532
          %v3789 = vcvt.s32.f32 %v3533
          %v3790 = vcvt.s32.f32 %v3534
          %v3791 = vcvt.s32.f32 %v3535
          %v3792 = vcvt.s32.f32 %v3536
          %v3793 = vcvt.s32.f32 %v3537
          %v3794 = vcvt.s32.f32 %v3538
          %v3795 = vcvt.s32.f32 %v3539
          %v3796 = vcvt.s32.f32 %v3540
          %v3797 = vcvt.s32.f32 %v3541
          %v3798 = vcvt.s32.f32 %v3542
          %v3799 = vcvt.s32.f32 %v3543
          %v3800 = vcvt.s32.f32 %v3544
          %v3801 = vcvt.s32.f32 %v3545
          %v3802 = vcvt.s32.f32 %v3546
          %v3803 = vcvt.s32.f32 %v3547
          %v3804 = vcvt.s32.f32 %v3548
          %v3805 = vcvt.s32.f32 %v3549
          %v3806 = vcvt.s32.f32 %v3550
          %v3807 = vcvt.s32.f32 %v3551
          %v3808 = vcvt.s32.f32 %v3552
          %v3809 = vcvt.s32.f32 %v3553
          %v3810 = vcvt.s32.f32 %v3554
          %v3811 = vcvt.s32.f32 %v3555
          %v3812 = vcvt.s32.f32 %v3556
          %v3813 = vcvt.s32.f32 %v3557
          %v3814 = vcvt.s32.f32 %v3558
          %v3815 = vcvt.s32.f32 %v3559
          %v3816 = vcvt.s32.f32 %v3560
          %v3817 = vcvt.s32.f32 %v3561
          %v3818 = vcvt.s32.f32 %v3562
          %v3819 = vcvt.s32.f32 %v3563
          %v3820 = vcvt.s32.f32 %v3564
          %v3821 = vcvt.s32.f32 %v3565
          %v3822 = vcvt.s32.f32 %v3566
          %v3823 = vcvt.s32.f32 %v3567
          %v3824 = vcvt.s32.f32 %v3568
          %v3825 = vcvt.s32.f32 %v3569
          %v3826 = vcvt.s32.f32 %v3570
          %v3827 = vcvt.s32.f32 %v3571
          %v3828 = vcvt.s32.f32 %v3572
          %v3829 = vcvt.s32.f32 %v3573
          %v3830 = vcvt.s32.f32 %v3574
          %v3831 = vcvt.s32.f32 %v3575
          %v3832 = vcvt.s32.f32 %v3576
          %v3833 = vcvt.s32.f32 %v3577
          %v3834 = vcvt.s32.f32 %v3578
          %v3835 = vcvt.s32.f32 %v3579
          %v3836 = vcvt.s32.f32 %v3580
          %v3837 = vcvt.s32.f32 %v3581
          %v3838 = vcvt.s32.f32 %v3582
          %v3839 = vcvt.s32.f32 %v3583
          %v3840 = vcvt.s32.f32 %v3584
          %v3841 = vcvt.s32.f32 %v3585
          %v3842 = vcvt.s32.f32 %v3586
          %v3843 = vcvt.s32.f32 %v3587
          %v3844 = vcvt.s32.f32 %v3588
          %v3845 = vcvt.s32.f32 %v3589
          %v3846 = vcvt.s32.f32 %v3590
          %v3847 = vcvt.s32.f32 %v3591
          %v3848 = vcvt.s32.f32 %v3592
          %v3849 = vcvt.s32.f32 %v3593
          %v3850 = vcvt.s32.f32 %v3594
          %v3851 = vcvt.s32.f32 %v3595
          %v3852 = vcvt.s32.f32 %v3596
          %v3853 = vcvt.s32.f32 %v3597
          %v3854 = vcvt.s32.f32 %v3598
          %v3855 = vpack.c.bf16 %v3603, %v3599
          %v3856 = vpack.c.bf16 %v3604, %v3600
          %v3857 = vpack.c.bf16 %v3605, %v3601
          %v3858 = vpack.c.bf16 %v3606, %v3602
          %v3859 = vpack.c.bf16 %v3611, %v3607
          %v3860 = vpack.c.bf16 %v3612, %v3608
          %v3861 = vpack.c.bf16 %v3613, %v3609
          %v3862 = vpack.c.bf16 %v3614, %v3610
          %v3863 = vpack.c.bf16 %v3619, %v3615
          %v3864 = vpack.c.bf16 %v3620, %v3616
          %v3865 = vpack.c.bf16 %v3621, %v3617
          %v3866 = vpack.c.bf16 %v3622, %v3618
          %v3867 = vpack.c.bf16 %v3627, %v3623
          %v3868 = vpack.c.bf16 %v3628, %v3624
          %v3869 = vpack.c.bf16 %v3629, %v3625
          %v3870 = vpack.c.bf16 %v3630, %v3626
          %v3871 = vpack.c.bf16 %v3635, %v3631
          %v3872 = vpack.c.bf16 %v3636, %v3632
          %v3873 = vpack.c.bf16 %v3637, %v3633
          %v3874 = vpack.c.bf16 %v3638, %v3634
          %v3875 = vpack.c.bf16 %v3643, %v3639
          %v3876 = vpack.c.bf16 %v3644, %v3640
          %v3877 = vpack.c.bf16 %v3645, %v3641
          %v3878 = vpack.c.bf16 %v3646, %v3642
          %v3879 = vpack.c.bf16 %v3651, %v3647
          %v3880 = vpack.c.bf16 %v3652, %v3648
          %v3881 = vpack.c.bf16 %v3653, %v3649
          %v3882 = vpack.c.bf16 %v3654, %v3650
          %v3883 = vpack.c.bf16 %v3659, %v3655
          %v3884 = vpack.c.bf16 %v3660, %v3656
          %v3885 = vpack.c.bf16 %v3661, %v3657
          %v3886 = vpack.c.bf16 %v3662, %v3658
          %v3887 = vpack.c.bf16 %v3667, %v3663
          %v3888 = vpack.c.bf16 %v3668, %v3664
          %v3889 = vpack.c.bf16 %v3669, %v3665
          %v3890 = vpack.c.bf16 %v3670, %v3666
          %v3891 = vpack.c.bf16 %v3675, %v3671
          %v3892 = vpack.c.bf16 %v3676, %v3672
          %v3893 = vpack.c.bf16 %v3677, %v3673
          %v3894 = vpack.c.bf16 %v3678, %v3674
          %v3895 = vpack.c.bf16 %v3683, %v3679
          %v3896 = vpack.c.bf16 %v3684, %v3680
          %v3897 = vpack.c.bf16 %v3685, %v3681
          %v3898 = vpack.c.bf16 %v3686, %v3682
          %v3899 = vpack.c.bf16 %v3691, %v3687
          %v3900 = vpack.c.bf16 %v3692, %v3688
          %v3901 = vpack.c.bf16 %v3693, %v3689
          %v3902 = vpack.c.bf16 %v3694, %v3690
          %v3903 = vpack.c.bf16 %v3699, %v3695
          %v3904 = vpack.c.bf16 %v3700, %v3696
          %v3905 = vpack.c.bf16 %v3701, %v3697
          %v3906 = vpack.c.bf16 %v3702, %v3698
          %v3907 = vpack.c.bf16 %v3707, %v3703
          %v3908 = vpack.c.bf16 %v3708, %v3704
          %v3909 = vpack.c.bf16 %v3709, %v3705
          %v3910 = vpack.c.bf16 %v3710, %v3706
          %v3911 = vpack.c.bf16 %v3715, %v3711
          %v3912 = vpack.c.bf16 %v3716, %v3712
          %v3913 = vpack.c.bf16 %v3717, %v3713
          %v3914 = vpack.c.bf16 %v3718, %v3714
          %v3915 = vpack.c.bf16 %v3723, %v3719
          %v3916 = vpack.c.bf16 %v3724, %v3720
          %v3917 = vpack.c.bf16 %v3725, %v3721
          %v3918 = vpack.c.bf16 %v3726, %v3722
          %v3919 = vpack.c.bf16 %v3731, %v3727
          %v3920 = vpack.c.bf16 %v3732, %v3728
          %v3921 = vpack.c.bf16 %v3733, %v3729
          %v3922 = vpack.c.bf16 %v3734, %v3730
          %v3923 = vpack.c.bf16 %v3739, %v3735
          %v3924 = vpack.c.bf16 %v3740, %v3736
          %v3925 = vpack.c.bf16 %v3741, %v3737
          %v3926 = vpack.c.bf16 %v3742, %v3738
          %v3927 = vpack.c.bf16 %v3747, %v3743
          %v3928 = vpack.c.bf16 %v3748, %v3744
          %v3929 = vpack.c.bf16 %v3749, %v3745
          %v3930 = vpack.c.bf16 %v3750, %v3746
          %v3931 = vpack.c.bf16 %v3755, %v3751
          %v3932 = vpack.c.bf16 %v3756, %v3752
          %v3933 = vpack.c.bf16 %v3757, %v3753
          %v3934 = vpack.c.bf16 %v3758, %v3754
          %v3935 = vpack.c.bf16 %v3763, %v3759
          %v3936 = vpack.c.bf16 %v3764, %v3760
          %v3937 = vpack.c.bf16 %v3765, %v3761
          %v3938 = vpack.c.bf16 %v3766, %v3762
          %v3939 = vpack.c.bf16 %v3771, %v3767
          %v3940 = vpack.c.bf16 %v3772, %v3768
          %v3941 = vpack.c.bf16 %v3773, %v3769
          %v3942 = vpack.c.bf16 %v3774, %v3770
          %v3943 = vpack.c.bf16 %v3779, %v3775
          %v3944 = vpack.c.bf16 %v3780, %v3776
          %v3945 = vpack.c.bf16 %v3781, %v3777
          %v3946 = vpack.c.bf16 %v3782, %v3778
          %v3947 = vpack.c.bf16 %v3787, %v3783
          %v3948 = vpack.c.bf16 %v3788, %v3784
          %v3949 = vpack.c.bf16 %v3789, %v3785
          %v3950 = vpack.c.bf16 %v3790, %v3786
          %v3951 = vpack.c.bf16 %v3795, %v3791
          %v3952 = vpack.c.bf16 %v3796, %v3792
          %v3953 = vpack.c.bf16 %v3797, %v3793
          %v3954 = vpack.c.bf16 %v3798, %v3794
          %v3955 = vpack.c.bf16 %v3803, %v3799
          %v3956 = vpack.c.bf16 %v3804, %v3800
          %v3957 = vpack.c.bf16 %v3805, %v3801
          %v3958 = vpack.c.bf16 %v3806, %v3802
          %v3959 = vpack.c.bf16 %v3811, %v3807
          %v3960 = vpack.c.bf16 %v3812, %v3808
          %v3961 = vpack.c.bf16 %v3813, %v3809
          %v3962 = vpack.c.bf16 %v3814, %v3810
          %v3963 = vpack.c.bf16 %v3819, %v3815
          %v3964 = vpack.c.bf16 %v3820, %v3816
          %v3965 = vpack.c.bf16 %v3821, %v3817
          %v3966 = vpack.c.bf16 %v3822, %v3818
          %v3967 = vpack.c.bf16 %v3827, %v3823
          %v3968 = vpack.c.bf16 %v3828, %v3824
          %v3969 = vpack.c.bf16 %v3829, %v3825
          %v3970 = vpack.c.bf16 %v3830, %v3826
          %v3971 = vpack.c.bf16 %v3835, %v3831
          %v3972 = vpack.c.bf16 %v3836, %v3832
          %v3973 = vpack.c.bf16 %v3837, %v3833
          %v3974 = vpack.c.bf16 %v3838, %v3834
          %v3975 = vpack.c.bf16 %v3843, %v3839
          %v3976 = vpack.c.bf16 %v3844, %v3840
          %v3977 = vpack.c.bf16 %v3845, %v3841
          %v3978 = vpack.c.bf16 %v3846, %v3842
          %v3979 = vpack.c.bf16 %v3851, %v3847
          %v3980 = vpack.c.bf16 %v3852, %v3848
          %v3981 = vpack.c.bf16 %v3853, %v3849
          %v3982 = vpack.c.bf16 %v3854, %v3850
          %v3985 = vunpack.c.l.b16 %v2569
          %v3986 = vunpack.c.h.b16 %v2569
          %v3987 = vunpack.c.l.b16 %v2570
          %v3988 = vunpack.c.h.b16 %v2570
          %v3989 = vpack.c.b16 %v3985, %v3985
          %v3990 = vpack.c.b16 %v3986, %v3986
          %v3991 = vpack.c.b16 %v3987, %v3987
          %v3992 = vpack.c.b16 %v3988, %v3988
          %3997 = vmatpush.bf16.msra.mxu0 %v3883
          %3998 = vmatpush.bf16.msra.mxu0 %v3879
          %3999 = vmatpush.bf16.msra.mxu0 %v3875
          %4000 = vmatpush.bf16.msra.mxu0 %v3871
          %4001 = vmatpush.bf16.msra.mxu0 %v3867
          %4002 = vmatpush.bf16.msra.mxu0 %v3863
          %4003 = vmatpush.bf16.msra.mxu0 %v3859
          %4004 = vmatpush.bf16.msra.mxu0 %v3855
          %4005 = vmatmul.bf16.gmra.mxu0 %v3989
          %v4006 = vpop.f32.mrf.mxu0
          %v4007 = vadd.f32 0.0, %v4006
          %v4008 = vpop.f32.mrf.mxu0
          %4009 = vdwg.mxu0
          %4010 = vmatpush.bf16.msra.mxu0 %v3915
          %4011 = vmatpush.bf16.msra.mxu0 %v3911
          %4012 = vmatpush.bf16.msra.mxu0 %v3907
          %4013 = vmatpush.bf16.msra.mxu0 %v3903
          %4014 = vmatpush.bf16.msra.mxu0 %v3899
          %4015 = vmatpush.bf16.msra.mxu0 %v3895
          %4016 = vmatpush.bf16.msra.mxu0 %v3891
          %4017 = vmatpush.bf16.msra.mxu0 %v3887
          %4018 = vmatmul.bf16.gmra.mxu0 %v3990
          %v4019 = vpop.f32.mrf.mxu0
          %v4020 = vadd.f32 %v4007, %v4019
          %v4021 = vpop.f32.mrf.mxu0
          %4022 = vdwg.mxu0
          %4023 = vmatpush.bf16.msra.mxu0 %v3947
          %4024 = vmatpush.bf16.msra.mxu0 %v3943
          %4025 = vmatpush.bf16.msra.mxu0 %v3939
          %4026 = vmatpush.bf16.msra.mxu0 %v3935
          %4027 = vmatpush.bf16.msra.mxu0 %v3931
          %4028 = vmatpush.bf16.msra.mxu0 %v3927
          %4029 = vmatpush.bf16.msra.mxu0 %v3923
          %4030 = vmatpush.bf16.msra.mxu0 %v3919
          %4031 = vmatmul.bf16.gmra.mxu0 %v3991
          %v4032 = vpop.f32.mrf.mxu0
          %v4033 = vadd.f32 %v4020, %v4032
          %v4034 = vpop.f32.mrf.mxu0
          %4035 = vdwg.mxu0
          %4036 = vmatpush.bf16.msra.mxu0 %v3979
          %4037 = vmatpush.bf16.msra.mxu0 %v3975
          %4038 = vmatpush.bf16.msra.mxu0 %v3971
          %4039 = vmatpush.bf16.msra.mxu0 %v3967
          %4040 = vmatpush.bf16.msra.mxu0 %v3963
          %4041 = vmatpush.bf16.msra.mxu0 %v3959
          %4042 = vmatpush.bf16.msra.mxu0 %v3955
          %4043 = vmatpush.bf16.msra.mxu0 %v3951
          %4044 = vmatmul.bf16.gmra.mxu0 %v3992
          %v4045 = vpop.f32.mrf.mxu0
          %v4046 = vadd.f32 %v4033, %v4045
          %v4047 = vpop.f32.mrf.mxu0
          %4048 = vdwg.mxu0
          %4049 = vmatpush.bf16.msra.mxu0 %v3884
          %4050 = vmatpush.bf16.msra.mxu0 %v3880
          %4051 = vmatpush.bf16.msra.mxu0 %v3876
          %4052 = vmatpush.bf16.msra.mxu0 %v3872
          %4053 = vmatpush.bf16.msra.mxu0 %v3868
          %4054 = vmatpush.bf16.msra.mxu0 %v3864
          %4055 = vmatpush.bf16.msra.mxu0 %v3860
          %4056 = vmatpush.bf16.msra.mxu0 %v3856
          %4057 = vmatmul.bf16.gmra.mxu0 %v3989
          %v4058 = vpop.f32.mrf.mxu0
          %v4059 = vadd.f32 0.0, %v4058
          %v4060 = vpop.f32.mrf.mxu0
          %4061 = vdwg.mxu0
          %4062 = vmatpush.bf16.msra.mxu0 %v3916
          %4063 = vmatpush.bf16.msra.mxu0 %v3912
          %4064 = vmatpush.bf16.msra.mxu0 %v3908
          %4065 = vmatpush.bf16.msra.mxu0 %v3904
          %4066 = vmatpush.bf16.msra.mxu0 %v3900
          %4067 = vmatpush.bf16.msra.mxu0 %v3896
          %4068 = vmatpush.bf16.msra.mxu0 %v3892
          %4069 = vmatpush.bf16.msra.mxu0 %v3888
          %4070 = vmatmul.bf16.gmra.mxu0 %v3990
          %v4071 = vpop.f32.mrf.mxu0
          %v4072 = vadd.f32 %v4059, %v4071
          %v4073 = vpop.f32.mrf.mxu0
          %4074 = vdwg.mxu0
          %4075 = vmatpush.bf16.msra.mxu0 %v3948
          %4076 = vmatpush.bf16.msra.mxu0 %v3944
          %4077 = vmatpush.bf16.msra.mxu0 %v3940
          %4078 = vmatpush.bf16.msra.mxu0 %v3936
          %4079 = vmatpush.bf16.msra.mxu0 %v3932
          %4080 = vmatpush.bf16.msra.mxu0 %v3928
          %4081 = vmatpush.bf16.msra.mxu0 %v3924
          %4082 = vmatpush.bf16.msra.mxu0 %v3920
          %4083 = vmatmul.bf16.gmra.mxu0 %v3991
          %v4084 = vpop.f32.mrf.mxu0
          %v4085 = vadd.f32 %v4072, %v4084
          %v4086 = vpop.f32.mrf.mxu0
          %4087 = vdwg.mxu0
          %4088 = vmatpush.bf16.msra.mxu0 %v3980
          %4089 = vmatpush.bf16.msra.mxu0 %v3976
          %4090 = vmatpush.bf16.msra.mxu0 %v3972
          %4091 = vmatpush.bf16.msra.mxu0 %v3968
          %4092 = vmatpush.bf16.msra.mxu0 %v3964
          %4093 = vmatpush.bf16.msra.mxu0 %v3960
          %4094 = vmatpush.bf16.msra.mxu0 %v3956
          %4095 = vmatpush.bf16.msra.mxu0 %v3952
          %4096 = vmatmul.bf16.gmra.mxu0 %v3992
          %v4097 = vpop.f32.mrf.mxu0
          %v4098 = vadd.f32 %v4085, %v4097
          %v4099 = vpop.f32.mrf.mxu0
          %4100 = vdwg.mxu0
          %4101 = vmatpush.bf16.msra.mxu0 %v3885
          %4102 = vmatpush.bf16.msra.mxu0 %v3881
          %4103 = vmatpush.bf16.msra.mxu0 %v3877
          %4104 = vmatpush.bf16.msra.mxu0 %v3873
          %4105 = vmatpush.bf16.msra.mxu0 %v3869
          %4106 = vmatpush.bf16.msra.mxu0 %v3865
          %4107 = vmatpush.bf16.msra.mxu0 %v3861
          %4108 = vmatpush.bf16.msra.mxu0 %v3857
          %4109 = vmatmul.bf16.gmra.mxu0 %v3989
          %v4110 = vpop.f32.mrf.mxu0
          %v4111 = vadd.f32 0.0, %v4110
          %v4112 = vpop.f32.mrf.mxu0
          %4113 = vdwg.mxu0
          %4114 = vmatpush.bf16.msra.mxu0 %v3917
          %4115 = vmatpush.bf16.msra.mxu0 %v3913
          %4116 = vmatpush.bf16.msra.mxu0 %v3909
          %4117 = vmatpush.bf16.msra.mxu0 %v3905
          %4118 = vmatpush.bf16.msra.mxu0 %v3901
          %4119 = vmatpush.bf16.msra.mxu0 %v3897
          %4120 = vmatpush.bf16.msra.mxu0 %v3893
          %4121 = vmatpush.bf16.msra.mxu0 %v3889
          %4122 = vmatmul.bf16.gmra.mxu0 %v3990
          %v4123 = vpop.f32.mrf.mxu0
          %v4124 = vadd.f32 %v4111, %v4123
          %v4125 = vpop.f32.mrf.mxu0
          %4126 = vdwg.mxu0
          %4127 = vmatpush.bf16.msra.mxu0 %v3949
          %4128 = vmatpush.bf16.msra.mxu0 %v3945
          %4129 = vmatpush.bf16.msra.mxu0 %v3941
          %4130 = vmatpush.bf16.msra.mxu0 %v3937
          %4131 = vmatpush.bf16.msra.mxu0 %v3933
          %4132 = vmatpush.bf16.msra.mxu0 %v3929
          %4133 = vmatpush.bf16.msra.mxu0 %v3925
          %4134 = vmatpush.bf16.msra.mxu0 %v3921
          %4135 = vmatmul.bf16.gmra.mxu0 %v3991
          %v4136 = vpop.f32.mrf.mxu0
          %v4137 = vadd.f32 %v4124, %v4136
          %v4138 = vpop.f32.mrf.mxu0
          %4139 = vdwg.mxu0
          %4140 = vmatpush.bf16.msra.mxu0 %v3981
          %4141 = vmatpush.bf16.msra.mxu0 %v3977
          %4142 = vmatpush.bf16.msra.mxu0 %v3973
          %4143 = vmatpush.bf16.msra.mxu0 %v3969
          %4144 = vmatpush.bf16.msra.mxu0 %v3965
          %4145 = vmatpush.bf16.msra.mxu0 %v3961
          %4146 = vmatpush.bf16.msra.mxu0 %v3957
          %4147 = vmatpush.bf16.msra.mxu0 %v3953
          %4148 = vmatmul.bf16.gmra.mxu0 %v3992
          %v4149 = vpop.f32.mrf.mxu0
          %v4150 = vadd.f32 %v4137, %v4149
          %v4151 = vpop.f32.mrf.mxu0
          %4152 = vdwg.mxu0
          %4153 = vmatpush.bf16.msra.mxu0 %v3886
          %4154 = vmatpush.bf16.msra.mxu0 %v3882
          %4155 = vmatpush.bf16.msra.mxu0 %v3878
          %4156 = vmatpush.bf16.msra.mxu0 %v3874
          %4157 = vmatpush.bf16.msra.mxu0 %v3870
          %4158 = vmatpush.bf16.msra.mxu0 %v3866
          %4159 = vmatpush.bf16.msra.mxu0 %v3862
          %4160 = vmatpush.bf16.msra.mxu0 %v3858
          %4161 = vmatmul.bf16.gmra.mxu0 %v3989
          %v4162 = vpop.f32.mrf.mxu0
          %v4163 = vadd.f32 0.0, %v4162
          %v4164 = vpop.f32.mrf.mxu0
          %4165 = vdwg.mxu0
          %4166 = vmatpush.bf16.msra.mxu0 %v3918
          %4167 = vmatpush.bf16.msra.mxu0 %v3914
          %4168 = vmatpush.bf16.msra.mxu0 %v3910
          %4169 = vmatpush.bf16.msra.mxu0 %v3906
          %4170 = vmatpush.bf16.msra.mxu0 %v3902
          %4171 = vmatpush.bf16.msra.mxu0 %v3898
          %4172 = vmatpush.bf16.msra.mxu0 %v3894
          %4173 = vmatpush.bf16.msra.mxu0 %v3890
          %4174 = vmatmul.bf16.gmra.mxu0 %v3990
          %v4175 = vpop.f32.mrf.mxu0
          %v4176 = vadd.f32 %v4163, %v4175
          %v4177 = vpop.f32.mrf.mxu0
          %4178 = vdwg.mxu0
          %4179 = vmatpush.bf16.msra.mxu0 %v3950
          %4180 = vmatpush.bf16.msra.mxu0 %v3946
          %4181 = vmatpush.bf16.msra.mxu0 %v3942
          %4182 = vmatpush.bf16.msra.mxu0 %v3938
          %4183 = vmatpush.bf16.msra.mxu0 %v3934
          %4184 = vmatpush.bf16.msra.mxu0 %v3930
          %4185 = vmatpush.bf16.msra.mxu0 %v3926
          %4186 = vmatpush.bf16.msra.mxu0 %v3922
          %4187 = vmatmul.bf16.gmra.mxu0 %v3991
          %v4188 = vpop.f32.mrf.mxu0
          %v4189 = vadd.f32 %v4176, %v4188
          %v4190 = vpop.f32.mrf.mxu0
          %4191 = vdwg.mxu0
          %4192 = vmatpush.bf16.msra.mxu0 %v3982
          %4193 = vmatpush.bf16.msra.mxu0 %v3978
          %4194 = vmatpush.bf16.msra.mxu0 %v3974
          %4195 = vmatpush.bf16.msra.mxu0 %v3970
          %4196 = vmatpush.bf16.msra.mxu0 %v3966
          %4197 = vmatpush.bf16.msra.mxu0 %v3962
          %4198 = vmatpush.bf16.msra.mxu0 %v3958
          %4199 = vmatpush.bf16.msra.mxu0 %v3954
          %4200 = vmatmul.bf16.gmra.mxu0 %v3992
          %v4201 = vpop.f32.mrf.mxu0
          %v4202 = vadd.f32 %v4189, %v4201
          %v4203 = vpop.f32.mrf.mxu0
          %4204 = vdwg.mxu0
          %v4207 = vunpack.c.l.b16 %v2567
          %v4208 = vunpack.c.h.b16 %v2567
          %v4209 = vunpack.c.l.b16 %v2568
          %v4210 = vunpack.c.h.b16 %v2568
          %v4211 = vpack.c.b16 %v4207, %v4207
          %v4212 = vpack.c.b16 %v4208, %v4208
          %v4213 = vpack.c.b16 %v4209, %v4209
          %v4214 = vpack.c.b16 %v4210, %v4210
          %4219 = vmatpush.bf16.msra.mxu0 %v3179
          %4220 = vmatpush.bf16.msra.mxu0 %v3175
          %4221 = vmatpush.bf16.msra.mxu0 %v3171
          %4222 = vmatpush.bf16.msra.mxu0 %v3167
          %4223 = vmatpush.bf16.msra.mxu0 %v3163
          %4224 = vmatpush.bf16.msra.mxu0 %v3159
          %4225 = vmatpush.bf16.msra.mxu0 %v3155
          %4226 = vmatpush.bf16.msra.mxu0 %v3151
          %4227 = vmatmul.bf16.gmra.mxu0 %v4211
          %v4228 = vpop.f32.mrf.mxu0
          %v4229 = vadd.f32 %v4046, %v4228
          %v4230 = vpop.f32.mrf.mxu0
          %4231 = vdwg.mxu0
          %4232 = vmatpush.bf16.msra.mxu0 %v3211
          %4233 = vmatpush.bf16.msra.mxu0 %v3207
          %4234 = vmatpush.bf16.msra.mxu0 %v3203
          %4235 = vmatpush.bf16.msra.mxu0 %v3199
          %4236 = vmatpush.bf16.msra.mxu0 %v3195
          %4237 = vmatpush.bf16.msra.mxu0 %v3191
          %4238 = vmatpush.bf16.msra.mxu0 %v3187
          %4239 = vmatpush.bf16.msra.mxu0 %v3183
          %4240 = vmatmul.bf16.gmra.mxu0 %v4212
          %v4241 = vpop.f32.mrf.mxu0
          %v4242 = vadd.f32 %v4229, %v4241
          %v4243 = vpop.f32.mrf.mxu0
          %4244 = vdwg.mxu0
          %4245 = vmatpush.bf16.msra.mxu0 %v3243
          %4246 = vmatpush.bf16.msra.mxu0 %v3239
          %4247 = vmatpush.bf16.msra.mxu0 %v3235
          %4248 = vmatpush.bf16.msra.mxu0 %v3231
          %4249 = vmatpush.bf16.msra.mxu0 %v3227
          %4250 = vmatpush.bf16.msra.mxu0 %v3223
          %4251 = vmatpush.bf16.msra.mxu0 %v3219
          %4252 = vmatpush.bf16.msra.mxu0 %v3215
          %4253 = vmatmul.bf16.gmra.mxu0 %v4213
          %v4254 = vpop.f32.mrf.mxu0
          %v4255 = vadd.f32 %v4242, %v4254
          %v4256 = vpop.f32.mrf.mxu0
          %4257 = vdwg.mxu0
          %4258 = vmatpush.bf16.msra.mxu0 %v3275
          %4259 = vmatpush.bf16.msra.mxu0 %v3271
          %4260 = vmatpush.bf16.msra.mxu0 %v3267
          %4261 = vmatpush.bf16.msra.mxu0 %v3263
          %4262 = vmatpush.bf16.msra.mxu0 %v3259
          %4263 = vmatpush.bf16.msra.mxu0 %v3255
          %4264 = vmatpush.bf16.msra.mxu0 %v3251
          %4265 = vmatpush.bf16.msra.mxu0 %v3247
          %4266 = vmatmul.bf16.gmra.mxu0 %v4214
          %v4267 = vpop.f32.mrf.mxu0
          %v4268 = vadd.f32 %v4255, %v4267
          %v4269 = vpop.f32.mrf.mxu0
          %4270 = vdwg.mxu0
          %4271 = vmatpush.bf16.msra.mxu0 %v3180
          %4272 = vmatpush.bf16.msra.mxu0 %v3176
          %4273 = vmatpush.bf16.msra.mxu0 %v3172
          %4274 = vmatpush.bf16.msra.mxu0 %v3168
          %4275 = vmatpush.bf16.msra.mxu0 %v3164
          %4276 = vmatpush.bf16.msra.mxu0 %v3160
          %4277 = vmatpush.bf16.msra.mxu0 %v3156
          %4278 = vmatpush.bf16.msra.mxu0 %v3152
          %4279 = vmatmul.bf16.gmra.mxu0 %v4211
          %v4280 = vpop.f32.mrf.mxu0
          %v4281 = vadd.f32 %v4098, %v4280
          %v4282 = vpop.f32.mrf.mxu0
          %4283 = vdwg.mxu0
          %4284 = vmatpush.bf16.msra.mxu0 %v3212
          %4285 = vmatpush.bf16.msra.mxu0 %v3208
          %4286 = vmatpush.bf16.msra.mxu0 %v3204
          %4287 = vmatpush.bf16.msra.mxu0 %v3200
          %4288 = vmatpush.bf16.msra.mxu0 %v3196
          %4289 = vmatpush.bf16.msra.mxu0 %v3192
          %4290 = vmatpush.bf16.msra.mxu0 %v3188
          %4291 = vmatpush.bf16.msra.mxu0 %v3184
          %4292 = vmatmul.bf16.gmra.mxu0 %v4212
          %v4293 = vpop.f32.mrf.mxu0
          %v4294 = vadd.f32 %v4281, %v4293
          %v4295 = vpop.f32.mrf.mxu0
          %4296 = vdwg.mxu0
          %4297 = vmatpush.bf16.msra.mxu0 %v3244
          %4298 = vmatpush.bf16.msra.mxu0 %v3240
          %4299 = vmatpush.bf16.msra.mxu0 %v3236
          %4300 = vmatpush.bf16.msra.mxu0 %v3232
          %4301 = vmatpush.bf16.msra.mxu0 %v3228
          %4302 = vmatpush.bf16.msra.mxu0 %v3224
          %4303 = vmatpush.bf16.msra.mxu0 %v3220
          %4304 = vmatpush.bf16.msra.mxu0 %v3216
          %4305 = vmatmul.bf16.gmra.mxu0 %v4213
          %v4306 = vpop.f32.mrf.mxu0
          %v4307 = vadd.f32 %v4294, %v4306
          %v4308 = vpop.f32.mrf.mxu0
          %4309 = vdwg.mxu0
          %4310 = vmatpush.bf16.msra.mxu0 %v3276
          %4311 = vmatpush.bf16.msra.mxu0 %v3272
          %4312 = vmatpush.bf16.msra.mxu0 %v3268
          %4313 = vmatpush.bf16.msra.mxu0 %v3264
          %4314 = vmatpush.bf16.msra.mxu0 %v3260
          %4315 = vmatpush.bf16.msra.mxu0 %v3256
          %4316 = vmatpush.bf16.msra.mxu0 %v3252
          %4317 = vmatpush.bf16.msra.mxu0 %v3248
          %4318 = vmatmul.bf16.gmra.mxu0 %v4214
          %v4319 = vpop.f32.mrf.mxu0
          %v4320 = vadd.f32 %v4307, %v4319
          %v4321 = vpop.f32.mrf.mxu0
          %4322 = vdwg.mxu0
          %4323 = vmatpush.bf16.msra.mxu0 %v3181
          %4324 = vmatpush.bf16.msra.mxu0 %v3177
          %4325 = vmatpush.bf16.msra.mxu0 %v3173
          %4326 = vmatpush.bf16.msra.mxu0 %v3169
          %4327 = vmatpush.bf16.msra.mxu0 %v3165
          %4328 = vmatpush.bf16.msra.mxu0 %v3161
          %4329 = vmatpush.bf16.msra.mxu0 %v3157
          %4330 = vmatpush.bf16.msra.mxu0 %v3153
          %4331 = vmatmul.bf16.gmra.mxu0 %v4211
          %v4332 = vpop.f32.mrf.mxu0
          %v4333 = vadd.f32 %v4150, %v4332
          %v4334 = vpop.f32.mrf.mxu0
          %4335 = vdwg.mxu0
          %4336 = vmatpush.bf16.msra.mxu0 %v3213
          %4337 = vmatpush.bf16.msra.mxu0 %v3209
          %4338 = vmatpush.bf16.msra.mxu0 %v3205
          %4339 = vmatpush.bf16.msra.mxu0 %v3201
          %4340 = vmatpush.bf16.msra.mxu0 %v3197
          %4341 = vmatpush.bf16.msra.mxu0 %v3193
          %4342 = vmatpush.bf16.msra.mxu0 %v3189
          %4343 = vmatpush.bf16.msra.mxu0 %v3185
          %4344 = vmatmul.bf16.gmra.mxu0 %v4212
          %v4345 = vpop.f32.mrf.mxu0
          %v4346 = vadd.f32 %v4333, %v4345
          %v4347 = vpop.f32.mrf.mxu0
          %4348 = vdwg.mxu0
          %4349 = vmatpush.bf16.msra.mxu0 %v3245
          %4350 = vmatpush.bf16.msra.mxu0 %v3241
          %4351 = vmatpush.bf16.msra.mxu0 %v3237
          %4352 = vmatpush.bf16.msra.mxu0 %v3233
          %4353 = vmatpush.bf16.msra.mxu0 %v3229
          %4354 = vmatpush.bf16.msra.mxu0 %v3225
          %4355 = vmatpush.bf16.msra.mxu0 %v3221
          %4356 = vmatpush.bf16.msra.mxu0 %v3217
          %4357 = vmatmul.bf16.gmra.mxu0 %v4213
          %v4358 = vpop.f32.mrf.mxu0
          %v4359 = vadd.f32 %v4346, %v4358
          %v4360 = vpop.f32.mrf.mxu0
          %4361 = vdwg.mxu0
          %4362 = vmatpush.bf16.msra.mxu0 %v3277
          %4363 = vmatpush.bf16.msra.mxu0 %v3273
          %4364 = vmatpush.bf16.msra.mxu0 %v3269
          %4365 = vmatpush.bf16.msra.mxu0 %v3265
          %4366 = vmatpush.bf16.msra.mxu0 %v3261
          %4367 = vmatpush.bf16.msra.mxu0 %v3257
          %4368 = vmatpush.bf16.msra.mxu0 %v3253
          %4369 = vmatpush.bf16.msra.mxu0 %v3249
          %4370 = vmatmul.bf16.gmra.mxu0 %v4214
          %v4371 = vpop.f32.mrf.mxu0
          %v4372 = vadd.f32 %v4359, %v4371
          %v4373 = vpop.f32.mrf.mxu0
          %4374 = vdwg.mxu0
          %4375 = vmatpush.bf16.msra.mxu0 %v3182
          %4376 = vmatpush.bf16.msra.mxu0 %v3178
          %4377 = vmatpush.bf16.msra.mxu0 %v3174
          %4378 = vmatpush.bf16.msra.mxu0 %v3170
          %4379 = vmatpush.bf16.msra.mxu0 %v3166
          %4380 = vmatpush.bf16.msra.mxu0 %v3162
          %4381 = vmatpush.bf16.msra.mxu0 %v3158
          %4382 = vmatpush.bf16.msra.mxu0 %v3154
          %4383 = vmatmul.bf16.gmra.mxu0 %v4211
          %v4384 = vpop.f32.mrf.mxu0
          %v4385 = vadd.f32 %v4202, %v4384
          %v4386 = vpop.f32.mrf.mxu0
          %4387 = vdwg.mxu0
          %4388 = vmatpush.bf16.msra.mxu0 %v3214
          %4389 = vmatpush.bf16.msra.mxu0 %v3210
          %4390 = vmatpush.bf16.msra.mxu0 %v3206
          %4391 = vmatpush.bf16.msra.mxu0 %v3202
          %4392 = vmatpush.bf16.msra.mxu0 %v3198
          %4393 = vmatpush.bf16.msra.mxu0 %v3194
          %4394 = vmatpush.bf16.msra.mxu0 %v3190
          %4395 = vmatpush.bf16.msra.mxu0 %v3186
          %4396 = vmatmul.bf16.gmra.mxu0 %v4212
          %v4397 = vpop.f32.mrf.mxu0
          %v4398 = vadd.f32 %v4385, %v4397
          %v4399 = vpop.f32.mrf.mxu0
          %4400 = vdwg.mxu0
          %4401 = vmatpush.bf16.msra.mxu0 %v3246
          %4402 = vmatpush.bf16.msra.mxu0 %v3242
          %4403 = vmatpush.bf16.msra.mxu0 %v3238
          %4404 = vmatpush.bf16.msra.mxu0 %v3234
          %4405 = vmatpush.bf16.msra.mxu0 %v3230
          %4406 = vmatpush.bf16.msra.mxu0 %v3226
          %4407 = vmatpush.bf16.msra.mxu0 %v3222
          %4408 = vmatpush.bf16.msra.mxu0 %v3218
          %4409 = vmatmul.bf16.gmra.mxu0 %v4213
          %v4410 = vpop.f32.mrf.mxu0
          %v4411 = vadd.f32 %v4398, %v4410
          %v4412 = vpop.f32.mrf.mxu0
          %4413 = vdwg.mxu0
          %4414 = vmatpush.bf16.msra.mxu0 %v3278
          %4415 = vmatpush.bf16.msra.mxu0 %v3274
          %4416 = vmatpush.bf16.msra.mxu0 %v3270
          %4417 = vmatpush.bf16.msra.mxu0 %v3266
          %4418 = vmatpush.bf16.msra.mxu0 %v3262
          %4419 = vmatpush.bf16.msra.mxu0 %v3258
          %4420 = vmatpush.bf16.msra.mxu0 %v3254
          %4421 = vmatpush.bf16.msra.mxu0 %v3250
          %4422 = vmatmul.bf16.gmra.mxu0 %v4214
          %v4423 = vpop.f32.mrf.mxu0
          %v4424 = vadd.f32 %v4411, %v4423
          %v4425 = vpop.f32.mrf.mxu0
          %4426 = vdwg.mxu0
          %v4427 = vld [vmem:[%s3 + $0x400] sm:$0xff]
          %v4428 = vld [vmem:[%s3 + $0x408] sm:$0xff]
          %v4429 = vld [vmem:[%s3 + $0x410] sm:$0xff]
          %v4430 = vld [vmem:[%s3 + $0x418] sm:$0xff]
          %v4431 = vld [vmem:[%s3 + $0x420] sm:$0xff]
          %v4432 = vld [vmem:[%s3 + $0x428] sm:$0xff]
          %v4433 = vld [vmem:[%s3 + $0x430] sm:$0xff]
          %v4434 = vld [vmem:[%s3 + $0x438] sm:$0xff]
          %v4435 = vld [vmem:[%s3 + $0x440] sm:$0xff]
          %v4436 = vld [vmem:[%s3 + $0x448] sm:$0xff]
          %v4437 = vld [vmem:[%s3 + $0x450] sm:$0xff]
          %v4438 = vld [vmem:[%s3 + $0x458] sm:$0xff]
          %v4439 = vld [vmem:[%s3 + $0x460] sm:$0xff]
          %v4440 = vld [vmem:[%s3 + $0x468] sm:$0xff]
          %v4441 = vld [vmem:[%s3 + $0x470] sm:$0xff]
          %v4442 = vld [vmem:[%s3 + $0x478] sm:$0xff]
          %v4443 = vld [vmem:[%s3 + $0x480] sm:$0xff]
          %v4444 = vld [vmem:[%s3 + $0x488] sm:$0xff]
          %v4445 = vld [vmem:[%s3 + $0x490] sm:$0xff]
          %v4446 = vld [vmem:[%s3 + $0x498] sm:$0xff]
          %v4447 = vld [vmem:[%s3 + $0x4a0] sm:$0xff]
          %v4448 = vld [vmem:[%s3 + $0x4a8] sm:$0xff]
          %v4449 = vld [vmem:[%s3 + $0x4b0] sm:$0xff]
          %v4450 = vld [vmem:[%s3 + $0x4b8] sm:$0xff]
          %v4451 = vld [vmem:[%s3 + $0x4c0] sm:$0xff]
          %v4452 = vld [vmem:[%s3 + $0x4c8] sm:$0xff]
          %v4453 = vld [vmem:[%s3 + $0x4d0] sm:$0xff]
          %v4454 = vld [vmem:[%s3 + $0x4d8] sm:$0xff]
          %v4455 = vld [vmem:[%s3 + $0x4e0] sm:$0xff]
          %v4456 = vld [vmem:[%s3 + $0x4e8] sm:$0xff]
          %v4457 = vld [vmem:[%s3 + $0x4f0] sm:$0xff]
          %v4458 = vld [vmem:[%s3 + $0x4f8] sm:$0xff]
          %v4459 = vld [vmem:[%s3 + $0x500] sm:$0xff]
          %v4460 = vld [vmem:[%s3 + $0x508] sm:$0xff]
          %v4461 = vld [vmem:[%s3 + $0x510] sm:$0xff]
          %v4462 = vld [vmem:[%s3 + $0x518] sm:$0xff]
          %v4463 = vld [vmem:[%s3 + $0x520] sm:$0xff]
          %v4464 = vld [vmem:[%s3 + $0x528] sm:$0xff]
          %v4465 = vld [vmem:[%s3 + $0x530] sm:$0xff]
          %v4466 = vld [vmem:[%s3 + $0x538] sm:$0xff]
          %v4467 = vld [vmem:[%s3 + $0x540] sm:$0xff]
          %v4468 = vld [vmem:[%s3 + $0x548] sm:$0xff]
          %v4469 = vld [vmem:[%s3 + $0x550] sm:$0xff]
          %v4470 = vld [vmem:[%s3 + $0x558] sm:$0xff]
          %v4471 = vld [vmem:[%s3 + $0x560] sm:$0xff]
          %v4472 = vld [vmem:[%s3 + $0x568] sm:$0xff]
          %v4473 = vld [vmem:[%s3 + $0x570] sm:$0xff]
          %v4474 = vld [vmem:[%s3 + $0x578] sm:$0xff]
          %v4475 = vld [vmem:[%s3 + $0x580] sm:$0xff]
          %v4476 = vld [vmem:[%s3 + $0x588] sm:$0xff]
          %v4477 = vld [vmem:[%s3 + $0x590] sm:$0xff]
          %v4478 = vld [vmem:[%s3 + $0x598] sm:$0xff]
          %v4479 = vld [vmem:[%s3 + $0x5a0] sm:$0xff]
          %v4480 = vld [vmem:[%s3 + $0x5a8] sm:$0xff]
          %v4481 = vld [vmem:[%s3 + $0x5b0] sm:$0xff]
          %v4482 = vld [vmem:[%s3 + $0x5b8] sm:$0xff]
          %v4483 = vld [vmem:[%s3 + $0x5c0] sm:$0xff]
          %v4484 = vld [vmem:[%s3 + $0x5c8] sm:$0xff]
          %v4485 = vld [vmem:[%s3 + $0x5d0] sm:$0xff]
          %v4486 = vld [vmem:[%s3 + $0x5d8] sm:$0xff]
          %v4487 = vld [vmem:[%s3 + $0x5e0] sm:$0xff]
          %v4488 = vld [vmem:[%s3 + $0x5e8] sm:$0xff]
          %v4489 = vld [vmem:[%s3 + $0x5f0] sm:$0xff]
          %v4490 = vld [vmem:[%s3 + $0x5f8] sm:$0xff]
          %v4491 = vunpack.c.0.s8 %v4427
          %v4492 = vunpack.c.0.s8 %v4428
          %v4493 = vunpack.c.0.s8 %v4429
          %v4494 = vunpack.c.0.s8 %v4430
          %v4495 = vunpack.c.1.s8 %v4427
          %v4496 = vunpack.c.1.s8 %v4428
          %v4497 = vunpack.c.1.s8 %v4429
          %v4498 = vunpack.c.1.s8 %v4430
          %v4499 = vunpack.c.2.s8 %v4427
          %v4500 = vunpack.c.2.s8 %v4428
          %v4501 = vunpack.c.2.s8 %v4429
          %v4502 = vunpack.c.2.s8 %v4430
          %v4503 = vunpack.c.3.s8 %v4427
          %v4504 = vunpack.c.3.s8 %v4428
          %v4505 = vunpack.c.3.s8 %v4429
          %v4506 = vunpack.c.3.s8 %v4430
          %v4507 = vunpack.c.0.s8 %v4431
          %v4508 = vunpack.c.0.s8 %v4432
          %v4509 = vunpack.c.0.s8 %v4433
          %v4510 = vunpack.c.0.s8 %v4434
          %v4511 = vunpack.c.1.s8 %v4431
          %v4512 = vunpack.c.1.s8 %v4432
          %v4513 = vunpack.c.1.s8 %v4433
          %v4514 = vunpack.c.1.s8 %v4434
          %v4515 = vunpack.c.2.s8 %v4431
          %v4516 = vunpack.c.2.s8 %v4432
          %v4517 = vunpack.c.2.s8 %v4433
          %v4518 = vunpack.c.2.s8 %v4434
          %v4519 = vunpack.c.3.s8 %v4431
          %v4520 = vunpack.c.3.s8 %v4432
          %v4521 = vunpack.c.3.s8 %v4433
          %v4522 = vunpack.c.3.s8 %v4434
          %v4523 = vunpack.c.0.s8 %v4435
          %v4524 = vunpack.c.0.s8 %v4436
          %v4525 = vunpack.c.0.s8 %v4437
          %v4526 = vunpack.c.0.s8 %v4438
          %v4527 = vunpack.c.1.s8 %v4435
          %v4528 = vunpack.c.1.s8 %v4436
          %v4529 = vunpack.c.1.s8 %v4437
          %v4530 = vunpack.c.1.s8 %v4438
          %v4531 = vunpack.c.2.s8 %v4435
          %v4532 = vunpack.c.2.s8 %v4436
          %v4533 = vunpack.c.2.s8 %v4437
          %v4534 = vunpack.c.2.s8 %v4438
          %v4535 = vunpack.c.3.s8 %v4435
          %v4536 = vunpack.c.3.s8 %v4436
          %v4537 = vunpack.c.3.s8 %v4437
          %v4538 = vunpack.c.3.s8 %v4438
          %v4539 = vunpack.c.0.s8 %v4439
          %v4540 = vunpack.c.0.s8 %v4440
          %v4541 = vunpack.c.0.s8 %v4441
          %v4542 = vunpack.c.0.s8 %v4442
          %v4543 = vunpack.c.1.s8 %v4439
          %v4544 = vunpack.c.1.s8 %v4440
          %v4545 = vunpack.c.1.s8 %v4441
          %v4546 = vunpack.c.1.s8 %v4442
          %v4547 = vunpack.c.2.s8 %v4439
          %v4548 = vunpack.c.2.s8 %v4440
          %v4549 = vunpack.c.2.s8 %v4441
          %v4550 = vunpack.c.2.s8 %v4442
          %v4551 = vunpack.c.3.s8 %v4439
          %v4552 = vunpack.c.3.s8 %v4440
          %v4553 = vunpack.c.3.s8 %v4441
          %v4554 = vunpack.c.3.s8 %v4442
          %v4555 = vunpack.c.0.s8 %v4443
          %v4556 = vunpack.c.0.s8 %v4444
          %v4557 = vunpack.c.0.s8 %v4445
          %v4558 = vunpack.c.0.s8 %v4446
          %v4559 = vunpack.c.1.s8 %v4443
          %v4560 = vunpack.c.1.s8 %v4444
          %v4561 = vunpack.c.1.s8 %v4445
          %v4562 = vunpack.c.1.s8 %v4446
          %v4563 = vunpack.c.2.s8 %v4443
          %v4564 = vunpack.c.2.s8 %v4444
          %v4565 = vunpack.c.2.s8 %v4445
          %v4566 = vunpack.c.2.s8 %v4446
          %v4567 = vunpack.c.3.s8 %v4443
          %v4568 = vunpack.c.3.s8 %v4444
          %v4569 = vunpack.c.3.s8 %v4445
          %v4570 = vunpack.c.3.s8 %v4446
          %v4571 = vunpack.c.0.s8 %v4447
          %v4572 = vunpack.c.0.s8 %v4448
          %v4573 = vunpack.c.0.s8 %v4449
          %v4574 = vunpack.c.0.s8 %v4450
          %v4575 = vunpack.c.1.s8 %v4447
          %v4576 = vunpack.c.1.s8 %v4448
          %v4577 = vunpack.c.1.s8 %v4449
          %v4578 = vunpack.c.1.s8 %v4450
          %v4579 = vunpack.c.2.s8 %v4447
          %v4580 = vunpack.c.2.s8 %v4448
          %v4581 = vunpack.c.2.s8 %v4449
          %v4582 = vunpack.c.2.s8 %v4450
          %v4583 = vunpack.c.3.s8 %v4447
          %v4584 = vunpack.c.3.s8 %v4448
          %v4585 = vunpack.c.3.s8 %v4449
          %v4586 = vunpack.c.3.s8 %v4450
          %v4587 = vunpack.c.0.s8 %v4451
          %v4588 = vunpack.c.0.s8 %v4452
          %v4589 = vunpack.c.0.s8 %v4453
          %v4590 = vunpack.c.0.s8 %v4454
          %v4591 = vunpack.c.1.s8 %v4451
          %v4592 = vunpack.c.1.s8 %v4452
          %v4593 = vunpack.c.1.s8 %v4453
          %v4594 = vunpack.c.1.s8 %v4454
          %v4595 = vunpack.c.2.s8 %v4451
          %v4596 = vunpack.c.2.s8 %v4452
          %v4597 = vunpack.c.2.s8 %v4453
          %v4598 = vunpack.c.2.s8 %v4454
          %v4599 = vunpack.c.3.s8 %v4451
          %v4600 = vunpack.c.3.s8 %v4452
          %v4601 = vunpack.c.3.s8 %v4453
          %v4602 = vunpack.c.3.s8 %v4454
          %v4603 = vunpack.c.0.s8 %v4455
          %v4604 = vunpack.c.0.s8 %v4456
          %v4605 = vunpack.c.0.s8 %v4457
          %v4606 = vunpack.c.0.s8 %v4458
          %v4607 = vunpack.c.1.s8 %v4455
          %v4608 = vunpack.c.1.s8 %v4456
          %v4609 = vunpack.c.1.s8 %v4457
          %v4610 = vunpack.c.1.s8 %v4458
          %v4611 = vunpack.c.2.s8 %v4455
          %v4612 = vunpack.c.2.s8 %v4456
          %v4613 = vunpack.c.2.s8 %v4457
          %v4614 = vunpack.c.2.s8 %v4458
          %v4615 = vunpack.c.3.s8 %v4455
          %v4616 = vunpack.c.3.s8 %v4456
          %v4617 = vunpack.c.3.s8 %v4457
          %v4618 = vunpack.c.3.s8 %v4458
          %v4619 = vunpack.c.0.s8 %v4459
          %v4620 = vunpack.c.0.s8 %v4460
          %v4621 = vunpack.c.0.s8 %v4461
          %v4622 = vunpack.c.0.s8 %v4462
          %v4623 = vunpack.c.1.s8 %v4459
          %v4624 = vunpack.c.1.s8 %v4460
          %v4625 = vunpack.c.1.s8 %v4461
          %v4626 = vunpack.c.1.s8 %v4462
          %v4627 = vunpack.c.2.s8 %v4459
          %v4628 = vunpack.c.2.s8 %v4460
          %v4629 = vunpack.c.2.s8 %v4461
          %v4630 = vunpack.c.2.s8 %v4462
          %v4631 = vunpack.c.3.s8 %v4459
          %v4632 = vunpack.c.3.s8 %v4460
          %v4633 = vunpack.c.3.s8 %v4461
          %v4634 = vunpack.c.3.s8 %v4462
          %v4635 = vunpack.c.0.s8 %v4463
          %v4636 = vunpack.c.0.s8 %v4464
          %v4637 = vunpack.c.0.s8 %v4465
          %v4638 = vunpack.c.0.s8 %v4466
          %v4639 = vunpack.c.1.s8 %v4463
          %v4640 = vunpack.c.1.s8 %v4464
          %v4641 = vunpack.c.1.s8 %v4465
          %v4642 = vunpack.c.1.s8 %v4466
          %v4643 = vunpack.c.2.s8 %v4463
          %v4644 = vunpack.c.2.s8 %v4464
          %v4645 = vunpack.c.2.s8 %v4465
          %v4646 = vunpack.c.2.s8 %v4466
          %v4647 = vunpack.c.3.s8 %v4463
          %v4648 = vunpack.c.3.s8 %v4464
          %v4649 = vunpack.c.3.s8 %v4465
          %v4650 = vunpack.c.3.s8 %v4466
          %v4651 = vunpack.c.0.s8 %v4467
          %v4652 = vunpack.c.0.s8 %v4468
          %v4653 = vunpack.c.0.s8 %v4469
          %v4654 = vunpack.c.0.s8 %v4470
          %v4655 = vunpack.c.1.s8 %v4467
          %v4656 = vunpack.c.1.s8 %v4468
          %v4657 = vunpack.c.1.s8 %v4469
          %v4658 = vunpack.c.1.s8 %v4470
          %v4659 = vunpack.c.2.s8 %v4467
          %v4660 = vunpack.c.2.s8 %v4468
          %v4661 = vunpack.c.2.s8 %v4469
          %v4662 = vunpack.c.2.s8 %v4470
          %v4663 = vunpack.c.3.s8 %v4467
          %v4664 = vunpack.c.3.s8 %v4468
          %v4665 = vunpack.c.3.s8 %v4469
          %v4666 = vunpack.c.3.s8 %v4470
          %v4667 = vunpack.c.0.s8 %v4471
          %v4668 = vunpack.c.0.s8 %v4472
          %v4669 = vunpack.c.0.s8 %v4473
          %v4670 = vunpack.c.0.s8 %v4474
          %v4671 = vunpack.c.1.s8 %v4471
          %v4672 = vunpack.c.1.s8 %v4472
          %v4673 = vunpack.c.1.s8 %v4473
          %v4674 = vunpack.c.1.s8 %v4474
          %v4675 = vunpack.c.2.s8 %v4471
          %v4676 = vunpack.c.2.s8 %v4472
          %v4677 = vunpack.c.2.s8 %v4473
          %v4678 = vunpack.c.2.s8 %v4474
          %v4679 = vunpack.c.3.s8 %v4471
          %v4680 = vunpack.c.3.s8 %v4472
          %v4681 = vunpack.c.3.s8 %v4473
          %v4682 = vunpack.c.3.s8 %v4474
          %v4683 = vunpack.c.0.s8 %v4475
          %v4684 = vunpack.c.0.s8 %v4476
          %v4685 = vunpack.c.0.s8 %v4477
          %v4686 = vunpack.c.0.s8 %v4478
          %v4687 = vunpack.c.1.s8 %v4475
          %v4688 = vunpack.c.1.s8 %v4476
          %v4689 = vunpack.c.1.s8 %v4477
          %v4690 = vunpack.c.1.s8 %v4478
          %v4691 = vunpack.c.2.s8 %v4475
          %v4692 = vunpack.c.2.s8 %v4476
          %v4693 = vunpack.c.2.s8 %v4477
          %v4694 = vunpack.c.2.s8 %v4478
          %v4695 = vunpack.c.3.s8 %v4475
          %v4696 = vunpack.c.3.s8 %v4476
          %v4697 = vunpack.c.3.s8 %v4477
          %v4698 = vunpack.c.3.s8 %v4478
          %v4699 = vunpack.c.0.s8 %v4479
          %v4700 = vunpack.c.0.s8 %v4480
          %v4701 = vunpack.c.0.s8 %v4481
          %v4702 = vunpack.c.0.s8 %v4482
          %v4703 = vunpack.c.1.s8 %v4479
          %v4704 = vunpack.c.1.s8 %v4480
          %v4705 = vunpack.c.1.s8 %v4481
          %v4706 = vunpack.c.1.s8 %v4482
          %v4707 = vunpack.c.2.s8 %v4479
          %v4708 = vunpack.c.2.s8 %v4480
          %v4709 = vunpack.c.2.s8 %v4481
          %v4710 = vunpack.c.2.s8 %v4482
          %v4711 = vunpack.c.3.s8 %v4479
          %v4712 = vunpack.c.3.s8 %v4480
          %v4713 = vunpack.c.3.s8 %v4481
          %v4714 = vunpack.c.3.s8 %v4482
          %v4715 = vunpack.c.0.s8 %v4483
          %v4716 = vunpack.c.0.s8 %v4484
          %v4717 = vunpack.c.0.s8 %v4485
          %v4718 = vunpack.c.0.s8 %v4486
          %v4719 = vunpack.c.1.s8 %v4483
          %v4720 = vunpack.c.1.s8 %v4484
          %v4721 = vunpack.c.1.s8 %v4485
          %v4722 = vunpack.c.1.s8 %v4486
          %v4723 = vunpack.c.2.s8 %v4483
          %v4724 = vunpack.c.2.s8 %v4484
          %v4725 = vunpack.c.2.s8 %v4485
          %v4726 = vunpack.c.2.s8 %v4486
          %v4727 = vunpack.c.3.s8 %v4483
          %v4728 = vunpack.c.3.s8 %v4484
          %v4729 = vunpack.c.3.s8 %v4485
          %v4730 = vunpack.c.3.s8 %v4486
          %v4731 = vunpack.c.0.s8 %v4487
          %v4732 = vunpack.c.0.s8 %v4488
          %v4733 = vunpack.c.0.s8 %v4489
          %v4734 = vunpack.c.0.s8 %v4490
          %v4735 = vunpack.c.1.s8 %v4487
          %v4736 = vunpack.c.1.s8 %v4488
          %v4737 = vunpack.c.1.s8 %v4489
          %v4738 = vunpack.c.1.s8 %v4490
          %v4739 = vunpack.c.2.s8 %v4487
          %v4740 = vunpack.c.2.s8 %v4488
          %v4741 = vunpack.c.2.s8 %v4489
          %v4742 = vunpack.c.2.s8 %v4490
          %v4743 = vunpack.c.3.s8 %v4487
          %v4744 = vunpack.c.3.s8 %v4488
          %v4745 = vunpack.c.3.s8 %v4489
          %v4746 = vunpack.c.3.s8 %v4490
          %v4747 = vcvt.s32.f32 %v4491
          %v4748 = vcvt.s32.f32 %v4492
          %v4749 = vcvt.s32.f32 %v4493
          %v4750 = vcvt.s32.f32 %v4494
          %v4751 = vcvt.s32.f32 %v4495
          %v4752 = vcvt.s32.f32 %v4496
          %v4753 = vcvt.s32.f32 %v4497
          %v4754 = vcvt.s32.f32 %v4498
          %v4755 = vcvt.s32.f32 %v4499
          %v4756 = vcvt.s32.f32 %v4500
          %v4757 = vcvt.s32.f32 %v4501
          %v4758 = vcvt.s32.f32 %v4502
          %v4759 = vcvt.s32.f32 %v4503
          %v4760 = vcvt.s32.f32 %v4504
          %v4761 = vcvt.s32.f32 %v4505
          %v4762 = vcvt.s32.f32 %v4506
          %v4763 = vcvt.s32.f32 %v4507
          %v4764 = vcvt.s32.f32 %v4508
          %v4765 = vcvt.s32.f32 %v4509
          %v4766 = vcvt.s32.f32 %v4510
          %v4767 = vcvt.s32.f32 %v4511
          %v4768 = vcvt.s32.f32 %v4512
          %v4769 = vcvt.s32.f32 %v4513
          %v4770 = vcvt.s32.f32 %v4514
          %v4771 = vcvt.s32.f32 %v4515
          %v4772 = vcvt.s32.f32 %v4516
          %v4773 = vcvt.s32.f32 %v4517
          %v4774 = vcvt.s32.f32 %v4518
          %v4775 = vcvt.s32.f32 %v4519
          %v4776 = vcvt.s32.f32 %v4520
          %v4777 = vcvt.s32.f32 %v4521
          %v4778 = vcvt.s32.f32 %v4522
          %v4779 = vcvt.s32.f32 %v4523
          %v4780 = vcvt.s32.f32 %v4524
          %v4781 = vcvt.s32.f32 %v4525
          %v4782 = vcvt.s32.f32 %v4526
          %v4783 = vcvt.s32.f32 %v4527
          %v4784 = vcvt.s32.f32 %v4528
          %v4785 = vcvt.s32.f32 %v4529
          %v4786 = vcvt.s32.f32 %v4530
          %v4787 = vcvt.s32.f32 %v4531
          %v4788 = vcvt.s32.f32 %v4532
          %v4789 = vcvt.s32.f32 %v4533
          %v4790 = vcvt.s32.f32 %v4534
          %v4791 = vcvt.s32.f32 %v4535
          %v4792 = vcvt.s32.f32 %v4536
          %v4793 = vcvt.s32.f32 %v4537
          %v4794 = vcvt.s32.f32 %v4538
          %v4795 = vcvt.s32.f32 %v4539
          %v4796 = vcvt.s32.f32 %v4540
          %v4797 = vcvt.s32.f32 %v4541
          %v4798 = vcvt.s32.f32 %v4542
          %v4799 = vcvt.s32.f32 %v4543
          %v4800 = vcvt.s32.f32 %v4544
          %v4801 = vcvt.s32.f32 %v4545
          %v4802 = vcvt.s32.f32 %v4546
          %v4803 = vcvt.s32.f32 %v4547
          %v4804 = vcvt.s32.f32 %v4548
          %v4805 = vcvt.s32.f32 %v4549
          %v4806 = vcvt.s32.f32 %v4550
          %v4807 = vcvt.s32.f32 %v4551
          %v4808 = vcvt.s32.f32 %v4552
          %v4809 = vcvt.s32.f32 %v4553
          %v4810 = vcvt.s32.f32 %v4554
          %v4811 = vcvt.s32.f32 %v4555
          %v4812 = vcvt.s32.f32 %v4556
          %v4813 = vcvt.s32.f32 %v4557
          %v4814 = vcvt.s32.f32 %v4558
          %v4815 = vcvt.s32.f32 %v4559
          %v4816 = vcvt.s32.f32 %v4560
          %v4817 = vcvt.s32.f32 %v4561
          %v4818 = vcvt.s32.f32 %v4562
          %v4819 = vcvt.s32.f32 %v4563
          %v4820 = vcvt.s32.f32 %v4564
          %v4821 = vcvt.s32.f32 %v4565
          %v4822 = vcvt.s32.f32 %v4566
          %v4823 = vcvt.s32.f32 %v4567
          %v4824 = vcvt.s32.f32 %v4568
          %v4825 = vcvt.s32.f32 %v4569
          %v4826 = vcvt.s32.f32 %v4570
          %v4827 = vcvt.s32.f32 %v4571
          %v4828 = vcvt.s32.f32 %v4572
          %v4829 = vcvt.s32.f32 %v4573
          %v4830 = vcvt.s32.f32 %v4574
          %v4831 = vcvt.s32.f32 %v4575
          %v4832 = vcvt.s32.f32 %v4576
          %v4833 = vcvt.s32.f32 %v4577
          %v4834 = vcvt.s32.f32 %v4578
          %v4835 = vcvt.s32.f32 %v4579
          %v4836 = vcvt.s32.f32 %v4580
          %v4837 = vcvt.s32.f32 %v4581
          %v4838 = vcvt.s32.f32 %v4582
          %v4839 = vcvt.s32.f32 %v4583
          %v4840 = vcvt.s32.f32 %v4584
          %v4841 = vcvt.s32.f32 %v4585
          %v4842 = vcvt.s32.f32 %v4586
          %v4843 = vcvt.s32.f32 %v4587
          %v4844 = vcvt.s32.f32 %v4588
          %v4845 = vcvt.s32.f32 %v4589
          %v4846 = vcvt.s32.f32 %v4590
          %v4847 = vcvt.s32.f32 %v4591
          %v4848 = vcvt.s32.f32 %v4592
          %v4849 = vcvt.s32.f32 %v4593
          %v4850 = vcvt.s32.f32 %v4594
          %v4851 = vcvt.s32.f32 %v4595
          %v4852 = vcvt.s32.f32 %v4596
          %v4853 = vcvt.s32.f32 %v4597
          %v4854 = vcvt.s32.f32 %v4598
          %v4855 = vcvt.s32.f32 %v4599
          %v4856 = vcvt.s32.f32 %v4600
          %v4857 = vcvt.s32.f32 %v4601
          %v4858 = vcvt.s32.f32 %v4602
          %v4859 = vcvt.s32.f32 %v4603
          %v4860 = vcvt.s32.f32 %v4604
          %v4861 = vcvt.s32.f32 %v4605
          %v4862 = vcvt.s32.f32 %v4606
          %v4863 = vcvt.s32.f32 %v4607
          %v4864 = vcvt.s32.f32 %v4608
          %v4865 = vcvt.s32.f32 %v4609
          %v4866 = vcvt.s32.f32 %v4610
          %v4867 = vcvt.s32.f32 %v4611
          %v4868 = vcvt.s32.f32 %v4612
          %v4869 = vcvt.s32.f32 %v4613
          %v4870 = vcvt.s32.f32 %v4614
          %v4871 = vcvt.s32.f32 %v4615
          %v4872 = vcvt.s32.f32 %v4616
          %v4873 = vcvt.s32.f32 %v4617
          %v4874 = vcvt.s32.f32 %v4618
          %v4875 = vcvt.s32.f32 %v4619
          %v4876 = vcvt.s32.f32 %v4620
          %v4877 = vcvt.s32.f32 %v4621
          %v4878 = vcvt.s32.f32 %v4622
          %v4879 = vcvt.s32.f32 %v4623
          %v4880 = vcvt.s32.f32 %v4624
          %v4881 = vcvt.s32.f32 %v4625
          %v4882 = vcvt.s32.f32 %v4626
          %v4883 = vcvt.s32.f32 %v4627
          %v4884 = vcvt.s32.f32 %v4628
          %v4885 = vcvt.s32.f32 %v4629
          %v4886 = vcvt.s32.f32 %v4630
          %v4887 = vcvt.s32.f32 %v4631
          %v4888 = vcvt.s32.f32 %v4632
          %v4889 = vcvt.s32.f32 %v4633
          %v4890 = vcvt.s32.f32 %v4634
          %v4891 = vcvt.s32.f32 %v4635
          %v4892 = vcvt.s32.f32 %v4636
          %v4893 = vcvt.s32.f32 %v4637
          %v4894 = vcvt.s32.f32 %v4638
          %v4895 = vcvt.s32.f32 %v4639
          %v4896 = vcvt.s32.f32 %v4640
          %v4897 = vcvt.s32.f32 %v4641
          %v4898 = vcvt.s32.f32 %v4642
          %v4899 = vcvt.s32.f32 %v4643
          %v4900 = vcvt.s32.f32 %v4644
          %v4901 = vcvt.s32.f32 %v4645
          %v4902 = vcvt.s32.f32 %v4646
          %v4903 = vcvt.s32.f32 %v4647
          %v4904 = vcvt.s32.f32 %v4648
          %v4905 = vcvt.s32.f32 %v4649
          %v4906 = vcvt.s32.f32 %v4650
          %v4907 = vcvt.s32.f32 %v4651
          %v4908 = vcvt.s32.f32 %v4652
          %v4909 = vcvt.s32.f32 %v4653
          %v4910 = vcvt.s32.f32 %v4654
          %v4911 = vcvt.s32.f32 %v4655
          %v4912 = vcvt.s32.f32 %v4656
          %v4913 = vcvt.s32.f32 %v4657
          %v4914 = vcvt.s32.f32 %v4658
          %v4915 = vcvt.s32.f32 %v4659
          %v4916 = vcvt.s32.f32 %v4660
          %v4917 = vcvt.s32.f32 %v4661
          %v4918 = vcvt.s32.f32 %v4662
          %v4919 = vcvt.s32.f32 %v4663
          %v4920 = vcvt.s32.f32 %v4664
          %v4921 = vcvt.s32.f32 %v4665
          %v4922 = vcvt.s32.f32 %v4666
          %v4923 = vcvt.s32.f32 %v4667
          %v4924 = vcvt.s32.f32 %v4668
          %v4925 = vcvt.s32.f32 %v4669
          %v4926 = vcvt.s32.f32 %v4670
          %v4927 = vcvt.s32.f32 %v4671
          %v4928 = vcvt.s32.f32 %v4672
          %v4929 = vcvt.s32.f32 %v4673
          %v4930 = vcvt.s32.f32 %v4674
          %v4931 = vcvt.s32.f32 %v4675
          %v4932 = vcvt.s32.f32 %v4676
          %v4933 = vcvt.s32.f32 %v4677
          %v4934 = vcvt.s32.f32 %v4678
          %v4935 = vcvt.s32.f32 %v4679
          %v4936 = vcvt.s32.f32 %v4680
          %v4937 = vcvt.s32.f32 %v4681
          %v4938 = vcvt.s32.f32 %v4682
          %v4939 = vcvt.s32.f32 %v4683
          %v4940 = vcvt.s32.f32 %v4684
          %v4941 = vcvt.s32.f32 %v4685
          %v4942 = vcvt.s32.f32 %v4686
          %v4943 = vcvt.s32.f32 %v4687
          %v4944 = vcvt.s32.f32 %v4688
          %v4945 = vcvt.s32.f32 %v4689
          %v4946 = vcvt.s32.f32 %v4690
          %v4947 = vcvt.s32.f32 %v4691
          %v4948 = vcvt.s32.f32 %v4692
          %v4949 = vcvt.s32.f32 %v4693
          %v4950 = vcvt.s32.f32 %v4694
          %v4951 = vcvt.s32.f32 %v4695
          %v4952 = vcvt.s32.f32 %v4696
          %v4953 = vcvt.s32.f32 %v4697
          %v4954 = vcvt.s32.f32 %v4698
          %v4955 = vcvt.s32.f32 %v4699
          %v4956 = vcvt.s32.f32 %v4700
          %v4957 = vcvt.s32.f32 %v4701
          %v4958 = vcvt.s32.f32 %v4702
          %v4959 = vcvt.s32.f32 %v4703
          %v4960 = vcvt.s32.f32 %v4704
          %v4961 = vcvt.s32.f32 %v4705
          %v4962 = vcvt.s32.f32 %v4706
          %v4963 = vcvt.s32.f32 %v4707
          %v4964 = vcvt.s32.f32 %v4708
          %v4965 = vcvt.s32.f32 %v4709
          %v4966 = vcvt.s32.f32 %v4710
          %v4967 = vcvt.s32.f32 %v4711
          %v4968 = vcvt.s32.f32 %v4712
          %v4969 = vcvt.s32.f32 %v4713
          %v4970 = vcvt.s32.f32 %v4714
          %v4971 = vcvt.s32.f32 %v4715
          %v4972 = vcvt.s32.f32 %v4716
          %v4973 = vcvt.s32.f32 %v4717
          %v4974 = vcvt.s32.f32 %v4718
          %v4975 = vcvt.s32.f32 %v4719
          %v4976 = vcvt.s32.f32 %v4720
          %v4977 = vcvt.s32.f32 %v4721
          %v4978 = vcvt.s32.f32 %v4722
          %v4979 = vcvt.s32.f32 %v4723
          %v4980 = vcvt.s32.f32 %v4724
          %v4981 = vcvt.s32.f32 %v4725
          %v4982 = vcvt.s32.f32 %v4726
          %v4983 = vcvt.s32.f32 %v4727
          %v4984 = vcvt.s32.f32 %v4728
          %v4985 = vcvt.s32.f32 %v4729
          %v4986 = vcvt.s32.f32 %v4730
          %v4987 = vcvt.s32.f32 %v4731
          %v4988 = vcvt.s32.f32 %v4732
          %v4989 = vcvt.s32.f32 %v4733
          %v4990 = vcvt.s32.f32 %v4734
          %v4991 = vcvt.s32.f32 %v4735
          %v4992 = vcvt.s32.f32 %v4736
          %v4993 = vcvt.s32.f32 %v4737
          %v4994 = vcvt.s32.f32 %v4738
          %v4995 = vcvt.s32.f32 %v4739
          %v4996 = vcvt.s32.f32 %v4740
          %v4997 = vcvt.s32.f32 %v4741
          %v4998 = vcvt.s32.f32 %v4742
          %v4999 = vcvt.s32.f32 %v4743
          %v5000 = vcvt.s32.f32 %v4744
          %v5001 = vcvt.s32.f32 %v4745
          %v5002 = vcvt.s32.f32 %v4746
          %v5003 = vpack.c.bf16 %v4751, %v4747
          %v5004 = vpack.c.bf16 %v4752, %v4748
          %v5005 = vpack.c.bf16 %v4753, %v4749
          %v5006 = vpack.c.bf16 %v4754, %v4750
          %v5007 = vpack.c.bf16 %v4759, %v4755
          %v5008 = vpack.c.bf16 %v4760, %v4756
          %v5009 = vpack.c.bf16 %v4761, %v4757
          %v5010 = vpack.c.bf16 %v4762, %v4758
          %v5011 = vpack.c.bf16 %v4767, %v4763
          %v5012 = vpack.c.bf16 %v4768, %v4764
          %v5013 = vpack.c.bf16 %v4769, %v4765
          %v5014 = vpack.c.bf16 %v4770, %v4766
          %v5015 = vpack.c.bf16 %v4775, %v4771
          %v5016 = vpack.c.bf16 %v4776, %v4772
          %v5017 = vpack.c.bf16 %v4777, %v4773
          %v5018 = vpack.c.bf16 %v4778, %v4774
          %v5019 = vpack.c.bf16 %v4783, %v4779
          %v5020 = vpack.c.bf16 %v4784, %v4780
          %v5021 = vpack.c.bf16 %v4785, %v4781
          %v5022 = vpack.c.bf16 %v4786, %v4782
          %v5023 = vpack.c.bf16 %v4791, %v4787
          %v5024 = vpack.c.bf16 %v4792, %v4788
          %v5025 = vpack.c.bf16 %v4793, %v4789
          %v5026 = vpack.c.bf16 %v4794, %v4790
          %v5027 = vpack.c.bf16 %v4799, %v4795
          %v5028 = vpack.c.bf16 %v4800, %v4796
          %v5029 = vpack.c.bf16 %v4801, %v4797
          %v5030 = vpack.c.bf16 %v4802, %v4798
          %v5031 = vpack.c.bf16 %v4807, %v4803
          %v5032 = vpack.c.bf16 %v4808, %v4804
          %v5033 = vpack.c.bf16 %v4809, %v4805
          %v5034 = vpack.c.bf16 %v4810, %v4806
          %v5035 = vpack.c.bf16 %v4815, %v4811
          %v5036 = vpack.c.bf16 %v4816, %v4812
          %v5037 = vpack.c.bf16 %v4817, %v4813
          %v5038 = vpack.c.bf16 %v4818, %v4814
          %v5039 = vpack.c.bf16 %v4823, %v4819
          %v5040 = vpack.c.bf16 %v4824, %v4820
          %v5041 = vpack.c.bf16 %v4825, %v4821
          %v5042 = vpack.c.bf16 %v4826, %v4822
          %v5043 = vpack.c.bf16 %v4831, %v4827
          %v5044 = vpack.c.bf16 %v4832, %v4828
          %v5045 = vpack.c.bf16 %v4833, %v4829
          %v5046 = vpack.c.bf16 %v4834, %v4830
          %v5047 = vpack.c.bf16 %v4839, %v4835
          %v5048 = vpack.c.bf16 %v4840, %v4836
          %v5049 = vpack.c.bf16 %v4841, %v4837
          %v5050 = vpack.c.bf16 %v4842, %v4838
          %v5051 = vpack.c.bf16 %v4847, %v4843
          %v5052 = vpack.c.bf16 %v4848, %v4844
          %v5053 = vpack.c.bf16 %v4849, %v4845
          %v5054 = vpack.c.bf16 %v4850, %v4846
          %v5055 = vpack.c.bf16 %v4855, %v4851
          %v5056 = vpack.c.bf16 %v4856, %v4852
          %v5057 = vpack.c.bf16 %v4857, %v4853
          %v5058 = vpack.c.bf16 %v4858, %v4854
          %v5059 = vpack.c.bf16 %v4863, %v4859
          %v5060 = vpack.c.bf16 %v4864, %v4860
          %v5061 = vpack.c.bf16 %v4865, %v4861
          %v5062 = vpack.c.bf16 %v4866, %v4862
          %v5063 = vpack.c.bf16 %v4871, %v4867
          %v5064 = vpack.c.bf16 %v4872, %v4868
          %v5065 = vpack.c.bf16 %v4873, %v4869
          %v5066 = vpack.c.bf16 %v4874, %v4870
          %v5067 = vpack.c.bf16 %v4879, %v4875
          %v5068 = vpack.c.bf16 %v4880, %v4876
          %v5069 = vpack.c.bf16 %v4881, %v4877
          %v5070 = vpack.c.bf16 %v4882, %v4878
          %v5071 = vpack.c.bf16 %v4887, %v4883
          %v5072 = vpack.c.bf16 %v4888, %v4884
          %v5073 = vpack.c.bf16 %v4889, %v4885
          %v5074 = vpack.c.bf16 %v4890, %v4886
          %v5075 = vpack.c.bf16 %v4895, %v4891
          %v5076 = vpack.c.bf16 %v4896, %v4892
          %v5077 = vpack.c.bf16 %v4897, %v4893
          %v5078 = vpack.c.bf16 %v4898, %v4894
          %v5079 = vpack.c.bf16 %v4903, %v4899
          %v5080 = vpack.c.bf16 %v4904, %v4900
          %v5081 = vpack.c.bf16 %v4905, %v4901
          %v5082 = vpack.c.bf16 %v4906, %v4902
          %v5083 = vpack.c.bf16 %v4911, %v4907
          %v5084 = vpack.c.bf16 %v4912, %v4908
          %v5085 = vpack.c.bf16 %v4913, %v4909
          %v5086 = vpack.c.bf16 %v4914, %v4910
          %v5087 = vpack.c.bf16 %v4919, %v4915
          %v5088 = vpack.c.bf16 %v4920, %v4916
          %v5089 = vpack.c.bf16 %v4921, %v4917
          %v5090 = vpack.c.bf16 %v4922, %v4918
          %v5091 = vpack.c.bf16 %v4927, %v4923
          %v5092 = vpack.c.bf16 %v4928, %v4924
          %v5093 = vpack.c.bf16 %v4929, %v4925
          %v5094 = vpack.c.bf16 %v4930, %v4926
          %v5095 = vpack.c.bf16 %v4935, %v4931
          %v5096 = vpack.c.bf16 %v4936, %v4932
          %v5097 = vpack.c.bf16 %v4937, %v4933
          %v5098 = vpack.c.bf16 %v4938, %v4934
          %v5099 = vpack.c.bf16 %v4943, %v4939
          %v5100 = vpack.c.bf16 %v4944, %v4940
          %v5101 = vpack.c.bf16 %v4945, %v4941
          %v5102 = vpack.c.bf16 %v4946, %v4942
          %v5103 = vpack.c.bf16 %v4951, %v4947
          %v5104 = vpack.c.bf16 %v4952, %v4948
          %v5105 = vpack.c.bf16 %v4953, %v4949
          %v5106 = vpack.c.bf16 %v4954, %v4950
          %v5107 = vpack.c.bf16 %v4959, %v4955
          %v5108 = vpack.c.bf16 %v4960, %v4956
          %v5109 = vpack.c.bf16 %v4961, %v4957
          %v5110 = vpack.c.bf16 %v4962, %v4958
          %v5111 = vpack.c.bf16 %v4967, %v4963
          %v5112 = vpack.c.bf16 %v4968, %v4964
          %v5113 = vpack.c.bf16 %v4969, %v4965
          %v5114 = vpack.c.bf16 %v4970, %v4966
          %v5115 = vpack.c.bf16 %v4975, %v4971
          %v5116 = vpack.c.bf16 %v4976, %v4972
          %v5117 = vpack.c.bf16 %v4977, %v4973
          %v5118 = vpack.c.bf16 %v4978, %v4974
          %v5119 = vpack.c.bf16 %v4983, %v4979
          %v5120 = vpack.c.bf16 %v4984, %v4980
          %v5121 = vpack.c.bf16 %v4985, %v4981
          %v5122 = vpack.c.bf16 %v4986, %v4982
          %v5123 = vpack.c.bf16 %v4991, %v4987
          %v5124 = vpack.c.bf16 %v4992, %v4988
          %v5125 = vpack.c.bf16 %v4993, %v4989
          %v5126 = vpack.c.bf16 %v4994, %v4990
          %v5127 = vpack.c.bf16 %v4999, %v4995
          %v5128 = vpack.c.bf16 %v5000, %v4996
          %v5129 = vpack.c.bf16 %v5001, %v4997
          %v5130 = vpack.c.bf16 %v5002, %v4998
          %v5133 = vunpack.c.l.b16 %v2571
          %v5134 = vunpack.c.h.b16 %v2571
          %v5135 = vunpack.c.l.b16 %v2572
          %v5136 = vunpack.c.h.b16 %v2572
          %v5137 = vpack.c.b16 %v5133, %v5133
          %v5138 = vpack.c.b16 %v5134, %v5134
          %v5139 = vpack.c.b16 %v5135, %v5135
          %v5140 = vpack.c.b16 %v5136, %v5136
          %5145 = vmatpush.bf16.msra.mxu0 %v5031
          %5146 = vmatpush.bf16.msra.mxu0 %v5027
          %5147 = vmatpush.bf16.msra.mxu0 %v5023
          %5148 = vmatpush.bf16.msra.mxu0 %v5019
          %5149 = vmatpush.bf16.msra.mxu0 %v5015
          %5150 = vmatpush.bf16.msra.mxu0 %v5011
          %5151 = vmatpush.bf16.msra.mxu0 %v5007
          %5152 = vmatpush.bf16.msra.mxu0 %v5003
          %5153 = vmatmul.bf16.gmra.mxu0 %v5137
          %v5154 = vpop.f32.mrf.mxu0
          %v5155 = vadd.f32 0.0, %v5154
          %v5156 = vpop.f32.mrf.mxu0
          %5157 = vdwg.mxu0
          %5158 = vmatpush.bf16.msra.mxu0 %v5063
          %5159 = vmatpush.bf16.msra.mxu0 %v5059
          %5160 = vmatpush.bf16.msra.mxu0 %v5055
          %5161 = vmatpush.bf16.msra.mxu0 %v5051
          %5162 = vmatpush.bf16.msra.mxu0 %v5047
          %5163 = vmatpush.bf16.msra.mxu0 %v5043
          %5164 = vmatpush.bf16.msra.mxu0 %v5039
          %5165 = vmatpush.bf16.msra.mxu0 %v5035
          %5166 = vmatmul.bf16.gmra.mxu0 %v5138
          %v5167 = vpop.f32.mrf.mxu0
          %v5168 = vadd.f32 %v5155, %v5167
          %v5169 = vpop.f32.mrf.mxu0
          %5170 = vdwg.mxu0
          %5171 = vmatpush.bf16.msra.mxu0 %v5095
          %5172 = vmatpush.bf16.msra.mxu0 %v5091
          %5173 = vmatpush.bf16.msra.mxu0 %v5087
          %5174 = vmatpush.bf16.msra.mxu0 %v5083
          %5175 = vmatpush.bf16.msra.mxu0 %v5079
          %5176 = vmatpush.bf16.msra.mxu0 %v5075
          %5177 = vmatpush.bf16.msra.mxu0 %v5071
          %5178 = vmatpush.bf16.msra.mxu0 %v5067
          %5179 = vmatmul.bf16.gmra.mxu0 %v5139
          %v5180 = vpop.f32.mrf.mxu0
          %v5181 = vadd.f32 %v5168, %v5180
          %v5182 = vpop.f32.mrf.mxu0
          %5183 = vdwg.mxu0
          %5184 = vmatpush.bf16.msra.mxu0 %v5127
          %5185 = vmatpush.bf16.msra.mxu0 %v5123
          %5186 = vmatpush.bf16.msra.mxu0 %v5119
          %5187 = vmatpush.bf16.msra.mxu0 %v5115
          %5188 = vmatpush.bf16.msra.mxu0 %v5111
          %5189 = vmatpush.bf16.msra.mxu0 %v5107
          %5190 = vmatpush.bf16.msra.mxu0 %v5103
          %5191 = vmatpush.bf16.msra.mxu0 %v5099
          %5192 = vmatmul.bf16.gmra.mxu0 %v5140
          %v5193 = vpop.f32.mrf.mxu0
          %v5194 = vadd.f32 %v5181, %v5193
          %v5195 = vpop.f32.mrf.mxu0
          %5196 = vdwg.mxu0
          %5197 = vmatpush.bf16.msra.mxu0 %v5032
          %5198 = vmatpush.bf16.msra.mxu0 %v5028
          %5199 = vmatpush.bf16.msra.mxu0 %v5024
          %5200 = vmatpush.bf16.msra.mxu0 %v5020
          %5201 = vmatpush.bf16.msra.mxu0 %v5016
          %5202 = vmatpush.bf16.msra.mxu0 %v5012
          %5203 = vmatpush.bf16.msra.mxu0 %v5008
          %5204 = vmatpush.bf16.msra.mxu0 %v5004
          %5205 = vmatmul.bf16.gmra.mxu0 %v5137
          %v5206 = vpop.f32.mrf.mxu0
          %v5207 = vadd.f32 0.0, %v5206
          %v5208 = vpop.f32.mrf.mxu0
          %5209 = vdwg.mxu0
          %5210 = vmatpush.bf16.msra.mxu0 %v5064
          %5211 = vmatpush.bf16.msra.mxu0 %v5060
          %5212 = vmatpush.bf16.msra.mxu0 %v5056
          %5213 = vmatpush.bf16.msra.mxu0 %v5052
          %5214 = vmatpush.bf16.msra.mxu0 %v5048
          %5215 = vmatpush.bf16.msra.mxu0 %v5044
          %5216 = vmatpush.bf16.msra.mxu0 %v5040
          %5217 = vmatpush.bf16.msra.mxu0 %v5036
          %5218 = vmatmul.bf16.gmra.mxu0 %v5138
          %v5219 = vpop.f32.mrf.mxu0
          %v5220 = vadd.f32 %v5207, %v5219
          %v5221 = vpop.f32.mrf.mxu0
          %5222 = vdwg.mxu0
          %5223 = vmatpush.bf16.msra.mxu0 %v5096
          %5224 = vmatpush.bf16.msra.mxu0 %v5092
          %5225 = vmatpush.bf16.msra.mxu0 %v5088
          %5226 = vmatpush.bf16.msra.mxu0 %v5084
          %5227 = vmatpush.bf16.msra.mxu0 %v5080
          %5228 = vmatpush.bf16.msra.mxu0 %v5076
          %5229 = vmatpush.bf16.msra.mxu0 %v5072
          %5230 = vmatpush.bf16.msra.mxu0 %v5068
          %5231 = vmatmul.bf16.gmra.mxu0 %v5139
          %v5232 = vpop.f32.mrf.mxu0
          %v5233 = vadd.f32 %v5220, %v5232
          %v5234 = vpop.f32.mrf.mxu0
          %5235 = vdwg.mxu0
          %5236 = vmatpush.bf16.msra.mxu0 %v5128
          %5237 = vmatpush.bf16.msra.mxu0 %v5124
          %5238 = vmatpush.bf16.msra.mxu0 %v5120
          %5239 = vmatpush.bf16.msra.mxu0 %v5116
          %5240 = vmatpush.bf16.msra.mxu0 %v5112
          %5241 = vmatpush.bf16.msra.mxu0 %v5108
          %5242 = vmatpush.bf16.msra.mxu0 %v5104
          %5243 = vmatpush.bf16.msra.mxu0 %v5100
          %5244 = vmatmul.bf16.gmra.mxu0 %v5140
          %v5245 = vpop.f32.mrf.mxu0
          %v5246 = vadd.f32 %v5233, %v5245
          %v5247 = vpop.f32.mrf.mxu0
          %5248 = vdwg.mxu0
          %5249 = vmatpush.bf16.msra.mxu0 %v5033
          %5250 = vmatpush.bf16.msra.mxu0 %v5029
          %5251 = vmatpush.bf16.msra.mxu0 %v5025
          %5252 = vmatpush.bf16.msra.mxu0 %v5021
          %5253 = vmatpush.bf16.msra.mxu0 %v5017
          %5254 = vmatpush.bf16.msra.mxu0 %v5013
          %5255 = vmatpush.bf16.msra.mxu0 %v5009
          %5256 = vmatpush.bf16.msra.mxu0 %v5005
          %5257 = vmatmul.bf16.gmra.mxu0 %v5137
          %v5258 = vpop.f32.mrf.mxu0
          %v5259 = vadd.f32 0.0, %v5258
          %v5260 = vpop.f32.mrf.mxu0
          %5261 = vdwg.mxu0
          %5262 = vmatpush.bf16.msra.mxu0 %v5065
          %5263 = vmatpush.bf16.msra.mxu0 %v5061
          %5264 = vmatpush.bf16.msra.mxu0 %v5057
          %5265 = vmatpush.bf16.msra.mxu0 %v5053
          %5266 = vmatpush.bf16.msra.mxu0 %v5049
          %5267 = vmatpush.bf16.msra.mxu0 %v5045
          %5268 = vmatpush.bf16.msra.mxu0 %v5041
          %5269 = vmatpush.bf16.msra.mxu0 %v5037
          %5270 = vmatmul.bf16.gmra.mxu0 %v5138
          %v5271 = vpop.f32.mrf.mxu0
          %v5272 = vadd.f32 %v5259, %v5271
          %v5273 = vpop.f32.mrf.mxu0
          %5274 = vdwg.mxu0
          %5275 = vmatpush.bf16.msra.mxu0 %v5097
          %5276 = vmatpush.bf16.msra.mxu0 %v5093
          %5277 = vmatpush.bf16.msra.mxu0 %v5089
          %5278 = vmatpush.bf16.msra.mxu0 %v5085
          %5279 = vmatpush.bf16.msra.mxu0 %v5081
          %5280 = vmatpush.bf16.msra.mxu0 %v5077
          %5281 = vmatpush.bf16.msra.mxu0 %v5073
          %5282 = vmatpush.bf16.msra.mxu0 %v5069
          %5283 = vmatmul.bf16.gmra.mxu0 %v5139
          %v5284 = vpop.f32.mrf.mxu0
          %v5285 = vadd.f32 %v5272, %v5284
          %v5286 = vpop.f32.mrf.mxu0
          %5287 = vdwg.mxu0
          %5288 = vmatpush.bf16.msra.mxu0 %v5129
          %5289 = vmatpush.bf16.msra.mxu0 %v5125
          %5290 = vmatpush.bf16.msra.mxu0 %v5121
          %5291 = vmatpush.bf16.msra.mxu0 %v5117
          %5292 = vmatpush.bf16.msra.mxu0 %v5113
          %5293 = vmatpush.bf16.msra.mxu0 %v5109
          %5294 = vmatpush.bf16.msra.mxu0 %v5105
          %5295 = vmatpush.bf16.msra.mxu0 %v5101
          %5296 = vmatmul.bf16.gmra.mxu0 %v5140
          %v5297 = vpop.f32.mrf.mxu0
          %v5298 = vadd.f32 %v5285, %v5297
          %v5299 = vpop.f32.mrf.mxu0
          %5300 = vdwg.mxu0
          %5301 = vmatpush.bf16.msra.mxu0 %v5034
          %5302 = vmatpush.bf16.msra.mxu0 %v5030
          %5303 = vmatpush.bf16.msra.mxu0 %v5026
          %5304 = vmatpush.bf16.msra.mxu0 %v5022
          %5305 = vmatpush.bf16.msra.mxu0 %v5018
          %5306 = vmatpush.bf16.msra.mxu0 %v5014
          %5307 = vmatpush.bf16.msra.mxu0 %v5010
          %5308 = vmatpush.bf16.msra.mxu0 %v5006
          %5309 = vmatmul.bf16.gmra.mxu0 %v5137
          %v5310 = vpop.f32.mrf.mxu0
          %v5311 = vadd.f32 0.0, %v5310
          %v5312 = vpop.f32.mrf.mxu0
          %5313 = vdwg.mxu0
          %5314 = vmatpush.bf16.msra.mxu0 %v5066
          %5315 = vmatpush.bf16.msra.mxu0 %v5062
          %5316 = vmatpush.bf16.msra.mxu0 %v5058
          %5317 = vmatpush.bf16.msra.mxu0 %v5054
          %5318 = vmatpush.bf16.msra.mxu0 %v5050
          %5319 = vmatpush.bf16.msra.mxu0 %v5046
          %5320 = vmatpush.bf16.msra.mxu0 %v5042
          %5321 = vmatpush.bf16.msra.mxu0 %v5038
          %5322 = vmatmul.bf16.gmra.mxu0 %v5138
          %v5323 = vpop.f32.mrf.mxu0
          %v5324 = vadd.f32 %v5311, %v5323
          %v5325 = vpop.f32.mrf.mxu0
          %5326 = vdwg.mxu0
          %5327 = vmatpush.bf16.msra.mxu0 %v5098
          %5328 = vmatpush.bf16.msra.mxu0 %v5094
          %5329 = vmatpush.bf16.msra.mxu0 %v5090
          %5330 = vmatpush.bf16.msra.mxu0 %v5086
          %5331 = vmatpush.bf16.msra.mxu0 %v5082
          %5332 = vmatpush.bf16.msra.mxu0 %v5078
          %5333 = vmatpush.bf16.msra.mxu0 %v5074
          %5334 = vmatpush.bf16.msra.mxu0 %v5070
          %5335 = vmatmul.bf16.gmra.mxu0 %v5139
          %v5336 = vpop.f32.mrf.mxu0
          %v5337 = vadd.f32 %v5324, %v5336
          %v5338 = vpop.f32.mrf.mxu0
          %5339 = vdwg.mxu0
          %5340 = vmatpush.bf16.msra.mxu0 %v5130
          %5341 = vmatpush.bf16.msra.mxu0 %v5126
          %5342 = vmatpush.bf16.msra.mxu0 %v5122
          %5343 = vmatpush.bf16.msra.mxu0 %v5118
          %5344 = vmatpush.bf16.msra.mxu0 %v5114
          %5345 = vmatpush.bf16.msra.mxu0 %v5110
          %5346 = vmatpush.bf16.msra.mxu0 %v5106
          %5347 = vmatpush.bf16.msra.mxu0 %v5102
          %5348 = vmatmul.bf16.gmra.mxu0 %v5140
          %v5349 = vpop.f32.mrf.mxu0
          %v5350 = vadd.f32 %v5337, %v5349
          %v5351 = vpop.f32.mrf.mxu0
          %5352 = vdwg.mxu0
          %v5353 = vadd.f32 %v4268, %v5194
          %v5354 = vadd.f32 %v4320, %v5246
          %v5355 = vadd.f32 %v4372, %v5298
          %v5356 = vadd.f32 %v4424, %v5350
          %v5357 = vld [vmem:[%s3 + $0x600] sm:$0xff]
          %v5358 = vld [vmem:[%s3 + $0x608] sm:$0xff]
          %v5359 = vld [vmem:[%s3 + $0x610] sm:$0xff]
          %v5360 = vld [vmem:[%s3 + $0x618] sm:$0xff]
          %v5361 = vld [vmem:[%s3 + $0x620] sm:$0xff]
          %v5362 = vld [vmem:[%s3 + $0x628] sm:$0xff]
          %v5363 = vld [vmem:[%s3 + $0x630] sm:$0xff]
          %v5364 = vld [vmem:[%s3 + $0x638] sm:$0xff]
          %v5365 = vld [vmem:[%s3 + $0x640] sm:$0xff]
          %v5366 = vld [vmem:[%s3 + $0x648] sm:$0xff]
          %v5367 = vld [vmem:[%s3 + $0x650] sm:$0xff]
          %v5368 = vld [vmem:[%s3 + $0x658] sm:$0xff]
          %v5369 = vld [vmem:[%s3 + $0x660] sm:$0xff]
          %v5370 = vld [vmem:[%s3 + $0x668] sm:$0xff]
          %v5371 = vld [vmem:[%s3 + $0x670] sm:$0xff]
          %v5372 = vld [vmem:[%s3 + $0x678] sm:$0xff]
          %v5373 = vld [vmem:[%s3 + $0x680] sm:$0xff]
          %v5374 = vld [vmem:[%s3 + $0x688] sm:$0xff]
          %v5375 = vld [vmem:[%s3 + $0x690] sm:$0xff]
          %v5376 = vld [vmem:[%s3 + $0x698] sm:$0xff]
          %v5377 = vld [vmem:[%s3 + $0x6a0] sm:$0xff]
          %v5378 = vld [vmem:[%s3 + $0x6a8] sm:$0xff]
          %v5379 = vld [vmem:[%s3 + $0x6b0] sm:$0xff]
          %v5380 = vld [vmem:[%s3 + $0x6b8] sm:$0xff]
          %v5381 = vld [vmem:[%s3 + $0x6c0] sm:$0xff]
          %v5382 = vld [vmem:[%s3 + $0x6c8] sm:$0xff]
          %v5383 = vld [vmem:[%s3 + $0x6d0] sm:$0xff]
          %v5384 = vld [vmem:[%s3 + $0x6d8] sm:$0xff]
          %v5385 = vld [vmem:[%s3 + $0x6e0] sm:$0xff]
          %v5386 = vld [vmem:[%s3 + $0x6e8] sm:$0xff]
          %v5387 = vld [vmem:[%s3 + $0x6f0] sm:$0xff]
          %v5388 = vld [vmem:[%s3 + $0x6f8] sm:$0xff]
          %v5389 = vld [vmem:[%s3 + $0x700] sm:$0xff]
          %v5390 = vld [vmem:[%s3 + $0x708] sm:$0xff]
          %v5391 = vld [vmem:[%s3 + $0x710] sm:$0xff]
          %v5392 = vld [vmem:[%s3 + $0x718] sm:$0xff]
          %v5393 = vld [vmem:[%s3 + $0x720] sm:$0xff]
          %v5394 = vld [vmem:[%s3 + $0x728] sm:$0xff]
          %v5395 = vld [vmem:[%s3 + $0x730] sm:$0xff]
          %v5396 = vld [vmem:[%s3 + $0x738] sm:$0xff]
          %v5397 = vld [vmem:[%s3 + $0x740] sm:$0xff]
          %v5398 = vld [vmem:[%s3 + $0x748] sm:$0xff]
          %v5399 = vld [vmem:[%s3 + $0x750] sm:$0xff]
          %v5400 = vld [vmem:[%s3 + $0x758] sm:$0xff]
          %v5401 = vld [vmem:[%s3 + $0x760] sm:$0xff]
          %v5402 = vld [vmem:[%s3 + $0x768] sm:$0xff]
          %v5403 = vld [vmem:[%s3 + $0x770] sm:$0xff]
          %v5404 = vld [vmem:[%s3 + $0x778] sm:$0xff]
          %v5405 = vld [vmem:[%s3 + $0x780] sm:$0xff]
          %v5406 = vld [vmem:[%s3 + $0x788] sm:$0xff]
          %v5407 = vld [vmem:[%s3 + $0x790] sm:$0xff]
          %v5408 = vld [vmem:[%s3 + $0x798] sm:$0xff]
          %v5409 = vld [vmem:[%s3 + $0x7a0] sm:$0xff]
          %v5410 = vld [vmem:[%s3 + $0x7a8] sm:$0xff]
          %v5411 = vld [vmem:[%s3 + $0x7b0] sm:$0xff]
          %v5412 = vld [vmem:[%s3 + $0x7b8] sm:$0xff]
          %v5413 = vld [vmem:[%s3 + $0x7c0] sm:$0xff]
          %v5414 = vld [vmem:[%s3 + $0x7c8] sm:$0xff]
          %v5415 = vld [vmem:[%s3 + $0x7d0] sm:$0xff]
          %v5416 = vld [vmem:[%s3 + $0x7d8] sm:$0xff]
          %v5417 = vld [vmem:[%s3 + $0x7e0] sm:$0xff]
          %v5418 = vld [vmem:[%s3 + $0x7e8] sm:$0xff]
          %v5419 = vld [vmem:[%s3 + $0x7f0] sm:$0xff]
          %v5420 = vld [vmem:[%s3 + $0x7f8] sm:$0xff]
          %v5421 = vunpack.c.0.s8 %v5357
          %v5422 = vunpack.c.0.s8 %v5358
          %v5423 = vunpack.c.0.s8 %v5359
          %v5424 = vunpack.c.0.s8 %v5360
          %v5425 = vunpack.c.1.s8 %v5357
          %v5426 = vunpack.c.1.s8 %v5358
          %v5427 = vunpack.c.1.s8 %v5359
          %v5428 = vunpack.c.1.s8 %v5360
          %v5429 = vunpack.c.2.s8 %v5357
          %v5430 = vunpack.c.2.s8 %v5358
          %v5431 = vunpack.c.2.s8 %v5359
          %v5432 = vunpack.c.2.s8 %v5360
          %v5433 = vunpack.c.3.s8 %v5357
          %v5434 = vunpack.c.3.s8 %v5358
          %v5435 = vunpack.c.3.s8 %v5359
          %v5436 = vunpack.c.3.s8 %v5360
          %v5437 = vunpack.c.0.s8 %v5361
          %v5438 = vunpack.c.0.s8 %v5362
          %v5439 = vunpack.c.0.s8 %v5363
          %v5440 = vunpack.c.0.s8 %v5364
          %v5441 = vunpack.c.1.s8 %v5361
          %v5442 = vunpack.c.1.s8 %v5362
          %v5443 = vunpack.c.1.s8 %v5363
          %v5444 = vunpack.c.1.s8 %v5364
          %v5445 = vunpack.c.2.s8 %v5361
          %v5446 = vunpack.c.2.s8 %v5362
          %v5447 = vunpack.c.2.s8 %v5363
          %v5448 = vunpack.c.2.s8 %v5364
          %v5449 = vunpack.c.3.s8 %v5361
          %v5450 = vunpack.c.3.s8 %v5362
          %v5451 = vunpack.c.3.s8 %v5363
          %v5452 = vunpack.c.3.s8 %v5364
          %v5453 = vunpack.c.0.s8 %v5365
          %v5454 = vunpack.c.0.s8 %v5366
          %v5455 = vunpack.c.0.s8 %v5367
          %v5456 = vunpack.c.0.s8 %v5368
          %v5457 = vunpack.c.1.s8 %v5365
          %v5458 = vunpack.c.1.s8 %v5366
          %v5459 = vunpack.c.1.s8 %v5367
          %v5460 = vunpack.c.1.s8 %v5368
          %v5461 = vunpack.c.2.s8 %v5365
          %v5462 = vunpack.c.2.s8 %v5366
          %v5463 = vunpack.c.2.s8 %v5367
          %v5464 = vunpack.c.2.s8 %v5368
          %v5465 = vunpack.c.3.s8 %v5365
          %v5466 = vunpack.c.3.s8 %v5366
          %v5467 = vunpack.c.3.s8 %v5367
          %v5468 = vunpack.c.3.s8 %v5368
          %v5469 = vunpack.c.0.s8 %v5369
          %v5470 = vunpack.c.0.s8 %v5370
          %v5471 = vunpack.c.0.s8 %v5371
          %v5472 = vunpack.c.0.s8 %v5372
          %v5473 = vunpack.c.1.s8 %v5369
          %v5474 = vunpack.c.1.s8 %v5370
          %v5475 = vunpack.c.1.s8 %v5371
          %v5476 = vunpack.c.1.s8 %v5372
          %v5477 = vunpack.c.2.s8 %v5369
          %v5478 = vunpack.c.2.s8 %v5370
          %v5479 = vunpack.c.2.s8 %v5371
          %v5480 = vunpack.c.2.s8 %v5372
          %v5481 = vunpack.c.3.s8 %v5369
          %v5482 = vunpack.c.3.s8 %v5370
          %v5483 = vunpack.c.3.s8 %v5371
          %v5484 = vunpack.c.3.s8 %v5372
          %v5485 = vunpack.c.0.s8 %v5373
          %v5486 = vunpack.c.0.s8 %v5374
          %v5487 = vunpack.c.0.s8 %v5375
          %v5488 = vunpack.c.0.s8 %v5376
          %v5489 = vunpack.c.1.s8 %v5373
          %v5490 = vunpack.c.1.s8 %v5374
          %v5491 = vunpack.c.1.s8 %v5375
          %v5492 = vunpack.c.1.s8 %v5376
          %v5493 = vunpack.c.2.s8 %v5373
          %v5494 = vunpack.c.2.s8 %v5374
          %v5495 = vunpack.c.2.s8 %v5375
          %v5496 = vunpack.c.2.s8 %v5376
          %v5497 = vunpack.c.3.s8 %v5373
          %v5498 = vunpack.c.3.s8 %v5374
          %v5499 = vunpack.c.3.s8 %v5375
          %v5500 = vunpack.c.3.s8 %v5376
          %v5501 = vunpack.c.0.s8 %v5377
          %v5502 = vunpack.c.0.s8 %v5378
          %v5503 = vunpack.c.0.s8 %v5379
          %v5504 = vunpack.c.0.s8 %v5380
          %v5505 = vunpack.c.1.s8 %v5377
          %v5506 = vunpack.c.1.s8 %v5378
          %v5507 = vunpack.c.1.s8 %v5379
          %v5508 = vunpack.c.1.s8 %v5380
          %v5509 = vunpack.c.2.s8 %v5377
          %v5510 = vunpack.c.2.s8 %v5378
          %v5511 = vunpack.c.2.s8 %v5379
          %v5512 = vunpack.c.2.s8 %v5380
          %v5513 = vunpack.c.3.s8 %v5377
          %v5514 = vunpack.c.3.s8 %v5378
          %v5515 = vunpack.c.3.s8 %v5379
          %v5516 = vunpack.c.3.s8 %v5380
          %v5517 = vunpack.c.0.s8 %v5381
          %v5518 = vunpack.c.0.s8 %v5382
          %v5519 = vunpack.c.0.s8 %v5383
          %v5520 = vunpack.c.0.s8 %v5384
          %v5521 = vunpack.c.1.s8 %v5381
          %v5522 = vunpack.c.1.s8 %v5382
          %v5523 = vunpack.c.1.s8 %v5383
          %v5524 = vunpack.c.1.s8 %v5384
          %v5525 = vunpack.c.2.s8 %v5381
          %v5526 = vunpack.c.2.s8 %v5382
          %v5527 = vunpack.c.2.s8 %v5383
          %v5528 = vunpack.c.2.s8 %v5384
          %v5529 = vunpack.c.3.s8 %v5381
          %v5530 = vunpack.c.3.s8 %v5382
          %v5531 = vunpack.c.3.s8 %v5383
          %v5532 = vunpack.c.3.s8 %v5384
          %v5533 = vunpack.c.0.s8 %v5385
          %v5534 = vunpack.c.0.s8 %v5386
          %v5535 = vunpack.c.0.s8 %v5387
          %v5536 = vunpack.c.0.s8 %v5388
          %v5537 = vunpack.c.1.s8 %v5385
          %v5538 = vunpack.c.1.s8 %v5386
          %v5539 = vunpack.c.1.s8 %v5387
          %v5540 = vunpack.c.1.s8 %v5388
          %v5541 = vunpack.c.2.s8 %v5385
          %v5542 = vunpack.c.2.s8 %v5386
          %v5543 = vunpack.c.2.s8 %v5387
          %v5544 = vunpack.c.2.s8 %v5388
          %v5545 = vunpack.c.3.s8 %v5385
          %v5546 = vunpack.c.3.s8 %v5386
          %v5547 = vunpack.c.3.s8 %v5387
          %v5548 = vunpack.c.3.s8 %v5388
          %v5549 = vunpack.c.0.s8 %v5389
          %v5550 = vunpack.c.0.s8 %v5390
          %v5551 = vunpack.c.0.s8 %v5391
          %v5552 = vunpack.c.0.s8 %v5392
          %v5553 = vunpack.c.1.s8 %v5389
          %v5554 = vunpack.c.1.s8 %v5390
          %v5555 = vunpack.c.1.s8 %v5391
          %v5556 = vunpack.c.1.s8 %v5392
          %v5557 = vunpack.c.2.s8 %v5389
          %v5558 = vunpack.c.2.s8 %v5390
          %v5559 = vunpack.c.2.s8 %v5391
          %v5560 = vunpack.c.2.s8 %v5392
          %v5561 = vunpack.c.3.s8 %v5389
          %v5562 = vunpack.c.3.s8 %v5390
          %v5563 = vunpack.c.3.s8 %v5391
          %v5564 = vunpack.c.3.s8 %v5392
          %v5565 = vunpack.c.0.s8 %v5393
          %v5566 = vunpack.c.0.s8 %v5394
          %v5567 = vunpack.c.0.s8 %v5395
          %v5568 = vunpack.c.0.s8 %v5396
          %v5569 = vunpack.c.1.s8 %v5393
          %v5570 = vunpack.c.1.s8 %v5394
          %v5571 = vunpack.c.1.s8 %v5395
          %v5572 = vunpack.c.1.s8 %v5396
          %v5573 = vunpack.c.2.s8 %v5393
          %v5574 = vunpack.c.2.s8 %v5394
          %v5575 = vunpack.c.2.s8 %v5395
          %v5576 = vunpack.c.2.s8 %v5396
          %v5577 = vunpack.c.3.s8 %v5393
          %v5578 = vunpack.c.3.s8 %v5394
          %v5579 = vunpack.c.3.s8 %v5395
          %v5580 = vunpack.c.3.s8 %v5396
          %v5581 = vunpack.c.0.s8 %v5397
          %v5582 = vunpack.c.0.s8 %v5398
          %v5583 = vunpack.c.0.s8 %v5399
          %v5584 = vunpack.c.0.s8 %v5400
          %v5585 = vunpack.c.1.s8 %v5397
          %v5586 = vunpack.c.1.s8 %v5398
          %v5587 = vunpack.c.1.s8 %v5399
          %v5588 = vunpack.c.1.s8 %v5400
          %v5589 = vunpack.c.2.s8 %v5397
          %v5590 = vunpack.c.2.s8 %v5398
          %v5591 = vunpack.c.2.s8 %v5399
          %v5592 = vunpack.c.2.s8 %v5400
          %v5593 = vunpack.c.3.s8 %v5397
          %v5594 = vunpack.c.3.s8 %v5398
          %v5595 = vunpack.c.3.s8 %v5399
          %v5596 = vunpack.c.3.s8 %v5400
          %v5597 = vunpack.c.0.s8 %v5401
          %v5598 = vunpack.c.0.s8 %v5402
          %v5599 = vunpack.c.0.s8 %v5403
          %v5600 = vunpack.c.0.s8 %v5404
          %v5601 = vunpack.c.1.s8 %v5401
          %v5602 = vunpack.c.1.s8 %v5402
          %v5603 = vunpack.c.1.s8 %v5403
          %v5604 = vunpack.c.1.s8 %v5404
          %v5605 = vunpack.c.2.s8 %v5401
          %v5606 = vunpack.c.2.s8 %v5402
          %v5607 = vunpack.c.2.s8 %v5403
          %v5608 = vunpack.c.2.s8 %v5404
          %v5609 = vunpack.c.3.s8 %v5401
          %v5610 = vunpack.c.3.s8 %v5402
          %v5611 = vunpack.c.3.s8 %v5403
          %v5612 = vunpack.c.3.s8 %v5404
          %v5613 = vunpack.c.0.s8 %v5405
          %v5614 = vunpack.c.0.s8 %v5406
          %v5615 = vunpack.c.0.s8 %v5407
          %v5616 = vunpack.c.0.s8 %v5408
          %v5617 = vunpack.c.1.s8 %v5405
          %v5618 = vunpack.c.1.s8 %v5406
          %v5619 = vunpack.c.1.s8 %v5407
          %v5620 = vunpack.c.1.s8 %v5408
          %v5621 = vunpack.c.2.s8 %v5405
          %v5622 = vunpack.c.2.s8 %v5406
          %v5623 = vunpack.c.2.s8 %v5407
          %v5624 = vunpack.c.2.s8 %v5408
          %v5625 = vunpack.c.3.s8 %v5405
          %v5626 = vunpack.c.3.s8 %v5406
          %v5627 = vunpack.c.3.s8 %v5407
          %v5628 = vunpack.c.3.s8 %v5408
          %v5629 = vunpack.c.0.s8 %v5409
          %v5630 = vunpack.c.0.s8 %v5410
          %v5631 = vunpack.c.0.s8 %v5411
          %v5632 = vunpack.c.0.s8 %v5412
          %v5633 = vunpack.c.1.s8 %v5409
          %v5634 = vunpack.c.1.s8 %v5410
          %v5635 = vunpack.c.1.s8 %v5411
          %v5636 = vunpack.c.1.s8 %v5412
          %v5637 = vunpack.c.2.s8 %v5409
          %v5638 = vunpack.c.2.s8 %v5410
          %v5639 = vunpack.c.2.s8 %v5411
          %v5640 = vunpack.c.2.s8 %v5412
          %v5641 = vunpack.c.3.s8 %v5409
          %v5642 = vunpack.c.3.s8 %v5410
          %v5643 = vunpack.c.3.s8 %v5411
          %v5644 = vunpack.c.3.s8 %v5412
          %v5645 = vunpack.c.0.s8 %v5413
          %v5646 = vunpack.c.0.s8 %v5414
          %v5647 = vunpack.c.0.s8 %v5415
          %v5648 = vunpack.c.0.s8 %v5416
          %v5649 = vunpack.c.1.s8 %v5413
          %v5650 = vunpack.c.1.s8 %v5414
          %v5651 = vunpack.c.1.s8 %v5415
          %v5652 = vunpack.c.1.s8 %v5416
          %v5653 = vunpack.c.2.s8 %v5413
          %v5654 = vunpack.c.2.s8 %v5414
          %v5655 = vunpack.c.2.s8 %v5415
          %v5656 = vunpack.c.2.s8 %v5416
          %v5657 = vunpack.c.3.s8 %v5413
          %v5658 = vunpack.c.3.s8 %v5414
          %v5659 = vunpack.c.3.s8 %v5415
          %v5660 = vunpack.c.3.s8 %v5416
          %v5661 = vunpack.c.0.s8 %v5417
          %v5662 = vunpack.c.0.s8 %v5418
          %v5663 = vunpack.c.0.s8 %v5419
          %v5664 = vunpack.c.0.s8 %v5420
          %v5665 = vunpack.c.1.s8 %v5417
          %v5666 = vunpack.c.1.s8 %v5418
          %v5667 = vunpack.c.1.s8 %v5419
          %v5668 = vunpack.c.1.s8 %v5420
          %v5669 = vunpack.c.2.s8 %v5417
          %v5670 = vunpack.c.2.s8 %v5418
          %v5671 = vunpack.c.2.s8 %v5419
          %v5672 = vunpack.c.2.s8 %v5420
          %v5673 = vunpack.c.3.s8 %v5417
          %v5674 = vunpack.c.3.s8 %v5418
          %v5675 = vunpack.c.3.s8 %v5419
          %v5676 = vunpack.c.3.s8 %v5420
          %v5677 = vcvt.s32.f32 %v5421
          %v5678 = vcvt.s32.f32 %v5422
          %v5679 = vcvt.s32.f32 %v5423
          %v5680 = vcvt.s32.f32 %v5424
          %v5681 = vcvt.s32.f32 %v5425
          %v5682 = vcvt.s32.f32 %v5426
          %v5683 = vcvt.s32.f32 %v5427
          %v5684 = vcvt.s32.f32 %v5428
          %v5685 = vcvt.s32.f32 %v5429
          %v5686 = vcvt.s32.f32 %v5430
          %v5687 = vcvt.s32.f32 %v5431
          %v5688 = vcvt.s32.f32 %v5432
          %v5689 = vcvt.s32.f32 %v5433
          %v5690 = vcvt.s32.f32 %v5434
          %v5691 = vcvt.s32.f32 %v5435
          %v5692 = vcvt.s32.f32 %v5436
          %v5693 = vcvt.s32.f32 %v5437
          %v5694 = vcvt.s32.f32 %v5438
          %v5695 = vcvt.s32.f32 %v5439
          %v5696 = vcvt.s32.f32 %v5440
          %v5697 = vcvt.s32.f32 %v5441
          %v5698 = vcvt.s32.f32 %v5442
          %v5699 = vcvt.s32.f32 %v5443
          %v5700 = vcvt.s32.f32 %v5444
          %v5701 = vcvt.s32.f32 %v5445
          %v5702 = vcvt.s32.f32 %v5446
          %v5703 = vcvt.s32.f32 %v5447
          %v5704 = vcvt.s32.f32 %v5448
          %v5705 = vcvt.s32.f32 %v5449
          %v5706 = vcvt.s32.f32 %v5450
          %v5707 = vcvt.s32.f32 %v5451
          %v5708 = vcvt.s32.f32 %v5452
          %v5709 = vcvt.s32.f32 %v5453
          %v5710 = vcvt.s32.f32 %v5454
          %v5711 = vcvt.s32.f32 %v5455
          %v5712 = vcvt.s32.f32 %v5456
          %v5713 = vcvt.s32.f32 %v5457
          %v5714 = vcvt.s32.f32 %v5458
          %v5715 = vcvt.s32.f32 %v5459
          %v5716 = vcvt.s32.f32 %v5460
          %v5717 = vcvt.s32.f32 %v5461
          %v5718 = vcvt.s32.f32 %v5462
          %v5719 = vcvt.s32.f32 %v5463
          %v5720 = vcvt.s32.f32 %v5464
          %v5721 = vcvt.s32.f32 %v5465
          %v5722 = vcvt.s32.f32 %v5466
          %v5723 = vcvt.s32.f32 %v5467
          %v5724 = vcvt.s32.f32 %v5468
          %v5725 = vcvt.s32.f32 %v5469
          %v5726 = vcvt.s32.f32 %v5470
          %v5727 = vcvt.s32.f32 %v5471
          %v5728 = vcvt.s32.f32 %v5472
          %v5729 = vcvt.s32.f32 %v5473
          %v5730 = vcvt.s32.f32 %v5474
          %v5731 = vcvt.s32.f32 %v5475
          %v5732 = vcvt.s32.f32 %v5476
          %v5733 = vcvt.s32.f32 %v5477
          %v5734 = vcvt.s32.f32 %v5478
          %v5735 = vcvt.s32.f32 %v5479
          %v5736 = vcvt.s32.f32 %v5480
          %v5737 = vcvt.s32.f32 %v5481
          %v5738 = vcvt.s32.f32 %v5482
          %v5739 = vcvt.s32.f32 %v5483
          %v5740 = vcvt.s32.f32 %v5484
          %v5741 = vcvt.s32.f32 %v5485
          %v5742 = vcvt.s32.f32 %v5486
          %v5743 = vcvt.s32.f32 %v5487
          %v5744 = vcvt.s32.f32 %v5488
          %v5745 = vcvt.s32.f32 %v5489
          %v5746 = vcvt.s32.f32 %v5490
          %v5747 = vcvt.s32.f32 %v5491
          %v5748 = vcvt.s32.f32 %v5492
          %v5749 = vcvt.s32.f32 %v5493
          %v5750 = vcvt.s32.f32 %v5494
          %v5751 = vcvt.s32.f32 %v5495
          %v5752 = vcvt.s32.f32 %v5496
          %v5753 = vcvt.s32.f32 %v5497
          %v5754 = vcvt.s32.f32 %v5498
          %v5755 = vcvt.s32.f32 %v5499
          %v5756 = vcvt.s32.f32 %v5500
          %v5757 = vcvt.s32.f32 %v5501
          %v5758 = vcvt.s32.f32 %v5502
          %v5759 = vcvt.s32.f32 %v5503
          %v5760 = vcvt.s32.f32 %v5504
          %v5761 = vcvt.s32.f32 %v5505
          %v5762 = vcvt.s32.f32 %v5506
          %v5763 = vcvt.s32.f32 %v5507
          %v5764 = vcvt.s32.f32 %v5508
          %v5765 = vcvt.s32.f32 %v5509
          %v5766 = vcvt.s32.f32 %v5510
          %v5767 = vcvt.s32.f32 %v5511
          %v5768 = vcvt.s32.f32 %v5512
          %v5769 = vcvt.s32.f32 %v5513
          %v5770 = vcvt.s32.f32 %v5514
          %v5771 = vcvt.s32.f32 %v5515
          %v5772 = vcvt.s32.f32 %v5516
          %v5773 = vcvt.s32.f32 %v5517
          %v5774 = vcvt.s32.f32 %v5518
          %v5775 = vcvt.s32.f32 %v5519
          %v5776 = vcvt.s32.f32 %v5520
          %v5777 = vcvt.s32.f32 %v5521
          %v5778 = vcvt.s32.f32 %v5522
          %v5779 = vcvt.s32.f32 %v5523
          %v5780 = vcvt.s32.f32 %v5524
          %v5781 = vcvt.s32.f32 %v5525
          %v5782 = vcvt.s32.f32 %v5526
          %v5783 = vcvt.s32.f32 %v5527
          %v5784 = vcvt.s32.f32 %v5528
          %v5785 = vcvt.s32.f32 %v5529
          %v5786 = vcvt.s32.f32 %v5530
          %v5787 = vcvt.s32.f32 %v5531
          %v5788 = vcvt.s32.f32 %v5532
          %v5789 = vcvt.s32.f32 %v5533
          %v5790 = vcvt.s32.f32 %v5534
          %v5791 = vcvt.s32.f32 %v5535
          %v5792 = vcvt.s32.f32 %v5536
          %v5793 = vcvt.s32.f32 %v5537
          %v5794 = vcvt.s32.f32 %v5538
          %v5795 = vcvt.s32.f32 %v5539
          %v5796 = vcvt.s32.f32 %v5540
          %v5797 = vcvt.s32.f32 %v5541
          %v5798 = vcvt.s32.f32 %v5542
          %v5799 = vcvt.s32.f32 %v5543
          %v5800 = vcvt.s32.f32 %v5544
          %v5801 = vcvt.s32.f32 %v5545
          %v5802 = vcvt.s32.f32 %v5546
          %v5803 = vcvt.s32.f32 %v5547
          %v5804 = vcvt.s32.f32 %v5548
          %v5805 = vcvt.s32.f32 %v5549
          %v5806 = vcvt.s32.f32 %v5550
          %v5807 = vcvt.s32.f32 %v5551
          %v5808 = vcvt.s32.f32 %v5552
          %v5809 = vcvt.s32.f32 %v5553
          %v5810 = vcvt.s32.f32 %v5554
          %v5811 = vcvt.s32.f32 %v5555
          %v5812 = vcvt.s32.f32 %v5556
          %v5813 = vcvt.s32.f32 %v5557
          %v5814 = vcvt.s32.f32 %v5558
          %v5815 = vcvt.s32.f32 %v5559
          %v5816 = vcvt.s32.f32 %v5560
          %v5817 = vcvt.s32.f32 %v5561
          %v5818 = vcvt.s32.f32 %v5562
          %v5819 = vcvt.s32.f32 %v5563
          %v5820 = vcvt.s32.f32 %v5564
          %v5821 = vcvt.s32.f32 %v5565
          %v5822 = vcvt.s32.f32 %v5566
          %v5823 = vcvt.s32.f32 %v5567
          %v5824 = vcvt.s32.f32 %v5568
          %v5825 = vcvt.s32.f32 %v5569
          %v5826 = vcvt.s32.f32 %v5570
          %v5827 = vcvt.s32.f32 %v5571
          %v5828 = vcvt.s32.f32 %v5572
          %v5829 = vcvt.s32.f32 %v5573
          %v5830 = vcvt.s32.f32 %v5574
          %v5831 = vcvt.s32.f32 %v5575
          %v5832 = vcvt.s32.f32 %v5576
          %v5833 = vcvt.s32.f32 %v5577
          %v5834 = vcvt.s32.f32 %v5578
          %v5835 = vcvt.s32.f32 %v5579
          %v5836 = vcvt.s32.f32 %v5580
          %v5837 = vcvt.s32.f32 %v5581
          %v5838 = vcvt.s32.f32 %v5582
          %v5839 = vcvt.s32.f32 %v5583
          %v5840 = vcvt.s32.f32 %v5584
          %v5841 = vcvt.s32.f32 %v5585
          %v5842 = vcvt.s32.f32 %v5586
          %v5843 = vcvt.s32.f32 %v5587
          %v5844 = vcvt.s32.f32 %v5588
          %v5845 = vcvt.s32.f32 %v5589
          %v5846 = vcvt.s32.f32 %v5590
          %v5847 = vcvt.s32.f32 %v5591
          %v5848 = vcvt.s32.f32 %v5592
          %v5849 = vcvt.s32.f32 %v5593
          %v5850 = vcvt.s32.f32 %v5594
          %v5851 = vcvt.s32.f32 %v5595
          %v5852 = vcvt.s32.f32 %v5596
          %v5853 = vcvt.s32.f32 %v5597
          %v5854 = vcvt.s32.f32 %v5598
          %v5855 = vcvt.s32.f32 %v5599
          %v5856 = vcvt.s32.f32 %v5600
          %v5857 = vcvt.s32.f32 %v5601
          %v5858 = vcvt.s32.f32 %v5602
          %v5859 = vcvt.s32.f32 %v5603
          %v5860 = vcvt.s32.f32 %v5604
          %v5861 = vcvt.s32.f32 %v5605
          %v5862 = vcvt.s32.f32 %v5606
          %v5863 = vcvt.s32.f32 %v5607
          %v5864 = vcvt.s32.f32 %v5608
          %v5865 = vcvt.s32.f32 %v5609
          %v5866 = vcvt.s32.f32 %v5610
          %v5867 = vcvt.s32.f32 %v5611
          %v5868 = vcvt.s32.f32 %v5612
          %v5869 = vcvt.s32.f32 %v5613
          %v5870 = vcvt.s32.f32 %v5614
          %v5871 = vcvt.s32.f32 %v5615
          %v5872 = vcvt.s32.f32 %v5616
          %v5873 = vcvt.s32.f32 %v5617
          %v5874 = vcvt.s32.f32 %v5618
          %v5875 = vcvt.s32.f32 %v5619
          %v5876 = vcvt.s32.f32 %v5620
          %v5877 = vcvt.s32.f32 %v5621
          %v5878 = vcvt.s32.f32 %v5622
          %v5879 = vcvt.s32.f32 %v5623
          %v5880 = vcvt.s32.f32 %v5624
          %v5881 = vcvt.s32.f32 %v5625
          %v5882 = vcvt.s32.f32 %v5626
          %v5883 = vcvt.s32.f32 %v5627
          %v5884 = vcvt.s32.f32 %v5628
          %v5885 = vcvt.s32.f32 %v5629
          %v5886 = vcvt.s32.f32 %v5630
          %v5887 = vcvt.s32.f32 %v5631
          %v5888 = vcvt.s32.f32 %v5632
          %v5889 = vcvt.s32.f32 %v5633
          %v5890 = vcvt.s32.f32 %v5634
          %v5891 = vcvt.s32.f32 %v5635
          %v5892 = vcvt.s32.f32 %v5636
          %v5893 = vcvt.s32.f32 %v5637
          %v5894 = vcvt.s32.f32 %v5638
          %v5895 = vcvt.s32.f32 %v5639
          %v5896 = vcvt.s32.f32 %v5640
          %v5897 = vcvt.s32.f32 %v5641
          %v5898 = vcvt.s32.f32 %v5642
          %v5899 = vcvt.s32.f32 %v5643
          %v5900 = vcvt.s32.f32 %v5644
          %v5901 = vcvt.s32.f32 %v5645
          %v5902 = vcvt.s32.f32 %v5646
          %v5903 = vcvt.s32.f32 %v5647
          %v5904 = vcvt.s32.f32 %v5648
          %v5905 = vcvt.s32.f32 %v5649
          %v5906 = vcvt.s32.f32 %v5650
          %v5907 = vcvt.s32.f32 %v5651
          %v5908 = vcvt.s32.f32 %v5652
          %v5909 = vcvt.s32.f32 %v5653
          %v5910 = vcvt.s32.f32 %v5654
          %v5911 = vcvt.s32.f32 %v5655
          %v5912 = vcvt.s32.f32 %v5656
          %v5913 = vcvt.s32.f32 %v5657
          %v5914 = vcvt.s32.f32 %v5658
          %v5915 = vcvt.s32.f32 %v5659
          %v5916 = vcvt.s32.f32 %v5660
          %v5917 = vcvt.s32.f32 %v5661
          %v5918 = vcvt.s32.f32 %v5662
          %v5919 = vcvt.s32.f32 %v5663
          %v5920 = vcvt.s32.f32 %v5664
          %v5921 = vcvt.s32.f32 %v5665
          %v5922 = vcvt.s32.f32 %v5666
          %v5923 = vcvt.s32.f32 %v5667
          %v5924 = vcvt.s32.f32 %v5668
          %v5925 = vcvt.s32.f32 %v5669
          %v5926 = vcvt.s32.f32 %v5670
          %v5927 = vcvt.s32.f32 %v5671
          %v5928 = vcvt.s32.f32 %v5672
          %v5929 = vcvt.s32.f32 %v5673
          %v5930 = vcvt.s32.f32 %v5674
          %v5931 = vcvt.s32.f32 %v5675
          %v5932 = vcvt.s32.f32 %v5676
          %v5933 = vpack.c.bf16 %v5681, %v5677
          %v5934 = vpack.c.bf16 %v5682, %v5678
          %v5935 = vpack.c.bf16 %v5683, %v5679
          %v5936 = vpack.c.bf16 %v5684, %v5680
          %v5937 = vpack.c.bf16 %v5689, %v5685
          %v5938 = vpack.c.bf16 %v5690, %v5686
          %v5939 = vpack.c.bf16 %v5691, %v5687
          %v5940 = vpack.c.bf16 %v5692, %v5688
          %v5941 = vpack.c.bf16 %v5697, %v5693
          %v5942 = vpack.c.bf16 %v5698, %v5694
          %v5943 = vpack.c.bf16 %v5699, %v5695
          %v5944 = vpack.c.bf16 %v5700, %v5696
          %v5945 = vpack.c.bf16 %v5705, %v5701
          %v5946 = vpack.c.bf16 %v5706, %v5702
          %v5947 = vpack.c.bf16 %v5707, %v5703
          %v5948 = vpack.c.bf16 %v5708, %v5704
          %v5949 = vpack.c.bf16 %v5713, %v5709
          %v5950 = vpack.c.bf16 %v5714, %v5710
          %v5951 = vpack.c.bf16 %v5715, %v5711
          %v5952 = vpack.c.bf16 %v5716, %v5712
          %v5953 = vpack.c.bf16 %v5721, %v5717
          %v5954 = vpack.c.bf16 %v5722, %v5718
          %v5955 = vpack.c.bf16 %v5723, %v5719
          %v5956 = vpack.c.bf16 %v5724, %v5720
          %v5957 = vpack.c.bf16 %v5729, %v5725
          %v5958 = vpack.c.bf16 %v5730, %v5726
          %v5959 = vpack.c.bf16 %v5731, %v5727
          %v5960 = vpack.c.bf16 %v5732, %v5728
          %v5961 = vpack.c.bf16 %v5737, %v5733
          %v5962 = vpack.c.bf16 %v5738, %v5734
          %v5963 = vpack.c.bf16 %v5739, %v5735
          %v5964 = vpack.c.bf16 %v5740, %v5736
          %v5965 = vpack.c.bf16 %v5745, %v5741
          %v5966 = vpack.c.bf16 %v5746, %v5742
          %v5967 = vpack.c.bf16 %v5747, %v5743
          %v5968 = vpack.c.bf16 %v5748, %v5744
          %v5969 = vpack.c.bf16 %v5753, %v5749
          %v5970 = vpack.c.bf16 %v5754, %v5750
          %v5971 = vpack.c.bf16 %v5755, %v5751
          %v5972 = vpack.c.bf16 %v5756, %v5752
          %v5973 = vpack.c.bf16 %v5761, %v5757
          %v5974 = vpack.c.bf16 %v5762, %v5758
          %v5975 = vpack.c.bf16 %v5763, %v5759
          %v5976 = vpack.c.bf16 %v5764, %v5760
          %v5977 = vpack.c.bf16 %v5769, %v5765
          %v5978 = vpack.c.bf16 %v5770, %v5766
          %v5979 = vpack.c.bf16 %v5771, %v5767
          %v5980 = vpack.c.bf16 %v5772, %v5768
          %v5981 = vpack.c.bf16 %v5777, %v5773
          %v5982 = vpack.c.bf16 %v5778, %v5774
          %v5983 = vpack.c.bf16 %v5779, %v5775
          %v5984 = vpack.c.bf16 %v5780, %v5776
          %v5985 = vpack.c.bf16 %v5785, %v5781
          %v5986 = vpack.c.bf16 %v5786, %v5782
          %v5987 = vpack.c.bf16 %v5787, %v5783
          %v5988 = vpack.c.bf16 %v5788, %v5784
          %v5989 = vpack.c.bf16 %v5793, %v5789
          %v5990 = vpack.c.bf16 %v5794, %v5790
          %v5991 = vpack.c.bf16 %v5795, %v5791
          %v5992 = vpack.c.bf16 %v5796, %v5792
          %v5993 = vpack.c.bf16 %v5801, %v5797
          %v5994 = vpack.c.bf16 %v5802, %v5798
          %v5995 = vpack.c.bf16 %v5803, %v5799
          %v5996 = vpack.c.bf16 %v5804, %v5800
          %v5997 = vpack.c.bf16 %v5809, %v5805
          %v5998 = vpack.c.bf16 %v5810, %v5806
          %v5999 = vpack.c.bf16 %v5811, %v5807
          %v6000 = vpack.c.bf16 %v5812, %v5808
          %v6001 = vpack.c.bf16 %v5817, %v5813
          %v6002 = vpack.c.bf16 %v5818, %v5814
          %v6003 = vpack.c.bf16 %v5819, %v5815
          %v6004 = vpack.c.bf16 %v5820, %v5816
          %v6005 = vpack.c.bf16 %v5825, %v5821
          %v6006 = vpack.c.bf16 %v5826, %v5822
          %v6007 = vpack.c.bf16 %v5827, %v5823
          %v6008 = vpack.c.bf16 %v5828, %v5824
          %v6009 = vpack.c.bf16 %v5833, %v5829
          %v6010 = vpack.c.bf16 %v5834, %v5830
          %v6011 = vpack.c.bf16 %v5835, %v5831
          %v6012 = vpack.c.bf16 %v5836, %v5832
          %v6013 = vpack.c.bf16 %v5841, %v5837
          %v6014 = vpack.c.bf16 %v5842, %v5838
          %v6015 = vpack.c.bf16 %v5843, %v5839
          %v6016 = vpack.c.bf16 %v5844, %v5840
          %v6017 = vpack.c.bf16 %v5849, %v5845
          %v6018 = vpack.c.bf16 %v5850, %v5846
          %v6019 = vpack.c.bf16 %v5851, %v5847
          %v6020 = vpack.c.bf16 %v5852, %v5848
          %v6021 = vpack.c.bf16 %v5857, %v5853
          %v6022 = vpack.c.bf16 %v5858, %v5854
          %v6023 = vpack.c.bf16 %v5859, %v5855
          %v6024 = vpack.c.bf16 %v5860, %v5856
          %v6025 = vpack.c.bf16 %v5865, %v5861
          %v6026 = vpack.c.bf16 %v5866, %v5862
          %v6027 = vpack.c.bf16 %v5867, %v5863
          %v6028 = vpack.c.bf16 %v5868, %v5864
          %v6029 = vpack.c.bf16 %v5873, %v5869
          %v6030 = vpack.c.bf16 %v5874, %v5870
          %v6031 = vpack.c.bf16 %v5875, %v5871
          %v6032 = vpack.c.bf16 %v5876, %v5872
          %v6033 = vpack.c.bf16 %v5881, %v5877
          %v6034 = vpack.c.bf16 %v5882, %v5878
          %v6035 = vpack.c.bf16 %v5883, %v5879
          %v6036 = vpack.c.bf16 %v5884, %v5880
          %v6037 = vpack.c.bf16 %v5889, %v5885
          %v6038 = vpack.c.bf16 %v5890, %v5886
          %v6039 = vpack.c.bf16 %v5891, %v5887
          %v6040 = vpack.c.bf16 %v5892, %v5888
          %v6041 = vpack.c.bf16 %v5897, %v5893
          %v6042 = vpack.c.bf16 %v5898, %v5894
          %v6043 = vpack.c.bf16 %v5899, %v5895
          %v6044 = vpack.c.bf16 %v5900, %v5896
          %v6045 = vpack.c.bf16 %v5905, %v5901
          %v6046 = vpack.c.bf16 %v5906, %v5902
          %v6047 = vpack.c.bf16 %v5907, %v5903
          %v6048 = vpack.c.bf16 %v5908, %v5904
          %v6049 = vpack.c.bf16 %v5913, %v5909
          %v6050 = vpack.c.bf16 %v5914, %v5910
          %v6051 = vpack.c.bf16 %v5915, %v5911
          %v6052 = vpack.c.bf16 %v5916, %v5912
          %v6053 = vpack.c.bf16 %v5921, %v5917
          %v6054 = vpack.c.bf16 %v5922, %v5918
          %v6055 = vpack.c.bf16 %v5923, %v5919
          %v6056 = vpack.c.bf16 %v5924, %v5920
          %v6057 = vpack.c.bf16 %v5929, %v5925
          %v6058 = vpack.c.bf16 %v5930, %v5926
          %v6059 = vpack.c.bf16 %v5931, %v5927
          %v6060 = vpack.c.bf16 %v5932, %v5928
          %v6063 = vunpack.c.l.b16 %v2573
          %v6064 = vunpack.c.h.b16 %v2573
          %v6065 = vunpack.c.l.b16 %v2574
          %v6066 = vunpack.c.h.b16 %v2574
          %v6067 = vpack.c.b16 %v6063, %v6063
          %v6068 = vpack.c.b16 %v6064, %v6064
          %v6069 = vpack.c.b16 %v6065, %v6065
          %v6070 = vpack.c.b16 %v6066, %v6066
          %6075 = vmatpush.bf16.msra.mxu0 %v5961
          %6076 = vmatpush.bf16.msra.mxu0 %v5957
          %6077 = vmatpush.bf16.msra.mxu0 %v5953
          %6078 = vmatpush.bf16.msra.mxu0 %v5949
          %6079 = vmatpush.bf16.msra.mxu0 %v5945
          %6080 = vmatpush.bf16.msra.mxu0 %v5941
          %6081 = vmatpush.bf16.msra.mxu0 %v5937
          %6082 = vmatpush.bf16.msra.mxu0 %v5933
          %6083 = vmatmul.bf16.gmra.mxu0 %v6067
          %v6084 = vpop.f32.mrf.mxu0
          %v6085 = vadd.f32 0.0, %v6084
          %v6086 = vpop.f32.mrf.mxu0
          %6087 = vdwg.mxu0
          %6088 = vmatpush.bf16.msra.mxu0 %v5993
          %6089 = vmatpush.bf16.msra.mxu0 %v5989
          %6090 = vmatpush.bf16.msra.mxu0 %v5985
          %6091 = vmatpush.bf16.msra.mxu0 %v5981
          %6092 = vmatpush.bf16.msra.mxu0 %v5977
          %6093 = vmatpush.bf16.msra.mxu0 %v5973
          %6094 = vmatpush.bf16.msra.mxu0 %v5969
          %6095 = vmatpush.bf16.msra.mxu0 %v5965
          %6096 = vmatmul.bf16.gmra.mxu0 %v6068
          %v6097 = vpop.f32.mrf.mxu0
          %v6098 = vadd.f32 %v6085, %v6097
          %v6099 = vpop.f32.mrf.mxu0
          %6100 = vdwg.mxu0
          %6101 = vmatpush.bf16.msra.mxu0 %v6025
          %6102 = vmatpush.bf16.msra.mxu0 %v6021
          %6103 = vmatpush.bf16.msra.mxu0 %v6017
          %6104 = vmatpush.bf16.msra.mxu0 %v6013
          %6105 = vmatpush.bf16.msra.mxu0 %v6009
          %6106 = vmatpush.bf16.msra.mxu0 %v6005
          %6107 = vmatpush.bf16.msra.mxu0 %v6001
          %6108 = vmatpush.bf16.msra.mxu0 %v5997
          %6109 = vmatmul.bf16.gmra.mxu0 %v6069
          %v6110 = vpop.f32.mrf.mxu0
          %v6111 = vadd.f32 %v6098, %v6110
          %v6112 = vpop.f32.mrf.mxu0
          %6113 = vdwg.mxu0
          %6114 = vmatpush.bf16.msra.mxu0 %v6057
          %6115 = vmatpush.bf16.msra.mxu0 %v6053
          %6116 = vmatpush.bf16.msra.mxu0 %v6049
          %6117 = vmatpush.bf16.msra.mxu0 %v6045
          %6118 = vmatpush.bf16.msra.mxu0 %v6041
          %6119 = vmatpush.bf16.msra.mxu0 %v6037
          %6120 = vmatpush.bf16.msra.mxu0 %v6033
          %6121 = vmatpush.bf16.msra.mxu0 %v6029
          %6122 = vmatmul.bf16.gmra.mxu0 %v6070
          %v6123 = vpop.f32.mrf.mxu0
          %v6124 = vadd.f32 %v6111, %v6123
          %v6125 = vpop.f32.mrf.mxu0
          %6126 = vdwg.mxu0
          %6127 = vmatpush.bf16.msra.mxu0 %v5962
          %6128 = vmatpush.bf16.msra.mxu0 %v5958
          %6129 = vmatpush.bf16.msra.mxu0 %v5954
          %6130 = vmatpush.bf16.msra.mxu0 %v5950
          %6131 = vmatpush.bf16.msra.mxu0 %v5946
          %6132 = vmatpush.bf16.msra.mxu0 %v5942
          %6133 = vmatpush.bf16.msra.mxu0 %v5938
          %6134 = vmatpush.bf16.msra.mxu0 %v5934
          %6135 = vmatmul.bf16.gmra.mxu0 %v6067
          %v6136 = vpop.f32.mrf.mxu0
          %v6137 = vadd.f32 0.0, %v6136
          %v6138 = vpop.f32.mrf.mxu0
          %6139 = vdwg.mxu0
          %6140 = vmatpush.bf16.msra.mxu0 %v5994
          %6141 = vmatpush.bf16.msra.mxu0 %v5990
          %6142 = vmatpush.bf16.msra.mxu0 %v5986
          %6143 = vmatpush.bf16.msra.mxu0 %v5982
          %6144 = vmatpush.bf16.msra.mxu0 %v5978
          %6145 = vmatpush.bf16.msra.mxu0 %v5974
          %6146 = vmatpush.bf16.msra.mxu0 %v5970
          %6147 = vmatpush.bf16.msra.mxu0 %v5966
          %6148 = vmatmul.bf16.gmra.mxu0 %v6068
          %v6149 = vpop.f32.mrf.mxu0
          %v6150 = vadd.f32 %v6137, %v6149
          %v6151 = vpop.f32.mrf.mxu0
          %6152 = vdwg.mxu0
          %6153 = vmatpush.bf16.msra.mxu0 %v6026
          %6154 = vmatpush.bf16.msra.mxu0 %v6022
          %6155 = vmatpush.bf16.msra.mxu0 %v6018
          %6156 = vmatpush.bf16.msra.mxu0 %v6014
          %6157 = vmatpush.bf16.msra.mxu0 %v6010
          %6158 = vmatpush.bf16.msra.mxu0 %v6006
          %6159 = vmatpush.bf16.msra.mxu0 %v6002
          %6160 = vmatpush.bf16.msra.mxu0 %v5998
          %6161 = vmatmul.bf16.gmra.mxu0 %v6069
          %v6162 = vpop.f32.mrf.mxu0
          %v6163 = vadd.f32 %v6150, %v6162
          %v6164 = vpop.f32.mrf.mxu0
          %6165 = vdwg.mxu0
          %6166 = vmatpush.bf16.msra.mxu0 %v6058
          %6167 = vmatpush.bf16.msra.mxu0 %v6054
          %6168 = vmatpush.bf16.msra.mxu0 %v6050
          %6169 = vmatpush.bf16.msra.mxu0 %v6046
          %6170 = vmatpush.bf16.msra.mxu0 %v6042
          %6171 = vmatpush.bf16.msra.mxu0 %v6038
          %6172 = vmatpush.bf16.msra.mxu0 %v6034
          %6173 = vmatpush.bf16.msra.mxu0 %v6030
          %6174 = vmatmul.bf16.gmra.mxu0 %v6070
          %v6175 = vpop.f32.mrf.mxu0
          %v6176 = vadd.f32 %v6163, %v6175
          %v6177 = vpop.f32.mrf.mxu0
          %6178 = vdwg.mxu0
          %6179 = vmatpush.bf16.msra.mxu0 %v5963
          %6180 = vmatpush.bf16.msra.mxu0 %v5959
          %6181 = vmatpush.bf16.msra.mxu0 %v5955
          %6182 = vmatpush.bf16.msra.mxu0 %v5951
          %6183 = vmatpush.bf16.msra.mxu0 %v5947
          %6184 = vmatpush.bf16.msra.mxu0 %v5943
          %6185 = vmatpush.bf16.msra.mxu0 %v5939
          %6186 = vmatpush.bf16.msra.mxu0 %v5935
          %6187 = vmatmul.bf16.gmra.mxu0 %v6067
          %v6188 = vpop.f32.mrf.mxu0
          %v6189 = vadd.f32 0.0, %v6188
          %v6190 = vpop.f32.mrf.mxu0
          %6191 = vdwg.mxu0
          %6192 = vmatpush.bf16.msra.mxu0 %v5995
          %6193 = vmatpush.bf16.msra.mxu0 %v5991
          %6194 = vmatpush.bf16.msra.mxu0 %v5987
          %6195 = vmatpush.bf16.msra.mxu0 %v5983
          %6196 = vmatpush.bf16.msra.mxu0 %v5979
          %6197 = vmatpush.bf16.msra.mxu0 %v5975
          %6198 = vmatpush.bf16.msra.mxu0 %v5971
          %6199 = vmatpush.bf16.msra.mxu0 %v5967
          %6200 = vmatmul.bf16.gmra.mxu0 %v6068
          %v6201 = vpop.f32.mrf.mxu0
          %v6202 = vadd.f32 %v6189, %v6201
          %v6203 = vpop.f32.mrf.mxu0
          %6204 = vdwg.mxu0
          %6205 = vmatpush.bf16.msra.mxu0 %v6027
          %6206 = vmatpush.bf16.msra.mxu0 %v6023
          %6207 = vmatpush.bf16.msra.mxu0 %v6019
          %6208 = vmatpush.bf16.msra.mxu0 %v6015
          %6209 = vmatpush.bf16.msra.mxu0 %v6011
          %6210 = vmatpush.bf16.msra.mxu0 %v6007
          %6211 = vmatpush.bf16.msra.mxu0 %v6003
          %6212 = vmatpush.bf16.msra.mxu0 %v5999
          %6213 = vmatmul.bf16.gmra.mxu0 %v6069
          %v6214 = vpop.f32.mrf.mxu0
          %v6215 = vadd.f32 %v6202, %v6214
          %v6216 = vpop.f32.mrf.mxu0
          %6217 = vdwg.mxu0
          %6218 = vmatpush.bf16.msra.mxu0 %v6059
          %6219 = vmatpush.bf16.msra.mxu0 %v6055
          %6220 = vmatpush.bf16.msra.mxu0 %v6051
          %6221 = vmatpush.bf16.msra.mxu0 %v6047
          %6222 = vmatpush.bf16.msra.mxu0 %v6043
          %6223 = vmatpush.bf16.msra.mxu0 %v6039
          %6224 = vmatpush.bf16.msra.mxu0 %v6035
          %6225 = vmatpush.bf16.msra.mxu0 %v6031
          %6226 = vmatmul.bf16.gmra.mxu0 %v6070
          %v6227 = vpop.f32.mrf.mxu0
          %v6228 = vadd.f32 %v6215, %v6227
          %v6229 = vpop.f32.mrf.mxu0
          %6230 = vdwg.mxu0
          %6231 = vmatpush.bf16.msra.mxu0 %v5964
          %6232 = vmatpush.bf16.msra.mxu0 %v5960
          %6233 = vmatpush.bf16.msra.mxu0 %v5956
          %6234 = vmatpush.bf16.msra.mxu0 %v5952
          %6235 = vmatpush.bf16.msra.mxu0 %v5948
          %6236 = vmatpush.bf16.msra.mxu0 %v5944
          %6237 = vmatpush.bf16.msra.mxu0 %v5940
          %6238 = vmatpush.bf16.msra.mxu0 %v5936
          %6239 = vmatmul.bf16.gmra.mxu0 %v6067
          %v6240 = vpop.f32.mrf.mxu0
          %v6241 = vadd.f32 0.0, %v6240
          %v6242 = vpop.f32.mrf.mxu0
          %6243 = vdwg.mxu0
          %6244 = vmatpush.bf16.msra.mxu0 %v5996
          %6245 = vmatpush.bf16.msra.mxu0 %v5992
          %6246 = vmatpush.bf16.msra.mxu0 %v5988
          %6247 = vmatpush.bf16.msra.mxu0 %v5984
          %6248 = vmatpush.bf16.msra.mxu0 %v5980
          %6249 = vmatpush.bf16.msra.mxu0 %v5976
          %6250 = vmatpush.bf16.msra.mxu0 %v5972
          %6251 = vmatpush.bf16.msra.mxu0 %v5968
          %6252 = vmatmul.bf16.gmra.mxu0 %v6068
          %v6253 = vpop.f32.mrf.mxu0
          %v6254 = vadd.f32 %v6241, %v6253
          %v6255 = vpop.f32.mrf.mxu0
          %6256 = vdwg.mxu0
          %6257 = vmatpush.bf16.msra.mxu0 %v6028
          %6258 = vmatpush.bf16.msra.mxu0 %v6024
          %6259 = vmatpush.bf16.msra.mxu0 %v6020
          %6260 = vmatpush.bf16.msra.mxu0 %v6016
          %6261 = vmatpush.bf16.msra.mxu0 %v6012
          %6262 = vmatpush.bf16.msra.mxu0 %v6008
          %6263 = vmatpush.bf16.msra.mxu0 %v6004
          %6264 = vmatpush.bf16.msra.mxu0 %v6000
          %6265 = vmatmul.bf16.gmra.mxu0 %v6069
          %v6266 = vpop.f32.mrf.mxu0
          %v6267 = vadd.f32 %v6254, %v6266
          %v6268 = vpop.f32.mrf.mxu0
          %6269 = vdwg.mxu0
          %6270 = vmatpush.bf16.msra.mxu0 %v6060
          %6271 = vmatpush.bf16.msra.mxu0 %v6056
          %6272 = vmatpush.bf16.msra.mxu0 %v6052
          %6273 = vmatpush.bf16.msra.mxu0 %v6048
          %6274 = vmatpush.bf16.msra.mxu0 %v6044
          %6275 = vmatpush.bf16.msra.mxu0 %v6040
          %6276 = vmatpush.bf16.msra.mxu0 %v6036
          %6277 = vmatpush.bf16.msra.mxu0 %v6032
          %6278 = vmatmul.bf16.gmra.mxu0 %v6070
          %v6279 = vpop.f32.mrf.mxu0
          %v6280 = vadd.f32 %v6267, %v6279
          %v6281 = vpop.f32.mrf.mxu0
          %6282 = vdwg.mxu0
          %v6283 = vadd.f32 %v5353, %v6124
          %v6284 = vadd.f32 %v5354, %v6176
          %v6285 = vadd.f32 %v5355, %v6228
          %v6286 = vadd.f32 %v5356, %v6280
          %v6287 = vld [vmem:[%s4] sm:$0xf]
          %v6289 = vperm.slane %v6287, 0
          %v6290 = vperm.slane %v6287, 1
          %v6291 = vperm.slane %v6287, 2
          %v6292 = vperm.slane %v6287, 3
          %v6297 = vmul.f32 %v6283, %v6289
          %v6298 = vmul.f32 %v6284, %v6290
          %v6299 = vmul.f32 %v6285, %v6291
          %v6300 = vmul.f32 %v6286, %v6292
          %v6301 = vld [vmem:[%s5] sm:$0xf]
          %v6303 = vperm.slane %v6301, 0
          %v6304 = vperm.slane %v6301, 1
          %v6305 = vperm.slane %v6301, 2
          %v6306 = vperm.slane %v6301, 3
          %v6311 = vadd.f32 %v6297, %v6303
          %v6312 = vadd.f32 %v6298, %v6304
          %v6313 = vadd.f32 %v6299, %v6305
          %v6314 = vadd.f32 %v6300, %v6306
          %v6315 = vmax.f32 %v6311, 0.0
          %v6316 = vmax.f32 %v6312, 0.0
          %v6317 = vmax.f32 %v6313, 0.0
          %v6318 = vmax.f32 %v6314, 0.0
          %v6323 = vrot.slane %v6316, 6
          %v6324 = vrot.slane %v6317, 4
          %v6325 = vrot.slane %v6318, 2
          %vm6326 = vcmask 1041408
          %v6327 = vsel %vm6326, %v6315, %v6323
          %vm6328 = vcmask 1045508
          %v6329 = vsel %vm6328, %v6324, %v6325
          %vm6330 = vcmask 1043456
          %v6331 = vsel %vm6330, %v6327, %v6329
          %6333 = vst [vmem:[#allocation2] sm:$0xff] %v6331
        $region83: #{video_classifier_forward.1} parent=74 // pred_fallthru
          _
        %v6334 = vld [vmem:[#allocation2] sm:$0xff]
        %6336 = vst [vmem:[#allocation1] ss:$4 sm:$0xff] %v6334
        %v6337 = vld.sshfl [vmem:[#allocation1] sm:$0xff pattern:$0x73625140]
        %v6338 = vld.sshfl [vmem:[#allocation1 + $0x8] sm:$0xff pattern:$0x73625140]
        %v6339 = vld.sshfl [vmem:[#allocation1 + $0x10] sm:$0xff pattern:$0x73625140]
        %v6340 = vld.sshfl [vmem:[#allocation1 + $0x18] sm:$0xff pattern:$0x73625140]
        %v6345 = vpack.c.bf16 %v6337, %v6337
        %v6346 = vpack.c.bf16 %v6338, %v6338
        %v6347 = vpack.c.bf16 %v6339, %v6339
        %v6348 = vpack.c.bf16 %v6340, %v6340
        %v6349 = vld [vmem:[%s502] sm:$0xff]
        %v6350 = vld [vmem:[%s502 + $0x8] sm:$0xff]
        %v6351 = vld [vmem:[%s502 + $0x10] sm:$0xff]
        %v6352 = vld [vmem:[%s502 + $0x18] sm:$0xff]
        %v6353 = vld [vmem:[%s502 + $0x20] sm:$0xff]
        %v6354 = vld [vmem:[%s502 + $0x28] sm:$0xff]
        %v6355 = vld [vmem:[%s502 + $0x30] sm:$0xff]
        %v6356 = vld [vmem:[%s502 + $0x38] sm:$0xff]
        %v6357 = vld [vmem:[%s502 + $0x40] sm:$0xff]
        %v6358 = vld [vmem:[%s502 + $0x48] sm:$0xff]
        %v6359 = vld [vmem:[%s502 + $0x50] sm:$0xff]
        %v6360 = vld [vmem:[%s502 + $0x58] sm:$0xff]
        %v6361 = vld [vmem:[%s502 + $0x60] sm:$0xff]
        %v6362 = vld [vmem:[%s502 + $0x68] sm:$0xff]
        %v6363 = vld [vmem:[%s502 + $0x70] sm:$0xff]
        %v6364 = vld [vmem:[%s502 + $0x78] sm:$0xff]
        %v6365 = vld [vmem:[%s502 + $0x80] sm:$0xff]
        %v6366 = vld [vmem:[%s502 + $0x88] sm:$0xff]
        %v6367 = vld [vmem:[%s502 + $0x90] sm:$0xff]
        %v6368 = vld [vmem:[%s502 + $0x98] sm:$0xff]
        %v6369 = vld [vmem:[%s502 + $0xa0] sm:$0xff]
        %v6370 = vld [vmem:[%s502 + $0xa8] sm:$0xff]
        %v6371 = vld [vmem:[%s502 + $0xb0] sm:$0xff]
        %v6372 = vld [vmem:[%s502 + $0xb8] sm:$0xff]
        %v6373 = vld [vmem:[%s502 + $0xc0] sm:$0xff]
        %v6374 = vld [vmem:[%s502 + $0xc8] sm:$0xff]
        %v6375 = vld [vmem:[%s502 + $0xd0] sm:$0xff]
        %v6376 = vld [vmem:[%s502 + $0xd8] sm:$0xff]
        %v6377 = vld [vmem:[%s502 + $0xe0] sm:$0xff]
        %v6378 = vld [vmem:[%s502 + $0xe8] sm:$0xff]
        %v6379 = vld [vmem:[%s502 + $0xf0] sm:$0xff]
        %v6380 = vld [vmem:[%s502 + $0xf8] sm:$0xff]
        %v6381 = vld [vmem:[%s502 + $0x100] sm:$0xff]
        %v6382 = vld [vmem:[%s502 + $0x108] sm:$0xff]
        %v6383 = vld [vmem:[%s502 + $0x110] sm:$0xff]
        %v6384 = vld [vmem:[%s502 + $0x118] sm:$0xff]
        %v6385 = vld [vmem:[%s502 + $0x120] sm:$0xff]
        %v6386 = vld [vmem:[%s502 + $0x128] sm:$0xff]
        %v6387 = vld [vmem:[%s502 + $0x130] sm:$0xff]
        %v6388 = vld [vmem:[%s502 + $0x138] sm:$0xff]
        %v6389 = vld [vmem:[%s502 + $0x140] sm:$0xff]
        %v6390 = vld [vmem:[%s502 + $0x148] sm:$0xff]
        %v6391 = vld [vmem:[%s502 + $0x150] sm:$0xff]
        %v6392 = vld [vmem:[%s502 + $0x158] sm:$0xff]
        %v6393 = vld [vmem:[%s502 + $0x160] sm:$0xff]
        %v6394 = vld [vmem:[%s502 + $0x168] sm:$0xff]
        %v6395 = vld [vmem:[%s502 + $0x170] sm:$0xff]
        %v6396 = vld [vmem:[%s502 + $0x178] sm:$0xff]
        %v6397 = vld [vmem:[%s502 + $0x180] sm:$0xff]
        %v6398 = vld [vmem:[%s502 + $0x188] sm:$0xff]
        %v6399 = vld [vmem:[%s502 + $0x190] sm:$0xff]
        %v6400 = vld [vmem:[%s502 + $0x198] sm:$0xff]
        %v6401 = vld [vmem:[%s502 + $0x1a0] sm:$0xff]
        %v6402 = vld [vmem:[%s502 + $0x1a8] sm:$0xff]
        %v6403 = vld [vmem:[%s502 + $0x1b0] sm:$0xff]
        %v6404 = vld [vmem:[%s502 + $0x1b8] sm:$0xff]
        %v6405 = vld [vmem:[%s502 + $0x1c0] sm:$0xff]
        %v6406 = vld [vmem:[%s502 + $0x1c8] sm:$0xff]
        %v6407 = vld [vmem:[%s502 + $0x1d0] sm:$0xff]
        %v6408 = vld [vmem:[%s502 + $0x1d8] sm:$0xff]
        %v6409 = vld [vmem:[%s502 + $0x1e0] sm:$0xff]
        %v6410 = vld [vmem:[%s502 + $0x1e8] sm:$0xff]
        %v6411 = vld [vmem:[%s502 + $0x1f0] sm:$0xff]
        %v6412 = vld [vmem:[%s502 + $0x1f8] sm:$0xff]
        %v6413 = vunpack.c.0.s8 %v6349
        %v6414 = vunpack.c.0.s8 %v6350
        %v6415 = vunpack.c.0.s8 %v6351
        %v6416 = vunpack.c.0.s8 %v6352
        %v6417 = vunpack.c.1.s8 %v6349
        %v6418 = vunpack.c.1.s8 %v6350
        %v6419 = vunpack.c.1.s8 %v6351
        %v6420 = vunpack.c.1.s8 %v6352
        %v6421 = vunpack.c.2.s8 %v6349
        %v6422 = vunpack.c.2.s8 %v6350
        %v6423 = vunpack.c.2.s8 %v6351
        %v6424 = vunpack.c.2.s8 %v6352
        %v6425 = vunpack.c.3.s8 %v6349
        %v6426 = vunpack.c.3.s8 %v6350
        %v6427 = vunpack.c.3.s8 %v6351
        %v6428 = vunpack.c.3.s8 %v6352
        %v6429 = vunpack.c.0.s8 %v6353
        %v6430 = vunpack.c.0.s8 %v6354
        %v6431 = vunpack.c.0.s8 %v6355
        %v6432 = vunpack.c.0.s8 %v6356
        %v6433 = vunpack.c.1.s8 %v6353
        %v6434 = vunpack.c.1.s8 %v6354
        %v6435 = vunpack.c.1.s8 %v6355
        %v6436 = vunpack.c.1.s8 %v6356
        %v6437 = vunpack.c.2.s8 %v6353
        %v6438 = vunpack.c.2.s8 %v6354
        %v6439 = vunpack.c.2.s8 %v6355
        %v6440 = vunpack.c.2.s8 %v6356
        %v6441 = vunpack.c.3.s8 %v6353
        %v6442 = vunpack.c.3.s8 %v6354
        %v6443 = vunpack.c.3.s8 %v6355
        %v6444 = vunpack.c.3.s8 %v6356
        %v6445 = vunpack.c.0.s8 %v6357
        %v6446 = vunpack.c.0.s8 %v6358
        %v6447 = vunpack.c.0.s8 %v6359
        %v6448 = vunpack.c.0.s8 %v6360
        %v6449 = vunpack.c.1.s8 %v6357
        %v6450 = vunpack.c.1.s8 %v6358
        %v6451 = vunpack.c.1.s8 %v6359
        %v6452 = vunpack.c.1.s8 %v6360
        %v6453 = vunpack.c.2.s8 %v6357
        %v6454 = vunpack.c.2.s8 %v6358
        %v6455 = vunpack.c.2.s8 %v6359
        %v6456 = vunpack.c.2.s8 %v6360
        %v6457 = vunpack.c.3.s8 %v6357
        %v6458 = vunpack.c.3.s8 %v6358
        %v6459 = vunpack.c.3.s8 %v6359
        %v6460 = vunpack.c.3.s8 %v6360
        %v6461 = vunpack.c.0.s8 %v6361
        %v6462 = vunpack.c.0.s8 %v6362
        %v6463 = vunpack.c.0.s8 %v6363
        %v6464 = vunpack.c.0.s8 %v6364
        %v6465 = vunpack.c.1.s8 %v6361
        %v6466 = vunpack.c.1.s8 %v6362
        %v6467 = vunpack.c.1.s8 %v6363
        %v6468 = vunpack.c.1.s8 %v6364
        %v6469 = vunpack.c.2.s8 %v6361
        %v6470 = vunpack.c.2.s8 %v6362
        %v6471 = vunpack.c.2.s8 %v6363
        %v6472 = vunpack.c.2.s8 %v6364
        %v6473 = vunpack.c.3.s8 %v6361
        %v6474 = vunpack.c.3.s8 %v6362
        %v6475 = vunpack.c.3.s8 %v6363
        %v6476 = vunpack.c.3.s8 %v6364
        %v6477 = vunpack.c.0.s8 %v6365
        %v6478 = vunpack.c.0.s8 %v6366
        %v6479 = vunpack.c.0.s8 %v6367
        %v6480 = vunpack.c.0.s8 %v6368
        %v6481 = vunpack.c.1.s8 %v6365
        %v6482 = vunpack.c.1.s8 %v6366
        %v6483 = vunpack.c.1.s8 %v6367
        %v6484 = vunpack.c.1.s8 %v6368
        %v6485 = vunpack.c.2.s8 %v6365
        %v6486 = vunpack.c.2.s8 %v6366
        %v6487 = vunpack.c.2.s8 %v6367
        %v6488 = vunpack.c.2.s8 %v6368
        %v6489 = vunpack.c.3.s8 %v6365
        %v6490 = vunpack.c.3.s8 %v6366
        %v6491 = vunpack.c.3.s8 %v6367
        %v6492 = vunpack.c.3.s8 %v6368
        %v6493 = vunpack.c.0.s8 %v6369
        %v6494 = vunpack.c.0.s8 %v6370
        %v6495 = vunpack.c.0.s8 %v6371
        %v6496 = vunpack.c.0.s8 %v6372
        %v6497 = vunpack.c.1.s8 %v6369
        %v6498 = vunpack.c.1.s8 %v6370
        %v6499 = vunpack.c.1.s8 %v6371
        %v6500 = vunpack.c.1.s8 %v6372
        %v6501 = vunpack.c.2.s8 %v6369
        %v6502 = vunpack.c.2.s8 %v6370
        %v6503 = vunpack.c.2.s8 %v6371
        %v6504 = vunpack.c.2.s8 %v6372
        %v6505 = vunpack.c.3.s8 %v6369
        %v6506 = vunpack.c.3.s8 %v6370
        %v6507 = vunpack.c.3.s8 %v6371
        %v6508 = vunpack.c.3.s8 %v6372
        %v6509 = vunpack.c.0.s8 %v6373
        %v6510 = vunpack.c.0.s8 %v6374
        %v6511 = vunpack.c.0.s8 %v6375
        %v6512 = vunpack.c.0.s8 %v6376
        %v6513 = vunpack.c.1.s8 %v6373
        %v6514 = vunpack.c.1.s8 %v6374
        %v6515 = vunpack.c.1.s8 %v6375
        %v6516 = vunpack.c.1.s8 %v6376
        %v6517 = vunpack.c.2.s8 %v6373
        %v6518 = vunpack.c.2.s8 %v6374
        %v6519 = vunpack.c.2.s8 %v6375
        %v6520 = vunpack.c.2.s8 %v6376
        %v6521 = vunpack.c.3.s8 %v6373
        %v6522 = vunpack.c.3.s8 %v6374
        %v6523 = vunpack.c.3.s8 %v6375
        %v6524 = vunpack.c.3.s8 %v6376
        %v6525 = vunpack.c.0.s8 %v6377
        %v6526 = vunpack.c.0.s8 %v6378
        %v6527 = vunpack.c.0.s8 %v6379
        %v6528 = vunpack.c.0.s8 %v6380
        %v6529 = vunpack.c.1.s8 %v6377
        %v6530 = vunpack.c.1.s8 %v6378
        %v6531 = vunpack.c.1.s8 %v6379
        %v6532 = vunpack.c.1.s8 %v6380
        %v6533 = vunpack.c.2.s8 %v6377
        %v6534 = vunpack.c.2.s8 %v6378
        %v6535 = vunpack.c.2.s8 %v6379
        %v6536 = vunpack.c.2.s8 %v6380
        %v6537 = vunpack.c.3.s8 %v6377
        %v6538 = vunpack.c.3.s8 %v6378
        %v6539 = vunpack.c.3.s8 %v6379
        %v6540 = vunpack.c.3.s8 %v6380
        %v6541 = vunpack.c.0.s8 %v6381
        %v6542 = vunpack.c.0.s8 %v6382
        %v6543 = vunpack.c.0.s8 %v6383
        %v6544 = vunpack.c.0.s8 %v6384
        %v6545 = vunpack.c.1.s8 %v6381
        %v6546 = vunpack.c.1.s8 %v6382
        %v6547 = vunpack.c.1.s8 %v6383
        %v6548 = vunpack.c.1.s8 %v6384
        %v6549 = vunpack.c.2.s8 %v6381
        %v6550 = vunpack.c.2.s8 %v6382
        %v6551 = vunpack.c.2.s8 %v6383
        %v6552 = vunpack.c.2.s8 %v6384
        %v6553 = vunpack.c.3.s8 %v6381
        %v6554 = vunpack.c.3.s8 %v6382
        %v6555 = vunpack.c.3.s8 %v6383
        %v6556 = vunpack.c.3.s8 %v6384
        %v6557 = vunpack.c.0.s8 %v6385
        %v6558 = vunpack.c.0.s8 %v6386
        %v6559 = vunpack.c.0.s8 %v6387
        %v6560 = vunpack.c.0.s8 %v6388
        %v6561 = vunpack.c.1.s8 %v6385
        %v6562 = vunpack.c.1.s8 %v6386
        %v6563 = vunpack.c.1.s8 %v6387
        %v6564 = vunpack.c.1.s8 %v6388
        %v6565 = vunpack.c.2.s8 %v6385
        %v6566 = vunpack.c.2.s8 %v6386
        %v6567 = vunpack.c.2.s8 %v6387
        %v6568 = vunpack.c.2.s8 %v6388
        %v6569 = vunpack.c.3.s8 %v6385
        %v6570 = vunpack.c.3.s8 %v6386
        %v6571 = vunpack.c.3.s8 %v6387
        %v6572 = vunpack.c.3.s8 %v6388
        %v6573 = vunpack.c.0.s8 %v6389
        %v6574 = vunpack.c.0.s8 %v6390
        %v6575 = vunpack.c.0.s8 %v6391
        %v6576 = vunpack.c.0.s8 %v6392
        %v6577 = vunpack.c.1.s8 %v6389
        %v6578 = vunpack.c.1.s8 %v6390
        %v6579 = vunpack.c.1.s8 %v6391
        %v6580 = vunpack.c.1.s8 %v6392
        %v6581 = vunpack.c.2.s8 %v6389
        %v6582 = vunpack.c.2.s8 %v6390
        %v6583 = vunpack.c.2.s8 %v6391
        %v6584 = vunpack.c.2.s8 %v6392
        %v6585 = vunpack.c.3.s8 %v6389
        %v6586 = vunpack.c.3.s8 %v6390
        %v6587 = vunpack.c.3.s8 %v6391
        %v6588 = vunpack.c.3.s8 %v6392
        %v6589 = vunpack.c.0.s8 %v6393
        %v6590 = vunpack.c.0.s8 %v6394
        %v6591 = vunpack.c.0.s8 %v6395
        %v6592 = vunpack.c.0.s8 %v6396
        %v6593 = vunpack.c.1.s8 %v6393
        %v6594 = vunpack.c.1.s8 %v6394
        %v6595 = vunpack.c.1.s8 %v6395
        %v6596 = vunpack.c.1.s8 %v6396
        %v6597 = vunpack.c.2.s8 %v6393
        %v6598 = vunpack.c.2.s8 %v6394
        %v6599 = vunpack.c.2.s8 %v6395
        %v6600 = vunpack.c.2.s8 %v6396
        %v6601 = vunpack.c.3.s8 %v6393
        %v6602 = vunpack.c.3.s8 %v6394
        %v6603 = vunpack.c.3.s8 %v6395
        %v6604 = vunpack.c.3.s8 %v6396
        %v6605 = vunpack.c.0.s8 %v6397
        %v6606 = vunpack.c.0.s8 %v6398
        %v6607 = vunpack.c.0.s8 %v6399
        %v6608 = vunpack.c.0.s8 %v6400
        %v6609 = vunpack.c.1.s8 %v6397
        %v6610 = vunpack.c.1.s8 %v6398
        %v6611 = vunpack.c.1.s8 %v6399
        %v6612 = vunpack.c.1.s8 %v6400
        %v6613 = vunpack.c.2.s8 %v6397
        %v6614 = vunpack.c.2.s8 %v6398
        %v6615 = vunpack.c.2.s8 %v6399
        %v6616 = vunpack.c.2.s8 %v6400
        %v6617 = vunpack.c.3.s8 %v6397
        %v6618 = vunpack.c.3.s8 %v6398
        %v6619 = vunpack.c.3.s8 %v6399
        %v6620 = vunpack.c.3.s8 %v6400
        %v6621 = vunpack.c.0.s8 %v6401
        %v6622 = vunpack.c.0.s8 %v6402
        %v6623 = vunpack.c.0.s8 %v6403
        %v6624 = vunpack.c.0.s8 %v6404
        %v6625 = vunpack.c.1.s8 %v6401
        %v6626 = vunpack.c.1.s8 %v6402
        %v6627 = vunpack.c.1.s8 %v6403
        %v6628 = vunpack.c.1.s8 %v6404
        %v6629 = vunpack.c.2.s8 %v6401
        %v6630 = vunpack.c.2.s8 %v6402
        %v6631 = vunpack.c.2.s8 %v6403
        %v6632 = vunpack.c.2.s8 %v6404
        %v6633 = vunpack.c.3.s8 %v6401
        %v6634 = vunpack.c.3.s8 %v6402
        %v6635 = vunpack.c.3.s8 %v6403
        %v6636 = vunpack.c.3.s8 %v6404
        %v6637 = vunpack.c.0.s8 %v6405
        %v6638 = vunpack.c.0.s8 %v6406
        %v6639 = vunpack.c.0.s8 %v6407
        %v6640 = vunpack.c.0.s8 %v6408
        %v6641 = vunpack.c.1.s8 %v6405
        %v6642 = vunpack.c.1.s8 %v6406
        %v6643 = vunpack.c.1.s8 %v6407
        %v6644 = vunpack.c.1.s8 %v6408
        %v6645 = vunpack.c.2.s8 %v6405
        %v6646 = vunpack.c.2.s8 %v6406
        %v6647 = vunpack.c.2.s8 %v6407
        %v6648 = vunpack.c.2.s8 %v6408
        %v6649 = vunpack.c.3.s8 %v6405
        %v6650 = vunpack.c.3.s8 %v6406
        %v6651 = vunpack.c.3.s8 %v6407
        %v6652 = vunpack.c.3.s8 %v6408
        %v6653 = vunpack.c.0.s8 %v6409
        %v6654 = vunpack.c.0.s8 %v6410
        %v6655 = vunpack.c.0.s8 %v6411
        %v6656 = vunpack.c.0.s8 %v6412
        %v6657 = vunpack.c.1.s8 %v6409
        %v6658 = vunpack.c.1.s8 %v6410
        %v6659 = vunpack.c.1.s8 %v6411
        %v6660 = vunpack.c.1.s8 %v6412
        %v6661 = vunpack.c.2.s8 %v6409
        %v6662 = vunpack.c.2.s8 %v6410
        %v6663 = vunpack.c.2.s8 %v6411
        %v6664 = vunpack.c.2.s8 %v6412
        %v6665 = vunpack.c.3.s8 %v6409
        %v6666 = vunpack.c.3.s8 %v6410
        %v6667 = vunpack.c.3.s8 %v6411
        %v6668 = vunpack.c.3.s8 %v6412
        %v6669 = vcvt.s32.f32 %v6413
        %v6670 = vcvt.s32.f32 %v6414
        %v6671 = vcvt.s32.f32 %v6415
        %v6672 = vcvt.s32.f32 %v6416
        %v6673 = vcvt.s32.f32 %v6417
        %v6674 = vcvt.s32.f32 %v6418
        %v6675 = vcvt.s32.f32 %v6419
        %v6676 = vcvt.s32.f32 %v6420
        %v6677 = vcvt.s32.f32 %v6421
        %v6678 = vcvt.s32.f32 %v6422
        %v6679 = vcvt.s32.f32 %v6423
        %v6680 = vcvt.s32.f32 %v6424
        %v6681 = vcvt.s32.f32 %v6425
        %v6682 = vcvt.s32.f32 %v6426
        %v6683 = vcvt.s32.f32 %v6427
        %v6684 = vcvt.s32.f32 %v6428
        %v6685 = vcvt.s32.f32 %v6429
        %v6686 = vcvt.s32.f32 %v6430
        %v6687 = vcvt.s32.f32 %v6431
        %v6688 = vcvt.s32.f32 %v6432
        %v6689 = vcvt.s32.f32 %v6433
        %v6690 = vcvt.s32.f32 %v6434
        %v6691 = vcvt.s32.f32 %v6435
        %v6692 = vcvt.s32.f32 %v6436
        %v6693 = vcvt.s32.f32 %v6437
        %v6694 = vcvt.s32.f32 %v6438
        %v6695 = vcvt.s32.f32 %v6439
        %v6696 = vcvt.s32.f32 %v6440
        %v6697 = vcvt.s32.f32 %v6441
        %v6698 = vcvt.s32.f32 %v6442
        %v6699 = vcvt.s32.f32 %v6443
        %v6700 = vcvt.s32.f32 %v6444
        %v6701 = vcvt.s32.f32 %v6445
        %v6702 = vcvt.s32.f32 %v6446
        %v6703 = vcvt.s32.f32 %v6447
        %v6704 = vcvt.s32.f32 %v6448
        %v6705 = vcvt.s32.f32 %v6449
        %v6706 = vcvt.s32.f32 %v6450
        %v6707 = vcvt.s32.f32 %v6451
        %v6708 = vcvt.s32.f32 %v6452
        %v6709 = vcvt.s32.f32 %v6453
        %v6710 = vcvt.s32.f32 %v6454
        %v6711 = vcvt.s32.f32 %v6455
        %v6712 = vcvt.s32.f32 %v6456
        %v6713 = vcvt.s32.f32 %v6457
        %v6714 = vcvt.s32.f32 %v6458
        %v6715 = vcvt.s32.f32 %v6459
        %v6716 = vcvt.s32.f32 %v6460
        %v6717 = vcvt.s32.f32 %v6461
        %v6718 = vcvt.s32.f32 %v6462
        %v6719 = vcvt.s32.f32 %v6463
        %v6720 = vcvt.s32.f32 %v6464
        %v6721 = vcvt.s32.f32 %v6465
        %v6722 = vcvt.s32.f32 %v6466
        %v6723 = vcvt.s32.f32 %v6467
        %v6724 = vcvt.s32.f32 %v6468
        %v6725 = vcvt.s32.f32 %v6469
        %v6726 = vcvt.s32.f32 %v6470
        %v6727 = vcvt.s32.f32 %v6471
        %v6728 = vcvt.s32.f32 %v6472
        %v6729 = vcvt.s32.f32 %v6473
        %v6730 = vcvt.s32.f32 %v6474
        %v6731 = vcvt.s32.f32 %v6475
        %v6732 = vcvt.s32.f32 %v6476
        %v6733 = vcvt.s32.f32 %v6477
        %v6734 = vcvt.s32.f32 %v6478
        %v6735 = vcvt.s32.f32 %v6479
        %v6736 = vcvt.s32.f32 %v6480
        %v6737 = vcvt.s32.f32 %v6481
        %v6738 = vcvt.s32.f32 %v6482
        %v6739 = vcvt.s32.f32 %v6483
        %v6740 = vcvt.s32.f32 %v6484
        %v6741 = vcvt.s32.f32 %v6485
        %v6742 = vcvt.s32.f32 %v6486
        %v6743 = vcvt.s32.f32 %v6487
        %v6744 = vcvt.s32.f32 %v6488
        %v6745 = vcvt.s32.f32 %v6489
        %v6746 = vcvt.s32.f32 %v6490
        %v6747 = vcvt.s32.f32 %v6491
        %v6748 = vcvt.s32.f32 %v6492
        %v6749 = vcvt.s32.f32 %v6493
        %v6750 = vcvt.s32.f32 %v6494
        %v6751 = vcvt.s32.f32 %v6495
        %v6752 = vcvt.s32.f32 %v6496
        %v6753 = vcvt.s32.f32 %v6497
        %v6754 = vcvt.s32.f32 %v6498
        %v6755 = vcvt.s32.f32 %v6499
        %v6756 = vcvt.s32.f32 %v6500
        %v6757 = vcvt.s32.f32 %v6501
        %v6758 = vcvt.s32.f32 %v6502
        %v6759 = vcvt.s32.f32 %v6503
        %v6760 = vcvt.s32.f32 %v6504
        %v6761 = vcvt.s32.f32 %v6505
        %v6762 = vcvt.s32.f32 %v6506
        %v6763 = vcvt.s32.f32 %v6507
        %v6764 = vcvt.s32.f32 %v6508
        %v6765 = vcvt.s32.f32 %v6509
        %v6766 = vcvt.s32.f32 %v6510
        %v6767 = vcvt.s32.f32 %v6511
        %v6768 = vcvt.s32.f32 %v6512
        %v6769 = vcvt.s32.f32 %v6513
        %v6770 = vcvt.s32.f32 %v6514
        %v6771 = vcvt.s32.f32 %v6515
        %v6772 = vcvt.s32.f32 %v6516
        %v6773 = vcvt.s32.f32 %v6517
        %v6774 = vcvt.s32.f32 %v6518
        %v6775 = vcvt.s32.f32 %v6519
        %v6776 = vcvt.s32.f32 %v6520
        %v6777 = vcvt.s32.f32 %v6521
        %v6778 = vcvt.s32.f32 %v6522
        %v6779 = vcvt.s32.f32 %v6523
        %v6780 = vcvt.s32.f32 %v6524
        %v6781 = vcvt.s32.f32 %v6525
        %v6782 = vcvt.s32.f32 %v6526
        %v6783 = vcvt.s32.f32 %v6527
        %v6784 = vcvt.s32.f32 %v6528
        %v6785 = vcvt.s32.f32 %v6529
        %v6786 = vcvt.s32.f32 %v6530
        %v6787 = vcvt.s32.f32 %v6531
        %v6788 = vcvt.s32.f32 %v6532
        %v6789 = vcvt.s32.f32 %v6533
        %v6790 = vcvt.s32.f32 %v6534
        %v6791 = vcvt.s32.f32 %v6535
        %v6792 = vcvt.s32.f32 %v6536
        %v6793 = vcvt.s32.f32 %v6537
        %v6794 = vcvt.s32.f32 %v6538
        %v6795 = vcvt.s32.f32 %v6539
        %v6796 = vcvt.s32.f32 %v6540
        %v6797 = vcvt.s32.f32 %v6541
        %v6798 = vcvt.s32.f32 %v6542
        %v6799 = vcvt.s32.f32 %v6543
        %v6800 = vcvt.s32.f32 %v6544
        %v6801 = vcvt.s32.f32 %v6545
        %v6802 = vcvt.s32.f32 %v6546
        %v6803 = vcvt.s32.f32 %v6547
        %v6804 = vcvt.s32.f32 %v6548
        %v6805 = vcvt.s32.f32 %v6549
        %v6806 = vcvt.s32.f32 %v6550
        %v6807 = vcvt.s32.f32 %v6551
        %v6808 = vcvt.s32.f32 %v6552
        %v6809 = vcvt.s32.f32 %v6553
        %v6810 = vcvt.s32.f32 %v6554
        %v6811 = vcvt.s32.f32 %v6555
        %v6812 = vcvt.s32.f32 %v6556
        %v6813 = vcvt.s32.f32 %v6557
        %v6814 = vcvt.s32.f32 %v6558
        %v6815 = vcvt.s32.f32 %v6559
        %v6816 = vcvt.s32.f32 %v6560
        %v6817 = vcvt.s32.f32 %v6561
        %v6818 = vcvt.s32.f32 %v6562
        %v6819 = vcvt.s32.f32 %v6563
        %v6820 = vcvt.s32.f32 %v6564
        %v6821 = vcvt.s32.f32 %v6565
        %v6822 = vcvt.s32.f32 %v6566
        %v6823 = vcvt.s32.f32 %v6567
        %v6824 = vcvt.s32.f32 %v6568
        %v6825 = vcvt.s32.f32 %v6569
        %v6826 = vcvt.s32.f32 %v6570
        %v6827 = vcvt.s32.f32 %v6571
        %v6828 = vcvt.s32.f32 %v6572
        %v6829 = vcvt.s32.f32 %v6573
        %v6830 = vcvt.s32.f32 %v6574
        %v6831 = vcvt.s32.f32 %v6575
        %v6832 = vcvt.s32.f32 %v6576
        %v6833 = vcvt.s32.f32 %v6577
        %v6834 = vcvt.s32.f32 %v6578
        %v6835 = vcvt.s32.f32 %v6579
        %v6836 = vcvt.s32.f32 %v6580
        %v6837 = vcvt.s32.f32 %v6581
        %v6838 = vcvt.s32.f32 %v6582
        %v6839 = vcvt.s32.f32 %v6583
        %v6840 = vcvt.s32.f32 %v6584
        %v6841 = vcvt.s32.f32 %v6585
        %v6842 = vcvt.s32.f32 %v6586
        %v6843 = vcvt.s32.f32 %v6587
        %v6844 = vcvt.s32.f32 %v6588
        %v6845 = vcvt.s32.f32 %v6589
        %v6846 = vcvt.s32.f32 %v6590
        %v6847 = vcvt.s32.f32 %v6591
        %v6848 = vcvt.s32.f32 %v6592
        %v6849 = vcvt.s32.f32 %v6593
        %v6850 = vcvt.s32.f32 %v6594
        %v6851 = vcvt.s32.f32 %v6595
        %v6852 = vcvt.s32.f32 %v6596
        %v6853 = vcvt.s32.f32 %v6597
        %v6854 = vcvt.s32.f32 %v6598
        %v6855 = vcvt.s32.f32 %v6599
        %v6856 = vcvt.s32.f32 %v6600
        %v6857 = vcvt.s32.f32 %v6601
        %v6858 = vcvt.s32.f32 %v6602
        %v6859 = vcvt.s32.f32 %v6603
        %v6860 = vcvt.s32.f32 %v6604
        %v6861 = vcvt.s32.f32 %v6605
        %v6862 = vcvt.s32.f32 %v6606
        %v6863 = vcvt.s32.f32 %v6607
        %v6864 = vcvt.s32.f32 %v6608
        %v6865 = vcvt.s32.f32 %v6609
        %v6866 = vcvt.s32.f32 %v6610
        %v6867 = vcvt.s32.f32 %v6611
        %v6868 = vcvt.s32.f32 %v6612
        %v6869 = vcvt.s32.f32 %v6613
        %v6870 = vcvt.s32.f32 %v6614
        %v6871 = vcvt.s32.f32 %v6615
        %v6872 = vcvt.s32.f32 %v6616
        %v6873 = vcvt.s32.f32 %v6617
        %v6874 = vcvt.s32.f32 %v6618
        %v6875 = vcvt.s32.f32 %v6619
        %v6876 = vcvt.s32.f32 %v6620
        %v6877 = vcvt.s32.f32 %v6621
        %v6878 = vcvt.s32.f32 %v6622
        %v6879 = vcvt.s32.f32 %v6623
        %v6880 = vcvt.s32.f32 %v6624
        %v6881 = vcvt.s32.f32 %v6625
        %v6882 = vcvt.s32.f32 %v6626
        %v6883 = vcvt.s32.f32 %v6627
        %v6884 = vcvt.s32.f32 %v6628
        %v6885 = vcvt.s32.f32 %v6629
        %v6886 = vcvt.s32.f32 %v6630
        %v6887 = vcvt.s32.f32 %v6631
        %v6888 = vcvt.s32.f32 %v6632
        %v6889 = vcvt.s32.f32 %v6633
        %v6890 = vcvt.s32.f32 %v6634
        %v6891 = vcvt.s32.f32 %v6635
        %v6892 = vcvt.s32.f32 %v6636
        %v6893 = vcvt.s32.f32 %v6637
        %v6894 = vcvt.s32.f32 %v6638
        %v6895 = vcvt.s32.f32 %v6639
        %v6896 = vcvt.s32.f32 %v6640
        %v6897 = vcvt.s32.f32 %v6641
        %v6898 = vcvt.s32.f32 %v6642
        %v6899 = vcvt.s32.f32 %v6643
        %v6900 = vcvt.s32.f32 %v6644
        %v6901 = vcvt.s32.f32 %v6645
        %v6902 = vcvt.s32.f32 %v6646
        %v6903 = vcvt.s32.f32 %v6647
        %v6904 = vcvt.s32.f32 %v6648
        %v6905 = vcvt.s32.f32 %v6649
        %v6906 = vcvt.s32.f32 %v6650
        %v6907 = vcvt.s32.f32 %v6651
        %v6908 = vcvt.s32.f32 %v6652
        %v6909 = vcvt.s32.f32 %v6653
        %v6910 = vcvt.s32.f32 %v6654
        %v6911 = vcvt.s32.f32 %v6655
        %v6912 = vcvt.s32.f32 %v6656
        %v6913 = vcvt.s32.f32 %v6657
        %v6914 = vcvt.s32.f32 %v6658
        %v6915 = vcvt.s32.f32 %v6659
        %v6916 = vcvt.s32.f32 %v6660
        %v6917 = vcvt.s32.f32 %v6661
        %v6918 = vcvt.s32.f32 %v6662
        %v6919 = vcvt.s32.f32 %v6663
        %v6920 = vcvt.s32.f32 %v6664
        %v6921 = vcvt.s32.f32 %v6665
        %v6922 = vcvt.s32.f32 %v6666
        %v6923 = vcvt.s32.f32 %v6667
        %v6924 = vcvt.s32.f32 %v6668
        %v6925 = vpack.c.bf16 %v6673, %v6669
        %v6926 = vpack.c.bf16 %v6674, %v6670
        %v6927 = vpack.c.bf16 %v6675, %v6671
        %v6928 = vpack.c.bf16 %v6676, %v6672
        %v6929 = vpack.c.bf16 %v6681, %v6677
        %v6930 = vpack.c.bf16 %v6682, %v6678
        %v6931 = vpack.c.bf16 %v6683, %v6679
        %v6932 = vpack.c.bf16 %v6684, %v6680
        %v6933 = vpack.c.bf16 %v6689, %v6685
        %v6934 = vpack.c.bf16 %v6690, %v6686
        %v6935 = vpack.c.bf16 %v6691, %v6687
        %v6936 = vpack.c.bf16 %v6692, %v6688
        %v6937 = vpack.c.bf16 %v6697, %v6693
        %v6938 = vpack.c.bf16 %v6698, %v6694
        %v6939 = vpack.c.bf16 %v6699, %v6695
        %v6940 = vpack.c.bf16 %v6700, %v6696
        %v6941 = vpack.c.bf16 %v6705, %v6701
        %v6942 = vpack.c.bf16 %v6706, %v6702
        %v6943 = vpack.c.bf16 %v6707, %v6703
        %v6944 = vpack.c.bf16 %v6708, %v6704
        %v6945 = vpack.c.bf16 %v6713, %v6709
        %v6946 = vpack.c.bf16 %v6714, %v6710
        %v6947 = vpack.c.bf16 %v6715, %v6711
        %v6948 = vpack.c.bf16 %v6716, %v6712
        %v6949 = vpack.c.bf16 %v6721, %v6717
        %v6950 = vpack.c.bf16 %v6722, %v6718
        %v6951 = vpack.c.bf16 %v6723, %v6719
        %v6952 = vpack.c.bf16 %v6724, %v6720
        %v6953 = vpack.c.bf16 %v6729, %v6725
        %v6954 = vpack.c.bf16 %v6730, %v6726
        %v6955 = vpack.c.bf16 %v6731, %v6727
        %v6956 = vpack.c.bf16 %v6732, %v6728
        %v6957 = vpack.c.bf16 %v6737, %v6733
        %v6958 = vpack.c.bf16 %v6738, %v6734
        %v6959 = vpack.c.bf16 %v6739, %v6735
        %v6960 = vpack.c.bf16 %v6740, %v6736
        %v6961 = vpack.c.bf16 %v6745, %v6741
        %v6962 = vpack.c.bf16 %v6746, %v6742
        %v6963 = vpack.c.bf16 %v6747, %v6743
        %v6964 = vpack.c.bf16 %v6748, %v6744
        %v6965 = vpack.c.bf16 %v6753, %v6749
        %v6966 = vpack.c.bf16 %v6754, %v6750
        %v6967 = vpack.c.bf16 %v6755, %v6751
        %v6968 = vpack.c.bf16 %v6756, %v6752
        %v6969 = vpack.c.bf16 %v6761, %v6757
        %v6970 = vpack.c.bf16 %v6762, %v6758
        %v6971 = vpack.c.bf16 %v6763, %v6759
        %v6972 = vpack.c.bf16 %v6764, %v6760
        %v6973 = vpack.c.bf16 %v6769, %v6765
        %v6974 = vpack.c.bf16 %v6770, %v6766
        %v6975 = vpack.c.bf16 %v6771, %v6767
        %v6976 = vpack.c.bf16 %v6772, %v6768
        %v6977 = vpack.c.bf16 %v6777, %v6773
        %v6978 = vpack.c.bf16 %v6778, %v6774
        %v6979 = vpack.c.bf16 %v6779, %v6775
        %v6980 = vpack.c.bf16 %v6780, %v6776
        %v6981 = vpack.c.bf16 %v6785, %v6781
        %v6982 = vpack.c.bf16 %v6786, %v6782
        %v6983 = vpack.c.bf16 %v6787, %v6783
        %v6984 = vpack.c.bf16 %v6788, %v6784
        %v6985 = vpack.c.bf16 %v6793, %v6789
        %v6986 = vpack.c.bf16 %v6794, %v6790
        %v6987 = vpack.c.bf16 %v6795, %v6791
        %v6988 = vpack.c.bf16 %v6796, %v6792
        %v6989 = vpack.c.bf16 %v6801, %v6797
        %v6990 = vpack.c.bf16 %v6802, %v6798
        %v6991 = vpack.c.bf16 %v6803, %v6799
        %v6992 = vpack.c.bf16 %v6804, %v6800
        %v6993 = vpack.c.bf16 %v6809, %v6805
        %v6994 = vpack.c.bf16 %v6810, %v6806
        %v6995 = vpack.c.bf16 %v6811, %v6807
        %v6996 = vpack.c.bf16 %v6812, %v6808
        %v6997 = vpack.c.bf16 %v6817, %v6813
        %v6998 = vpack.c.bf16 %v6818, %v6814
        %v6999 = vpack.c.bf16 %v6819, %v6815
        %v7000 = vpack.c.bf16 %v6820, %v6816
        %v7001 = vpack.c.bf16 %v6825, %v6821
        %v7002 = vpack.c.bf16 %v6826, %v6822
        %v7003 = vpack.c.bf16 %v6827, %v6823
        %v7004 = vpack.c.bf16 %v6828, %v6824
        %v7005 = vpack.c.bf16 %v6833, %v6829
        %v7006 = vpack.c.bf16 %v6834, %v6830
        %v7007 = vpack.c.bf16 %v6835, %v6831
        %v7008 = vpack.c.bf16 %v6836, %v6832
        %v7009 = vpack.c.bf16 %v6841, %v6837
        %v7010 = vpack.c.bf16 %v6842, %v6838
        %v7011 = vpack.c.bf16 %v6843, %v6839
        %v7012 = vpack.c.bf16 %v6844, %v6840
        %v7013 = vpack.c.bf16 %v6849, %v6845
        %v7014 = vpack.c.bf16 %v6850, %v6846
        %v7015 = vpack.c.bf16 %v6851, %v6847
        %v7016 = vpack.c.bf16 %v6852, %v6848
        %v7017 = vpack.c.bf16 %v6857, %v6853
        %v7018 = vpack.c.bf16 %v6858, %v6854
        %v7019 = vpack.c.bf16 %v6859, %v6855
        %v7020 = vpack.c.bf16 %v6860, %v6856
        %v7021 = vpack.c.bf16 %v6865, %v6861
        %v7022 = vpack.c.bf16 %v6866, %v6862
        %v7023 = vpack.c.bf16 %v6867, %v6863
        %v7024 = vpack.c.bf16 %v6868, %v6864
        %v7025 = vpack.c.bf16 %v6873, %v6869
        %v7026 = vpack.c.bf16 %v6874, %v6870
        %v7027 = vpack.c.bf16 %v6875, %v6871
        %v7028 = vpack.c.bf16 %v6876, %v6872
        %v7029 = vpack.c.bf16 %v6881, %v6877
        %v7030 = vpack.c.bf16 %v6882, %v6878
        %v7031 = vpack.c.bf16 %v6883, %v6879
        %v7032 = vpack.c.bf16 %v6884, %v6880
        %v7033 = vpack.c.bf16 %v6889, %v6885
        %v7034 = vpack.c.bf16 %v6890, %v6886
        %v7035 = vpack.c.bf16 %v6891, %v6887
        %v7036 = vpack.c.bf16 %v6892, %v6888
        %v7037 = vpack.c.bf16 %v6897, %v6893
        %v7038 = vpack.c.bf16 %v6898, %v6894
        %v7039 = vpack.c.bf16 %v6899, %v6895
        %v7040 = vpack.c.bf16 %v6900, %v6896
        %v7041 = vpack.c.bf16 %v6905, %v6901
        %v7042 = vpack.c.bf16 %v6906, %v6902
        %v7043 = vpack.c.bf16 %v6907, %v6903
        %v7044 = vpack.c.bf16 %v6908, %v6904
        %v7045 = vpack.c.bf16 %v6913, %v6909
        %v7046 = vpack.c.bf16 %v6914, %v6910
        %v7047 = vpack.c.bf16 %v6915, %v6911
        %v7048 = vpack.c.bf16 %v6916, %v6912
        %v7049 = vpack.c.bf16 %v6921, %v6917
        %v7050 = vpack.c.bf16 %v6922, %v6918
        %v7051 = vpack.c.bf16 %v6923, %v6919
        %v7052 = vpack.c.bf16 %v6924, %v6920
        %7053 = vmatpush.bf16.msra.mxu0 %v6953
        %7054 = vmatpush.bf16.msra.mxu0 %v6949
        %7055 = vmatpush.bf16.msra.mxu0 %v6945
        %7056 = vmatpush.bf16.msra.mxu0 %v6941
        %7057 = vmatpush.bf16.msra.mxu0 %v6937
        %7058 = vmatpush.bf16.msra.mxu0 %v6933
        %7059 = vmatpush.bf16.msra.mxu0 %v6929
        %7060 = vmatpush.bf16.msra.mxu0 %v6925
        %7061 = vmatmul.bf16.gmra.mxu0 %v6345
        %v7062 = vpop.f32.mrf.mxu0
        %v7063 = vadd.f32 0.0, %v7062
        %v7064 = vpop.f32.mrf.mxu0
        %7065 = vdwg.mxu0
        %7066 = vmatpush.bf16.msra.mxu0 %v6985
        %7067 = vmatpush.bf16.msra.mxu0 %v6981
        %7068 = vmatpush.bf16.msra.mxu0 %v6977
        %7069 = vmatpush.bf16.msra.mxu0 %v6973
        %7070 = vmatpush.bf16.msra.mxu0 %v6969
        %7071 = vmatpush.bf16.msra.mxu0 %v6965
        %7072 = vmatpush.bf16.msra.mxu0 %v6961
        %7073 = vmatpush.bf16.msra.mxu0 %v6957
        %7074 = vmatmul.bf16.gmra.mxu0 %v6346
        %v7075 = vpop.f32.mrf.mxu0
        %v7076 = vadd.f32 %v7063, %v7075
        %v7077 = vpop.f32.mrf.mxu0
        %7078 = vdwg.mxu0
        %7079 = vmatpush.bf16.msra.mxu0 %v7017
        %7080 = vmatpush.bf16.msra.mxu0 %v7013
        %7081 = vmatpush.bf16.msra.mxu0 %v7009
        %7082 = vmatpush.bf16.msra.mxu0 %v7005
        %7083 = vmatpush.bf16.msra.mxu0 %v7001
        %7084 = vmatpush.bf16.msra.mxu0 %v6997
        %7085 = vmatpush.bf16.msra.mxu0 %v6993
        %7086 = vmatpush.bf16.msra.mxu0 %v6989
        %7087 = vmatmul.bf16.gmra.mxu0 %v6347
        %v7088 = vpop.f32.mrf.mxu0
        %v7089 = vadd.f32 %v7076, %v7088
        %v7090 = vpop.f32.mrf.mxu0
        %7091 = vdwg.mxu0
        %7092 = vmatpush.bf16.msra.mxu0 %v7049
        %7093 = vmatpush.bf16.msra.mxu0 %v7045
        %7094 = vmatpush.bf16.msra.mxu0 %v7041
        %7095 = vmatpush.bf16.msra.mxu0 %v7037
        %7096 = vmatpush.bf16.msra.mxu0 %v7033
        %7097 = vmatpush.bf16.msra.mxu0 %v7029
        %7098 = vmatpush.bf16.msra.mxu0 %v7025
        %7099 = vmatpush.bf16.msra.mxu0 %v7021
        %7100 = vmatmul.bf16.gmra.mxu0 %v6348
        %v7101 = vpop.f32.mrf.mxu0
        %v7102 = vadd.f32 %v7089, %v7101
        %v7103 = vpop.f32.mrf.mxu0
        %7104 = vdwg.mxu0
        %7105 = vmatpush.bf16.msra.mxu0 %v6954
        %7106 = vmatpush.bf16.msra.mxu0 %v6950
        %7107 = vmatpush.bf16.msra.mxu0 %v6946
        %7108 = vmatpush.bf16.msra.mxu0 %v6942
        %7109 = vmatpush.bf16.msra.mxu0 %v6938
        %7110 = vmatpush.bf16.msra.mxu0 %v6934
        %7111 = vmatpush.bf16.msra.mxu0 %v6930
        %7112 = vmatpush.bf16.msra.mxu0 %v6926
        %7113 = vmatmul.bf16.gmra.mxu0 %v6345
        %v7114 = vpop.f32.mrf.mxu0
        %v7115 = vadd.f32 0.0, %v7114
        %v7116 = vpop.f32.mrf.mxu0
        %7117 = vdwg.mxu0
        %7118 = vmatpush.bf16.msra.mxu0 %v6986
        %7119 = vmatpush.bf16.msra.mxu0 %v6982
        %7120 = vmatpush.bf16.msra.mxu0 %v6978
        %7121 = vmatpush.bf16.msra.mxu0 %v6974
        %7122 = vmatpush.bf16.msra.mxu0 %v6970
        %7123 = vmatpush.bf16.msra.mxu0 %v6966
        %7124 = vmatpush.bf16.msra.mxu0 %v6962
        %7125 = vmatpush.bf16.msra.mxu0 %v6958
        %7126 = vmatmul.bf16.gmra.mxu0 %v6346
        %v7127 = vpop.f32.mrf.mxu0
        %v7128 = vadd.f32 %v7115, %v7127
        %v7129 = vpop.f32.mrf.mxu0
        %7130 = vdwg.mxu0
        %7131 = vmatpush.bf16.msra.mxu0 %v7018
        %7132 = vmatpush.bf16.msra.mxu0 %v7014
        %7133 = vmatpush.bf16.msra.mxu0 %v7010
        %7134 = vmatpush.bf16.msra.mxu0 %v7006
        %7135 = vmatpush.bf16.msra.mxu0 %v7002
        %7136 = vmatpush.bf16.msra.mxu0 %v6998
        %7137 = vmatpush.bf16.msra.mxu0 %v6994
        %7138 = vmatpush.bf16.msra.mxu0 %v6990
        %7139 = vmatmul.bf16.gmra.mxu0 %v6347
        %v7140 = vpop.f32.mrf.mxu0
        %v7141 = vadd.f32 %v7128, %v7140
        %v7142 = vpop.f32.mrf.mxu0
        %7143 = vdwg.mxu0
        %7144 = vmatpush.bf16.msra.mxu0 %v7050
        %7145 = vmatpush.bf16.msra.mxu0 %v7046
        %7146 = vmatpush.bf16.msra.mxu0 %v7042
        %7147 = vmatpush.bf16.msra.mxu0 %v7038
        %7148 = vmatpush.bf16.msra.mxu0 %v7034
        %7149 = vmatpush.bf16.msra.mxu0 %v7030
        %7150 = vmatpush.bf16.msra.mxu0 %v7026
        %7151 = vmatpush.bf16.msra.mxu0 %v7022
        %7152 = vmatmul.bf16.gmra.mxu0 %v6348
        %v7153 = vpop.f32.mrf.mxu0
        %v7154 = vadd.f32 %v7141, %v7153
        %v7155 = vpop.f32.mrf.mxu0
        %7156 = vdwg.mxu0
        %7157 = vmatpush.bf16.msra.mxu0 %v6955
        %7158 = vmatpush.bf16.msra.mxu0 %v6951
        %7159 = vmatpush.bf16.msra.mxu0 %v6947
        %7160 = vmatpush.bf16.msra.mxu0 %v6943
        %7161 = vmatpush.bf16.msra.mxu0 %v6939
        %7162 = vmatpush.bf16.msra.mxu0 %v6935
        %7163 = vmatpush.bf16.msra.mxu0 %v6931
        %7164 = vmatpush.bf16.msra.mxu0 %v6927
        %7165 = vmatmul.bf16.gmra.mxu0 %v6345
        %v7166 = vpop.f32.mrf.mxu0
        %v7167 = vadd.f32 0.0, %v7166
        %v7168 = vpop.f32.mrf.mxu0
        %7169 = vdwg.mxu0
        %7170 = vmatpush.bf16.msra.mxu0 %v6987
        %7171 = vmatpush.bf16.msra.mxu0 %v6983
        %7172 = vmatpush.bf16.msra.mxu0 %v6979
        %7173 = vmatpush.bf16.msra.mxu0 %v6975
        %7174 = vmatpush.bf16.msra.mxu0 %v6971
        %7175 = vmatpush.bf16.msra.mxu0 %v6967
        %7176 = vmatpush.bf16.msra.mxu0 %v6963
        %7177 = vmatpush.bf16.msra.mxu0 %v6959
        %7178 = vmatmul.bf16.gmra.mxu0 %v6346
        %v7179 = vpop.f32.mrf.mxu0
        %v7180 = vadd.f32 %v7167, %v7179
        %v7181 = vpop.f32.mrf.mxu0
        %7182 = vdwg.mxu0
        %7183 = vmatpush.bf16.msra.mxu0 %v7019
        %7184 = vmatpush.bf16.msra.mxu0 %v7015
        %7185 = vmatpush.bf16.msra.mxu0 %v7011
        %7186 = vmatpush.bf16.msra.mxu0 %v7007
        %7187 = vmatpush.bf16.msra.mxu0 %v7003
        %7188 = vmatpush.bf16.msra.mxu0 %v6999
        %7189 = vmatpush.bf16.msra.mxu0 %v6995
        %7190 = vmatpush.bf16.msra.mxu0 %v6991
        %7191 = vmatmul.bf16.gmra.mxu0 %v6347
        %v7192 = vpop.f32.mrf.mxu0
        %v7193 = vadd.f32 %v7180, %v7192
        %v7194 = vpop.f32.mrf.mxu0
        %7195 = vdwg.mxu0
        %7196 = vmatpush.bf16.msra.mxu0 %v7051
        %7197 = vmatpush.bf16.msra.mxu0 %v7047
        %7198 = vmatpush.bf16.msra.mxu0 %v7043
        %7199 = vmatpush.bf16.msra.mxu0 %v7039
        %7200 = vmatpush.bf16.msra.mxu0 %v7035
        %7201 = vmatpush.bf16.msra.mxu0 %v7031
        %7202 = vmatpush.bf16.msra.mxu0 %v7027
        %7203 = vmatpush.bf16.msra.mxu0 %v7023
        %7204 = vmatmul.bf16.gmra.mxu0 %v6348
        %v7205 = vpop.f32.mrf.mxu0
        %v7206 = vadd.f32 %v7193, %v7205
        %v7207 = vpop.f32.mrf.mxu0
        %7208 = vdwg.mxu0
        %7209 = vmatpush.bf16.msra.mxu0 %v6956
        %7210 = vmatpush.bf16.msra.mxu0 %v6952
        %7211 = vmatpush.bf16.msra.mxu0 %v6948
        %7212 = vmatpush.bf16.msra.mxu0 %v6944
        %7213 = vmatpush.bf16.msra.mxu0 %v6940
        %7214 = vmatpush.bf16.msra.mxu0 %v6936
        %7215 = vmatpush.bf16.msra.mxu0 %v6932
        %7216 = vmatpush.bf16.msra.mxu0 %v6928
        %7217 = vmatmul.bf16.gmra.mxu0 %v6345
        %v7218 = vpop.f32.mrf.mxu0
        %v7219 = vadd.f32 0.0, %v7218
        %v7220 = vpop.f32.mrf.mxu0
        %7221 = vdwg.mxu0
        %7222 = vmatpush.bf16.msra.mxu0 %v6988
        %7223 = vmatpush.bf16.msra.mxu0 %v6984
        %7224 = vmatpush.bf16.msra.mxu0 %v6980
        %7225 = vmatpush.bf16.msra.mxu0 %v6976
        %7226 = vmatpush.bf16.msra.mxu0 %v6972
        %7227 = vmatpush.bf16.msra.mxu0 %v6968
        %7228 = vmatpush.bf16.msra.mxu0 %v6964
        %7229 = vmatpush.bf16.msra.mxu0 %v6960
        %7230 = vmatmul.bf16.gmra.mxu0 %v6346
        %v7231 = vpop.f32.mrf.mxu0
        %v7232 = vadd.f32 %v7219, %v7231
        %v7233 = vpop.f32.mrf.mxu0
        %7234 = vdwg.mxu0
        %7235 = vmatpush.bf16.msra.mxu0 %v7020
        %7236 = vmatpush.bf16.msra.mxu0 %v7016
        %7237 = vmatpush.bf16.msra.mxu0 %v7012
        %7238 = vmatpush.bf16.msra.mxu0 %v7008
        %7239 = vmatpush.bf16.msra.mxu0 %v7004
        %7240 = vmatpush.bf16.msra.mxu0 %v7000
        %7241 = vmatpush.bf16.msra.mxu0 %v6996
        %7242 = vmatpush.bf16.msra.mxu0 %v6992
        %7243 = vmatmul.bf16.gmra.mxu0 %v6347
        %v7244 = vpop.f32.mrf.mxu0
        %v7245 = vadd.f32 %v7232, %v7244
        %v7246 = vpop.f32.mrf.mxu0
        %7247 = vdwg.mxu0
        %7248 = vmatpush.bf16.msra.mxu0 %v7052
        %7249 = vmatpush.bf16.msra.mxu0 %v7048
        %7250 = vmatpush.bf16.msra.mxu0 %v7044
        %7251 = vmatpush.bf16.msra.mxu0 %v7040
        %7252 = vmatpush.bf16.msra.mxu0 %v7036
        %7253 = vmatpush.bf16.msra.mxu0 %v7032
        %7254 = vmatpush.bf16.msra.mxu0 %v7028
        %7255 = vmatpush.bf16.msra.mxu0 %v7024
        %7256 = vmatmul.bf16.gmra.mxu0 %v6348
        %v7257 = vpop.f32.mrf.mxu0
        %v7258 = vadd.f32 %v7245, %v7257
        %v7259 = vpop.f32.mrf.mxu0
        %7260 = vdwg.mxu0
        %v7261 = vld [vmem:[%s555] sm:$0xf]
        %v7263 = vperm.slane %v7261, 0
        %v7264 = vperm.slane %v7261, 1
        %v7265 = vperm.slane %v7261, 2
        %v7266 = vperm.slane %v7261, 3
        %v7271 = vmul.f32 %v7102, %v7263
        %v7272 = vmul.f32 %v7154, %v7264
        %v7273 = vmul.f32 %v7206, %v7265
        %v7274 = vmul.f32 %v7258, %v7266
        %v7275 = vld [vmem:[%s564] sm:$0xf]
        %v7277 = vperm.slane %v7275, 0
        %v7278 = vperm.slane %v7275, 1
        %v7279 = vperm.slane %v7275, 2
        %v7280 = vperm.slane %v7275, 3
        %v7285 = vadd.f32 %v7271, %v7277
        %v7286 = vadd.f32 %v7272, %v7278
        %v7287 = vadd.f32 %v7273, %v7279
        %v7288 = vadd.f32 %v7274, %v7280
        %v7293 = vrot.slane %v7286, 6
        %v7294 = vrot.slane %v7287, 4
        %v7295 = vrot.slane %v7288, 2
        %vm7296 = vcmask 1041408
        %v7297 = vsel %vm7296, %v7285, %v7293
        %vm7298 = vcmask 1045508
        %v7299 = vsel %vm7298, %v7294, %v7295
        %vm7300 = vcmask 1043456
        %v7301 = vsel %vm7300, %v7297, %v7299
        %7303 = vst [vmem:[%s546] sm:$0xff] %v7301
        %s7304 = sand.u32 %s263, 1
        %s7305 = scalar_lea.sflag [#allocation5], %s7304
        %s7306 = sand.u32 %s263, 1
        %s7307 = smul.addr %s7306, 8
        %s7308 = scalar_lea.vmem [#allocation4], %s7307
        // Predicated region
        $region84: #{video_classifier_forward.1} parent=74 // pred_check
          %p7309 = pneg %p273
        $region85: #{video_classifier_forward.1} parent=74 // pred_check_branch
          %7311 = sbr.rel (%p7309) target = $region87
        $region86: #{video_classifier_forward.1} parent=74 // pred_region
          %s7312 = smul.u32 %s27, 2
          %s7313 = sadd.s32 %s7312, %s28
          %s7314 = smul.u32 4, %s7313
          %7316 = vsyncadd %s7305, 0
          %s7317 = smul.addr %s7314, 2
          %s7318 = scalar_lea.hbm %s9, %s7317
          %s7320 = sshll.u32 %s7308, 4
          %s7321 = int_to_ptr.vmem [resolvable:$true] %s7320
          %s7322 = sshll.u32 %s7318, 4
          %s7323 = int_to_ptr.hbm [resolvable:$true] %s7322
          %7325 = dma.vmem_to_hbm [thread:$0]  %s7321, 128, %s7323, %s7305
        $region87: #{video_classifier_forward.1} parent=74 // pred_fallthru
          _
      $region75: #{video_classifier_forward.1} parent=5 // pred_fallthru
        _
      %p7326 = scmp.le.s32.totalorder 2, %s18
      // Predicated region
      $region88: #{video_classifier_forward.1} parent=5 // pred_check
        %p7327 = pneg %p7326
      $region89: #{video_classifier_forward.1} parent=5 // pred_check_branch
        %7329 = sbr.rel (%p7327) target = $region91
      $region90: #{video_classifier_forward.1} parent=5 // pred_region
        %s7330 = ssub.s32 %s18, 2
        // Predicated region
        $region92: #{video_classifier_forward.1} parent=90 // pred_check
          %p7331 = pneg %p279
        $region93: #{video_classifier_forward.1} parent=90 // pred_check_branch
          %7333 = sbr.rel (%p7331) target = $region95
        $region94: #{video_classifier_forward.1} parent=90 // pred_region
          %s7334 = sand.u32 %s264, 1
          %s7335 = scalar_lea.sflag [#allocation5], %s7334
          %s7336 = sand.u32 %s264, 1
          %s7337 = smul.addr %s7336, 8
          %s7338 = scalar_lea.vmem [#allocation4], %s7337
          %7340 = dma.done %s7335, 128
        $region95: #{video_classifier_forward.1} parent=90 // pred_fallthru
          _
      $region91: #{video_classifier_forward.1} parent=5 // pred_fallthru
        _
    $region6: #{video_classifier_forward.1} parent=1 // loop_footer
      %s22 = sadd.s32 1, %s18
    $region7: #{video_classifier_forward.1} parent=1 // loop_footer_branch
      %17 = sbr.rel target = $region3
    $region8: #{video_classifier_forward.1} parent=1 // loop_exit
      _
    %7341 = vsyncpa [#allocation5], 1
    %s7342 = scalar_lea.sflag [#allocation5], 1
    %7343 = vsyncpa %s7342, 1

</llo_original>
